<compile_context>
chip_gen: v5e
topology: v5e:2x2
jax: 0.10.0
libtpu: 0.0.40
codegen_flags: <defaults>
</compile_context>

<pallas_src>
import functools

import jax
import jax.numpy as jnp
from jax.experimental import pallas as pl
from jax.experimental.pallas import tpu as pltpu


def _pick_tile(n, max_tile):
    """Largest divisor of n that is a multiple of 8 and <= max_tile (else n)."""
    if n <= max_tile:
        return n
    for t in range(max_tile, 7, -1):
        if n % t == 0 and t % 8 == 0:
            return t
    return n


# --------------------------- reduce: 1x1 conv + BN + ReLU --------------------
def _reduce_kernel(x_ref, w_ref, s_ref, b_ref, o_ref):
    y = jnp.dot(x_ref[...].astype(jnp.bfloat16), w_ref[...],
                preferred_element_type=jnp.float32)
    o_ref[...] = jnp.maximum(y * s_ref[...] + b_ref[...], 0.0)


def reduce_conv_bn_relu(x2d, w_bf16, scale, bias, tile_n):
    n, cin = x2d.shape
    cout = w_bf16.shape[1]
    return pl.pallas_call(
        _reduce_kernel,
        out_shape=jax.ShapeDtypeStruct((n, cout), jnp.float32),
        grid=(n // tile_n,),
        in_specs=[pl.BlockSpec((tile_n, cin), lambda i: (i, 0)),
                  pl.BlockSpec(w_bf16.shape, lambda i: (0, 0)),
                  pl.BlockSpec(scale.shape, lambda i: (0, 0)),
                  pl.BlockSpec(bias.shape, lambda i: (0, 0))],
        out_specs=pl.BlockSpec((tile_n, cout), lambda i: (i, 0)),
        compiler_params=pltpu.CompilerParams(
            dimension_semantics=("parallel",)),
    )(x2d, w_bf16, scale, bias)


# --------------------------- SpatialAttention maps ---------------------------
def _sa_att_from_maps(avg, mx, pad_ref, band_ref, H, W):
    """avg/mx: (H, W) maps (W on lanes). 7x7 conv via 14 band matmuls."""
    pad_ref[...] = jnp.zeros(pad_ref.shape, jnp.float32)
    pad_ref[0, 3:3 + H, :] = avg
    pad_ref[1, 3:3 + H, :] = mx
    logit = jnp.zeros((H, W), jnp.float32)
    for ch in range(2):
        for di in range(7):
            logit = logit + jnp.dot(pad_ref[ch, di:di + H, :],
                                    band_ref[ch * 7 + di],
                                    preferred_element_type=jnp.float32)
    return jax.nn.sigmoid(logit)


def _sa_map_mul_kernel(a_ref, b_ref, band_ref, o_ref, pad_ref, *, H, W):
    x = a_ref[0] * b_ref[0]                       # (C, H, W) channels-first
    avg = jnp.mean(x, axis=0)                     # (H, W)
    mx = jnp.max(x, axis=0)                       # (H, W)
    o_ref[0] = _sa_att_from_maps(avg, mx, pad_ref, band_ref, H, W)


def _sa_map_xt0_kernel(t_ref, f_ref, atf_ref, band_ref, o_ref, pad_ref,
                       *, c2, H, W):
    atf = atf_ref[0]                              # (H, W)
    # xt_0 = tf[:, :c2] + f[:, :c2] with tf = (t*f) * SA(t*f)
    x = t_ref[0, :c2] * f_ref[0, :c2] * atf[None, :, :] + f_ref[0, :c2]
    avg = jnp.mean(x, axis=0)
    mx = jnp.max(x, axis=0)
    o_ref[0] = _sa_att_from_maps(avg, mx, pad_ref, band_ref, H, W)


def sa_attention_map(a_cf, b_cf, bands):
    B, C, H, W = a_cf.shape
    kern = functools.partial(_sa_map_mul_kernel, H=H, W=W)
    return pl.pallas_call(
        kern,
        out_shape=jax.ShapeDtypeStruct((B, H, W), jnp.float32),
        grid=(B,),
        in_specs=[pl.BlockSpec((1, C, H, W), lambda b: (b, 0, 0, 0)),
                  pl.BlockSpec((1, C, H, W), lambda b: (b, 0, 0, 0)),
                  pl.BlockSpec(bands.shape, lambda b: (0, 0, 0))],
        out_specs=pl.BlockSpec((1, H, W), lambda b: (b, 0, 0)),
        scratch_shapes=[pltpu.VMEM((2, H + 6, W), jnp.float32)],
        compiler_params=pltpu.CompilerParams(
            dimension_semantics=("parallel",)),
    )(a_cf, b_cf, bands)


def sa_attention_map_xt0(t_cf, f_cf, att_tf, bands, c2):
    B, C, H, W = t_cf.shape
    kern = functools.partial(_sa_map_xt0_kernel, c2=c2, H=H, W=W)
    return pl.pallas_call(
        kern,
        out_shape=jax.ShapeDtypeStruct((B, H, W), jnp.float32),
        grid=(B,),
        in_specs=[pl.BlockSpec((1, C, H, W), lambda b: (b, 0, 0, 0)),
                  pl.BlockSpec((1, C, H, W), lambda b: (b, 0, 0, 0)),
                  pl.BlockSpec((1, H, W), lambda b: (b, 0, 0)),
                  pl.BlockSpec(bands.shape, lambda b: (0, 0, 0))],
        out_specs=pl.BlockSpec((1, H, W), lambda b: (b, 0, 0)),
        scratch_shapes=[pltpu.VMEM((2, H + 6, W), jnp.float32)],
        compiler_params=pltpu.CompilerParams(
            dimension_semantics=("parallel",)),
    )(t_cf, f_cf, att_tf, bands)


def _sa_bands(w_sa, W):
    """(2,7,7) SA conv weights -> (14, W, W) band matrices (zero-pad in W)."""
    js = jnp.arange(W)[:, None]          # source column
    jo = jnp.arange(W)[None, :]          # output column
    rel = js - jo + 3
    valid = (rel >= 0) & (rel <= 6)
    relc = jnp.clip(rel, 0, 6)
    bands = []
    for ch in range(2):                  # 0 = avg map, 1 = max map
        for di in range(7):
            row = w_sa[ch, di]
            bands.append(jnp.where(valid, row[relc], 0.0))
    return jnp.stack(bands, axis=0)


# ---------------- ChannelAttention (3 gates, global pools + MLP) -------------
def _ca_kernel(e_ref, t_ref, f_ref, aef_ref, atf_ref, w1_ref, w2_ref, att_ref,
               sum_acc, max_acc, *, c2, inv_hw):
    k = pl.program_id(1)

    @pl.when(k == 0)
    def _():
        sum_acc[...] = jnp.zeros(sum_acc.shape, jnp.float32)
        max_acc[...] = jnp.full(max_acc.shape, -jnp.inf, jnp.float32)

    aef = aef_ref[0]                                  # (T, 1)
    atf = atf_ref[0]
    f0 = f_ref[0, :, :c2]
    f1 = f_ref[0, :, c2:]
    xe0 = e_ref[0, :, :c2] * f0 * aef + f0            # ef_half0 + f_half0
    xe1 = e_ref[0, :, c2:] * f1 * aef + f1
    xt1 = t_ref[0, :, c2:] * f1 * atf + f1

    sum_acc[0:1, :] = sum_acc[0:1, :] + jnp.sum(xe0, axis=0, keepdims=True)
    sum_acc[1:2, :] = sum_acc[1:2, :] + jnp.sum(xe1, axis=0, keepdims=True)
    sum_acc[2:3, :] = sum_acc[2:3, :] + jnp.sum(xt1, axis=0, keepdims=True)
    max_acc[0:1, :] = jnp.maximum(max_acc[0:1, :],
                                  jnp.max(xe0, axis=0, keepdims=True))
    max_acc[1:2, :] = jnp.maximum(max_acc[1:2, :],
                                  jnp.max(xe1, axis=0, keepdims=True))
    max_acc[2:3, :] = jnp.maximum(max_acc[2:3, :],
                                  jnp.max(xt1, axis=0, keepdims=True))

    @pl.when(k == pl.num_programs(1) - 1)
    def _():
        def mlp(v):
            h = jnp.maximum(jnp.dot(v, w1_ref[...],
                                    preferred_element_type=jnp.float32), 0.0)
            return jnp.dot(h, w2_ref[...], preferred_element_type=jnp.float32)

        att_ref[0] = jax.nn.sigmoid(mlp(sum_acc[...] * inv_hw) +
                                    mlp(max_acc[...]))


def channel_attention(e3, t3, f3, aef, atf, w1, w2, tile_hw):
    B, HW, C = e3.shape
    c2 = C // 2
    kern = functools.partial(_ca_kernel, c2=c2, inv_hw=1.0 / HW)
    data_spec = pl.BlockSpec((1, tile_hw, C), lambda b, k: (b, k, 0))
    map_spec = pl.BlockSpec((1, tile_hw, 1), lambda b, k: (b, k, 0))
    return pl.pallas_call(
        kern,
        out_shape=jax.ShapeDtypeStruct((B, 3, c2), jnp.float32),
        grid=(B, HW // tile_hw),
        in_specs=[data_spec, data_spec, data_spec, map_spec, map_spec,
                  pl.BlockSpec(w1.shape, lambda b, k: (0, 0)),
                  pl.BlockSpec(w2.shape, lambda b, k: (0, 0))],
        out_specs=pl.BlockSpec((1, 3, c2), lambda b, k: (b, 0, 0)),
        scratch_shapes=[pltpu.VMEM((3, c2), jnp.float32),
                        pltpu.VMEM((3, c2), jnp.float32)],
        compiler_params=pltpu.CompilerParams(
            dimension_semantics=("parallel", "arbitrary")),
    )(e3, t3, f3, aef, atf, w1, w2)


# --------- fused gating + chunk/add/mul/cat + conv1_2 + BN/ReLU + residual ---
def _fuse_kernel(e_ref, t_ref, f_ref, aef_ref, atf_ref, axt0_ref, attca_ref,
                 w_ref, s_ref, b_ref, o_ref, seg_buf, *, c2):
    aef = aef_ref[0]                                  # (T, 1)
    atf = atf_ref[0]
    f_full = f_ref[0]                                 # (T, C)
    f0 = f_ref[0, :, :c2]
    f1 = f_ref[0, :, c2:]
    att_e0 = attca_ref[0, 0:1, :]                     # (1, c2)
    att_e1 = attca_ref[0, 1:2, :]
    att_t1 = attca_ref[0, 2:3, :]

    xe0 = (e_ref[0, :, :c2] * f0 * aef + f0) * att_e0
    xe1 = (e_ref[0, :, c2:] * f1 * aef + f1) * att_e1
    xt0 = (t_ref[0, :, :c2] * f0 * atf + f0) * axt0_ref[0]
    xt1 = (t_ref[0, :, c2:] * f1 * atf + f1) * att_t1

    a0 = xe0 + xe1
    a1 = xe0 * xe1
    b0 = xt0 + xt1
    b1 = xt0 * xt1
    # cat(f_0_0, f_1_1) channel order = [a0+b0 | a1+b1 | a0*b0 | a1*b1]
    seg_buf[:, 0 * c2:1 * c2] = a0 + b0
    seg_buf[:, 1 * c2:2 * c2] = a1 + b1
    seg_buf[:, 2 * c2:3 * c2] = a0 * b0
    seg_buf[:, 3 * c2:4 * c2] = a1 * b1

    y = jnp.dot(seg_buf[...].astype(jnp.bfloat16), w_ref[...],
                preferred_element_type=jnp.float32)
    xx = jnp.maximum(y * s_ref[...] + b_ref[...], 0.0)   # conv1_2 + BN + ReLU
    o_ref[0] = f_full + xx                               # residual f + xx


def fuse_conv1x1(e3, t3, f3, aef, atf, axt0, att_ca, w12, scale, bias, tile_hw):
    B, HW, C = e3.shape
    c2 = C // 2
    kern = functools.partial(_fuse_kernel, c2=c2)
    data_spec = pl.BlockSpec((1, tile_hw, C), lambda b, k: (b, k, 0))
    map_spec = pl.BlockSpec((1, tile_hw, 1), lambda b, k: (b, k, 0))
    return pl.pallas_call(
        kern,
        out_shape=jax.ShapeDtypeStruct((B, HW, C), jnp.float32),
        grid=(B, HW // tile_hw),
        in_specs=[data_spec, data_spec, data_spec, map_spec, map_spec, map_spec,
                  pl.BlockSpec((1, 3, c2), lambda b, k: (b, 0, 0)),
                  pl.BlockSpec(w12.shape, lambda b, k: (0, 0)),
                  pl.BlockSpec(scale.shape, lambda b, k: (0, 0)),
                  pl.BlockSpec(bias.shape, lambda b, k: (0, 0))],
        out_specs=data_spec,
        scratch_shapes=[pltpu.VMEM((tile_hw, 4 * c2), jnp.float32)],
        compiler_params=pltpu.CompilerParams(
            dimension_semantics=("parallel", "parallel")),
    )(e3, t3, f3, aef, atf, axt0, att_ca, w12, scale, bias)


# ------------------------------- 3x3 conv + BN -------------------------------
def _conv3x3_kernel(x_ref, w_ref, s_ref, b_ref, o_ref, xp_ref, tap_ref,
                    *, H, W, C):
    xp_ref[...] = jnp.zeros(xp_ref.shape, jnp.float32)
    xp_ref[1:1 + H, 1:1 + W, :] = x_ref[0]            # zero-padded image
    k = 0
    for di in range(3):                               # in-VMEM im2col
        for dj in range(3):
            tap_ref[:, k * C:(k + 1) * C] = (
                xp_ref[di:di + H, dj:dj + W, :].reshape(H * W, C))
            k += 1
    y = jnp.dot(tap_ref[...].astype(jnp.bfloat16), w_ref[...],
                preferred_element_type=jnp.float32)   # single K=9C matmul
    o_ref[0] = y * s_ref[...] + b_ref[...]            # BN, no ReLU


def conv3x3_bn(s4, w33, scale, bias):
    B, H, W, C = s4.shape
    kern = functools.partial(_conv3x3_kernel, H=H, W=W, C=C)
    return pl.pallas_call(
        kern,
        out_shape=jax.ShapeDtypeStruct((B, H * W, C), jnp.float32),
        grid=(B,),
        in_specs=[pl.BlockSpec((1, H, W, C), lambda b: (b, 0, 0, 0)),
                  pl.BlockSpec(w33.shape, lambda b: (0, 0)),
                  pl.BlockSpec(scale.shape, lambda b: (0, 0)),
                  pl.BlockSpec(bias.shape, lambda b: (0, 0))],
        out_specs=pl.BlockSpec((1, H * W, C), lambda b: (b, 0, 0)),
        scratch_shapes=[pltpu.VMEM((H + 2, W + 2, C), jnp.float32),
                        pltpu.VMEM((H * W, 9 * C), jnp.float32)],
        compiler_params=pltpu.CompilerParams(
            dimension_semantics=("parallel",)),
    )(s4, w33, scale, bias)


# ------------------- bilinear resize (PyTorch align_corners=False) -----------
def _bilinear_axis(in_size, out_size):
    scale = in_size / out_size
    o = jnp.arange(out_size, dtype=jnp.float32)
    src = (o + 0.5) * scale - 0.5
    src = jnp.maximum(src, 0.0)
    i0 = jnp.minimum(jnp.floor(src).astype(jnp.int32), in_size - 1)
    i1 = jnp.minimum(i0 + 1, in_size - 1)
    frac = src - i0.astype(jnp.float32)
    return i0, i1, frac


def bilinear_resize_nchw(x, out_h, out_w):
    B, C, H, W = x.shape
    if (H, W) == (out_h, out_w):
        return x
    i0h, i1h, fh = _bilinear_axis(H, out_h)
    i0w, i1w, fw = _bilinear_axis(W, out_w)
    x0 = jnp.take(x, i0h, axis=2)
    x1 = jnp.take(x, i1h, axis=2)
    fh_ = fh[None, None, :, None]
    xr = x0 * (1.0 - fh_) + x1 * fh_
    y0 = jnp.take(xr, i0w, axis=3)
    y1 = jnp.take(xr, i1w, axis=3)
    fw_ = fw[None, None, None, :]
    return y0 * (1.0 - fw_) + y1 * fw_


# --------------------------------- parameters --------------------------------
def init_params(key, channel=64):
    ks = jax.random.split(key, 11)
    eps = 1e-5

    def nrm(k, shape, s=0.1):
        return s * jax.random.normal(k, shape, jnp.float32)

    def bn_fold(k, c, conv_bias=None):
        kg, kb, km, kv = jax.random.split(k, 4)
        gamma = 1.0 + nrm(kg, (c,))
        beta = nrm(kb, (c,))
        mean = nrm(km, (c,))
        var = 1.0 + 0.1 * jax.random.uniform(kv, (c,), jnp.float32)
        scale = gamma / jnp.sqrt(var + eps)
        bias = beta - mean * scale
        if conv_bias is not None:
            bias = bias + conv_bias * scale
        return scale.reshape(1, c), bias.reshape(1, c)

    c = channel
    c2 = c // 2
    hid = max(c2 // 16, 1)                 # ChannelAttention hidden (ratio=16)

    # reduce: Conv1x1(32 -> 64) with bias, BN, ReLU
    w_red = nrm(ks[0], (32, c))
    s_red, b_red = bn_fold(ks[2], c, conv_bias=nrm(ks[1], (c,)))
    # conv1_2: Conv1x1(2c -> c) with bias, BN, ReLU
    w_12 = nrm(ks[3], (2 * c, c))
    s_12, b_12 = bn_fold(ks[5], c, conv_bias=nrm(ks[4], (c,)))
    # conv3_3: BasicConv2d(c, c, 3, padding=1): conv (no bias), BN, no ReLU
    w_33 = nrm(ks[6], (3, 3, c, c)).reshape(9 * c, c)   # rows = (di,dj,cin)
    s_33, b_33 = bn_fold(ks[7], c)
    # SpatialAttention: Conv2d(2 -> 1, 7x7, no bias): (chan, ki, kj)
    w_sa = nrm(ks[8], (2, 7, 7))
    # ChannelAttention fc1/fc2, no bias; hidden zero-padded to 8 (exact).
    w_ca1 = jnp.zeros((c2, 8), jnp.float32).at[:, :hid].set(nrm(ks[9], (c2, hid)))
    w_ca2 = jnp.zeros((8, c2), jnp.float32).at[:hid, :].set(nrm(ks[10], (hid, c2)))

    return dict(w_red=w_red, s_red=s_red, b_red=b_red,
                w_12=w_12, s_12=s_12, b_12=b_12,
                w_33=w_33, s_33=s_33, b_33=b_33,
                w_sa=w_sa, w_ca1=w_ca1, w_ca2=w_ca2)


# --------------------------------- ETFM forward -------------------------------
def etfm_forward(e, t, f, params):
    """e: (B,64,H,W), t: (B,32,H/2,W/2), f: (B,64,Hf,Wf) — NCHW like PyTorch."""
    B, C, H, W = e.shape
    c2 = C // 2
    HW = H * W
    n = B * HW

    # if e.size() != f.size(): bilinear-resize f to e's spatial size
    if f.shape[2] != H or f.shape[3] != W:
        f = bilinear_resize_nchw(f, H, W)

    # t = upsample(t, scale_factor=2); t = reduce(t)
    t_up = bilinear_resize_nchw(t, 2 * t.shape[2], 2 * t.shape[3])   # (B,32,H,W)
    t_rows = jnp.transpose(t_up, (0, 2, 3, 1)).reshape(n, t_up.shape[1])
    tile_rows = _pick_tile(n, 1024)
    t_red_rows = reduce_conv_bn_relu(
        t_rows, params["w_red"].astype(jnp.bfloat16),
        params["s_red"], params["b_red"], tile_rows)                 # (n, C)

    # layout views: channels-first for SA kernels, channels-last for CA/fuse
    t_red_cl = t_red_rows.reshape(B, HW, C)
    t_red_cf = jnp.transpose(t_red_rows.reshape(B, H, W, C), (0, 3, 1, 2))
    e_cl = jnp.transpose(e, (0, 2, 3, 1)).reshape(B, HW, C)
    f_cl = jnp.transpose(f, (0, 2, 3, 1)).reshape(B, HW, C)

    bands = _sa_bands(params["w_sa"], W)                             # (14,W,W)

    # SpatialAttention sigmoid maps (per-pixel scalars); gating fused downstream
    att_ef = sa_attention_map(e, f, bands)                           # SA(e*f)
    att_tf = sa_attention_map(t_red_cf, f, bands)                    # SA(t*f)
    att_xt0 = sa_attention_map_xt0(t_red_cf, f, att_tf, bands, c2)   # SA(xt_0)

    aef = att_ef.reshape(B, HW, 1)
    atf = att_tf.reshape(B, HW, 1)
    axt0 = att_xt0.reshape(B, HW, 1)

    tile_hw = _pick_tile(HW, 512)
    # ChannelAttention vectors for xe_0 / xe_1 / xt_1 gates
    att_ca = channel_attention(e_cl, t_red_cl, f_cl, aef, atf,
                               params["w_ca1"], params["w_ca2"], tile_hw)

    # gating + chunk/add/mul/cat + conv1_2 (K=128 matmul) + BN/ReLU + residual
    s3 = fuse_conv1x1(e_cl, t_red_cl, f_cl, aef, atf, axt0, att_ca,
                      params["w_12"].astype(jnp.bfloat16),
                      params["s_12"], params["b_12"], tile_hw)       # (B,HW,C)

    # conv3_3(f + xx): in-kernel im2col + single K=9C matmul + BN
    out_rows = conv3x3_bn(s3.reshape(B, H, W, C),
                          params["w_33"].astype(jnp.bfloat16),
                          params["s_33"], params["b_33"])            # (B,HW,C)

    return jnp.transpose(out_rows.reshape(B, H, W, C), (0, 3, 1, 2))  # NCHW


if __name__ == "__main__":
    B, C, H, W = 2, 64, 8, 8
    key = jax.random.PRNGKey(0)
    k1, k2, k3, kp = jax.random.split(key, 4)
    e = jax.random.normal(k1, (B, C, H, W), jnp.float32)
    t = jax.random.normal(k2, (B, 32, H // 2, W // 2), jnp.float32)
    f = jax.random.normal(k3, (B, C, H // 2, W // 2), jnp.float32)  # resized inside
    params = init_params(kp, channel=C)

    out = jax.jit(etfm_forward)(e, t, f, params)
    out = jax.block_until_ready(out)
    assert out.shape == (B, C, H, W), out.shape
    assert bool(jnp.all(jnp.isfinite(out)))
    print("KERNEL_OK")
</pallas_src>

<mosaic_0001>
module attributes {stable_mosaic.version = 11 : i64} {
  func.func @_reduce_kernel(%arg0: i32, %arg1: memref<128x32xf32, #tpu.memory_space<vmem>>, %arg2: memref<32x64xbf16, #tpu.memory_space<vmem>>, %arg3: memref<1x64xf32, #tpu.memory_space<vmem>>, %arg4: memref<1x64xf32, #tpu.memory_space<vmem>>, %arg5: memref<128x64xf32, #tpu.memory_space<vmem>>) attributes {dimension_semantics = [#tpu.dimension_semantics<parallel>], iteration_bounds = array<i64: 1>, scalar_prefetch = 0 : i64, scratch_operands = 0 : i64, tpu.core_type = #tpu.core_type<tc>, window_params = [{transform_indices = @transform_0, window_bounds = array<i64: 128, 32>}, {pipeline_mode = #tpu.pipeline_mode<synchronous>, transform_indices = @transform_1, window_bounds = array<i64: 32, 64>}, {pipeline_mode = #tpu.pipeline_mode<synchronous>, transform_indices = @transform_2, window_bounds = array<i64: 1, 64>}, {pipeline_mode = #tpu.pipeline_mode<synchronous>, transform_indices = @transform_3, window_bounds = array<i64: 1, 64>}, {transform_indices = @transform_4, window_bounds = array<i64: 128, 64>}]} {
    %c0 = arith.constant 0 : index
    %c0_0 = arith.constant 0 : index
    %0 = vector.load %arg1[%c0, %c0_0] : memref<128x32xf32, #tpu.memory_space<vmem>>, vector<128x32xf32>
    %1 = arith.truncf %0 : vector<128x32xf32> to vector<128x32xbf16>
    %c0_1 = arith.constant 0 : index
    %c0_2 = arith.constant 0 : index
    %2 = vector.load %arg2[%c0_1, %c0_2] : memref<32x64xbf16, #tpu.memory_space<vmem>>, vector<32x64xbf16>
    %cst = arith.constant dense<0.000000e+00> : vector<128x64xf32>
    %3 = tpu.matmul %1, %2, %cst {dimension_numbers = #tpu.dot_dimension_numbers<[1], [0], [0], [1], [0, 0, 1, 1], [], []>} : vector<128x32xbf16>, vector<32x64xbf16>, vector<128x64xf32> -> vector<128x64xf32>
    %c0_3 = arith.constant 0 : index
    %c0_4 = arith.constant 0 : index
    %4 = vector.load %arg3[%c0_3, %c0_4] : memref<1x64xf32, #tpu.memory_space<vmem>>, vector<1x64xf32>
    %5 = vector.broadcast %4 : vector<1x64xf32> to vector<128x64xf32>
    %6 = arith.mulf %3, %5 : vector<128x64xf32>
    %c0_5 = arith.constant 0 : index
    %c0_6 = arith.constant 0 : index
    %7 = vector.load %arg4[%c0_5, %c0_6] : memref<1x64xf32, #tpu.memory_space<vmem>>, vector<1x64xf32>
    %8 = vector.broadcast %7 : vector<1x64xf32> to vector<128x64xf32>
    %9 = arith.addf %6, %8 : vector<128x64xf32>
    %cst_7 = arith.constant 0.000000e+00 : f32
    %10 = vector.broadcast %cst_7 : f32 to vector<128x64xf32>
    %11 = arith.maximumf %9, %10 : vector<128x64xf32>
    %c0_8 = arith.constant 0 : index
    %c0_9 = arith.constant 0 : index
    %12 = vector.load %arg5[%c0_8, %c0_9] : memref<128x64xf32, #tpu.memory_space<vmem>>, vector<128x64xf32>
    tpu.vector_store %arg5[%c0_8, %c0_9], %11 {strides = array<i32>} : memref<128x64xf32, #tpu.memory_space<vmem>>, vector<128x64xf32>,
    return
  }
  func.func @transform_0(%arg0: i32) -> (i32, i32) {
    %c0_i32 = arith.constant 0 : i32
    %c0_i32_0 = arith.constant 0 : i32
    return %arg0, %c0_i32 : i32, i32
  }
  func.func @transform_1(%arg0: i32) -> (i32, i32) {
    %c0_i32 = arith.constant 0 : i32
    %c0_i32_0 = arith.constant 0 : i32
    %c0_i32_1 = arith.constant 0 : i32
    return %c0_i32, %c0_i32_0 : i32, i32
  }
  func.func @transform_2(%arg0: i32) -> (i32, i32) {
    %c0_i32 = arith.constant 0 : i32
    %c0_i32_0 = arith.constant 0 : i32
    %c0_i32_1 = arith.constant 0 : i32
    return %c0_i32, %c0_i32_0 : i32, i32
  }
  func.func @transform_3(%arg0: i32) -> (i32, i32) {
    %c0_i32 = arith.constant 0 : i32
    %c0_i32_0 = arith.constant 0 : i32
    %c0_i32_1 = arith.constant 0 : i32
    return %c0_i32, %c0_i32_0 : i32, i32
  }
  func.func @transform_4(%arg0: i32) -> (i32, i32) {
    %c0_i32 = arith.constant 0 : i32
    %c0_i32_0 = arith.constant 0 : i32
    return %arg0, %c0_i32 : i32, i32
  }
}

module attributes {stable_mosaic.version = 11 : i64} {
  func.func @_sa_map_mul_kernel(%arg0: i32, %arg1: memref<1x64x8x8xf32, #tpu.memory_space<vmem>>, %arg2: memref<1x64x8x8xf32, #tpu.memory_space<vmem>>, %arg3: memref<14x8x8xf32, #tpu.memory_space<vmem>>, %arg4: memref<1x8x8xf32, #tpu.memory_space<vmem>>, %arg5: memref<2x14x8xf32, #tpu.memory_space<vmem>>) attributes {dimension_semantics = [#tpu.dimension_semantics<parallel>], iteration_bounds = array<i64: 2>, scalar_prefetch = 0 : i64, scratch_operands = 1 : i64, tpu.core_type = #tpu.core_type<tc>, window_params = [{transform_indices = @transform_0, window_bounds = array<i64: 1, 64, 8, 8>}, {transform_indices = @transform_1, window_bounds = array<i64: 1, 64, 8, 8>}, {pipeline_mode = #tpu.pipeline_mode<synchronous>, transform_indices = @transform_2, window_bounds = array<i64: 14, 8, 8>}, {transform_indices = @transform_3, window_bounds = array<i64: 1, 8, 8>}]} {
    %c0 = arith.constant 0 : index
    %c0_0 = arith.constant 0 : index
    %c0_1 = arith.constant 0 : index
    %c0_2 = arith.constant 0 : index
    %0 = vector.load %arg1[%c0, %c0_0, %c0_1, %c0_2] : memref<1x64x8x8xf32, #tpu.memory_space<vmem>>, vector<1x64x8x8xf32>
    %1 = vector.shape_cast %0 : vector<1x64x8x8xf32> to vector<64x8x8xf32>
    %c0_3 = arith.constant 0 : index
    %c0_4 = arith.constant 0 : index
    %c0_5 = arith.constant 0 : index
    %c0_6 = arith.constant 0 : index
    %2 = vector.load %arg2[%c0_3, %c0_4, %c0_5, %c0_6] : memref<1x64x8x8xf32, #tpu.memory_space<vmem>>, vector<1x64x8x8xf32>
    %3 = vector.shape_cast %2 : vector<1x64x8x8xf32> to vector<64x8x8xf32>
    %4 = arith.mulf %1, %3 : vector<64x8x8xf32>
    %cst = arith.constant dense<0.000000e+00> : vector<8x8xf32>
    %5 = vector.multi_reduction <add>, %4, %cst [0] : vector<64x8x8xf32> to vector<8x8xf32>
    %cst_7 = arith.constant 6.400000e+01 : f32
    %6 = vector.broadcast %cst_7 : f32 to vector<8x8xf32>
    %7 = arith.divf %5, %6 : vector<8x8xf32>
    %cst_8 = arith.constant dense<0xFF800000> : vector<8x8xf32>
    %8 = vector.multi_reduction <maximumf>, %4, %cst_8 [0] : vector<64x8x8xf32> to vector<8x8xf32>
    %cst_9 = arith.constant 0.000000e+00 : f32
    %9 = vector.broadcast %cst_9 : f32 to vector<2x14x8xf32>
    %c0_10 = arith.constant 0 : index
    %c0_11 = arith.constant 0 : index
    %c0_12 = arith.constant 0 : index
    %10 = vector.load %arg5[%c0_10, %c0_11, %c0_12] : memref<2x14x8xf32, #tpu.memory_space<vmem>>, vector<2x14x8xf32>
    tpu.vector_store %arg5[%c0_10, %c0_11, %c0_12], %9 {strides = array<i32>} : memref<2x14x8xf32, #tpu.memory_space<vmem>>, vector<2x14x8xf32>,
    %c0_13 = arith.constant 0 : index
    %c3 = arith.constant 3 : index
    %c0_14 = arith.constant 0 : index
    %11 = vector.load %arg5[%c0_13, %c3, %c0_14] : memref<2x14x8xf32, #tpu.memory_space<vmem>>, vector<1x8x8xf32>
    %12 = vector.shape_cast %11 : vector<1x8x8xf32> to vector<8x8xf32>
    %13 = vector.shape_cast %7 : vector<8x8xf32> to vector<1x8x8xf32>
    tpu.vector_store %arg5[%c0_13, %c3, %c0_14], %13 {strides = array<i32>} : memref<2x14x8xf32, #tpu.memory_space<vmem>>, vector<1x8x8xf32>,
    %c1 = arith.constant 1 : index
    %c3_15 = arith.constant 3 : index
    %c0_16 = arith.constant 0 : index
    %14 = vector.load %arg5[%c1, %c3_15, %c0_16] : memref<2x14x8xf32, #tpu.memory_space<vmem>>, vector<1x8x8xf32>
    %15 = vector.shape_cast %14 : vector<1x8x8xf32> to vector<8x8xf32>
    %16 = vector.shape_cast %8 : vector<8x8xf32> to vector<1x8x8xf32>
    tpu.vector_store %arg5[%c1, %c3_15, %c0_16], %16 {strides = array<i32>} : memref<2x14x8xf32, #tpu.memory_space<vmem>>, vector<1x8x8xf32>,
    %cst_17 = arith.constant 0.000000e+00 : f32
    %17 = vector.broadcast %cst_17 : f32 to vector<8x8xf32>
    %c0_18 = arith.constant 0 : index
    %c0_19 = arith.constant 0 : index
    %c0_20 = arith.constant 0 : index
    %18 = vector.load %arg5[%c0_18, %c0_19, %c0_20] : memref<2x14x8xf32, #tpu.memory_space<vmem>>, vector<1x8x8xf32>
    %19 = vector.shape_cast %18 : vector<1x8x8xf32> to vector<8x8xf32>
    %c0_21 = arith.constant 0 : index
    %c0_22 = arith.constant 0 : index
    %c0_23 = arith.constant 0 : index
    %20 = vector.load %arg3[%c0_21, %c0_22, %c0_23] : memref<14x8x8xf32, #tpu.memory_space<vmem>>, vector<1x8x8xf32>
    %21 = vector.shape_cast %20 : vector<1x8x8xf32> to vector<8x8xf32>
    %cst_24 = arith.constant dense<0.000000e+00> : vector<8x8xf32>
    %22 = tpu.matmul %19, %21, %cst_24 {dimension_numbers = #tpu.dot_dimension_numbers<[1], [0], [0], [1], [0, 0, 1, 1], [], []>} : vector<8x8xf32>, vector<8x8xf32>, vector<8x8xf32> -> vector<8x8xf32>
    %23 = arith.addf %17, %22 : vector<8x8xf32>
    %c0_25 = arith.constant 0 : index
    %c1_26 = arith.constant 1 : index
    %c0_27 = arith.constant 0 : index
    %24 = vector.load %arg5[%c0_25, %c1_26, %c0_27] : memref<2x14x8xf32, #tpu.memory_space<vmem>>, vector<1x8x8xf32>
    %25 = vector.shape_cast %24 : vector<1x8x8xf32> to vector<8x8xf32>
    %c1_28 = arith.constant 1 : index
    %c0_29 = arith.constant 0 : index
    %c0_30 = arith.constant 0 : index
    %26 = vector.load %arg3[%c1_28, %c0_29, %c0_30] : memref<14x8x8xf32, #tpu.memory_space<vmem>>, vector<1x8x8xf32>
    %27 = vector.shape_cast %26 : vector<1x8x8xf32> to vector<8x8xf32>
    %cst_31 = arith.constant dense<0.000000e+00> : vector<8x8xf32>
    %28 = tpu.matmul %25, %27, %cst_31 {dimension_numbers = #tpu.dot_dimension_numbers<[1], [0], [0], [1], [0, 0, 1, 1], [], []>} : vector<8x8xf32>, vector<8x8xf32>, vector<8x8xf32> -> vector<8x8xf32>
    %29 = arith.addf %23, %28 : vector<8x8xf32>
    %c0_32 = arith.constant 0 : index
    %c2 = arith.constant 2 : index
    %c0_33 = arith.constant 0 : index
    %30 = vector.load %arg5[%c0_32, %c2, %c0_33] : memref<2x14x8xf32, #tpu.memory_space<vmem>>, vector<1x8x8xf32>
    %31 = vector.shape_cast %30 : vector<1x8x8xf32> to vector<8x8xf32>
    %c2_34 = arith.constant 2 : index
    %c0_35 = arith.constant 0 : index
    %c0_36 = arith.constant 0 : index
    %32 = vector.load %arg3[%c2_34, %c0_35, %c0_36] : memref<14x8x8xf32, #tpu.memory_space<vmem>>, vector<1x8x8xf32>
    %33 = vector.shape_cast %32 : vector<1x8x8xf32> to vector<8x8xf32>
    %cst_37 = arith.constant dense<0.000000e+00> : vector<8x8xf32>
    %34 = tpu.matmul %31, %33, %cst_37 {dimension_numbers = #tpu.dot_dimension_numbers<[1], [0], [0], [1], [0, 0, 1, 1], [], []>} : vector<8x8xf32>, vector<8x8xf32>, vector<8x8xf32> -> vector<8x8xf32>
    %35 = arith.addf %29, %34 : vector<8x8xf32>
    %c0_38 = arith.constant 0 : index
    %c3_39 = arith.constant 3 : index
    %c0_40 = arith.constant 0 : index
    %36 = vector.load %arg5[%c0_38, %c3_39, %c0_40] : memref<2x14x8xf32, #tpu.memory_space<vmem>>, vector<1x8x8xf32>
    %37 = vector.shape_cast %36 : vector<1x8x8xf32> to vector<8x8xf32>
    %c3_41 = arith.constant 3 : index
    %c0_42 = arith.constant 0 : index
    %c0_43 = arith.constant 0 : index
    %38 = vector.load %arg3[%c3_41, %c0_42, %c0_43] : memref<14x8x8xf32, #tpu.memory_space<vmem>>, vector<1x8x8xf32>
    %39 = vector.shape_cast %38 : vector<1x8x8xf32> to vector<8x8xf32>
    %cst_44 = arith.constant dense<0.000000e+00> : vector<8x8xf32>
    %40 = tpu.matmul %37, %39, %cst_44 {dimension_numbers = #tpu.dot_dimension_numbers<[1], [0], [0], [1], [0, 0, 1, 1], [], []>} : vector<8x8xf32>, vector<8x8xf32>, vector<8x8xf32> -> vector<8x8xf32>
    %41 = arith.addf %35, %40 : vector<8x8xf32>
    %c0_45 = arith.constant 0 : index
    %c4 = arith.constant 4 : index
    %c0_46 = arith.constant 0 : index
    %42 = vector.load %arg5[%c0_45, %c4, %c0_46] : memref<2x14x8xf32, #tpu.memory_space<vmem>>, vector<1x8x8xf32>
    %43 = vector.shape_cast %42 : vector<1x8x8xf32> to vector<8x8xf32>
    %c4_47 = arith.constant 4 : index
    %c0_48 = arith.constant 0 : index
    %c0_49 = arith.constant 0 : index
    %44 = vector.load %arg3[%c4_47, %c0_48, %c0_49] : memref<14x8x8xf32, #tpu.memory_space<vmem>>, vector<1x8x8xf32>
    %45 = vector.shape_cast %44 : vector<1x8x8xf32> to vector<8x8xf32>
    %cst_50 = arith.constant dense<0.000000e+00> : vector<8x8xf32>
    %46 = tpu.matmul %43, %45, %cst_50 {dimension_numbers = #tpu.dot_dimension_numbers<[1], [0], [0], [1], [0, 0, 1, 1], [], []>} : vector<8x8xf32>, vector<8x8xf32>, vector<8x8xf32> -> vector<8x8xf32>
    %47 = arith.addf %41, %46 : vector<8x8xf32>
    %c0_51 = arith.constant 0 : index
    %c5 = arith.constant 5 : index
    %c0_52 = arith.constant 0 : index
    %48 = vector.load %arg5[%c0_51, %c5, %c0_52] : memref<2x14x8xf32, #tpu.memory_space<vmem>>, vector<1x8x8xf32>
    %49 = vector.shape_cast %48 : vector<1x8x8xf32> to vector<8x8xf32>
    %c5_53 = arith.constant 5 : index
    %c0_54 = arith.constant 0 : index
    %c0_55 = arith.constant 0 : index
    %50 = vector.load %arg3[%c5_53, %c0_54, %c0_55] : memref<14x8x8xf32, #tpu.memory_space<vmem>>, vector<1x8x8xf32>
    %51 = vector.shape_cast %50 : vector<1x8x8xf32> to vector<8x8xf32>
    %cst_56 = arith.constant dense<0.000000e+00> : vector<8x8xf32>
    %52 = tpu.matmul %49, %51, %cst_56 {dimension_numbers = #tpu.dot_dimension_numbers<[1], [0], [0], [1], [0, 0, 1, 1], [], []>} : vector<8x8xf32>, vector<8x8xf32>, vector<8x8xf32> -> vector<8x8xf32>
    %53 = arith.addf %47, %52 : vector<8x8xf32>
    %c0_57 = arith.constant 0 : index
    %c6 = arith.constant 6 : index
    %c0_58 = arith.constant 0 : index
    %54 = vector.load %arg5[%c0_57, %c6, %c0_58] : memref<2x14x8xf32, #tpu.memory_space<vmem>>, vector<1x8x8xf32>
    %55 = vector.shape_cast %54 : vector<1x8x8xf32> to vector<8x8xf32>
    %c6_59 = arith.constant 6 : index
    %c0_60 = arith.constant 0 : index
    %c0_61 = arith.constant 0 : index
    %56 = vector.load %arg3[%c6_59, %c0_60, %c0_61] : memref<14x8x8xf32, #tpu.memory_space<vmem>>, vector<1x8x8xf32>
    %57 = vector.shape_cast %56 : vector<1x8x8xf32> to vector<8x8xf32>
    %cst_62 = arith.constant dense<0.000000e+00> : vector<8x8xf32>
    %58 = tpu.matmul %55, %57, %cst_62 {dimension_numbers = #tpu.dot_dimension_numbers<[1], [0], [0], [1], [0, 0, 1, 1], [], []>} : vector<8x8xf32>, vector<8x8xf32>, vector<8x8xf32> -> vector<8x8xf32>
    %59 = arith.addf %53, %58 : vector<8x8xf32>
    %c1_63 = arith.constant 1 : index
    %c0_64 = arith.constant 0 : index
    %c0_65 = arith.constant 0 : index
    %60 = vector.load %arg5[%c1_63, %c0_64, %c0_65] : memref<2x14x8xf32, #tpu.memory_space<vmem>>, vector<1x8x8xf32>
    %61 = vector.shape_cast %60 : vector<1x8x8xf32> to vector<8x8xf32>
    %c7 = arith.constant 7 : index
    %c0_66 = arith.constant 0 : index
    %c0_67 = arith.constant 0 : index
    %62 = vector.load %arg3[%c7, %c0_66, %c0_67] : memref<14x8x8xf32, #tpu.memory_space<vmem>>, vector<1x8x8xf32>
    %63 = vector.shape_cast %62 : vector<1x8x8xf32> to vector<8x8xf32>
    %cst_68 = arith.constant dense<0.000000e+00> : vector<8x8xf32>
    %64 = tpu.matmul %61, %63, %cst_68 {dimension_numbers = #tpu.dot_dimension_numbers<[1], [0], [0], [1], [0, 0, 1, 1], [], []>} : vector<8x8xf32>, vector<8x8xf32>, vector<8x8xf32> -> vector<8x8xf32>
    %65 = arith.addf %59, %64 : vector<8x8xf32>
    %c1_69 = arith.constant 1 : index
    %c1_70 = arith.constant 1 : index
    %c0_71 = arith.constant 0 : index
    %66 = vector.load %arg5[%c1_69, %c1_70, %c0_71] : memref<2x14x8xf32, #tpu.memory_space<vmem>>, vector<1x8x8xf32>
    %67 = vector.shape_cast %66 : vector<1x8x8xf32> to vector<8x8xf32>
    %c8 = arith.constant 8 : index
    %c0_72 = arith.constant 0 : index
    %c0_73 = arith.constant 0 : index
    %68 = vector.load %arg3[%c8, %c0_72, %c0_73] : memref<14x8x8xf32, #tpu.memory_space<vmem>>, vector<1x8x8xf32>
    %69 = vector.shape_cast %68 : vector<1x8x8xf32> to vector<8x8xf32>
    %cst_74 = arith.constant dense<0.000000e+00> : vector<8x8xf32>
    %70 = tpu.matmul %67, %69, %cst_74 {dimension_numbers = #tpu.dot_dimension_numbers<[1], [0], [0], [1], [0, 0, 1, 1], [], []>} : vector<8x8xf32>, vector<8x8xf32>, vector<8x8xf32> -> vector<8x8xf32>
    %71 = arith.addf %65, %70 : vector<8x8xf32>
    %c1_75 = arith.constant 1 : index
    %c2_76 = arith.constant 2 : index
    %c0_77 = arith.constant 0 : index
    %72 = vector.load %arg5[%c1_75, %c2_76, %c0_77] : memref<2x14x8xf32, #tpu.memory_space<vmem>>, vector<1x8x8xf32>
    %73 = vector.shape_cast %72 : vector<1x8x8xf32> to vector<8x8xf32>
    %c9 = arith.constant 9 : index
    %c0_78 = arith.constant 0 : index
    %c0_79 = arith.constant 0 : index
    %74 = vector.load %arg3[%c9, %c0_78, %c0_79] : memref<14x8x8xf32, #tpu.memory_space<vmem>>, vector<1x8x8xf32>
    %75 = vector.shape_cast %74 : vector<1x8x8xf32> to vector<8x8xf32>
    %cst_80 = arith.constant dense<0.000000e+00> : vector<8x8xf32>
    %76 = tpu.matmul %73, %75, %cst_80 {dimension_numbers = #tpu.dot_dimension_numbers<[1], [0], [0], [1], [0, 0, 1, 1], [], []>} : vector<8x8xf32>, vector<8x8xf32>, vector<8x8xf32> -> vector<8x8xf32>
    %77 = arith.addf %71, %76 : vector<8x8xf32>
    %c1_81 = arith.constant 1 : index
    %c3_82 = arith.constant 3 : index
    %c0_83 = arith.constant 0 : index
    %78 = vector.load %arg5[%c1_81, %c3_82, %c0_83] : memref<2x14x8xf32, #tpu.memory_space<vmem>>, vector<1x8x8xf32>
    %79 = vector.shape_cast %78 : vector<1x8x8xf32> to vector<8x8xf32>
    %c10 = arith.constant 10 : index
    %c0_84 = arith.constant 0 : index
    %c0_85 = arith.constant 0 : index
    %80 = vector.load %arg3[%c10, %c0_84, %c0_85] : memref<14x8x8xf32, #tpu.memory_space<vmem>>, vector<1x8x8xf32>
    %81 = vector.shape_cast %80 : vector<1x8x8xf32> to vector<8x8xf32>
    %cst_86 = arith.constant dense<0.000000e+00> : vector<8x8xf32>
    %82 = tpu.matmul %79, %81, %cst_86 {dimension_numbers = #tpu.dot_dimension_numbers<[1], [0], [0], [1], [0, 0, 1, 1], [], []>} : vector<8x8xf32>, vector<8x8xf32>, vector<8x8xf32> -> vector<8x8xf32>
    %83 = arith.addf %77, %82 : vector<8x8xf32>
    %c1_87 = arith.constant 1 : index
    %c4_88 = arith.constant 4 : index
    %c0_89 = arith.constant 0 : index
    %84 = vector.load %arg5[%c1_87, %c4_88, %c0_89] : memref<2x14x8xf32, #tpu.memory_space<vmem>>, vector<1x8x8xf32>
    %85 = vector.shape_cast %84 : vector<1x8x8xf32> to vector<8x8xf32>
    %c11 = arith.constant 11 : index
    %c0_90 = arith.constant 0 : index
    %c0_91 = arith.constant 0 : index
    %86 = vector.load %arg3[%c11, %c0_90, %c0_91] : memref<14x8x8xf32, #tpu.memory_space<vmem>>, vector<1x8x8xf32>
    %87 = vector.shape_cast %86 : vector<1x8x8xf32> to vector<8x8xf32>
    %cst_92 = arith.constant dense<0.000000e+00> : vector<8x8xf32>
    %88 = tpu.matmul %85, %87, %cst_92 {dimension_numbers = #tpu.dot_dimension_numbers<[1], [0], [0], [1], [0, 0, 1, 1], [], []>} : vector<8x8xf32>, vector<8x8xf32>, vector<8x8xf32> -> vector<8x8xf32>
    %89 = arith.addf %83, %88 : vector<8x8xf32>
    %c1_93 = arith.constant 1 : index
    %c5_94 = arith.constant 5 : index
    %c0_95 = arith.constant 0 : index
    %90 = vector.load %arg5[%c1_93, %c5_94, %c0_95] : memref<2x14x8xf32, #tpu.memory_space<vmem>>, vector<1x8x8xf32>
    %91 = vector.shape_cast %90 : vector<1x8x8xf32> to vector<8x8xf32>
    %c12 = arith.constant 12 : index
    %c0_96 = arith.constant 0 : index
    %c0_97 = arith.constant 0 : index
    %92 = vector.load %arg3[%c12, %c0_96, %c0_97] : memref<14x8x8xf32, #tpu.memory_space<vmem>>, vector<1x8x8xf32>
    %93 = vector.shape_cast %92 : vector<1x8x8xf32> to vector<8x8xf32>
    %cst_98 = arith.constant dense<0.000000e+00> : vector<8x8xf32>
    %94 = tpu.matmul %91, %93, %cst_98 {dimension_numbers = #tpu.dot_dimension_numbers<[1], [0], [0], [1], [0, 0, 1, 1], [], []>} : vector<8x8xf32>, vector<8x8xf32>, vector<8x8xf32> -> vector<8x8xf32>
    %95 = arith.addf %89, %94 : vector<8x8xf32>
    %c1_99 = arith.constant 1 : index
    %c6_100 = arith.constant 6 : index
    %c0_101 = arith.constant 0 : index
    %96 = vector.load %arg5[%c1_99, %c6_100, %c0_101] : memref<2x14x8xf32, #tpu.memory_space<vmem>>, vector<1x8x8xf32>
    %97 = vector.shape_cast %96 : vector<1x8x8xf32> to vector<8x8xf32>
    %c13 = arith.constant 13 : index
    %c0_102 = arith.constant 0 : index
    %c0_103 = arith.constant 0 : index
    %98 = vector.load %arg3[%c13, %c0_102, %c0_103] : memref<14x8x8xf32, #tpu.memory_space<vmem>>, vector<1x8x8xf32>
    %99 = vector.shape_cast %98 : vector<1x8x8xf32> to vector<8x8xf32>
    %cst_104 = arith.constant dense<0.000000e+00> : vector<8x8xf32>
    %100 = tpu.matmul %97, %99, %cst_104 {dimension_numbers = #tpu.dot_dimension_numbers<[1], [0], [0], [1], [0, 0, 1, 1], [], []>} : vector<8x8xf32>, vector<8x8xf32>, vector<8x8xf32> -> vector<8x8xf32>
    %101 = arith.addf %95, %100 : vector<8x8xf32>
    %102 = arith.negf %101 : vector<8x8xf32>
    %103 = math.exp %102 : vector<8x8xf32>
    %cst_105 = arith.constant 1.000000e+00 : f32
    %104 = vector.broadcast %cst_105 : f32 to vector<8x8xf32>
    %105 = arith.addf %104, %103 : vector<8x8xf32>
    %106 = arith.divf %104, %105 : vector<8x8xf32>
    %c0_106 = arith.constant 0 : index
    %c0_107 = arith.constant 0 : index
    %c0_108 = arith.constant 0 : index
    %107 = vector.load %arg4[%c0_106, %c0_107, %c0_108] : memref<1x8x8xf32, #tpu.memory_space<vmem>>, vector<1x8x8xf32>
    %108 = vector.shape_cast %107 : vector<1x8x8xf32> to vector<8x8xf32>
    %109 = vector.shape_cast %106 : vector<8x8xf32> to vector<1x8x8xf32>
    tpu.vector_store %arg4[%c0_106, %c0_107, %c0_108], %109 {strides = array<i32>} : memref<1x8x8xf32, #tpu.memory_space<vmem>>, vector<1x8x8xf32>,
    return
  }
  func.func @transform_0(%arg0: i32) -> (i32, i32, i32, i32) {
    %c0_i32 = arith.constant 0 : i32
    %c0_i32_0 = arith.constant 0 : i32
    %c0_i32_1 = arith.constant 0 : i32
    %c0_i32_2 = arith.constant 0 : i32
    return %arg0, %c0_i32, %c0_i32_0, %c0_i32_1 : i32, i32, i32, i32
  }
  func.func @transform_1(%arg0: i32) -> (i32, i32, i32, i32) {
    %c0_i32 = arith.constant 0 : i32
    %c0_i32_0 = arith.constant 0 : i32
    %c0_i32_1 = arith.constant 0 : i32
    %c0_i32_2 = arith.constant 0 : i32
    return %arg0, %c0_i32, %c0_i32_0, %c0_i32_1 : i32, i32, i32, i32
  }
  func.func @transform_2(%arg0: i32) -> (i32, i32, i32) {
    %c0_i32 = arith.constant 0 : i32
    %c0_i32_0 = arith.constant 0 : i32
    %c0_i32_1 = arith.constant 0 : i32
    %c0_i32_2 = arith.constant 0 : i32
    return %c0_i32, %c0_i32_0, %c0_i32_1 : i32, i32, i32
  }
  func.func @transform_3(%arg0: i32) -> (i32, i32, i32) {
    %c0_i32 = arith.constant 0 : i32
    %c0_i32_0 = arith.constant 0 : i32
    %c0_i32_1 = arith.constant 0 : i32
    return %arg0, %c0_i32, %c0_i32_0 : i32, i32, i32
  }
}

module attributes {stable_mosaic.version = 11 : i64} {
  func.func @_sa_map_xt0_kernel(%arg0: i32, %arg1: memref<1x64x8x8xf32, #tpu.memory_space<vmem>>, %arg2: memref<1x64x8x8xf32, #tpu.memory_space<vmem>>, %arg3: memref<1x8x8xf32, #tpu.memory_space<vmem>>, %arg4: memref<14x8x8xf32, #tpu.memory_space<vmem>>, %arg5: memref<1x8x8xf32, #tpu.memory_space<vmem>>, %arg6: memref<2x14x8xf32, #tpu.memory_space<vmem>>) attributes {dimension_semantics = [#tpu.dimension_semantics<parallel>], iteration_bounds = array<i64: 2>, scalar_prefetch = 0 : i64, scratch_operands = 1 : i64, tpu.core_type = #tpu.core_type<tc>, window_params = [{transform_indices = @transform_0, window_bounds = array<i64: 1, 64, 8, 8>}, {transform_indices = @transform_1, window_bounds = array<i64: 1, 64, 8, 8>}, {transform_indices = @transform_2, window_bounds = array<i64: 1, 8, 8>}, {pipeline_mode = #tpu.pipeline_mode<synchronous>, transform_indices = @transform_3, window_bounds = array<i64: 14, 8, 8>}, {transform_indices = @transform_4, window_bounds = array<i64: 1, 8, 8>}]} {
    %c0 = arith.constant 0 : index
    %c0_0 = arith.constant 0 : index
    %c0_1 = arith.constant 0 : index
    %0 = vector.load %arg3[%c0, %c0_0, %c0_1] : memref<1x8x8xf32, #tpu.memory_space<vmem>>, vector<1x8x8xf32>
    %1 = vector.shape_cast %0 : vector<1x8x8xf32> to vector<8x8xf32>
    %c0_2 = arith.constant 0 : index
    %c0_3 = arith.constant 0 : index
    %c0_4 = arith.constant 0 : index
    %c0_5 = arith.constant 0 : index
    %2 = vector.load %arg1[%c0_2, %c0_3, %c0_4, %c0_5] : memref<1x64x8x8xf32, #tpu.memory_space<vmem>>, vector<1x32x8x8xf32>
    %3 = vector.shape_cast %2 : vector<1x32x8x8xf32> to vector<32x8x8xf32>
    %c0_6 = arith.constant 0 : index
    %c0_7 = arith.constant 0 : index
    %c0_8 = arith.constant 0 : index
    %c0_9 = arith.constant 0 : index
    %4 = vector.load %arg2[%c0_6, %c0_7, %c0_8, %c0_9] : memref<1x64x8x8xf32, #tpu.memory_space<vmem>>, vector<1x32x8x8xf32>
    %5 = vector.shape_cast %4 : vector<1x32x8x8xf32> to vector<32x8x8xf32>
    %6 = arith.mulf %3, %5 : vector<32x8x8xf32>
    %7 = vector.shape_cast %1 : vector<8x8xf32> to vector<1x8x8xf32>
    %8 = vector.broadcast %7 : vector<1x8x8xf32> to vector<32x8x8xf32>
    %9 = arith.mulf %6, %8 : vector<32x8x8xf32>
    %c0_10 = arith.constant 0 : index
    %c0_11 = arith.constant 0 : index
    %c0_12 = arith.constant 0 : index
    %c0_13 = arith.constant 0 : index
    %10 = vector.load %arg2[%c0_10, %c0_11, %c0_12, %c0_13] : memref<1x64x8x8xf32, #tpu.memory_space<vmem>>, vector<1x32x8x8xf32>
    %11 = vector.shape_cast %10 : vector<1x32x8x8xf32> to vector<32x8x8xf32>
    %12 = arith.addf %9, %11 : vector<32x8x8xf32>
    %cst = arith.constant dense<0.000000e+00> : vector<8x8xf32>
    %13 = vector.multi_reduction <add>, %12, %cst [0] : vector<32x8x8xf32> to vector<8x8xf32>
    %cst_14 = arith.constant 3.200000e+01 : f32
    %14 = vector.broadcast %cst_14 : f32 to vector<8x8xf32>
    %15 = arith.divf %13, %14 : vector<8x8xf32>
    %cst_15 = arith.constant dense<0xFF800000> : vector<8x8xf32>
    %16 = vector.multi_reduction <maximumf>, %12, %cst_15 [0] : vector<32x8x8xf32> to vector<8x8xf32>
    %cst_16 = arith.constant 0.000000e+00 : f32
    %17 = vector.broadcast %cst_16 : f32 to vector<2x14x8xf32>
    %c0_17 = arith.constant 0 : index
    %c0_18 = arith.constant 0 : index
    %c0_19 = arith.constant 0 : index
    %18 = vector.load %arg6[%c0_17, %c0_18, %c0_19] : memref<2x14x8xf32, #tpu.memory_space<vmem>>, vector<2x14x8xf32>
    tpu.vector_store %arg6[%c0_17, %c0_18, %c0_19], %17 {strides = array<i32>} : memref<2x14x8xf32, #tpu.memory_space<vmem>>, vector<2x14x8xf32>,
    %c0_20 = arith.constant 0 : index
    %c3 = arith.constant 3 : index
    %c0_21 = arith.constant 0 : index
    %19 = vector.load %arg6[%c0_20, %c3, %c0_21] : memref<2x14x8xf32, #tpu.memory_space<vmem>>, vector<1x8x8xf32>
    %20 = vector.shape_cast %19 : vector<1x8x8xf32> to vector<8x8xf32>
    %21 = vector.shape_cast %15 : vector<8x8xf32> to vector<1x8x8xf32>
    tpu.vector_store %arg6[%c0_20, %c3, %c0_21], %21 {strides = array<i32>} : memref<2x14x8xf32, #tpu.memory_space<vmem>>, vector<1x8x8xf32>,
    %c1 = arith.constant 1 : index
    %c3_22 = arith.constant 3 : index
    %c0_23 = arith.constant 0 : index
    %22 = vector.load %arg6[%c1, %c3_22, %c0_23] : memref<2x14x8xf32, #tpu.memory_space<vmem>>, vector<1x8x8xf32>
    %23 = vector.shape_cast %22 : vector<1x8x8xf32> to vector<8x8xf32>
    %24 = vector.shape_cast %16 : vector<8x8xf32> to vector<1x8x8xf32>
    tpu.vector_store %arg6[%c1, %c3_22, %c0_23], %24 {strides = array<i32>} : memref<2x14x8xf32, #tpu.memory_space<vmem>>, vector<1x8x8xf32>,
    %cst_24 = arith.constant 0.000000e+00 : f32
    %25 = vector.broadcast %cst_24 : f32 to vector<8x8xf32>
    %c0_25 = arith.constant 0 : index
    %c0_26 = arith.constant 0 : index
    %c0_27 = arith.constant 0 : index
    %26 = vector.load %arg6[%c0_25, %c0_26, %c0_27] : memref<2x14x8xf32, #tpu.memory_space<vmem>>, vector<1x8x8xf32>
    %27 = vector.shape_cast %26 : vector<1x8x8xf32> to vector<8x8xf32>
    %c0_28 = arith.constant 0 : index
    %c0_29 = arith.constant 0 : index
    %c0_30 = arith.constant 0 : index
    %28 = vector.load %arg4[%c0_28, %c0_29, %c0_30] : memref<14x8x8xf32, #tpu.memory_space<vmem>>, vector<1x8x8xf32>
    %29 = vector.shape_cast %28 : vector<1x8x8xf32> to vector<8x8xf32>
    %cst_31 = arith.constant dense<0.000000e+00> : vector<8x8xf32>
    %30 = tpu.matmul %27, %29, %cst_31 {dimension_numbers = #tpu.dot_dimension_numbers<[1], [0], [0], [1], [0, 0, 1, 1], [], []>} : vector<8x8xf32>, vector<8x8xf32>, vector<8x8xf32> -> vector<8x8xf32>
    %31 = arith.addf %25, %30 : vector<8x8xf32>
    %c0_32 = arith.constant 0 : index
    %c1_33 = arith.constant 1 : index
    %c0_34 = arith.constant 0 : index
    %32 = vector.load %arg6[%c0_32, %c1_33, %c0_34] : memref<2x14x8xf32, #tpu.memory_space<vmem>>, vector<1x8x8xf32>
    %33 = vector.shape_cast %32 : vector<1x8x8xf32> to vector<8x8xf32>
    %c1_35 = arith.constant 1 : index
    %c0_36 = arith.constant 0 : index
    %c0_37 = arith.constant 0 : index
    %34 = vector.load %arg4[%c1_35, %c0_36, %c0_37] : memref<14x8x8xf32, #tpu.memory_space<vmem>>, vector<1x8x8xf32>
    %35 = vector.shape_cast %34 : vector<1x8x8xf32> to vector<8x8xf32>
    %cst_38 = arith.constant dense<0.000000e+00> : vector<8x8xf32>
    %36 = tpu.matmul %33, %35, %cst_38 {dimension_numbers = #tpu.dot_dimension_numbers<[1], [0], [0], [1], [0, 0, 1, 1], [], []>} : vector<8x8xf32>, vector<8x8xf32>, vector<8x8xf32> -> vector<8x8xf32>
    %37 = arith.addf %31, %36 : vector<8x8xf32>
    %c0_39 = arith.constant 0 : index
    %c2 = arith.constant 2 : index
    %c0_40 = arith.constant 0 : index
    %38 = vector.load %arg6[%c0_39, %c2, %c0_40] : memref<2x14x8xf32, #tpu.memory_space<vmem>>, vector<1x8x8xf32>
    %39 = vector.shape_cast %38 : vector<1x8x8xf32> to vector<8x8xf32>
    %c2_41 = arith.constant 2 : index
    %c0_42 = arith.constant 0 : index
    %c0_43 = arith.constant 0 : index
    %40 = vector.load %arg4[%c2_41, %c0_42, %c0_43] : memref<14x8x8xf32, #tpu.memory_space<vmem>>, vector<1x8x8xf32>
    %41 = vector.shape_cast %40 : vector<1x8x8xf32> to vector<8x8xf32>
    %cst_44 = arith.constant dense<0.000000e+00> : vector<8x8xf32>
    %42 = tpu.matmul %39, %41, %cst_44 {dimension_numbers = #tpu.dot_dimension_numbers<[1], [0], [0], [1], [0, 0, 1, 1], [], []>} : vector<8x8xf32>, vector<8x8xf32>, vector<8x8xf32> -> vector<8x8xf32>
    %43 = arith.addf %37, %42 : vector<8x8xf32>
    %c0_45 = arith.constant 0 : index
    %c3_46 = arith.constant 3 : index
    %c0_47 = arith.constant 0 : index
    %44 = vector.load %arg6[%c0_45, %c3_46, %c0_47] : memref<2x14x8xf32, #tpu.memory_space<vmem>>, vector<1x8x8xf32>
    %45 = vector.shape_cast %44 : vector<1x8x8xf32> to vector<8x8xf32>
    %c3_48 = arith.constant 3 : index
    %c0_49 = arith.constant 0 : index
    %c0_50 = arith.constant 0 : index
    %46 = vector.load %arg4[%c3_48, %c0_49, %c0_50] : memref<14x8x8xf32, #tpu.memory_space<vmem>>, vector<1x8x8xf32>
    %47 = vector.shape_cast %46 : vector<1x8x8xf32> to vector<8x8xf32>
    %cst_51 = arith.constant dense<0.000000e+00> : vector<8x8xf32>
    %48 = tpu.matmul %45, %47, %cst_51 {dimension_numbers = #tpu.dot_dimension_numbers<[1], [0], [0], [1], [0, 0, 1, 1], [], []>} : vector<8x8xf32>, vector<8x8xf32>, vector<8x8xf32> -> vector<8x8xf32>
    %49 = arith.addf %43, %48 : vector<8x8xf32>
    %c0_52 = arith.constant 0 : index
    %c4 = arith.constant 4 : index
    %c0_53 = arith.constant 0 : index
    %50 = vector.load %arg6[%c0_52, %c4, %c0_53] : memref<2x14x8xf32, #tpu.memory_space<vmem>>, vector<1x8x8xf32>
    %51 = vector.shape_cast %50 : vector<1x8x8xf32> to vector<8x8xf32>
    %c4_54 = arith.constant 4 : index
    %c0_55 = arith.constant 0 : index
    %c0_56 = arith.constant 0 : index
    %52 = vector.load %arg4[%c4_54, %c0_55, %c0_56] : memref<14x8x8xf32, #tpu.memory_space<vmem>>, vector<1x8x8xf32>
    %53 = vector.shape_cast %52 : vector<1x8x8xf32> to vector<8x8xf32>
    %cst_57 = arith.constant dense<0.000000e+00> : vector<8x8xf32>
    %54 = tpu.matmul %51, %53, %cst_57 {dimension_numbers = #tpu.dot_dimension_numbers<[1], [0], [0], [1], [0, 0, 1, 1], [], []>} : vector<8x8xf32>, vector<8x8xf32>, vector<8x8xf32> -> vector<8x8xf32>
    %55 = arith.addf %49, %54 : vector<8x8xf32>
    %c0_58 = arith.constant 0 : index
    %c5 = arith.constant 5 : index
    %c0_59 = arith.constant 0 : index
    %56 = vector.load %arg6[%c0_58, %c5, %c0_59] : memref<2x14x8xf32, #tpu.memory_space<vmem>>, vector<1x8x8xf32>
    %57 = vector.shape_cast %56 : vector<1x8x8xf32> to vector<8x8xf32>
    %c5_60 = arith.constant 5 : index
    %c0_61 = arith.constant 0 : index
    %c0_62 = arith.constant 0 : index
    %58 = vector.load %arg4[%c5_60, %c0_61, %c0_62] : memref<14x8x8xf32, #tpu.memory_space<vmem>>, vector<1x8x8xf32>
    %59 = vector.shape_cast %58 : vector<1x8x8xf32> to vector<8x8xf32>
    %cst_63 = arith.constant dense<0.000000e+00> : vector<8x8xf32>
    %60 = tpu.matmul %57, %59, %cst_63 {dimension_numbers = #tpu.dot_dimension_numbers<[1], [0], [0], [1], [0, 0, 1, 1], [], []>} : vector<8x8xf32>, vector<8x8xf32>, vector<8x8xf32> -> vector<8x8xf32>
    %61 = arith.addf %55, %60 : vector<8x8xf32>
    %c0_64 = arith.constant 0 : index
    %c6 = arith.constant 6 : index
    %c0_65 = arith.constant 0 : index
    %62 = vector.load %arg6[%c0_64, %c6, %c0_65] : memref<2x14x8xf32, #tpu.memory_space<vmem>>, vector<1x8x8xf32>
    %63 = vector.shape_cast %62 : vector<1x8x8xf32> to vector<8x8xf32>
    %c6_66 = arith.constant 6 : index
    %c0_67 = arith.constant 0 : index
    %c0_68 = arith.constant 0 : index
    %64 = vector.load %arg4[%c6_66, %c0_67, %c0_68] : memref<14x8x8xf32, #tpu.memory_space<vmem>>, vector<1x8x8xf32>
    %65 = vector.shape_cast %64 : vector<1x8x8xf32> to vector<8x8xf32>
    %cst_69 = arith.constant dense<0.000000e+00> : vector<8x8xf32>
    %66 = tpu.matmul %63, %65, %cst_69 {dimension_numbers = #tpu.dot_dimension_numbers<[1], [0], [0], [1], [0, 0, 1, 1], [], []>} : vector<8x8xf32>, vector<8x8xf32>, vector<8x8xf32> -> vector<8x8xf32>
    %67 = arith.addf %61, %66 : vector<8x8xf32>
    %c1_70 = arith.constant 1 : index
    %c0_71 = arith.constant 0 : index
    %c0_72 = arith.constant 0 : index
    %68 = vector.load %arg6[%c1_70, %c0_71, %c0_72] : memref<2x14x8xf32, #tpu.memory_space<vmem>>, vector<1x8x8xf32>
    %69 = vector.shape_cast %68 : vector<1x8x8xf32> to vector<8x8xf32>
    %c7 = arith.constant 7 : index
    %c0_73 = arith.constant 0 : index
    %c0_74 = arith.constant 0 : index
    %70 = vector.load %arg4[%c7, %c0_73, %c0_74] : memref<14x8x8xf32, #tpu.memory_space<vmem>>, vector<1x8x8xf32>
    %71 = vector.shape_cast %70 : vector<1x8x8xf32> to vector<8x8xf32>
    %cst_75 = arith.constant dense<0.000000e+00> : vector<8x8xf32>
    %72 = tpu.matmul %69, %71, %cst_75 {dimension_numbers = #tpu.dot_dimension_numbers<[1], [0], [0], [1], [0, 0, 1, 1], [], []>} : vector<8x8xf32>, vector<8x8xf32>, vector<8x8xf32> -> vector<8x8xf32>
    %73 = arith.addf %67, %72 : vector<8x8xf32>
    %c1_76 = arith.constant 1 : index
    %c1_77 = arith.constant 1 : index
    %c0_78 = arith.constant 0 : index
    %74 = vector.load %arg6[%c1_76, %c1_77, %c0_78] : memref<2x14x8xf32, #tpu.memory_space<vmem>>, vector<1x8x8xf32>
    %75 = vector.shape_cast %74 : vector<1x8x8xf32> to vector<8x8xf32>
    %c8 = arith.constant 8 : index
    %c0_79 = arith.constant 0 : index
    %c0_80 = arith.constant 0 : index
    %76 = vector.load %arg4[%c8, %c0_79, %c0_80] : memref<14x8x8xf32, #tpu.memory_space<vmem>>, vector<1x8x8xf32>
    %77 = vector.shape_cast %76 : vector<1x8x8xf32> to vector<8x8xf32>
    %cst_81 = arith.constant dense<0.000000e+00> : vector<8x8xf32>
    %78 = tpu.matmul %75, %77, %cst_81 {dimension_numbers = #tpu.dot_dimension_numbers<[1], [0], [0], [1], [0, 0, 1, 1], [], []>} : vector<8x8xf32>, vector<8x8xf32>, vector<8x8xf32> -> vector<8x8xf32>
    %79 = arith.addf %73, %78 : vector<8x8xf32>
    %c1_82 = arith.constant 1 : index
    %c2_83 = arith.constant 2 : index
    %c0_84 = arith.constant 0 : index
    %80 = vector.load %arg6[%c1_82, %c2_83, %c0_84] : memref<2x14x8xf32, #tpu.memory_space<vmem>>, vector<1x8x8xf32>
    %81 = vector.shape_cast %80 : vector<1x8x8xf32> to vector<8x8xf32>
    %c9 = arith.constant 9 : index
    %c0_85 = arith.constant 0 : index
    %c0_86 = arith.constant 0 : index
    %82 = vector.load %arg4[%c9, %c0_85, %c0_86] : memref<14x8x8xf32, #tpu.memory_space<vmem>>, vector<1x8x8xf32>
    %83 = vector.shape_cast %82 : vector<1x8x8xf32> to vector<8x8xf32>
    %cst_87 = arith.constant dense<0.000000e+00> : vector<8x8xf32>
    %84 = tpu.matmul %81, %83, %cst_87 {dimension_numbers = #tpu.dot_dimension_numbers<[1], [0], [0], [1], [0, 0, 1, 1], [], []>} : vector<8x8xf32>, vector<8x8xf32>, vector<8x8xf32> -> vector<8x8xf32>
    %85 = arith.addf %79, %84 : vector<8x8xf32>
    %c1_88 = arith.constant 1 : index
    %c3_89 = arith.constant 3 : index
    %c0_90 = arith.constant 0 : index
    %86 = vector.load %arg6[%c1_88, %c3_89, %c0_90] : memref<2x14x8xf32, #tpu.memory_space<vmem>>, vector<1x8x8xf32>
    %87 = vector.shape_cast %86 : vector<1x8x8xf32> to vector<8x8xf32>
    %c10 = arith.constant 10 : index
    %c0_91 = arith.constant 0 : index
    %c0_92 = arith.constant 0 : index
    %88 = vector.load %arg4[%c10, %c0_91, %c0_92] : memref<14x8x8xf32, #tpu.memory_space<vmem>>, vector<1x8x8xf32>
    %89 = vector.shape_cast %88 : vector<1x8x8xf32> to vector<8x8xf32>
    %cst_93 = arith.constant dense<0.000000e+00> : vector<8x8xf32>
    %90 = tpu.matmul %87, %89, %cst_93 {dimension_numbers = #tpu.dot_dimension_numbers<[1], [0], [0], [1], [0, 0, 1, 1], [], []>} : vector<8x8xf32>, vector<8x8xf32>, vector<8x8xf32> -> vector<8x8xf32>
    %91 = arith.addf %85, %90 : vector<8x8xf32>
    %c1_94 = arith.constant 1 : index
    %c4_95 = arith.constant 4 : index
    %c0_96 = arith.constant 0 : index
    %92 = vector.load %arg6[%c1_94, %c4_95, %c0_96] : memref<2x14x8xf32, #tpu.memory_space<vmem>>, vector<1x8x8xf32>
    %93 = vector.shape_cast %92 : vector<1x8x8xf32> to vector<8x8xf32>
    %c11 = arith.constant 11 : index
    %c0_97 = arith.constant 0 : index
    %c0_98 = arith.constant 0 : index
    %94 = vector.load %arg4[%c11, %c0_97, %c0_98] : memref<14x8x8xf32, #tpu.memory_space<vmem>>, vector<1x8x8xf32>
    %95 = vector.shape_cast %94 : vector<1x8x8xf32> to vector<8x8xf32>
    %cst_99 = arith.constant dense<0.000000e+00> : vector<8x8xf32>
    %96 = tpu.matmul %93, %95, %cst_99 {dimension_numbers = #tpu.dot_dimension_numbers<[1], [0], [0], [1], [0, 0, 1, 1], [], []>} : vector<8x8xf32>, vector<8x8xf32>, vector<8x8xf32> -> vector<8x8xf32>
    %97 = arith.addf %91, %96 : vector<8x8xf32>
    %c1_100 = arith.constant 1 : index
    %c5_101 = arith.constant 5 : index
    %c0_102 = arith.constant 0 : index
    %98 = vector.load %arg6[%c1_100, %c5_101, %c0_102] : memref<2x14x8xf32, #tpu.memory_space<vmem>>, vector<1x8x8xf32>
    %99 = vector.shape_cast %98 : vector<1x8x8xf32> to vector<8x8xf32>
    %c12 = arith.constant 12 : index
    %c0_103 = arith.constant 0 : index
    %c0_104 = arith.constant 0 : index
    %100 = vector.load %arg4[%c12, %c0_103, %c0_104] : memref<14x8x8xf32, #tpu.memory_space<vmem>>, vector<1x8x8xf32>
    %101 = vector.shape_cast %100 : vector<1x8x8xf32> to vector<8x8xf32>
    %cst_105 = arith.constant dense<0.000000e+00> : vector<8x8xf32>
    %102 = tpu.matmul %99, %101, %cst_105 {dimension_numbers = #tpu.dot_dimension_numbers<[1], [0], [0], [1], [0, 0, 1, 1], [], []>} : vector<8x8xf32>, vector<8x8xf32>, vector<8x8xf32> -> vector<8x8xf32>
    %103 = arith.addf %97, %102 : vector<8x8xf32>
    %c1_106 = arith.constant 1 : index
    %c6_107 = arith.constant 6 : index
    %c0_108 = arith.constant 0 : index
    %104 = vector.load %arg6[%c1_106, %c6_107, %c0_108] : memref<2x14x8xf32, #tpu.memory_space<vmem>>, vector<1x8x8xf32>
    %105 = vector.shape_cast %104 : vector<1x8x8xf32> to vector<8x8xf32>
    %c13 = arith.constant 13 : index
    %c0_109 = arith.constant 0 : index
    %c0_110 = arith.constant 0 : index
    %106 = vector.load %arg4[%c13, %c0_109, %c0_110] : memref<14x8x8xf32, #tpu.memory_space<vmem>>, vector<1x8x8xf32>
    %107 = vector.shape_cast %106 : vector<1x8x8xf32> to vector<8x8xf32>
    %cst_111 = arith.constant dense<0.000000e+00> : vector<8x8xf32>
    %108 = tpu.matmul %105, %107, %cst_111 {dimension_numbers = #tpu.dot_dimension_numbers<[1], [0], [0], [1], [0, 0, 1, 1], [], []>} : vector<8x8xf32>, vector<8x8xf32>, vector<8x8xf32> -> vector<8x8xf32>
    %109 = arith.addf %103, %108 : vector<8x8xf32>
    %110 = arith.negf %109 : vector<8x8xf32>
    %111 = math.exp %110 : vector<8x8xf32>
    %cst_112 = arith.constant 1.000000e+00 : f32
    %112 = vector.broadcast %cst_112 : f32 to vector<8x8xf32>
    %113 = arith.addf %112, %111 : vector<8x8xf32>
    %114 = arith.divf %112, %113 : vector<8x8xf32>
    %c0_113 = arith.constant 0 : index
    %c0_114 = arith.constant 0 : index
    %c0_115 = arith.constant 0 : index
    %115 = vector.load %arg5[%c0_113, %c0_114, %c0_115] : memref<1x8x8xf32, #tpu.memory_space<vmem>>, vector<1x8x8xf32>
    %116 = vector.shape_cast %115 : vector<1x8x8xf32> to vector<8x8xf32>
    %117 = vector.shape_cast %114 : vector<8x8xf32> to vector<1x8x8xf32>
    tpu.vector_store %arg5[%c0_113, %c0_114, %c0_115], %117 {strides = array<i32>} : memref<1x8x8xf32, #tpu.memory_space<vmem>>, vector<1x8x8xf32>,
    return
  }
  func.func @transform_0(%arg0: i32) -> (i32, i32, i32, i32) {
    %c0_i32 = arith.constant 0 : i32
    %c0_i32_0 = arith.constant 0 : i32
    %c0_i32_1 = arith.constant 0 : i32
    %c0_i32_2 = arith.constant 0 : i32
    return %arg0, %c0_i32, %c0_i32_0, %c0_i32_1 : i32, i32, i32, i32
  }
  func.func @transform_1(%arg0: i32) -> (i32, i32, i32, i32) {
    %c0_i32 = arith.constant 0 : i32
    %c0_i32_0 = arith.constant 0 : i32
    %c0_i32_1 = arith.constant 0 : i32
    %c0_i32_2 = arith.constant 0 : i32
    return %arg0, %c0_i32, %c0_i32_0, %c0_i32_1 : i32, i32, i32, i32
  }
  func.func @transform_2(%arg0: i32) -> (i32, i32, i32) {
    %c0_i32 = arith.constant 0 : i32
    %c0_i32_0 = arith.constant 0 : i32
    %c0_i32_1 = arith.constant 0 : i32
    return %arg0, %c0_i32, %c0_i32_0 : i32, i32, i32
  }
  func.func @transform_3(%arg0: i32) -> (i32, i32, i32) {
    %c0_i32 = arith.constant 0 : i32
    %c0_i32_0 = arith.constant 0 : i32
    %c0_i32_1 = arith.constant 0 : i32
    %c0_i32_2 = arith.constant 0 : i32
    return %c0_i32, %c0_i32_0, %c0_i32_1 : i32, i32, i32
  }
  func.func @transform_4(%arg0: i32) -> (i32, i32, i32) {
    %c0_i32 = arith.constant 0 : i32
    %c0_i32_0 = arith.constant 0 : i32
    %c0_i32_1 = arith.constant 0 : i32
    return %arg0, %c0_i32, %c0_i32_0 : i32, i32, i32
  }
}

module attributes {stable_mosaic.version = 11 : i64} {
  func.func @_ca_kernel(%arg0: i32, %arg1: i32, %arg2: memref<1x64x64xf32, #tpu.memory_space<vmem>>, %arg3: memref<1x64x64xf32, #tpu.memory_space<vmem>>, %arg4: memref<1x64x64xf32, #tpu.memory_space<vmem>>, %arg5: memref<1x64x1xf32, #tpu.memory_space<vmem>>, %arg6: memref<1x64x1xf32, #tpu.memory_space<vmem>>, %arg7: memref<32x8xf32, #tpu.memory_space<vmem>>, %arg8: memref<8x32xf32, #tpu.memory_space<vmem>>, %arg9: memref<1x3x32xf32, #tpu.memory_space<vmem>>, %arg10: memref<3x32xf32, #tpu.memory_space<vmem>>, %arg11: memref<3x32xf32, #tpu.memory_space<vmem>>) attributes {dimension_semantics = [#tpu.dimension_semantics<parallel>, #tpu.dimension_semantics<arbitrary>], iteration_bounds = array<i64: 2, 1>, scalar_prefetch = 0 : i64, scratch_operands = 2 : i64, tpu.core_type = #tpu.core_type<tc>, window_params = [{transform_indices = @transform_0, window_bounds = array<i64: 1, 64, 64>}, {transform_indices = @transform_1, window_bounds = array<i64: 1, 64, 64>}, {transform_indices = @transform_2, window_bounds = array<i64: 1, 64, 64>}, {transform_indices = @transform_3, window_bounds = array<i64: 1, 64, 1>}, {transform_indices = @transform_4, window_bounds = array<i64: 1, 64, 1>}, {pipeline_mode = #tpu.pipeline_mode<synchronous>, transform_indices = @transform_5, window_bounds = array<i64: 32, 8>}, {pipeline_mode = #tpu.pipeline_mode<synchronous>, transform_indices = @transform_6, window_bounds = array<i64: 8, 32>}, {transform_indices = @transform_7, window_bounds = array<i64: 1, 3, 32>}]} {
    %c0_i32 = arith.constant 0 : i32
    %0 = arith.cmpi eq, %arg1, %c0_i32 : i32
    %1 = arith.extui %0 : i1 to i32
    %c0_i32_0 = arith.constant 0 : i32
    %2 = arith.cmpi ne, %1, %c0_i32_0 : i32
    scf.if %2 {
      %cst_49 = arith.constant 0.000000e+00 : f32
      %62 = vector.broadcast %cst_49 : f32 to vector<3x32xf32>
      %c0_50 = arith.constant 0 : index
      %c0_51 = arith.constant 0 : index
      %63 = vector.load %arg10[%c0_50, %c0_51] : memref<3x32xf32, #tpu.memory_space<vmem>>, vector<3x32xf32>
      tpu.vector_store %arg10[%c0_50, %c0_51], %62 {strides = array<i32>} : memref<3x32xf32, #tpu.memory_space<vmem>>, vector<3x32xf32>,
      %cst_52 = arith.constant 0xFF800000 : f32
      %64 = vector.broadcast %cst_52 : f32 to vector<3x32xf32>
      %c0_53 = arith.constant 0 : index
      %c0_54 = arith.constant 0 : index
      %65 = vector.load %arg11[%c0_53, %c0_54] : memref<3x32xf32, #tpu.memory_space<vmem>>, vector<3x32xf32>
      tpu.vector_store %arg11[%c0_53, %c0_54], %64 {strides = array<i32>} : memref<3x32xf32, #tpu.memory_space<vmem>>, vector<3x32xf32>,
    } else {
    }
    %c0 = arith.constant 0 : index
    %c0_1 = arith.constant 0 : index
    %c0_2 = arith.constant 0 : index
    %3 = vector.load %arg5[%c0, %c0_1, %c0_2] : memref<1x64x1xf32, #tpu.memory_space<vmem>>, vector<1x64x1xf32>
    %4 = vector.shape_cast %3 : vector<1x64x1xf32> to vector<64x1xf32>
    %c0_3 = arith.constant 0 : index
    %c0_4 = arith.constant 0 : index
    %c0_5 = arith.constant 0 : index
    %5 = vector.load %arg6[%c0_3, %c0_4, %c0_5] : memref<1x64x1xf32, #tpu.memory_space<vmem>>, vector<1x64x1xf32>
    %6 = vector.shape_cast %5 : vector<1x64x1xf32> to vector<64x1xf32>
    %c0_6 = arith.constant 0 : index
    %c0_7 = arith.constant 0 : index
    %c0_8 = arith.constant 0 : index
    %7 = vector.load %arg4[%c0_6, %c0_7, %c0_8] : memref<1x64x64xf32, #tpu.memory_space<vmem>>, vector<1x64x32xf32>
    %8 = vector.shape_cast %7 : vector<1x64x32xf32> to vector<64x32xf32>
    %c0_9 = arith.constant 0 : index
    %c0_10 = arith.constant 0 : index
    %c32 = arith.constant 32 : index
    %9 = vector.load %arg4[%c0_9, %c0_10, %c32] : memref<1x64x64xf32, #tpu.memory_space<vmem>>, vector<1x64x32xf32>
    %10 = vector.shape_cast %9 : vector<1x64x32xf32> to vector<64x32xf32>
    %c0_11 = arith.constant 0 : index
    %c0_12 = arith.constant 0 : index
    %c0_13 = arith.constant 0 : index
    %11 = vector.load %arg2[%c0_11, %c0_12, %c0_13] : memref<1x64x64xf32, #tpu.memory_space<vmem>>, vector<1x64x32xf32>
    %12 = vector.shape_cast %11 : vector<1x64x32xf32> to vector<64x32xf32>
    %13 = arith.mulf %12, %8 : vector<64x32xf32>
    %14 = vector.broadcast %4 : vector<64x1xf32> to vector<64x32xf32>
    %15 = arith.mulf %13, %14 : vector<64x32xf32>
    %16 = arith.addf %15, %8 : vector<64x32xf32>
    %c0_14 = arith.constant 0 : index
    %c0_15 = arith.constant 0 : index
    %c32_16 = arith.constant 32 : index
    %17 = vector.load %arg2[%c0_14, %c0_15, %c32_16] : memref<1x64x64xf32, #tpu.memory_space<vmem>>, vector<1x64x32xf32>
    %18 = vector.shape_cast %17 : vector<1x64x32xf32> to vector<64x32xf32>
    %19 = arith.mulf %18, %10 : vector<64x32xf32>
    %20 = vector.broadcast %4 : vector<64x1xf32> to vector<64x32xf32>
    %21 = arith.mulf %19, %20 : vector<64x32xf32>
    %22 = arith.addf %21, %10 : vector<64x32xf32>
    %c0_17 = arith.constant 0 : index
    %c0_18 = arith.constant 0 : index
    %c32_19 = arith.constant 32 : index
    %23 = vector.load %arg3[%c0_17, %c0_18, %c32_19] : memref<1x64x64xf32, #tpu.memory_space<vmem>>, vector<1x64x32xf32>
    %24 = vector.shape_cast %23 : vector<1x64x32xf32> to vector<64x32xf32>
    %25 = arith.mulf %24, %10 : vector<64x32xf32>
    %26 = vector.broadcast %6 : vector<64x1xf32> to vector<64x32xf32>
    %27 = arith.mulf %25, %26 : vector<64x32xf32>
    %28 = arith.addf %27, %10 : vector<64x32xf32>
    %c0_20 = arith.constant 0 : index
    %c0_21 = arith.constant 0 : index
    %29 = vector.load %arg10[%c0_20, %c0_21] : memref<3x32xf32, #tpu.memory_space<vmem>>, vector<1x32xf32>
    %cst = arith.constant dense<0.000000e+00> : vector<32xf32>
    %30 = vector.multi_reduction <add>, %16, %cst [0] : vector<64x32xf32> to vector<32xf32>
    %31 = vector.shape_cast %30 : vector<32xf32> to vector<1x32xf32>
    %32 = arith.addf %29, %31 : vector<1x32xf32>
    %c0_22 = arith.constant 0 : index
    %c0_23 = arith.constant 0 : index
    %33 = vector.load %arg10[%c0_22, %c0_23] : memref<3x32xf32, #tpu.memory_space<vmem>>, vector<1x32xf32>
    tpu.vector_store %arg10[%c0_22, %c0_23], %32 {strides = array<i32>} : memref<3x32xf32, #tpu.memory_space<vmem>>, vector<1x32xf32>,
    %c1 = arith.constant 1 : index
    %c0_24 = arith.constant 0 : index
    %34 = vector.load %arg10[%c1, %c0_24] : memref<3x32xf32, #tpu.memory_space<vmem>>, vector<1x32xf32>
    %cst_25 = arith.constant dense<0.000000e+00> : vector<32xf32>
    %35 = vector.multi_reduction <add>, %22, %cst_25 [0] : vector<64x32xf32> to vector<32xf32>
    %36 = vector.shape_cast %35 : vector<32xf32> to vector<1x32xf32>
    %37 = arith.addf %34, %36 : vector<1x32xf32>
    %c1_26 = arith.constant 1 : index
    %c0_27 = arith.constant 0 : index
    %38 = vector.load %arg10[%c1_26, %c0_27] : memref<3x32xf32, #tpu.memory_space<vmem>>, vector<1x32xf32>
    tpu.vector_store %arg10[%c1_26, %c0_27], %37 {strides = array<i32>} : memref<3x32xf32, #tpu.memory_space<vmem>>, vector<1x32xf32>,
    %c2 = arith.constant 2 : index
    %c0_28 = arith.constant 0 : index
    %39 = vector.load %arg10[%c2, %c0_28] : memref<3x32xf32, #tpu.memory_space<vmem>>, vector<1x32xf32>
    %cst_29 = arith.constant dense<0.000000e+00> : vector<32xf32>
    %40 = vector.multi_reduction <add>, %28, %cst_29 [0] : vector<64x32xf32> to vector<32xf32>
    %41 = vector.shape_cast %40 : vector<32xf32> to vector<1x32xf32>
    %42 = arith.addf %39, %41 : vector<1x32xf32>
    %c2_30 = arith.constant 2 : index
    %c0_31 = arith.constant 0 : index
    %43 = vector.load %arg10[%c2_30, %c0_31] : memref<3x32xf32, #tpu.memory_space<vmem>>, vector<1x32xf32>
    tpu.vector_store %arg10[%c2_30, %c0_31], %42 {strides = array<i32>} : memref<3x32xf32, #tpu.memory_space<vmem>>, vector<1x32xf32>,
    %c0_32 = arith.constant 0 : index
    %c0_33 = arith.constant 0 : index
    %44 = vector.load %arg11[%c0_32, %c0_33] : memref<3x32xf32, #tpu.memory_space<vmem>>, vector<1x32xf32>
    %cst_34 = arith.constant dense<0xFF800000> : vector<32xf32>
    %45 = vector.multi_reduction <maximumf>, %16, %cst_34 [0] : vector<64x32xf32> to vector<32xf32>
    %46 = vector.shape_cast %45 : vector<32xf32> to vector<1x32xf32>
    %47 = arith.maximumf %44, %46 : vector<1x32xf32>
    %c0_35 = arith.constant 0 : index
    %c0_36 = arith.constant 0 : index
    %48 = vector.load %arg11[%c0_35, %c0_36] : memref<3x32xf32, #tpu.memory_space<vmem>>, vector<1x32xf32>
    tpu.vector_store %arg11[%c0_35, %c0_36], %47 {strides = array<i32>} : memref<3x32xf32, #tpu.memory_space<vmem>>, vector<1x32xf32>,
    %c1_37 = arith.constant 1 : index
    %c0_38 = arith.constant 0 : index
    %49 = vector.load %arg11[%c1_37, %c0_38] : memref<3x32xf32, #tpu.memory_space<vmem>>, vector<1x32xf32>
    %cst_39 = arith.constant dense<0xFF800000> : vector<32xf32>
    %50 = vector.multi_reduction <maximumf>, %22, %cst_39 [0] : vector<64x32xf32> to vector<32xf32>
    %51 = vector.shape_cast %50 : vector<32xf32> to vector<1x32xf32>
    %52 = arith.maximumf %49, %51 : vector<1x32xf32>
    %c1_40 = arith.constant 1 : index
    %c0_41 = arith.constant 0 : index
    %53 = vector.load %arg11[%c1_40, %c0_41] : memref<3x32xf32, #tpu.memory_space<vmem>>, vector<1x32xf32>
    tpu.vector_store %arg11[%c1_40, %c0_41], %52 {strides = array<i32>} : memref<3x32xf32, #tpu.memory_space<vmem>>, vector<1x32xf32>,
    %c2_42 = arith.constant 2 : index
    %c0_43 = arith.constant 0 : index
    %54 = vector.load %arg11[%c2_42, %c0_43] : memref<3x32xf32, #tpu.memory_space<vmem>>, vector<1x32xf32>
    %cst_44 = arith.constant dense<0xFF800000> : vector<32xf32>
    %55 = vector.multi_reduction <maximumf>, %28, %cst_44 [0] : vector<64x32xf32> to vector<32xf32>
    %56 = vector.shape_cast %55 : vector<32xf32> to vector<1x32xf32>
    %57 = arith.maximumf %54, %56 : vector<1x32xf32>
    %c2_45 = arith.constant 2 : index
    %c0_46 = arith.constant 0 : index
    %58 = vector.load %arg11[%c2_45, %c0_46] : memref<3x32xf32, #tpu.memory_space<vmem>>, vector<1x32xf32>
    tpu.vector_store %arg11[%c2_45, %c0_46], %57 {strides = array<i32>} : memref<3x32xf32, #tpu.memory_space<vmem>>, vector<1x32xf32>,
    %c0_i32_47 = arith.constant 0 : i32
    %59 = arith.cmpi eq, %arg1, %c0_i32_47 : i32
    %60 = arith.extui %59 : i1 to i32
    %c0_i32_48 = arith.constant 0 : i32
    %61 = arith.cmpi ne, %60, %c0_i32_48 : i32
    scf.if %61 {
      %c0_49 = arith.constant 0 : index
      %c0_50 = arith.constant 0 : index
      %62 = vector.load %arg10[%c0_49, %c0_50] : memref<3x32xf32, #tpu.memory_space<vmem>>, vector<3x32xf32>
      %cst_51 = arith.constant 1.562500e-02 : f32
      %63 = vector.broadcast %cst_51 : f32 to vector<3x32xf32>
      %64 = arith.mulf %62, %63 : vector<3x32xf32>
      %c0_52 = arith.constant 0 : index
      %c0_53 = arith.constant 0 : index
      %65 = vector.load %arg7[%c0_52, %c0_53] : memref<32x8xf32, #tpu.memory_space<vmem>>, vector<32x8xf32>
      %cst_54 = arith.constant dense<0.000000e+00> : vector<3x8xf32>
      %66 = tpu.matmul %64, %65, %cst_54 {dimension_numbers = #tpu.dot_dimension_numbers<[1], [0], [0], [1], [0, 0, 1, 1], [], []>} : vector<3x32xf32>, vector<32x8xf32>, vector<3x8xf32> -> vector<3x8xf32>
      %cst_55 = arith.constant 0.000000e+00 : f32
      %67 = vector.broadcast %cst_55 : f32 to vector<3x8xf32>
      %68 = arith.maximumf %66, %67 : vector<3x8xf32>
      %c0_56 = arith.constant 0 : index
      %c0_57 = arith.constant 0 : index
      %69 = vector.load %arg8[%c0_56, %c0_57] : memref<8x32xf32, #tpu.memory_space<vmem>>, vector<8x32xf32>
      %cst_58 = arith.constant dense<0.000000e+00> : vector<3x32xf32>
      %70 = tpu.matmul %68, %69, %cst_58 {dimension_numbers = #tpu.dot_dimension_numbers<[1], [0], [0], [1], [0, 0, 1, 1], [], []>} : vector<3x8xf32>, vector<8x32xf32>, vector<3x32xf32> -> vector<3x32xf32>
      %c0_59 = arith.constant 0 : index
      %c0_60 = arith.constant 0 : index
      %71 = vector.load %arg11[%c0_59, %c0_60] : memref<3x32xf32, #tpu.memory_space<vmem>>, vector<3x32xf32>
      %c0_61 = arith.constant 0 : index
      %c0_62 = arith.constant 0 : index
      %72 = vector.load %arg7[%c0_61, %c0_62] : memref<32x8xf32, #tpu.memory_space<vmem>>, vector<32x8xf32>
      %cst_63 = arith.constant dense<0.000000e+00> : vector<3x8xf32>
      %73 = tpu.matmul %71, %72, %cst_63 {dimension_numbers = #tpu.dot_dimension_numbers<[1], [0], [0], [1], [0, 0, 1, 1], [], []>} : vector<3x32xf32>, vector<32x8xf32>, vector<3x8xf32> -> vector<3x8xf32>
      %cst_64 = arith.constant 0.000000e+00 : f32
      %74 = vector.broadcast %cst_64 : f32 to vector<3x8xf32>
      %75 = arith.maximumf %73, %74 : vector<3x8xf32>
      %c0_65 = arith.constant 0 : index
      %c0_66 = arith.constant 0 : index
      %76 = vector.load %arg8[%c0_65, %c0_66] : memref<8x32xf32, #tpu.memory_space<vmem>>, vector<8x32xf32>
      %cst_67 = arith.constant dense<0.000000e+00> : vector<3x32xf32>
      %77 = tpu.matmul %75, %76, %cst_67 {dimension_numbers = #tpu.dot_dimension_numbers<[1], [0], [0], [1], [0, 0, 1, 1], [], []>} : vector<3x8xf32>, vector<8x32xf32>, vector<3x32xf32> -> vector<3x32xf32>
      %78 = arith.addf %70, %77 : vector<3x32xf32>
      %79 = arith.negf %78 : vector<3x32xf32>
      %80 = math.exp %79 : vector<3x32xf32>
      %cst_68 = arith.constant 1.000000e+00 : f32
      %81 = vector.broadcast %cst_68 : f32 to vector<3x32xf32>
      %82 = arith.addf %81, %80 : vector<3x32xf32>
      %83 = arith.divf %81, %82 : vector<3x32xf32>
      %c0_69 = arith.constant 0 : index
      %c0_70 = arith.constant 0 : index
      %c0_71 = arith.constant 0 : index
      %84 = vector.load %arg9[%c0_69, %c0_70, %c0_71] : memref<1x3x32xf32, #tpu.memory_space<vmem>>, vector<1x3x32xf32>
      %85 = vector.shape_cast %84 : vector<1x3x32xf32> to vector<3x32xf32>
      %86 = vector.shape_cast %83 : vector<3x32xf32> to vector<1x3x32xf32>
      tpu.vector_store %arg9[%c0_69, %c0_70, %c0_71], %86 {strides = array<i32>} : memref<1x3x32xf32, #tpu.memory_space<vmem>>, vector<1x3x32xf32>,
    } else {
    }
    return
  }
  func.func @transform_0(%arg0: i32, %arg1: i32) -> (i32, i32, i32) {
    %c0_i32 = arith.constant 0 : i32
    %c0_i32_0 = arith.constant 0 : i32
    return %arg0, %arg1, %c0_i32 : i32, i32, i32
  }
  func.func @transform_1(%arg0: i32, %arg1: i32) -> (i32, i32, i32) {
    %c0_i32 = arith.constant 0 : i32
    %c0_i32_0 = arith.constant 0 : i32
    return %arg0, %arg1, %c0_i32 : i32, i32, i32
  }
  func.func @transform_2(%arg0: i32, %arg1: i32) -> (i32, i32, i32) {
    %c0_i32 = arith.constant 0 : i32
    %c0_i32_0 = arith.constant 0 : i32
    return %arg0, %arg1, %c0_i32 : i32, i32, i32
  }
  func.func @transform_3(%arg0: i32, %arg1: i32) -> (i32, i32, i32) {
    %c0_i32 = arith.constant 0 : i32
    %c0_i32_0 = arith.constant 0 : i32
    return %arg0, %arg1, %c0_i32 : i32, i32, i32
  }
  func.func @transform_4(%arg0: i32, %arg1: i32) -> (i32, i32, i32) {
    %c0_i32 = arith.constant 0 : i32
    %c0_i32_0 = arith.constant 0 : i32
    return %arg0, %arg1, %c0_i32 : i32, i32, i32
  }
  func.func @transform_5(%arg0: i32, %arg1: i32) -> (i32, i32) {
    %c0_i32 = arith.constant 0 : i32
    %c0_i32_0 = arith.constant 0 : i32
    %c0_i32_1 = arith.constant 0 : i32
    return %c0_i32, %c0_i32_0 : i32, i32
  }
  func.func @transform_6(%arg0: i32, %arg1: i32) -> (i32, i32) {
    %c0_i32 = arith.constant 0 : i32
    %c0_i32_0 = arith.constant 0 : i32
    %c0_i32_1 = arith.constant 0 : i32
    return %c0_i32, %c0_i32_0 : i32, i32
  }
  func.func @transform_7(%arg0: i32, %arg1: i32) -> (i32, i32, i32) {
    %c0_i32 = arith.constant 0 : i32
    %c0_i32_0 = arith.constant 0 : i32
    %c0_i32_1 = arith.constant 0 : i32
    return %arg0, %c0_i32, %c0_i32_0 : i32, i32, i32
  }
}

module attributes {stable_mosaic.version = 11 : i64} {
  func.func @_fuse_kernel(%arg0: i32, %arg1: i32, %arg2: memref<1x64x64xf32, #tpu.memory_space<vmem>>, %arg3: memref<1x64x64xf32, #tpu.memory_space<vmem>>, %arg4: memref<1x64x64xf32, #tpu.memory_space<vmem>>, %arg5: memref<1x64x1xf32, #tpu.memory_space<vmem>>, %arg6: memref<1x64x1xf32, #tpu.memory_space<vmem>>, %arg7: memref<1x64x1xf32, #tpu.memory_space<vmem>>, %arg8: memref<1x3x32xf32, #tpu.memory_space<vmem>>, %arg9: memref<128x64xbf16, #tpu.memory_space<vmem>>, %arg10: memref<1x64xf32, #tpu.memory_space<vmem>>, %arg11: memref<1x64xf32, #tpu.memory_space<vmem>>, %arg12: memref<1x64x64xf32, #tpu.memory_space<vmem>>, %arg13: memref<64x128xf32, #tpu.memory_space<vmem>>) attributes {dimension_semantics = [#tpu.dimension_semantics<parallel>, #tpu.dimension_semantics<parallel>], iteration_bounds = array<i64: 2, 1>, scalar_prefetch = 0 : i64, scratch_operands = 1 : i64, tpu.core_type = #tpu.core_type<tc>, window_params = [{transform_indices = @transform_0, window_bounds = array<i64: 1, 64, 64>}, {transform_indices = @transform_1, window_bounds = array<i64: 1, 64, 64>}, {transform_indices = @transform_2, window_bounds = array<i64: 1, 64, 64>}, {transform_indices = @transform_3, window_bounds = array<i64: 1, 64, 1>}, {transform_indices = @transform_4, window_bounds = array<i64: 1, 64, 1>}, {transform_indices = @transform_5, window_bounds = array<i64: 1, 64, 1>}, {transform_indices = @transform_6, window_bounds = array<i64: 1, 3, 32>}, {pipeline_mode = #tpu.pipeline_mode<synchronous>, transform_indices = @transform_7, window_bounds = array<i64: 128, 64>}, {pipeline_mode = #tpu.pipeline_mode<synchronous>, transform_indices = @transform_8, window_bounds = array<i64: 1, 64>}, {pipeline_mode = #tpu.pipeline_mode<synchronous>, transform_indices = @transform_9, window_bounds = array<i64: 1, 64>}, {transform_indices = @transform_10, window_bounds = array<i64: 1, 64, 64>}]} {
    %c0 = arith.constant 0 : index
    %c0_0 = arith.constant 0 : index
    %c0_1 = arith.constant 0 : index
    %0 = vector.load %arg5[%c0, %c0_0, %c0_1] : memref<1x64x1xf32, #tpu.memory_space<vmem>>, vector<1x64x1xf32>
    %1 = vector.shape_cast %0 : vector<1x64x1xf32> to vector<64x1xf32>
    %c0_2 = arith.constant 0 : index
    %c0_3 = arith.constant 0 : index
    %c0_4 = arith.constant 0 : index
    %2 = vector.load %arg6[%c0_2, %c0_3, %c0_4] : memref<1x64x1xf32, #tpu.memory_space<vmem>>, vector<1x64x1xf32>
    %3 = vector.shape_cast %2 : vector<1x64x1xf32> to vector<64x1xf32>
    %c0_5 = arith.constant 0 : index
    %c0_6 = arith.constant 0 : index
    %c0_7 = arith.constant 0 : index
    %4 = vector.load %arg4[%c0_5, %c0_6, %c0_7] : memref<1x64x64xf32, #tpu.memory_space<vmem>>, vector<1x64x64xf32>
    %5 = vector.shape_cast %4 : vector<1x64x64xf32> to vector<64x64xf32>
    %c0_8 = arith.constant 0 : index
    %c0_9 = arith.constant 0 : index
    %c0_10 = arith.constant 0 : index
    %6 = vector.load %arg4[%c0_8, %c0_9, %c0_10] : memref<1x64x64xf32, #tpu.memory_space<vmem>>, vector<1x64x32xf32>
    %7 = vector.shape_cast %6 : vector<1x64x32xf32> to vector<64x32xf32>
    %c0_11 = arith.constant 0 : index
    %c0_12 = arith.constant 0 : index
    %c32 = arith.constant 32 : index
    %8 = vector.load %arg4[%c0_11, %c0_12, %c32] : memref<1x64x64xf32, #tpu.memory_space<vmem>>, vector<1x64x32xf32>
    %9 = vector.shape_cast %8 : vector<1x64x32xf32> to vector<64x32xf32>
    %c0_13 = arith.constant 0 : index
    %c0_14 = arith.constant 0 : index
    %c0_15 = arith.constant 0 : index
    %10 = vector.load %arg8[%c0_13, %c0_14, %c0_15] : memref<1x3x32xf32, #tpu.memory_space<vmem>>, vector<1x1x32xf32>
    %11 = vector.shape_cast %10 : vector<1x1x32xf32> to vector<1x32xf32>
    %c0_16 = arith.constant 0 : index
    %c1 = arith.constant 1 : index
    %c0_17 = arith.constant 0 : index
    %12 = vector.load %arg8[%c0_16, %c1, %c0_17] : memref<1x3x32xf32, #tpu.memory_space<vmem>>, vector<1x1x32xf32>
    %13 = vector.shape_cast %12 : vector<1x1x32xf32> to vector<1x32xf32>
    %c0_18 = arith.constant 0 : index
    %c2 = arith.constant 2 : index
    %c0_19 = arith.constant 0 : index
    %14 = vector.load %arg8[%c0_18, %c2, %c0_19] : memref<1x3x32xf32, #tpu.memory_space<vmem>>, vector<1x1x32xf32>
    %15 = vector.shape_cast %14 : vector<1x1x32xf32> to vector<1x32xf32>
    %c0_20 = arith.constant 0 : index
    %c0_21 = arith.constant 0 : index
    %c0_22 = arith.constant 0 : index
    %16 = vector.load %arg2[%c0_20, %c0_21, %c0_22] : memref<1x64x64xf32, #tpu.memory_space<vmem>>, vector<1x64x32xf32>
    %17 = vector.shape_cast %16 : vector<1x64x32xf32> to vector<64x32xf32>
    %18 = arith.mulf %17, %7 : vector<64x32xf32>
    %19 = vector.broadcast %1 : vector<64x1xf32> to vector<64x32xf32>
    %20 = arith.mulf %18, %19 : vector<64x32xf32>
    %21 = arith.addf %20, %7 : vector<64x32xf32>
    %22 = vector.broadcast %11 : vector<1x32xf32> to vector<64x32xf32>
    %23 = arith.mulf %21, %22 : vector<64x32xf32>
    %c0_23 = arith.constant 0 : index
    %c0_24 = arith.constant 0 : index
    %c32_25 = arith.constant 32 : index
    %24 = vector.load %arg2[%c0_23, %c0_24, %c32_25] : memref<1x64x64xf32, #tpu.memory_space<vmem>>, vector<1x64x32xf32>
    %25 = vector.shape_cast %24 : vector<1x64x32xf32> to vector<64x32xf32>
    %26 = arith.mulf %25, %9 : vector<64x32xf32>
    %27 = vector.broadcast %1 : vector<64x1xf32> to vector<64x32xf32>
    %28 = arith.mulf %26, %27 : vector<64x32xf32>
    %29 = arith.addf %28, %9 : vector<64x32xf32>
    %30 = vector.broadcast %13 : vector<1x32xf32> to vector<64x32xf32>
    %31 = arith.mulf %29, %30 : vector<64x32xf32>
    %c0_26 = arith.constant 0 : index
    %c0_27 = arith.constant 0 : index
    %c0_28 = arith.constant 0 : index
    %32 = vector.load %arg3[%c0_26, %c0_27, %c0_28] : memref<1x64x64xf32, #tpu.memory_space<vmem>>, vector<1x64x32xf32>
    %33 = vector.shape_cast %32 : vector<1x64x32xf32> to vector<64x32xf32>
    %34 = arith.mulf %33, %7 : vector<64x32xf32>
    %35 = vector.broadcast %3 : vector<64x1xf32> to vector<64x32xf32>
    %36 = arith.mulf %34, %35 : vector<64x32xf32>
    %37 = arith.addf %36, %7 : vector<64x32xf32>
    %c0_29 = arith.constant 0 : index
    %c0_30 = arith.constant 0 : index
    %c0_31 = arith.constant 0 : index
    %38 = vector.load %arg7[%c0_29, %c0_30, %c0_31] : memref<1x64x1xf32, #tpu.memory_space<vmem>>, vector<1x64x1xf32>
    %39 = vector.shape_cast %38 : vector<1x64x1xf32> to vector<64x1xf32>
    %40 = vector.broadcast %39 : vector<64x1xf32> to vector<64x32xf32>
    %41 = arith.mulf %37, %40 : vector<64x32xf32>
    %c0_32 = arith.constant 0 : index
    %c0_33 = arith.constant 0 : index
    %c32_34 = arith.constant 32 : index
    %42 = vector.load %arg3[%c0_32, %c0_33, %c32_34] : memref<1x64x64xf32, #tpu.memory_space<vmem>>, vector<1x64x32xf32>
    %43 = vector.shape_cast %42 : vector<1x64x32xf32> to vector<64x32xf32>
    %44 = arith.mulf %43, %9 : vector<64x32xf32>
    %45 = vector.broadcast %3 : vector<64x1xf32> to vector<64x32xf32>
    %46 = arith.mulf %44, %45 : vector<64x32xf32>
    %47 = arith.addf %46, %9 : vector<64x32xf32>
    %48 = vector.broadcast %15 : vector<1x32xf32> to vector<64x32xf32>
    %49 = arith.mulf %47, %48 : vector<64x32xf32>
    %50 = arith.addf %23, %31 : vector<64x32xf32>
    %51 = arith.mulf %23, %31 : vector<64x32xf32>
    %52 = arith.addf %41, %49 : vector<64x32xf32>
    %53 = arith.mulf %41, %49 : vector<64x32xf32>
    %54 = arith.addf %50, %52 : vector<64x32xf32>
    %c0_35 = arith.constant 0 : index
    %c0_36 = arith.constant 0 : index
    %55 = vector.load %arg13[%c0_35, %c0_36] : memref<64x128xf32, #tpu.memory_space<vmem>>, vector<64x32xf32>
    tpu.vector_store %arg13[%c0_35, %c0_36], %54 {strides = array<i32>} : memref<64x128xf32, #tpu.memory_space<vmem>>, vector<64x32xf32>,
    %56 = arith.addf %51, %53 : vector<64x32xf32>
    %c0_37 = arith.constant 0 : index
    %c32_38 = arith.constant 32 : index
    %57 = vector.load %arg13[%c0_37, %c32_38] : memref<64x128xf32, #tpu.memory_space<vmem>>, vector<64x32xf32>
    tpu.vector_store %arg13[%c0_37, %c32_38], %56 {strides = array<i32>} : memref<64x128xf32, #tpu.memory_space<vmem>>, vector<64x32xf32>,
    %58 = arith.mulf %50, %52 : vector<64x32xf32>
    %c0_39 = arith.constant 0 : index
    %c64 = arith.constant 64 : index
    %59 = vector.load %arg13[%c0_39, %c64] : memref<64x128xf32, #tpu.memory_space<vmem>>, vector<64x32xf32>
    tpu.vector_store %arg13[%c0_39, %c64], %58 {strides = array<i32>} : memref<64x128xf32, #tpu.memory_space<vmem>>, vector<64x32xf32>,
    %60 = arith.mulf %51, %53 : vector<64x32xf32>
    %c0_40 = arith.constant 0 : index
    %c96 = arith.constant 96 : index
    %61 = vector.load %arg13[%c0_40, %c96] : memref<64x128xf32, #tpu.memory_space<vmem>>, vector<64x32xf32>
    tpu.vector_store %arg13[%c0_40, %c96], %60 {strides = array<i32>} : memref<64x128xf32, #tpu.memory_space<vmem>>, vector<64x32xf32>,
    %c0_41 = arith.constant 0 : index
    %c0_42 = arith.constant 0 : index
    %62 = vector.load %arg13[%c0_41, %c0_42] : memref<64x128xf32, #tpu.memory_space<vmem>>, vector<64x128xf32>
    %63 = arith.truncf %62 : vector<64x128xf32> to vector<64x128xbf16>
    %c0_43 = arith.constant 0 : index
    %c0_44 = arith.constant 0 : index
    %64 = vector.load %arg9[%c0_43, %c0_44] : memref<128x64xbf16, #tpu.memory_space<vmem>>, vector<128x64xbf16>
    %cst = arith.constant dense<0.000000e+00> : vector<64x64xf32>
    %65 = tpu.matmul %63, %64, %cst {dimension_numbers = #tpu.dot_dimension_numbers<[1], [0], [0], [1], [0, 0, 1, 1], [], []>} : vector<64x128xbf16>, vector<128x64xbf16>, vector<64x64xf32> -> vector<64x64xf32>
    %c0_45 = arith.constant 0 : index
    %c0_46 = arith.constant 0 : index
    %66 = vector.load %arg10[%c0_45, %c0_46] : memref<1x64xf32, #tpu.memory_space<vmem>>, vector<1x64xf32>
    %67 = vector.broadcast %66 : vector<1x64xf32> to vector<64x64xf32>
    %68 = arith.mulf %65, %67 : vector<64x64xf32>
    %c0_47 = arith.constant 0 : index
    %c0_48 = arith.constant 0 : index
    %69 = vector.load %arg11[%c0_47, %c0_48] : memref<1x64xf32, #tpu.memory_space<vmem>>, vector<1x64xf32>
    %70 = vector.broadcast %69 : vector<1x64xf32> to vector<64x64xf32>
    %71 = arith.addf %68, %70 : vector<64x64xf32>
    %cst_49 = arith.constant 0.000000e+00 : f32
    %72 = vector.broadcast %cst_49 : f32 to vector<64x64xf32>
    %73 = arith.maximumf %71, %72 : vector<64x64xf32>
    %74 = arith.addf %5, %73 : vector<64x64xf32>
    %c0_50 = arith.constant 0 : index
    %c0_51 = arith.constant 0 : index
    %c0_52 = arith.constant 0 : index
    %75 = vector.load %arg12[%c0_50, %c0_51, %c0_52] : memref<1x64x64xf32, #tpu.memory_space<vmem>>, vector<1x64x64xf32>
    %76 = vector.shape_cast %75 : vector<1x64x64xf32> to vector<64x64xf32>
    %77 = vector.shape_cast %74 : vector<64x64xf32> to vector<1x64x64xf32>
    tpu.vector_store %arg12[%c0_50, %c0_51, %c0_52], %77 {strides = array<i32>} : memref<1x64x64xf32, #tpu.memory_space<vmem>>, vector<1x64x64xf32>,
    return
  }
  func.func @transform_0(%arg0: i32, %arg1: i32) -> (i32, i32, i32) {
    %c0_i32 = arith.constant 0 : i32
    %c0_i32_0 = arith.constant 0 : i32
    return %arg0, %arg1, %c0_i32 : i32, i32, i32
  }
  func.func @transform_1(%arg0: i32, %arg1: i32) -> (i32, i32, i32) {
    %c0_i32 = arith.constant 0 : i32
    %c0_i32_0 = arith.constant 0 : i32
    return %arg0, %arg1, %c0_i32 : i32, i32, i32
  }
  func.func @transform_2(%arg0: i32, %arg1: i32) -> (i32, i32, i32) {
    %c0_i32 = arith.constant 0 : i32
    %c0_i32_0 = arith.constant 0 : i32
    return %arg0, %arg1, %c0_i32 : i32, i32, i32
  }
  func.func @transform_3(%arg0: i32, %arg1: i32) -> (i32, i32, i32) {
    %c0_i32 = arith.constant 0 : i32
    %c0_i32_0 = arith.constant 0 : i32
    return %arg0, %arg1, %c0_i32 : i32, i32, i32
  }
  func.func @transform_4(%arg0: i32, %arg1: i32) -> (i32, i32, i32) {
    %c0_i32 = arith.constant 0 : i32
    %c0_i32_0 = arith.constant 0 : i32
    return %arg0, %arg1, %c0_i32 : i32, i32, i32
  }
  func.func @transform_5(%arg0: i32, %arg1: i32) -> (i32, i32, i32) {
    %c0_i32 = arith.constant 0 : i32
    %c0_i32_0 = arith.constant 0 : i32
    return %arg0, %arg1, %c0_i32 : i32, i32, i32
  }
  func.func @transform_6(%arg0: i32, %arg1: i32) -> (i32, i32, i32) {
    %c0_i32 = arith.constant 0 : i32
    %c0_i32_0 = arith.constant 0 : i32
    %c0_i32_1 = arith.constant 0 : i32
    return %arg0, %c0_i32, %c0_i32_0 : i32, i32, i32
  }
  func.func @transform_7(%arg0: i32, %arg1: i32) -> (i32, i32) {
    %c0_i32 = arith.constant 0 : i32
    %c0_i32_0 = arith.constant 0 : i32
    %c0_i32_1 = arith.constant 0 : i32
    return %c0_i32, %c0_i32_0 : i32, i32
  }
  func.func @transform_8(%arg0: i32, %arg1: i32) -> (i32, i32) {
    %c0_i32 = arith.constant 0 : i32
    %c0_i32_0 = arith.constant 0 : i32
    %c0_i32_1 = arith.constant 0 : i32
    return %c0_i32, %c0_i32_0 : i32, i32
  }
  func.func @transform_9(%arg0: i32, %arg1: i32) -> (i32, i32) {
    %c0_i32 = arith.constant 0 : i32
    %c0_i32_0 = arith.constant 0 : i32
    %c0_i32_1 = arith.constant 0 : i32
    return %c0_i32, %c0_i32_0 : i32, i32
  }
  func.func @transform_10(%arg0: i32, %arg1: i32) -> (i32, i32, i32) {
    %c0_i32 = arith.constant 0 : i32
    %c0_i32_0 = arith.constant 0 : i32
    return %arg0, %arg1, %c0_i32 : i32, i32, i32
  }
}

module attributes {stable_mosaic.version = 11 : i64} {
  func.func @_conv3x3_kernel(%arg0: i32, %arg1: memref<1x8x8x64xf32, #tpu.memory_space<vmem>>, %arg2: memref<576x64xbf16, #tpu.memory_space<vmem>>, %arg3: memref<1x64xf32, #tpu.memory_space<vmem>>, %arg4: memref<1x64xf32, #tpu.memory_space<vmem>>, %arg5: memref<1x64x64xf32, #tpu.memory_space<vmem>>, %arg6: memref<10x10x64xf32, #tpu.memory_space<vmem>>, %arg7: memref<64x576xf32, #tpu.memory_space<vmem>>) attributes {dimension_semantics = [#tpu.dimension_semantics<parallel>], iteration_bounds = array<i64: 2>, scalar_prefetch = 0 : i64, scratch_operands = 2 : i64, tpu.core_type = #tpu.core_type<tc>, window_params = [{transform_indices = @transform_0, window_bounds = array<i64: 1, 8, 8, 64>}, {pipeline_mode = #tpu.pipeline_mode<synchronous>, transform_indices = @transform_1, window_bounds = array<i64: 576, 64>}, {pipeline_mode = #tpu.pipeline_mode<synchronous>, transform_indices = @transform_2, window_bounds = array<i64: 1, 64>}, {pipeline_mode = #tpu.pipeline_mode<synchronous>, transform_indices = @transform_3, window_bounds = array<i64: 1, 64>}, {transform_indices = @transform_4, window_bounds = array<i64: 1, 64, 64>}]} {
    %cst = arith.constant 0.000000e+00 : f32
    %0 = vector.broadcast %cst : f32 to vector<10x10x64xf32>
    %c0 = arith.constant 0 : index
    %c0_0 = arith.constant 0 : index
    %c0_1 = arith.constant 0 : index
    %1 = vector.load %arg6[%c0, %c0_0, %c0_1] : memref<10x10x64xf32, #tpu.memory_space<vmem>>, vector<10x10x64xf32>
    tpu.vector_store %arg6[%c0, %c0_0, %c0_1], %0 {strides = array<i32>} : memref<10x10x64xf32, #tpu.memory_space<vmem>>, vector<10x10x64xf32>,
    %c0_2 = arith.constant 0 : index
    %c0_3 = arith.constant 0 : index
    %c0_4 = arith.constant 0 : index
    %c0_5 = arith.constant 0 : index
    %2 = vector.load %arg1[%c0_2, %c0_3, %c0_4, %c0_5] : memref<1x8x8x64xf32, #tpu.memory_space<vmem>>, vector<1x8x8x64xf32>
    %3 = vector.shape_cast %2 : vector<1x8x8x64xf32> to vector<8x8x64xf32>
    %c1 = arith.constant 1 : index
    %c1_6 = arith.constant 1 : index
    %c0_7 = arith.constant 0 : index
    %4 = vector.load %arg6[%c1, %c1_6, %c0_7] : memref<10x10x64xf32, #tpu.memory_space<vmem>>, vector<8x8x64xf32>
    tpu.vector_store %arg6[%c1, %c1_6, %c0_7], %3 {strides = array<i32>} : memref<10x10x64xf32, #tpu.memory_space<vmem>>, vector<8x8x64xf32>,
    %c0_8 = arith.constant 0 : index
    %c0_9 = arith.constant 0 : index
    %c0_10 = arith.constant 0 : index
    %5 = vector.load %arg6[%c0_8, %c0_9, %c0_10] : memref<10x10x64xf32, #tpu.memory_space<vmem>>, vector<8x8x64xf32>
    %6 = vector.shape_cast %5 : vector<8x8x64xf32> to vector<64x64xf32>
    %c0_11 = arith.constant 0 : index
    %c0_12 = arith.constant 0 : index
    %7 = vector.load %arg7[%c0_11, %c0_12] : memref<64x576xf32, #tpu.memory_space<vmem>>, vector<64x64xf32>
    tpu.vector_store %arg7[%c0_11, %c0_12], %6 {strides = array<i32>} : memref<64x576xf32, #tpu.memory_space<vmem>>, vector<64x64xf32>,
    %c0_13 = arith.constant 0 : index
    %c1_14 = arith.constant 1 : index
    %c0_15 = arith.constant 0 : index
    %8 = vector.load %arg6[%c0_13, %c1_14, %c0_15] : memref<10x10x64xf32, #tpu.memory_space<vmem>>, vector<8x8x64xf32>
    %9 = vector.shape_cast %8 : vector<8x8x64xf32> to vector<64x64xf32>
    %c0_16 = arith.constant 0 : index
    %c64 = arith.constant 64 : index
    %10 = vector.load %arg7[%c0_16, %c64] : memref<64x576xf32, #tpu.memory_space<vmem>>, vector<64x64xf32>
    tpu.vector_store %arg7[%c0_16, %c64], %9 {strides = array<i32>} : memref<64x576xf32, #tpu.memory_space<vmem>>, vector<64x64xf32>,
    %c0_17 = arith.constant 0 : index
    %c2 = arith.constant 2 : index
    %c0_18 = arith.constant 0 : index
    %11 = vector.load %arg6[%c0_17, %c2, %c0_18] : memref<10x10x64xf32, #tpu.memory_space<vmem>>, vector<8x8x64xf32>
    %12 = vector.shape_cast %11 : vector<8x8x64xf32> to vector<64x64xf32>
    %c0_19 = arith.constant 0 : index
    %c128 = arith.constant 128 : index
    %13 = vector.load %arg7[%c0_19, %c128] : memref<64x576xf32, #tpu.memory_space<vmem>>, vector<64x64xf32>
    tpu.vector_store %arg7[%c0_19, %c128], %12 {strides = array<i32>} : memref<64x576xf32, #tpu.memory_space<vmem>>, vector<64x64xf32>,
    %c1_20 = arith.constant 1 : index
    %c0_21 = arith.constant 0 : index
    %c0_22 = arith.constant 0 : index
    %14 = vector.load %arg6[%c1_20, %c0_21, %c0_22] : memref<10x10x64xf32, #tpu.memory_space<vmem>>, vector<8x8x64xf32>
    %15 = vector.shape_cast %14 : vector<8x8x64xf32> to vector<64x64xf32>
    %c0_23 = arith.constant 0 : index
    %c192 = arith.constant 192 : index
    %16 = vector.load %arg7[%c0_23, %c192] : memref<64x576xf32, #tpu.memory_space<vmem>>, vector<64x64xf32>
    tpu.vector_store %arg7[%c0_23, %c192], %15 {strides = array<i32>} : memref<64x576xf32, #tpu.memory_space<vmem>>, vector<64x64xf32>,
    %c1_24 = arith.constant 1 : index
    %c1_25 = arith.constant 1 : index
    %c0_26 = arith.constant 0 : index
    %17 = vector.load %arg6[%c1_24, %c1_25, %c0_26] : memref<10x10x64xf32, #tpu.memory_space<vmem>>, vector<8x8x64xf32>
    %18 = vector.shape_cast %17 : vector<8x8x64xf32> to vector<64x64xf32>
    %c0_27 = arith.constant 0 : index
    %c256 = arith.constant 256 : index
    %19 = vector.load %arg7[%c0_27, %c256] : memref<64x576xf32, #tpu.memory_space<vmem>>, vector<64x64xf32>
    tpu.vector_store %arg7[%c0_27, %c256], %18 {strides = array<i32>} : memref<64x576xf32, #tpu.memory_space<vmem>>, vector<64x64xf32>,
    %c1_28 = arith.constant 1 : index
    %c2_29 = arith.constant 2 : index
    %c0_30 = arith.constant 0 : index
    %20 = vector.load %arg6[%c1_28, %c2_29, %c0_30] : memref<10x10x64xf32, #tpu.memory_space<vmem>>, vector<8x8x64xf32>
    %21 = vector.shape_cast %20 : vector<8x8x64xf32> to vector<64x64xf32>
    %c0_31 = arith.constant 0 : index
    %c320 = arith.constant 320 : index
    %22 = vector.load %arg7[%c0_31, %c320] : memref<64x576xf32, #tpu.memory_space<vmem>>, vector<64x64xf32>
    tpu.vector_store %arg7[%c0_31, %c320], %21 {strides = array<i32>} : memref<64x576xf32, #tpu.memory_space<vmem>>, vector<64x64xf32>,
    %c2_32 = arith.constant 2 : index
    %c0_33 = arith.constant 0 : index
    %c0_34 = arith.constant 0 : index
    %23 = vector.load %arg6[%c2_32, %c0_33, %c0_34] : memref<10x10x64xf32, #tpu.memory_space<vmem>>, vector<8x8x64xf32>
    %24 = vector.shape_cast %23 : vector<8x8x64xf32> to vector<64x64xf32>
    %c0_35 = arith.constant 0 : index
    %c384 = arith.constant 384 : index
    %25 = vector.load %arg7[%c0_35, %c384] : memref<64x576xf32, #tpu.memory_space<vmem>>, vector<64x64xf32>
    tpu.vector_store %arg7[%c0_35, %c384], %24 {strides = array<i32>} : memref<64x576xf32, #tpu.memory_space<vmem>>, vector<64x64xf32>,
    %c2_36 = arith.constant 2 : index
    %c1_37 = arith.constant 1 : index
    %c0_38 = arith.constant 0 : index
    %26 = vector.load %arg6[%c2_36, %c1_37, %c0_38] : memref<10x10x64xf32, #tpu.memory_space<vmem>>, vector<8x8x64xf32>
    %27 = vector.shape_cast %26 : vector<8x8x64xf32> to vector<64x64xf32>
    %c0_39 = arith.constant 0 : index
    %c448 = arith.constant 448 : index
    %28 = vector.load %arg7[%c0_39, %c448] : memref<64x576xf32, #tpu.memory_space<vmem>>, vector<64x64xf32>
    tpu.vector_store %arg7[%c0_39, %c448], %27 {strides = array<i32>} : memref<64x576xf32, #tpu.memory_space<vmem>>, vector<64x64xf32>,
    %c2_40 = arith.constant 2 : index
    %c2_41 = arith.constant 2 : index
    %c0_42 = arith.constant 0 : index
    %29 = vector.load %arg6[%c2_40, %c2_41, %c0_42] : memref<10x10x64xf32, #tpu.memory_space<vmem>>, vector<8x8x64xf32>
    %30 = vector.shape_cast %29 : vector<8x8x64xf32> to vector<64x64xf32>
    %c0_43 = arith.constant 0 : index
    %c512 = arith.constant 512 : index
    %31 = vector.load %arg7[%c0_43, %c512] : memref<64x576xf32, #tpu.memory_space<vmem>>, vector<64x64xf32>
    tpu.vector_store %arg7[%c0_43, %c512], %30 {strides = array<i32>} : memref<64x576xf32, #tpu.memory_space<vmem>>, vector<64x64xf32>,
    %c0_44 = arith.constant 0 : index
    %c0_45 = arith.constant 0 : index
    %32 = vector.load %arg7[%c0_44, %c0_45] : memref<64x576xf32, #tpu.memory_space<vmem>>, vector<64x576xf32>
    %33 = arith.truncf %32 : vector<64x576xf32> to vector<64x576xbf16>
    %c0_46 = arith.constant 0 : index
    %c0_47 = arith.constant 0 : index
    %34 = vector.load %arg2[%c0_46, %c0_47] : memref<576x64xbf16, #tpu.memory_space<vmem>>, vector<576x64xbf16>
    %cst_48 = arith.constant dense<0.000000e+00> : vector<64x64xf32>
    %35 = tpu.matmul %33, %34, %cst_48 {dimension_numbers = #tpu.dot_dimension_numbers<[1], [0], [0], [1], [0, 0, 1, 1], [], []>} : vector<64x576xbf16>, vector<576x64xbf16>, vector<64x64xf32> -> vector<64x64xf32>
    %c0_49 = arith.constant 0 : index
    %c0_50 = arith.constant 0 : index
    %36 = vector.load %arg3[%c0_49, %c0_50] : memref<1x64xf32, #tpu.memory_space<vmem>>, vector<1x64xf32>
    %37 = vector.broadcast %36 : vector<1x64xf32> to vector<64x64xf32>
    %38 = arith.mulf %35, %37 : vector<64x64xf32>
    %c0_51 = arith.constant 0 : index
    %c0_52 = arith.constant 0 : index
    %39 = vector.load %arg4[%c0_51, %c0_52] : memref<1x64xf32, #tpu.memory_space<vmem>>, vector<1x64xf32>
    %40 = vector.broadcast %39 : vector<1x64xf32> to vector<64x64xf32>
    %41 = arith.addf %38, %40 : vector<64x64xf32>
    %c0_53 = arith.constant 0 : index
    %c0_54 = arith.constant 0 : index
    %c0_55 = arith.constant 0 : index
    %42 = vector.load %arg5[%c0_53, %c0_54, %c0_55] : memref<1x64x64xf32, #tpu.memory_space<vmem>>, vector<1x64x64xf32>
    %43 = vector.shape_cast %42 : vector<1x64x64xf32> to vector<64x64xf32>
    %44 = vector.shape_cast %41 : vector<64x64xf32> to vector<1x64x64xf32>
    tpu.vector_store %arg5[%c0_53, %c0_54, %c0_55], %44 {strides = array<i32>} : memref<1x64x64xf32, #tpu.memory_space<vmem>>, vector<1x64x64xf32>,
    return
  }
  func.func @transform_0(%arg0: i32) -> (i32, i32, i32, i32) {
    %c0_i32 = arith.constant 0 : i32
    %c0_i32_0 = arith.constant 0 : i32
    %c0_i32_1 = arith.constant 0 : i32
    %c0_i32_2 = arith.constant 0 : i32
    return %arg0, %c0_i32, %c0_i32_0, %c0_i32_1 : i32, i32, i32, i32
  }
  func.func @transform_1(%arg0: i32) -> (i32, i32) {
    %c0_i32 = arith.constant 0 : i32
    %c0_i32_0 = arith.constant 0 : i32
    %c0_i32_1 = arith.constant 0 : i32
    return %c0_i32, %c0_i32_0 : i32, i32
  }
  func.func @transform_2(%arg0: i32) -> (i32, i32) {
    %c0_i32 = arith.constant 0 : i32
    %c0_i32_0 = arith.constant 0 : i32
    %c0_i32_1 = arith.constant 0 : i32
    return %c0_i32, %c0_i32_0 : i32, i32
  }
  func.func @transform_3(%arg0: i32) -> (i32, i32) {
    %c0_i32 = arith.constant 0 : i32
    %c0_i32_0 = arith.constant 0 : i32
    %c0_i32_1 = arith.constant 0 : i32
    return %c0_i32, %c0_i32_0 : i32, i32
  }
  func.func @transform_4(%arg0: i32) -> (i32, i32, i32) {
    %c0_i32 = arith.constant 0 : i32
    %c0_i32_0 = arith.constant 0 : i32
    %c0_i32_1 = arith.constant 0 : i32
    return %arg0, %c0_i32, %c0_i32_0 : i32, i32, i32
  }
}

</mosaic_0001>

<llo_original>
// kernel: etfm_forward.7
$region0: #{etfm_forward.7}
  #allocation0 [shape = 'u32[]', space=smem, size = 0x4, offset = 0x4, fixed_abs, tag = 'smem constant byte address 0x4 - core index']
  #allocation1 [shape = 'u32[72,128]{1,0:T(1,128)}', space=vmem, size = 0x9000, scoped, tag = 'internal scratch']
  %s0 = inlined_call_operand.vmem [shape: f32[128,32], index: 0, kind: input, shape index: {}]
  %s1 = inlined_call_operand.vmem [shape: bf16[32,64], index: 1, kind: input, shape index: {}]
  %s2 = inlined_call_operand.vmem [shape: f32[1,64], index: 2, kind: input, shape index: {}]
  %s3 = inlined_call_operand.vmem [shape: f32[1,64], index: 3, kind: input, shape index: {}]
  %s4 = inlined_call_operand.vmem [shape: f32[128,64], index: 4, kind: output, shape index: {}]
  %s5 = sld [smem:[#allocation0]]
  $region26: #{etfm_forward.7} parent=0
    _
  %s7 = ssub.s32 1, %s5
  %s8 = scalar_select 0, %s7, %s5
  // Predicated region
  $region2: #{etfm_forward.7} parent=0 // pred_check
    _
  $region3: #{etfm_forward.7} parent=0 // pred_check_branch
    %10 = sbr.rel (0) target = $region5
  $region4: #{etfm_forward.7} parent=0 // pred_region
    _
  $region5: #{etfm_forward.7} parent=0 // pred_fallthru
    _
  // Predicated region
  $region6: #{etfm_forward.7} parent=0 // pred_check
    _
  $region7: #{etfm_forward.7} parent=0 // pred_check_branch
    %12 = sbr.rel (0) target = $region9
  $region8: #{etfm_forward.7} parent=0 // pred_region
    _
  $region9: #{etfm_forward.7} parent=0 // pred_fallthru
    _
  // Predicated region
  $region10: #{etfm_forward.7} parent=0 // pred_check
    _
  $region11: #{etfm_forward.7} parent=0 // pred_check_branch
    %14 = sbr.rel (0) target = $region13
  $region12: #{etfm_forward.7} parent=0 // pred_region
    _
  $region13: #{etfm_forward.7} parent=0 // pred_fallthru
    _
  // Predicated region
  $region14: #{etfm_forward.7} parent=0 // pred_check
    _
  $region15: #{etfm_forward.7} parent=0 // pred_check_branch
    %16 = sbr.rel (0) target = $region17
  $region16: #{etfm_forward.7} parent=0 // pred_region
    _
  $region17: #{etfm_forward.7} parent=0 // pred_fallthru
    _
  %v18 = vld [vmem:[%s0] sm:$0xff]
  %v19 = vld [vmem:[%s0 + $0x8] sm:$0xff]
  %v20 = vld [vmem:[%s0 + $0x10] sm:$0xff]
  %v21 = vld [vmem:[%s0 + $0x18] sm:$0xff]
  %v22 = vld [vmem:[%s0 + $0x20] sm:$0xff]
  %v23 = vld [vmem:[%s0 + $0x28] sm:$0xff]
  %v24 = vld [vmem:[%s0 + $0x30] sm:$0xff]
  %v25 = vld [vmem:[%s0 + $0x38] sm:$0xff]
  %v26 = vld [vmem:[%s0 + $0x40] sm:$0xff]
  %v27 = vld [vmem:[%s0 + $0x48] sm:$0xff]
  %v28 = vld [vmem:[%s0 + $0x50] sm:$0xff]
  %v29 = vld [vmem:[%s0 + $0x58] sm:$0xff]
  %v30 = vld [vmem:[%s0 + $0x60] sm:$0xff]
  %v31 = vld [vmem:[%s0 + $0x68] sm:$0xff]
  %v32 = vld [vmem:[%s0 + $0x70] sm:$0xff]
  %v33 = vld [vmem:[%s0 + $0x78] sm:$0xff]
  %v34 = vpack.c.bf16 %v19, %v18
  %v35 = vpack.c.bf16 %v21, %v20
  %v36 = vpack.c.bf16 %v23, %v22
  %v37 = vpack.c.bf16 %v25, %v24
  %v38 = vpack.c.bf16 %v27, %v26
  %v39 = vpack.c.bf16 %v29, %v28
  %v40 = vpack.c.bf16 %v31, %v30
  %v41 = vpack.c.bf16 %v33, %v32
  %v42 = vld [vmem:[%s1] sm:$0xf]
  %v43 = vld [vmem:[%s1 + $0x4] sm:$0xf]
  %v44 = vld [vmem:[%s1 + $0x8] sm:$0xf]
  %v45 = vld [vmem:[%s1 + $0xc] sm:$0xf]
  %v50 = vunpack.c.l.b16 %v42
  %v51 = vunpack.c.l.b16 %v43
  %v52 = vunpack.c.l.b16 %v44
  %v53 = vunpack.c.l.b16 %v45
  %v54 = vpack.c.b16 %v51, %v50
  %v55 = vpack.c.b16 %v53, %v52
  %vm58 = vcmask 261120
  %v60 = vsel %vm58, %v34, 0
  %v63 = vsel %vm58, %v35, 0
  %v66 = vsel %vm58, %v36, 0
  %v69 = vsel %vm58, %v37, 0
  %v72 = vsel %vm58, %v38, 0
  %v75 = vsel %vm58, %v39, 0
  %v78 = vsel %vm58, %v40, 0
  %v81 = vsel %vm58, %v41, 0
  %83 = vmatpush.bf16.msra.mxu0 0
  %84 = vmatpush.bf16.msra.mxu0 0
  %85 = vmatpush.bf16.msra.mxu0 0
  %86 = vmatpush.bf16.msra.mxu0 0
  %87 = vmatpush.bf16.msra.mxu0 0
  %88 = vmatpush.bf16.msra.mxu0 0
  %89 = vmatpush.bf16.msra.mxu0 %v55
  %90 = vmatpush.bf16.msra.mxu0 %v54
  %91 = vmatmul.bf16.gmra.mxu0 %v60
  %v92 = vpop.f32.mrf.mxu0
  %v93 = vadd.f32 0.0, %v92
  %v94 = vpop.f32.mrf.mxu0
  %v95 = vadd.f32 0.0, %v94
  %96 = vmatmul.bf16.gmra.mxu0 %v63
  %v97 = vpop.f32.mrf.mxu0
  %v98 = vadd.f32 0.0, %v97
  %v99 = vpop.f32.mrf.mxu0
  %v100 = vadd.f32 0.0, %v99
  %101 = vmatmul.bf16.gmra.mxu0 %v66
  %v102 = vpop.f32.mrf.mxu0
  %v103 = vadd.f32 0.0, %v102
  %v104 = vpop.f32.mrf.mxu0
  %v105 = vadd.f32 0.0, %v104
  %106 = vmatmul.bf16.gmra.mxu0 %v69
  %v107 = vpop.f32.mrf.mxu0
  %v108 = vadd.f32 0.0, %v107
  %v109 = vpop.f32.mrf.mxu0
  %v110 = vadd.f32 0.0, %v109
  %111 = vmatmul.bf16.gmra.mxu0 %v72
  %v112 = vpop.f32.mrf.mxu0
  %v113 = vadd.f32 0.0, %v112
  %v114 = vpop.f32.mrf.mxu0
  %v115 = vadd.f32 0.0, %v114
  %116 = vmatmul.bf16.gmra.mxu0 %v75
  %v117 = vpop.f32.mrf.mxu0
  %v118 = vadd.f32 0.0, %v117
  %v119 = vpop.f32.mrf.mxu0
  %v120 = vadd.f32 0.0, %v119
  %121 = vmatmul.bf16.gmra.mxu0 %v78
  %v122 = vpop.f32.mrf.mxu0
  %v123 = vadd.f32 0.0, %v122
  %v124 = vpop.f32.mrf.mxu0
  %v125 = vadd.f32 0.0, %v124
  %126 = vmatmul.bf16.gmra.mxu0 %v81
  %v127 = vpop.f32.mrf.mxu0
  %v128 = vadd.f32 0.0, %v127
  %v129 = vpop.f32.mrf.mxu0
  %v130 = vadd.f32 0.0, %v129
  %131 = vdwg.mxu0
  %v132 = vld [vmem:[%s2] sm:$0x1]
  %v134 = vperm.slane %v132, 0
  %v136 = vmul.f32 %v93, %v134
  %v137 = vmul.f32 %v95, %v134
  %v138 = vmul.f32 %v98, %v134
  %v139 = vmul.f32 %v100, %v134
  %v140 = vmul.f32 %v103, %v134
  %v141 = vmul.f32 %v105, %v134
  %v142 = vmul.f32 %v108, %v134
  %v143 = vmul.f32 %v110, %v134
  %v144 = vmul.f32 %v113, %v134
  %v145 = vmul.f32 %v115, %v134
  %v146 = vmul.f32 %v118, %v134
  %v147 = vmul.f32 %v120, %v134
  %v148 = vmul.f32 %v123, %v134
  %v149 = vmul.f32 %v125, %v134
  %v150 = vmul.f32 %v128, %v134
  %v151 = vmul.f32 %v130, %v134
  %v152 = vld [vmem:[%s3] sm:$0x1]
  %v154 = vperm.slane %v152, 0
  %v156 = vadd.f32 %v136, %v154
  %v157 = vadd.f32 %v137, %v154
  %v158 = vadd.f32 %v138, %v154
  %v159 = vadd.f32 %v139, %v154
  %v160 = vadd.f32 %v140, %v154
  %v161 = vadd.f32 %v141, %v154
  %v162 = vadd.f32 %v142, %v154
  %v163 = vadd.f32 %v143, %v154
  %v164 = vadd.f32 %v144, %v154
  %v165 = vadd.f32 %v145, %v154
  %v166 = vadd.f32 %v146, %v154
  %v167 = vadd.f32 %v147, %v154
  %v168 = vadd.f32 %v148, %v154
  %v169 = vadd.f32 %v149, %v154
  %v170 = vadd.f32 %v150, %v154
  %v171 = vadd.f32 %v151, %v154
  %v172 = vmax.f32 %v156, 0.0
  %v173 = vmax.f32 %v157, 0.0
  %v174 = vmax.f32 %v158, 0.0
  %v175 = vmax.f32 %v159, 0.0
  %v176 = vmax.f32 %v160, 0.0
  %v177 = vmax.f32 %v161, 0.0
  %v178 = vmax.f32 %v162, 0.0
  %v179 = vmax.f32 %v163, 0.0
  %v180 = vmax.f32 %v164, 0.0
  %v181 = vmax.f32 %v165, 0.0
  %v182 = vmax.f32 %v166, 0.0
  %v183 = vmax.f32 %v167, 0.0
  %v184 = vmax.f32 %v168, 0.0
  %v185 = vmax.f32 %v169, 0.0
  %v186 = vmax.f32 %v170, 0.0
  %v187 = vmax.f32 %v171, 0.0
  %vm188 = vcmask 523264
  %189 = vst.msk [vmem:[%s4] sm:$0xff] %vm188, %v172
  %190 = vst.msk [vmem:[%s4 + $0x8] sm:$0xff] %vm188, %v173
  %191 = vst.msk [vmem:[%s4 + $0x10] sm:$0xff] %vm188, %v174
  %192 = vst.msk [vmem:[%s4 + $0x18] sm:$0xff] %vm188, %v175
  %193 = vst.msk [vmem:[%s4 + $0x20] sm:$0xff] %vm188, %v176
  %194 = vst.msk [vmem:[%s4 + $0x28] sm:$0xff] %vm188, %v177
  %195 = vst.msk [vmem:[%s4 + $0x30] sm:$0xff] %vm188, %v178
  %196 = vst.msk [vmem:[%s4 + $0x38] sm:$0xff] %vm188, %v179
  %197 = vst.msk [vmem:[%s4 + $0x40] sm:$0xff] %vm188, %v180
  %198 = vst.msk [vmem:[%s4 + $0x48] sm:$0xff] %vm188, %v181
  %199 = vst.msk [vmem:[%s4 + $0x50] sm:$0xff] %vm188, %v182
  %200 = vst.msk [vmem:[%s4 + $0x58] sm:$0xff] %vm188, %v183
  %201 = vst.msk [vmem:[%s4 + $0x60] sm:$0xff] %vm188, %v184
  %202 = vst.msk [vmem:[%s4 + $0x68] sm:$0xff] %vm188, %v185
  %203 = vst.msk [vmem:[%s4 + $0x70] sm:$0xff] %vm188, %v186
  %204 = vst.msk [vmem:[%s4 + $0x78] sm:$0xff] %vm188, %v187
  // Predicated region
  $region18: #{etfm_forward.7} parent=0 // pred_check
    _
  $region19: #{etfm_forward.7} parent=0 // pred_check_branch
    %206 = sbr.rel (0) target = $region21
  $region20: #{etfm_forward.7} parent=0 // pred_region
    _
  $region21: #{etfm_forward.7} parent=0 // pred_fallthru
    _
  // Predicated region
  $region22: #{etfm_forward.7} parent=0 // pred_check
    _
  $region23: #{etfm_forward.7} parent=0 // pred_check_branch
    %208 = sbr.rel (0) target = $region25
  $region24: #{etfm_forward.7} parent=0 // pred_region
    _
  $region25: #{etfm_forward.7} parent=0 // pred_fallthru
    _

// kernel: etfm_forward.8
$region0: #{etfm_forward.8}
  #allocation0 [shape = 'u32[]', space=smem, size = 0x4, offset = 0x4, fixed_abs, tag = 'smem constant byte address 0x4 - core index']
  #allocation1 [shape = 'u32[72,128]{1,0:T(1,128)}', space=vmem, size = 0x9000, scoped, tag = 'internal scratch']
  #allocation2 [shape = 'f32[2,14,8]{2,1,0:T(8,128)}', space=vmem, size = 0x4000, scoped, tag = 'scratch operand']
  %s0 = inlined_call_operand.vmem [shape: f32[2,64,8,8], index: 0, kind: input, shape index: {}]
  %s1 = inlined_call_operand.vmem [shape: f32[2,64,8,8], index: 1, kind: input, shape index: {}]
  %s2 = inlined_call_operand.vmem [shape: f32[14,8,8], index: 2, kind: input, shape index: {}]
  %s3 = inlined_call_operand.vmem [shape: f32[2,8,8], index: 3, kind: output, shape index: {}]
  %s4 = sld [smem:[#allocation0]]
  $region45: #{etfm_forward.8} parent=0
    _
  %s6 = ssub.s32 1, %s4
  %s7 = scalar_select 0, %s6, %s4
  loop: start=0, step=1, limit=4
  $region2: #{etfm_forward.8} parent=0 // loop_pre_header
    _
  $region3: #{etfm_forward.8} parent=0 // loop_header
    %s9 = sphi 0, %s13
    %p10 = scmp.ge.s32.totalorder %s9, 4
    %s19 = sphi 0, %s21
    %s22 = sphi 0, %s19
    %s23 = sphi 0, %s22
    %s39 = sphi 0, %s23
    %s45 = sphi 0, %s47
    %s48 = sphi 0, %s45
    %s49 = sphi 0, %s48
    %s65 = sphi 0, %s49
    %s69 = sphi 0, %s69
    %s71 = sphi 0, %s69
    %s72 = sphi 0, %s71
    %s86 = sphi 0, %s72
    %s92 = sphi 0, %s94
    %s95 = sphi 0, %s92
    %s96 = sphi 0, %s95
    %s112 = sphi 0, %s96
  $region4: #{etfm_forward.8} parent=0 // loop_header_branch
    %12 = sbr.rel (%p10) target = $region8
  $region5: #{etfm_forward.8} parent=0 // loop_body
    %s14 = ssub.s32 %s9, 1
    %s15 = ssub.s32 %s9, 2
    %s16 = sadd.s32 %s9, 1
    %s17 = ssub.s32 %s9, %s16
    %p18 = scmp.eq.s32.totalorder %s17, 0
    %s20 = sadd.s32 %s19, 1
    %s21 = scalar_select %p18, %s19, %s20
    %p24 = pneg %p18
    %p25 = scmp.eq.s32.totalorder %s9, 1
    %p26 = por %p24, %p25
    %p27 = scmp.ne.s32.totalorder %s19, %s22
    %p28 = scmp.eq.s32.totalorder %s9, 0
    %p29 = por %p27, %p28
    %p30 = scmp.ne.s32.totalorder %s19, %s22
    %p31 = scmp.eq.s32.totalorder %s14, 1
    %p32 = por %p30, %p31
    %p33 = scmp.ne.s32.totalorder %s22, %s23
    %p34 = scmp.eq.s32.totalorder %s14, 0
    %p35 = por %p33, %p34
    %p36 = scmp.ne.s32.totalorder %s22, %s23
    %p37 = scmp.eq.s32.totalorder %s15, 1
    %p38 = por %p36, %p37
    %p40 = scmp.ne.s32.totalorder %s23, %s39
    %p41 = scmp.eq.s32.totalorder %s15, 0
    %p42 = por %p40, %p41
    %s43 = ssub.s32 %s9, %s16
    %p44 = scmp.eq.s32.totalorder %s43, 0
    %s46 = sadd.s32 %s45, 1
    %s47 = scalar_select %p44, %s45, %s46
    %p50 = pneg %p44
    %p51 = scmp.eq.s32.totalorder %s9, 1
    %p52 = por %p50, %p51
    %p53 = scmp.ne.s32.totalorder %s45, %s48
    %p54 = scmp.eq.s32.totalorder %s9, 0
    %p55 = por %p53, %p54
    %p56 = scmp.ne.s32.totalorder %s45, %s48
    %p57 = scmp.eq.s32.totalorder %s14, 1
    %p58 = por %p56, %p57
    %p59 = scmp.ne.s32.totalorder %s48, %s49
    %p60 = scmp.eq.s32.totalorder %s14, 0
    %p61 = por %p59, %p60
    %p62 = scmp.ne.s32.totalorder %s48, %s49
    %p63 = scmp.eq.s32.totalorder %s15, 1
    %p64 = por %p62, %p63
    %p66 = scmp.ne.s32.totalorder %s49, %s65
    %p67 = scmp.eq.s32.totalorder %s15, 0
    %p68 = por %p66, %p67
    %s70 = sadd.s32 %s69, 1
    %p73 = scmp.eq.s32.totalorder %s9, 1
    %p74 = scmp.ne.s32.totalorder %s69, %s71
    %p75 = scmp.eq.s32.totalorder %s9, 0
    %p76 = por %p74, %p75
    %p77 = scmp.ne.s32.totalorder %s69, %s71
    %p78 = scmp.eq.s32.totalorder %s14, 1
    %p79 = por %p77, %p78
    %p80 = scmp.ne.s32.totalorder %s71, %s72
    %p81 = scmp.eq.s32.totalorder %s14, 0
    %p82 = por %p80, %p81
    %p83 = scmp.ne.s32.totalorder %s71, %s72
    %p84 = scmp.eq.s32.totalorder %s15, 1
    %p85 = por %p83, %p84
    %p87 = scmp.ne.s32.totalorder %s72, %s86
    %p88 = scmp.eq.s32.totalorder %s15, 0
    %p89 = por %p87, %p88
    %s90 = ssub.s32 %s9, %s16
    %p91 = scmp.eq.s32.totalorder %s90, 0
    %s93 = sadd.s32 %s92, 1
    %s94 = scalar_select %p91, %s92, %s93
    %p97 = pneg %p91
    %p98 = scmp.eq.s32.totalorder %s9, 1
    %p99 = por %p97, %p98
    %p100 = scmp.ne.s32.totalorder %s92, %s95
    %p101 = scmp.eq.s32.totalorder %s9, 0
    %p102 = por %p100, %p101
    %p103 = scmp.ne.s32.totalorder %s92, %s95
    %p104 = scmp.eq.s32.totalorder %s14, 1
    %p105 = por %p103, %p104
    %p106 = scmp.ne.s32.totalorder %s95, %s96
    %p107 = scmp.eq.s32.totalorder %s14, 0
    %p108 = por %p106, %p107
    %p109 = scmp.ne.s32.totalorder %s95, %s96
    %p110 = scmp.eq.s32.totalorder %s15, 1
    %p111 = por %p109, %p110
    %p113 = scmp.ne.s32.totalorder %s96, %s112
    %p114 = scmp.eq.s32.totalorder %s15, 0
    %p115 = por %p113, %p114
    %p116 = scmp.le.s32.totalorder 1, %s9
    %p117 = scmp.lt.s32.totalorder %s9, 3
    %p118 = pnand %p116, %p117
    %p119 = pneg %p118
    // Predicated region
    $region9: #{etfm_forward.8} parent=5 // pred_check
      _
    $region10: #{etfm_forward.8} parent=5 // pred_check_branch
      %121 = sbr.rel (%p118) target = $region12
    $region11: #{etfm_forward.8} parent=5 // pred_region
      %s122 = ssub.s32 %s9, 1
      // Predicated region
      $region13: #{etfm_forward.8} parent=11 // pred_check
        %p123 = pneg %p82
      $region14: #{etfm_forward.8} parent=11 // pred_check_branch
        %125 = sbr.rel (%p123) target = $region16
      $region15: #{etfm_forward.8} parent=11 // pred_region
        _
      $region16: #{etfm_forward.8} parent=11 // pred_fallthru
        _
    $region12: #{etfm_forward.8} parent=5 // pred_fallthru
      _
    %p126 = scmp.lt.s32.totalorder %s9, 2
    // Predicated region
    $region17: #{etfm_forward.8} parent=5 // pred_check
      %p127 = pneg %p126
    $region18: #{etfm_forward.8} parent=5 // pred_check_branch
      %129 = sbr.rel (%p127) target = $region20
    $region19: #{etfm_forward.8} parent=5 // pred_region
      // Predicated region
      $region21: #{etfm_forward.8} parent=19 // pred_check
        %p130 = pneg %p29
      $region22: #{etfm_forward.8} parent=19 // pred_check_branch
        %132 = sbr.rel (%p130) target = $region24
      $region23: #{etfm_forward.8} parent=19 // pred_region
        %p133 = scmp.lt.s32.totalorder %s9, 1
        %s134 = scalar_select %p133, %s9, 1
        %s135 = smul.addr %s134, 64
        %s136 = smul.addr %s135, 8
        %s137 = scalar_lea.vmem %s0, %s136
      $region24: #{etfm_forward.8} parent=19 // pred_fallthru
        _
      // Predicated region
      $region25: #{etfm_forward.8} parent=19 // pred_check
        %p138 = pneg %p55
      $region26: #{etfm_forward.8} parent=19 // pred_check_branch
        %140 = sbr.rel (%p138) target = $region28
      $region27: #{etfm_forward.8} parent=19 // pred_region
        %p141 = scmp.lt.s32.totalorder %s9, 1
        %s142 = scalar_select %p141, %s9, 1
        %s143 = smul.addr %s142, 64
        %s144 = smul.addr %s143, 8
        %s145 = scalar_lea.vmem %s1, %s144
      $region28: #{etfm_forward.8} parent=19 // pred_fallthru
        _
    $region20: #{etfm_forward.8} parent=5 // pred_fallthru
      _
    %p146 = scmp.le.s32.totalorder 1, %s9
    %p147 = scmp.lt.s32.totalorder %s9, 3
    %p148 = pnand %p146, %p147
    %p149 = pneg %p148
    // Predicated region
    $region29: #{etfm_forward.8} parent=5 // pred_check
      _
    $region30: #{etfm_forward.8} parent=5 // pred_check_branch
      %151 = sbr.rel (%p148) target = $region32
    $region31: #{etfm_forward.8} parent=5 // pred_region
      %s152 = ssub.s32 %s9, 1
      %p153 = scmp.lt.s32.totalorder %s14, 1
      %s154 = scalar_select %p153, %s14, 1
      %s155 = smul.addr %s154, 64
      %s156 = smul.addr %s155, 8
      %s157 = scalar_lea.vmem %s0, %s156
      %p158 = pneg %p35
      %p159 = pneg %p32
      %p160 = scmp.lt.s32.totalorder %s14, 1
      %s161 = scalar_select %p160, %s14, 1
      %s162 = smul.addr %s161, 64
      %s163 = smul.addr %s162, 8
      %s164 = scalar_lea.vmem %s1, %s163
      %p165 = pneg %p61
      %p166 = pneg %p58
      %p167 = pneg %p82
      %p168 = pneg %p79
      %p169 = pneg %p108
      %p170 = pneg %p105
      %p171 = scmp.lt.s32.totalorder %s14, 1
      %s172 = scalar_select %p171, %s14, 1
      %s173 = smul.addr %s172, 8
      %s174 = scalar_lea.vmem %s3, %s173
      %p175 = scmp.lt.s32.totalorder %s14, 1
      %s176 = scalar_select %p175, %s14, 1
      %s177 = smul.addr %s176, 64
      %s178 = smul.addr %s177, 8
      %s179 = scalar_lea.vmem %s0, %s178
      %p180 = scmp.lt.s32.totalorder %s14, 1
      %s181 = scalar_select %p180, %s14, 1
      %s182 = smul.addr %s181, 64
      %s183 = smul.addr %s182, 8
      %s184 = scalar_lea.vmem %s1, %s183
      %p185 = scmp.lt.s32.totalorder %s14, 1
      %s186 = scalar_select %p185, %s14, 1
      %s187 = smul.addr %s186, 8
      %s188 = scalar_lea.vmem %s3, %s187
      %v189 = vld [vmem:[%s179] sm:$0xff]
      %v190 = vld [vmem:[%s179 + $0x8] sm:$0xff]
      %v191 = vld [vmem:[%s179 + $0x10] sm:$0xff]
      %v192 = vld [vmem:[%s179 + $0x18] sm:$0xff]
      %v193 = vld [vmem:[%s179 + $0x20] sm:$0xff]
      %v194 = vld [vmem:[%s179 + $0x28] sm:$0xff]
      %v195 = vld [vmem:[%s179 + $0x30] sm:$0xff]
      %v196 = vld [vmem:[%s179 + $0x38] sm:$0xff]
      %v197 = vld [vmem:[%s179 + $0x40] sm:$0xff]
      %v198 = vld [vmem:[%s179 + $0x48] sm:$0xff]
      %v199 = vld [vmem:[%s179 + $0x50] sm:$0xff]
      %v200 = vld [vmem:[%s179 + $0x58] sm:$0xff]
      %v201 = vld [vmem:[%s179 + $0x60] sm:$0xff]
      %v202 = vld [vmem:[%s179 + $0x68] sm:$0xff]
      %v203 = vld [vmem:[%s179 + $0x70] sm:$0xff]
      %v204 = vld [vmem:[%s179 + $0x78] sm:$0xff]
      %v205 = vld [vmem:[%s179 + $0x80] sm:$0xff]
      %v206 = vld [vmem:[%s179 + $0x88] sm:$0xff]
      %v207 = vld [vmem:[%s179 + $0x90] sm:$0xff]
      %v208 = vld [vmem:[%s179 + $0x98] sm:$0xff]
      %v209 = vld [vmem:[%s179 + $0xa0] sm:$0xff]
      %v210 = vld [vmem:[%s179 + $0xa8] sm:$0xff]
      %v211 = vld [vmem:[%s179 + $0xb0] sm:$0xff]
      %v212 = vld [vmem:[%s179 + $0xb8] sm:$0xff]
      %v213 = vld [vmem:[%s179 + $0xc0] sm:$0xff]
      %v214 = vld [vmem:[%s179 + $0xc8] sm:$0xff]
      %v215 = vld [vmem:[%s179 + $0xd0] sm:$0xff]
      %v216 = vld [vmem:[%s179 + $0xd8] sm:$0xff]
      %v217 = vld [vmem:[%s179 + $0xe0] sm:$0xff]
      %v218 = vld [vmem:[%s179 + $0xe8] sm:$0xff]
      %v219 = vld [vmem:[%s179 + $0xf0] sm:$0xff]
      %v220 = vld [vmem:[%s179 + $0xf8] sm:$0xff]
      %v221 = vld [vmem:[%s179 + $0x100] sm:$0xff]
      %v222 = vld [vmem:[%s179 + $0x108] sm:$0xff]
      %v223 = vld [vmem:[%s179 + $0x110] sm:$0xff]
      %v224 = vld [vmem:[%s179 + $0x118] sm:$0xff]
      %v225 = vld [vmem:[%s179 + $0x120] sm:$0xff]
      %v226 = vld [vmem:[%s179 + $0x128] sm:$0xff]
      %v227 = vld [vmem:[%s179 + $0x130] sm:$0xff]
      %v228 = vld [vmem:[%s179 + $0x138] sm:$0xff]
      %v229 = vld [vmem:[%s179 + $0x140] sm:$0xff]
      %v230 = vld [vmem:[%s179 + $0x148] sm:$0xff]
      %v231 = vld [vmem:[%s179 + $0x150] sm:$0xff]
      %v232 = vld [vmem:[%s179 + $0x158] sm:$0xff]
      %v233 = vld [vmem:[%s179 + $0x160] sm:$0xff]
      %v234 = vld [vmem:[%s179 + $0x168] sm:$0xff]
      %v235 = vld [vmem:[%s179 + $0x170] sm:$0xff]
      %v236 = vld [vmem:[%s179 + $0x178] sm:$0xff]
      %v237 = vld [vmem:[%s179 + $0x180] sm:$0xff]
      %v238 = vld [vmem:[%s179 + $0x188] sm:$0xff]
      %v239 = vld [vmem:[%s179 + $0x190] sm:$0xff]
      %v240 = vld [vmem:[%s179 + $0x198] sm:$0xff]
      %v241 = vld [vmem:[%s179 + $0x1a0] sm:$0xff]
      %v242 = vld [vmem:[%s179 + $0x1a8] sm:$0xff]
      %v243 = vld [vmem:[%s179 + $0x1b0] sm:$0xff]
      %v244 = vld [vmem:[%s179 + $0x1b8] sm:$0xff]
      %v245 = vld [vmem:[%s179 + $0x1c0] sm:$0xff]
      %v246 = vld [vmem:[%s179 + $0x1c8] sm:$0xff]
      %v247 = vld [vmem:[%s179 + $0x1d0] sm:$0xff]
      %v248 = vld [vmem:[%s179 + $0x1d8] sm:$0xff]
      %v249 = vld [vmem:[%s179 + $0x1e0] sm:$0xff]
      %v250 = vld [vmem:[%s179 + $0x1e8] sm:$0xff]
      %v251 = vld [vmem:[%s179 + $0x1f0] sm:$0xff]
      %v252 = vld [vmem:[%s179 + $0x1f8] sm:$0xff]
      %v253 = vld [vmem:[%s184] sm:$0xff]
      %v254 = vld [vmem:[%s184 + $0x8] sm:$0xff]
      %v255 = vld [vmem:[%s184 + $0x10] sm:$0xff]
      %v256 = vld [vmem:[%s184 + $0x18] sm:$0xff]
      %v257 = vld [vmem:[%s184 + $0x20] sm:$0xff]
      %v258 = vld [vmem:[%s184 + $0x28] sm:$0xff]
      %v259 = vld [vmem:[%s184 + $0x30] sm:$0xff]
      %v260 = vld [vmem:[%s184 + $0x38] sm:$0xff]
      %v261 = vld [vmem:[%s184 + $0x40] sm:$0xff]
      %v262 = vld [vmem:[%s184 + $0x48] sm:$0xff]
      %v263 = vld [vmem:[%s184 + $0x50] sm:$0xff]
      %v264 = vld [vmem:[%s184 + $0x58] sm:$0xff]
      %v265 = vld [vmem:[%s184 + $0x60] sm:$0xff]
      %v266 = vld [vmem:[%s184 + $0x68] sm:$0xff]
      %v267 = vld [vmem:[%s184 + $0x70] sm:$0xff]
      %v268 = vld [vmem:[%s184 + $0x78] sm:$0xff]
      %v269 = vld [vmem:[%s184 + $0x80] sm:$0xff]
      %v270 = vld [vmem:[%s184 + $0x88] sm:$0xff]
      %v271 = vld [vmem:[%s184 + $0x90] sm:$0xff]
      %v272 = vld [vmem:[%s184 + $0x98] sm:$0xff]
      %v273 = vld [vmem:[%s184 + $0xa0] sm:$0xff]
      %v274 = vld [vmem:[%s184 + $0xa8] sm:$0xff]
      %v275 = vld [vmem:[%s184 + $0xb0] sm:$0xff]
      %v276 = vld [vmem:[%s184 + $0xb8] sm:$0xff]
      %v277 = vld [vmem:[%s184 + $0xc0] sm:$0xff]
      %v278 = vld [vmem:[%s184 + $0xc8] sm:$0xff]
      %v279 = vld [vmem:[%s184 + $0xd0] sm:$0xff]
      %v280 = vld [vmem:[%s184 + $0xd8] sm:$0xff]
      %v281 = vld [vmem:[%s184 + $0xe0] sm:$0xff]
      %v282 = vld [vmem:[%s184 + $0xe8] sm:$0xff]
      %v283 = vld [vmem:[%s184 + $0xf0] sm:$0xff]
      %v284 = vld [vmem:[%s184 + $0xf8] sm:$0xff]
      %v285 = vld [vmem:[%s184 + $0x100] sm:$0xff]
      %v286 = vld [vmem:[%s184 + $0x108] sm:$0xff]
      %v287 = vld [vmem:[%s184 + $0x110] sm:$0xff]
      %v288 = vld [vmem:[%s184 + $0x118] sm:$0xff]
      %v289 = vld [vmem:[%s184 + $0x120] sm:$0xff]
      %v290 = vld [vmem:[%s184 + $0x128] sm:$0xff]
      %v291 = vld [vmem:[%s184 + $0x130] sm:$0xff]
      %v292 = vld [vmem:[%s184 + $0x138] sm:$0xff]
      %v293 = vld [vmem:[%s184 + $0x140] sm:$0xff]
      %v294 = vld [vmem:[%s184 + $0x148] sm:$0xff]
      %v295 = vld [vmem:[%s184 + $0x150] sm:$0xff]
      %v296 = vld [vmem:[%s184 + $0x158] sm:$0xff]
      %v297 = vld [vmem:[%s184 + $0x160] sm:$0xff]
      %v298 = vld [vmem:[%s184 + $0x168] sm:$0xff]
      %v299 = vld [vmem:[%s184 + $0x170] sm:$0xff]
      %v300 = vld [vmem:[%s184 + $0x178] sm:$0xff]
      %v301 = vld [vmem:[%s184 + $0x180] sm:$0xff]
      %v302 = vld [vmem:[%s184 + $0x188] sm:$0xff]
      %v303 = vld [vmem:[%s184 + $0x190] sm:$0xff]
      %v304 = vld [vmem:[%s184 + $0x198] sm:$0xff]
      %v305 = vld [vmem:[%s184 + $0x1a0] sm:$0xff]
      %v306 = vld [vmem:[%s184 + $0x1a8] sm:$0xff]
      %v307 = vld [vmem:[%s184 + $0x1b0] sm:$0xff]
      %v308 = vld [vmem:[%s184 + $0x1b8] sm:$0xff]
      %v309 = vld [vmem:[%s184 + $0x1c0] sm:$0xff]
      %v310 = vld [vmem:[%s184 + $0x1c8] sm:$0xff]
      %v311 = vld [vmem:[%s184 + $0x1d0] sm:$0xff]
      %v312 = vld [vmem:[%s184 + $0x1d8] sm:$0xff]
      %v313 = vld [vmem:[%s184 + $0x1e0] sm:$0xff]
      %v314 = vld [vmem:[%s184 + $0x1e8] sm:$0xff]
      %v315 = vld [vmem:[%s184 + $0x1f0] sm:$0xff]
      %v316 = vld [vmem:[%s184 + $0x1f8] sm:$0xff]
      %v317 = vmul.f32 %v189, %v253
      %v318 = vmul.f32 %v190, %v254
      %v319 = vmul.f32 %v191, %v255
      %v320 = vmul.f32 %v192, %v256
      %v321 = vmul.f32 %v193, %v257
      %v322 = vmul.f32 %v194, %v258
      %v323 = vmul.f32 %v195, %v259
      %v324 = vmul.f32 %v196, %v260
      %v325 = vmul.f32 %v197, %v261
      %v326 = vmul.f32 %v198, %v262
      %v327 = vmul.f32 %v199, %v263
      %v328 = vmul.f32 %v200, %v264
      %v329 = vmul.f32 %v201, %v265
      %v330 = vmul.f32 %v202, %v266
      %v331 = vmul.f32 %v203, %v267
      %v332 = vmul.f32 %v204, %v268
      %v333 = vmul.f32 %v205, %v269
      %v334 = vmul.f32 %v206, %v270
      %v335 = vmul.f32 %v207, %v271
      %v336 = vmul.f32 %v208, %v272
      %v337 = vmul.f32 %v209, %v273
      %v338 = vmul.f32 %v210, %v274
      %v339 = vmul.f32 %v211, %v275
      %v340 = vmul.f32 %v212, %v276
      %v341 = vmul.f32 %v213, %v277
      %v342 = vmul.f32 %v214, %v278
      %v343 = vmul.f32 %v215, %v279
      %v344 = vmul.f32 %v216, %v280
      %v345 = vmul.f32 %v217, %v281
      %v346 = vmul.f32 %v218, %v282
      %v347 = vmul.f32 %v219, %v283
      %v348 = vmul.f32 %v220, %v284
      %v349 = vmul.f32 %v221, %v285
      %v350 = vmul.f32 %v222, %v286
      %v351 = vmul.f32 %v223, %v287
      %v352 = vmul.f32 %v224, %v288
      %v353 = vmul.f32 %v225, %v289
      %v354 = vmul.f32 %v226, %v290
      %v355 = vmul.f32 %v227, %v291
      %v356 = vmul.f32 %v228, %v292
      %v357 = vmul.f32 %v229, %v293
      %v358 = vmul.f32 %v230, %v294
      %v359 = vmul.f32 %v231, %v295
      %v360 = vmul.f32 %v232, %v296
      %v361 = vmul.f32 %v233, %v297
      %v362 = vmul.f32 %v234, %v298
      %v363 = vmul.f32 %v235, %v299
      %v364 = vmul.f32 %v236, %v300
      %v365 = vmul.f32 %v237, %v301
      %v366 = vmul.f32 %v238, %v302
      %v367 = vmul.f32 %v239, %v303
      %v368 = vmul.f32 %v240, %v304
      %v369 = vmul.f32 %v241, %v305
      %v370 = vmul.f32 %v242, %v306
      %v371 = vmul.f32 %v243, %v307
      %v372 = vmul.f32 %v244, %v308
      %v373 = vmul.f32 %v245, %v309
      %v374 = vmul.f32 %v246, %v310
      %v375 = vmul.f32 %v247, %v311
      %v376 = vmul.f32 %v248, %v312
      %v377 = vmul.f32 %v249, %v313
      %v378 = vmul.f32 %v250, %v314
      %v379 = vmul.f32 %v251, %v315
      %v380 = vmul.f32 %v252, %v316
      %vm381 = vcmask 64512
      %v382 = vsel %vm381, %v317, 0.0
      %v383 = vsel %vm381, %v318, 0.0
      %v384 = vadd.f32 %v382, %v383
      %v385 = vsel %vm381, %v319, 0.0
      %v386 = vadd.f32 %v384, %v385
      %v387 = vsel %vm381, %v320, 0.0
      %v388 = vadd.f32 %v386, %v387
      %v389 = vsel %vm381, %v321, 0.0
      %v390 = vadd.f32 %v388, %v389
      %v391 = vsel %vm381, %v322, 0.0
      %v392 = vadd.f32 %v390, %v391
      %v393 = vsel %vm381, %v323, 0.0
      %v394 = vadd.f32 %v392, %v393
      %v395 = vsel %vm381, %v324, 0.0
      %v396 = vadd.f32 %v394, %v395
      %v397 = vsel %vm381, %v325, 0.0
      %v398 = vadd.f32 %v396, %v397
      %v399 = vsel %vm381, %v326, 0.0
      %v400 = vadd.f32 %v398, %v399
      %v401 = vsel %vm381, %v327, 0.0
      %v402 = vadd.f32 %v400, %v401
      %v403 = vsel %vm381, %v328, 0.0
      %v404 = vadd.f32 %v402, %v403
      %v405 = vsel %vm381, %v329, 0.0
      %v406 = vadd.f32 %v404, %v405
      %v407 = vsel %vm381, %v330, 0.0
      %v408 = vadd.f32 %v406, %v407
      %v409 = vsel %vm381, %v331, 0.0
      %v410 = vadd.f32 %v408, %v409
      %v411 = vsel %vm381, %v332, 0.0
      %v412 = vadd.f32 %v410, %v411
      %v413 = vsel %vm381, %v333, 0.0
      %v414 = vadd.f32 %v412, %v413
      %v415 = vsel %vm381, %v334, 0.0
      %v416 = vadd.f32 %v414, %v415
      %v417 = vsel %vm381, %v335, 0.0
      %v418 = vadd.f32 %v416, %v417
      %v419 = vsel %vm381, %v336, 0.0
      %v420 = vadd.f32 %v418, %v419
      %v421 = vsel %vm381, %v337, 0.0
      %v422 = vadd.f32 %v420, %v421
      %v423 = vsel %vm381, %v338, 0.0
      %v424 = vadd.f32 %v422, %v423
      %v425 = vsel %vm381, %v339, 0.0
      %v426 = vadd.f32 %v424, %v425
      %v427 = vsel %vm381, %v340, 0.0
      %v428 = vadd.f32 %v426, %v427
      %v429 = vsel %vm381, %v341, 0.0
      %v430 = vadd.f32 %v428, %v429
      %v431 = vsel %vm381, %v342, 0.0
      %v432 = vadd.f32 %v430, %v431
      %v433 = vsel %vm381, %v343, 0.0
      %v434 = vadd.f32 %v432, %v433
      %v435 = vsel %vm381, %v344, 0.0
      %v436 = vadd.f32 %v434, %v435
      %v437 = vsel %vm381, %v345, 0.0
      %v438 = vadd.f32 %v436, %v437
      %v439 = vsel %vm381, %v346, 0.0
      %v440 = vadd.f32 %v438, %v439
      %v441 = vsel %vm381, %v347, 0.0
      %v442 = vadd.f32 %v440, %v441
      %v443 = vsel %vm381, %v348, 0.0
      %v444 = vadd.f32 %v442, %v443
      %v445 = vsel %vm381, %v349, 0.0
      %v446 = vadd.f32 %v444, %v445
      %v447 = vsel %vm381, %v350, 0.0
      %v448 = vadd.f32 %v446, %v447
      %v449 = vsel %vm381, %v351, 0.0
      %v450 = vadd.f32 %v448, %v449
      %v451 = vsel %vm381, %v352, 0.0
      %v452 = vadd.f32 %v450, %v451
      %v453 = vsel %vm381, %v353, 0.0
      %v454 = vadd.f32 %v452, %v453
      %v455 = vsel %vm381, %v354, 0.0
      %v456 = vadd.f32 %v454, %v455
      %v457 = vsel %vm381, %v355, 0.0
      %v458 = vadd.f32 %v456, %v457
      %v459 = vsel %vm381, %v356, 0.0
      %v460 = vadd.f32 %v458, %v459
      %v461 = vsel %vm381, %v357, 0.0
      %v462 = vadd.f32 %v460, %v461
      %v463 = vsel %vm381, %v358, 0.0
      %v464 = vadd.f32 %v462, %v463
      %v465 = vsel %vm381, %v359, 0.0
      %v466 = vadd.f32 %v464, %v465
      %v467 = vsel %vm381, %v360, 0.0
      %v468 = vadd.f32 %v466, %v467
      %v469 = vsel %vm381, %v361, 0.0
      %v470 = vadd.f32 %v468, %v469
      %v471 = vsel %vm381, %v362, 0.0
      %v472 = vadd.f32 %v470, %v471
      %v473 = vsel %vm381, %v363, 0.0
      %v474 = vadd.f32 %v472, %v473
      %v475 = vsel %vm381, %v364, 0.0
      %v476 = vadd.f32 %v474, %v475
      %v477 = vsel %vm381, %v365, 0.0
      %v478 = vadd.f32 %v476, %v477
      %v479 = vsel %vm381, %v366, 0.0
      %v480 = vadd.f32 %v478, %v479
      %v481 = vsel %vm381, %v367, 0.0
      %v482 = vadd.f32 %v480, %v481
      %v483 = vsel %vm381, %v368, 0.0
      %v484 = vadd.f32 %v482, %v483
      %v485 = vsel %vm381, %v369, 0.0
      %v486 = vadd.f32 %v484, %v485
      %v487 = vsel %vm381, %v370, 0.0
      %v488 = vadd.f32 %v486, %v487
      %v489 = vsel %vm381, %v371, 0.0
      %v490 = vadd.f32 %v488, %v489
      %v491 = vsel %vm381, %v372, 0.0
      %v492 = vadd.f32 %v490, %v491
      %v493 = vsel %vm381, %v373, 0.0
      %v494 = vadd.f32 %v492, %v493
      %v495 = vsel %vm381, %v374, 0.0
      %v496 = vadd.f32 %v494, %v495
      %v497 = vsel %vm381, %v375, 0.0
      %v498 = vadd.f32 %v496, %v497
      %v499 = vsel %vm381, %v376, 0.0
      %v500 = vadd.f32 %v498, %v499
      %v501 = vsel %vm381, %v377, 0.0
      %v502 = vadd.f32 %v500, %v501
      %v503 = vsel %vm381, %v378, 0.0
      %v504 = vadd.f32 %v502, %v503
      %v505 = vsel %vm381, %v379, 0.0
      %v506 = vadd.f32 %v504, %v505
      %v507 = vsel %vm381, %v380, 0.0
      %v508 = vadd.f32 %v506, %v507
      %v509 = vrcp.pop 64.0
      %v510 = vmul.f32 64.0, %v509
      %v511 = vsub.f32 1.0, %v510
      %v512 = vmul.f32 %v509, %v511
      %v513 = vadd.f32 %v509, %v512
      %vm514 = vweird.f32 %v509
      %v515 = vsel %vm514, %v509, %v513
      %v516 = vmul.f32 %v508, %v515
      %v517 = vsel %vm381, %v317, -inf
      %v518 = vsel %vm381, %v318, -inf
      %v519 = vsel %vm381, %v319, -inf
      %v520 = vsel %vm381, %v320, -inf
      %v521 = vsel %vm381, %v321, -inf
      %v522 = vmax.f32 %v517, %v521
      %v523 = vsel %vm381, %v322, -inf
      %v524 = vmax.f32 %v518, %v523
      %v525 = vsel %vm381, %v323, -inf
      %v526 = vmax.f32 %v519, %v525
      %v527 = vsel %vm381, %v324, -inf
      %v528 = vmax.f32 %v520, %v527
      %v529 = vsel %vm381, %v325, -inf
      %v530 = vmax.f32 %v522, %v529
      %v531 = vsel %vm381, %v326, -inf
      %v532 = vmax.f32 %v524, %v531
      %v533 = vsel %vm381, %v327, -inf
      %v534 = vmax.f32 %v526, %v533
      %v535 = vsel %vm381, %v328, -inf
      %v536 = vmax.f32 %v528, %v535
      %v537 = vsel %vm381, %v329, -inf
      %v538 = vmax.f32 %v530, %v537
      %v539 = vsel %vm381, %v330, -inf
      %v540 = vmax.f32 %v532, %v539
      %v541 = vsel %vm381, %v331, -inf
      %v542 = vmax.f32 %v534, %v541
      %v543 = vsel %vm381, %v332, -inf
      %v544 = vmax.f32 %v536, %v543
      %v545 = vsel %vm381, %v333, -inf
      %v546 = vmax.f32 %v538, %v545
      %v547 = vsel %vm381, %v334, -inf
      %v548 = vmax.f32 %v540, %v547
      %v549 = vsel %vm381, %v335, -inf
      %v550 = vmax.f32 %v542, %v549
      %v551 = vsel %vm381, %v336, -inf
      %v552 = vmax.f32 %v544, %v551
      %v553 = vsel %vm381, %v337, -inf
      %v554 = vmax.f32 %v546, %v553
      %v555 = vsel %vm381, %v338, -inf
      %v556 = vmax.f32 %v548, %v555
      %v557 = vsel %vm381, %v339, -inf
      %v558 = vmax.f32 %v550, %v557
      %v559 = vsel %vm381, %v340, -inf
      %v560 = vmax.f32 %v552, %v559
      %v561 = vsel %vm381, %v341, -inf
      %v562 = vmax.f32 %v554, %v561
      %v563 = vsel %vm381, %v342, -inf
      %v564 = vmax.f32 %v556, %v563
      %v565 = vsel %vm381, %v343, -inf
      %v566 = vmax.f32 %v558, %v565
      %v567 = vsel %vm381, %v344, -inf
      %v568 = vmax.f32 %v560, %v567
      %v569 = vsel %vm381, %v345, -inf
      %v570 = vmax.f32 %v562, %v569
      %v571 = vsel %vm381, %v346, -inf
      %v572 = vmax.f32 %v564, %v571
      %v573 = vsel %vm381, %v347, -inf
      %v574 = vmax.f32 %v566, %v573
      %v575 = vsel %vm381, %v348, -inf
      %v576 = vmax.f32 %v568, %v575
      %v577 = vsel %vm381, %v349, -inf
      %v578 = vmax.f32 %v570, %v577
      %v579 = vsel %vm381, %v350, -inf
      %v580 = vmax.f32 %v572, %v579
      %v581 = vsel %vm381, %v351, -inf
      %v582 = vmax.f32 %v574, %v581
      %v583 = vsel %vm381, %v352, -inf
      %v584 = vmax.f32 %v576, %v583
      %v585 = vsel %vm381, %v353, -inf
      %v586 = vmax.f32 %v578, %v585
      %v587 = vsel %vm381, %v354, -inf
      %v588 = vmax.f32 %v580, %v587
      %v589 = vsel %vm381, %v355, -inf
      %v590 = vmax.f32 %v582, %v589
      %v591 = vsel %vm381, %v356, -inf
      %v592 = vmax.f32 %v584, %v591
      %v593 = vsel %vm381, %v357, -inf
      %v594 = vmax.f32 %v586, %v593
      %v595 = vsel %vm381, %v358, -inf
      %v596 = vmax.f32 %v588, %v595
      %v597 = vsel %vm381, %v359, -inf
      %v598 = vmax.f32 %v590, %v597
      %v599 = vsel %vm381, %v360, -inf
      %v600 = vmax.f32 %v592, %v599
      %v601 = vsel %vm381, %v361, -inf
      %v602 = vmax.f32 %v594, %v601
      %v603 = vsel %vm381, %v362, -inf
      %v604 = vmax.f32 %v596, %v603
      %v605 = vsel %vm381, %v363, -inf
      %v606 = vmax.f32 %v598, %v605
      %v607 = vsel %vm381, %v364, -inf
      %v608 = vmax.f32 %v600, %v607
      %v609 = vsel %vm381, %v365, -inf
      %v610 = vmax.f32 %v602, %v609
      %v611 = vsel %vm381, %v366, -inf
      %v612 = vmax.f32 %v604, %v611
      %v613 = vsel %vm381, %v367, -inf
      %v614 = vmax.f32 %v606, %v613
      %v615 = vsel %vm381, %v368, -inf
      %v616 = vmax.f32 %v608, %v615
      %v617 = vsel %vm381, %v369, -inf
      %v618 = vmax.f32 %v610, %v617
      %v619 = vsel %vm381, %v370, -inf
      %v620 = vmax.f32 %v612, %v619
      %v621 = vsel %vm381, %v371, -inf
      %v622 = vmax.f32 %v614, %v621
      %v623 = vsel %vm381, %v372, -inf
      %v624 = vmax.f32 %v616, %v623
      %v625 = vsel %vm381, %v373, -inf
      %v626 = vmax.f32 %v618, %v625
      %v627 = vsel %vm381, %v374, -inf
      %v628 = vmax.f32 %v620, %v627
      %v629 = vsel %vm381, %v375, -inf
      %v630 = vmax.f32 %v622, %v629
      %v631 = vsel %vm381, %v376, -inf
      %v632 = vmax.f32 %v624, %v631
      %v633 = vsel %vm381, %v377, -inf
      %v634 = vmax.f32 %v626, %v633
      %v635 = vsel %vm381, %v378, -inf
      %v636 = vmax.f32 %v628, %v635
      %v637 = vsel %vm381, %v379, -inf
      %v638 = vmax.f32 %v630, %v637
      %v639 = vsel %vm381, %v380, -inf
      %v640 = vmax.f32 %v632, %v639
      %v641 = vmax.f32 %v634, %v636
      %v642 = vmax.f32 %v638, %v640
      %v643 = vmax.f32 %v641, %v642
      %644 = vst.msk [vmem:[#allocation2] sm:$0xff] %vm381, 0.0
      %vm645 = vcmask 62464
      %646 = vst.msk [vmem:[#allocation2 + $0x8] sm:$0x3f] %vm645, 0.0
      %647 = vst.msk [vmem:[#allocation2 + $0x10] sm:$0xff] %vm381, 0.0
      %648 = vst.msk [vmem:[#allocation2 + $0x18] sm:$0x3f] %vm645, 0.0
      %649 = vst.msk [vmem:[#allocation2 + $0x3] sm:$0xff] %vm381, %v516
      %s650 = scalar_lea.vmem [#allocation2], 16
      %651 = vst.msk [vmem:[%s650 + $0x3] sm:$0xff] %vm381, %v643
      %v652 = vld [vmem:[#allocation2] sm:$0xff]
      %v653 = vld [vmem:[%s2] sm:$0xff]
      %v654 = vld [vmem:[#allocation2 + $0x1] sm:$0xff]
      %s655 = scalar_lea.vmem %s2, 8
      %v656 = vld [vmem:[%s655] sm:$0xff]
      %v658 = vsel %vm381, %v654, 0
      %660 = vmatpush.msra.mxu0 0.0
      %661 = vmatpush.msra.mxu0 0.0
      %662 = vmatpush.msra.mxu0 0.0
      %663 = vmatpush.msra.mxu0 0.0
      %664 = vmatpush.msra.mxu0 0.0
      %665 = vmatpush.msra.mxu0 0.0
      %666 = vmatpush.msra.mxu0 0.0
      %667 = vmatpush.msra.mxu0 0.0
      %668 = vmatpush.msra.mxu0 0.0
      %669 = vmatpush.msra.mxu0 0.0
      %670 = vmatpush.msra.mxu0 0.0
      %671 = vmatpush.msra.mxu0 0.0
      %672 = vmatpush.msra.mxu0 0.0
      %673 = vmatpush.msra.mxu0 0.0
      %674 = vmatpush.msra.mxu0 0.0
      %675 = vmatpush.msra.mxu0 %v656
      %676 = vmatmul.f32.gmra.mxu0 %v658
      %v677 = vpop.f32.mrf.mxu0
      %v678 = vadd.f32 0.0, %v677
      %679 = vdwg.mxu0
      %v681 = vsel %vm381, %v652, 0
      %683 = vmatpush.msra.mxu0 0.0
      %684 = vmatpush.msra.mxu0 0.0
      %685 = vmatpush.msra.mxu0 0.0
      %686 = vmatpush.msra.mxu0 0.0
      %687 = vmatpush.msra.mxu0 0.0
      %688 = vmatpush.msra.mxu0 0.0
      %689 = vmatpush.msra.mxu0 0.0
      %690 = vmatpush.msra.mxu0 0.0
      %691 = vmatpush.msra.mxu0 0.0
      %692 = vmatpush.msra.mxu0 0.0
      %693 = vmatpush.msra.mxu0 0.0
      %694 = vmatpush.msra.mxu0 0.0
      %695 = vmatpush.msra.mxu0 0.0
      %696 = vmatpush.msra.mxu0 0.0
      %697 = vmatpush.msra.mxu0 0.0
      %698 = vmatpush.msra.mxu0 %v653
      %699 = vmatmul.f32.gmra.mxu0 %v681
      %v700 = vpop.f32.mrf.mxu0
      %v701 = vadd.f32 %v678, %v700
      %702 = vdwg.mxu0
      %v703 = vld [vmem:[#allocation2 + $0x2] sm:$0xff]
      %s704 = scalar_lea.vmem %s2, 16
      %v705 = vld [vmem:[%s704] sm:$0xff]
      %v707 = vsel %vm381, %v703, 0
      %709 = vmatpush.msra.mxu0 0.0
      %710 = vmatpush.msra.mxu0 0.0
      %711 = vmatpush.msra.mxu0 0.0
      %712 = vmatpush.msra.mxu0 0.0
      %713 = vmatpush.msra.mxu0 0.0
      %714 = vmatpush.msra.mxu0 0.0
      %715 = vmatpush.msra.mxu0 0.0
      %716 = vmatpush.msra.mxu0 0.0
      %717 = vmatpush.msra.mxu0 0.0
      %718 = vmatpush.msra.mxu0 0.0
      %719 = vmatpush.msra.mxu0 0.0
      %720 = vmatpush.msra.mxu0 0.0
      %721 = vmatpush.msra.mxu0 0.0
      %722 = vmatpush.msra.mxu0 0.0
      %723 = vmatpush.msra.mxu0 0.0
      %724 = vmatpush.msra.mxu0 %v705
      %725 = vmatmul.f32.gmra.mxu0 %v707
      %v726 = vpop.f32.mrf.mxu0
      %v727 = vadd.f32 0.0, %v726
      %728 = vdwg.mxu0
      %v729 = vadd.f32 %v701, %v727
      %v730 = vld [vmem:[#allocation2 + $0x3] sm:$0xff]
      %s731 = scalar_lea.vmem %s2, 24
      %v732 = vld [vmem:[%s731] sm:$0xff]
      %v734 = vsel %vm381, %v730, 0
      %736 = vmatpush.msra.mxu0 0.0
      %737 = vmatpush.msra.mxu0 0.0
      %738 = vmatpush.msra.mxu0 0.0
      %739 = vmatpush.msra.mxu0 0.0
      %740 = vmatpush.msra.mxu0 0.0
      %741 = vmatpush.msra.mxu0 0.0
      %742 = vmatpush.msra.mxu0 0.0
      %743 = vmatpush.msra.mxu0 0.0
      %744 = vmatpush.msra.mxu0 0.0
      %745 = vmatpush.msra.mxu0 0.0
      %746 = vmatpush.msra.mxu0 0.0
      %747 = vmatpush.msra.mxu0 0.0
      %748 = vmatpush.msra.mxu0 0.0
      %749 = vmatpush.msra.mxu0 0.0
      %750 = vmatpush.msra.mxu0 0.0
      %751 = vmatpush.msra.mxu0 %v732
      %752 = vmatmul.f32.gmra.mxu0 %v734
      %v753 = vpop.f32.mrf.mxu0
      %v754 = vadd.f32 0.0, %v753
      %755 = vdwg.mxu0
      %v756 = vadd.f32 %v729, %v754
      %v757 = vld [vmem:[#allocation2 + $0x4] sm:$0xff]
      %s758 = scalar_lea.vmem %s2, 32
      %v759 = vld [vmem:[%s758] sm:$0xff]
      %v761 = vsel %vm381, %v757, 0
      %763 = vmatpush.msra.mxu0 0.0
      %764 = vmatpush.msra.mxu0 0.0
      %765 = vmatpush.msra.mxu0 0.0
      %766 = vmatpush.msra.mxu0 0.0
      %767 = vmatpush.msra.mxu0 0.0
      %768 = vmatpush.msra.mxu0 0.0
      %769 = vmatpush.msra.mxu0 0.0
      %770 = vmatpush.msra.mxu0 0.0
      %771 = vmatpush.msra.mxu0 0.0
      %772 = vmatpush.msra.mxu0 0.0
      %773 = vmatpush.msra.mxu0 0.0
      %774 = vmatpush.msra.mxu0 0.0
      %775 = vmatpush.msra.mxu0 0.0
      %776 = vmatpush.msra.mxu0 0.0
      %777 = vmatpush.msra.mxu0 0.0
      %778 = vmatpush.msra.mxu0 %v759
      %779 = vmatmul.f32.gmra.mxu0 %v761
      %v780 = vpop.f32.mrf.mxu0
      %v781 = vadd.f32 0.0, %v780
      %782 = vdwg.mxu0
      %v783 = vadd.f32 %v756, %v781
      %v784 = vld [vmem:[#allocation2 + $0x5] sm:$0xff]
      %s785 = scalar_lea.vmem %s2, 40
      %v786 = vld [vmem:[%s785] sm:$0xff]
      %v788 = vsel %vm381, %v784, 0
      %790 = vmatpush.msra.mxu0 0.0
      %791 = vmatpush.msra.mxu0 0.0
      %792 = vmatpush.msra.mxu0 0.0
      %793 = vmatpush.msra.mxu0 0.0
      %794 = vmatpush.msra.mxu0 0.0
      %795 = vmatpush.msra.mxu0 0.0
      %796 = vmatpush.msra.mxu0 0.0
      %797 = vmatpush.msra.mxu0 0.0
      %798 = vmatpush.msra.mxu0 0.0
      %799 = vmatpush.msra.mxu0 0.0
      %800 = vmatpush.msra.mxu0 0.0
      %801 = vmatpush.msra.mxu0 0.0
      %802 = vmatpush.msra.mxu0 0.0
      %803 = vmatpush.msra.mxu0 0.0
      %804 = vmatpush.msra.mxu0 0.0
      %805 = vmatpush.msra.mxu0 %v786
      %806 = vmatmul.f32.gmra.mxu0 %v788
      %v807 = vpop.f32.mrf.mxu0
      %v808 = vadd.f32 0.0, %v807
      %809 = vdwg.mxu0
      %v810 = vadd.f32 %v783, %v808
      %v811 = vld [vmem:[#allocation2 + $0x6] sm:$0xff]
      %s812 = scalar_lea.vmem %s2, 48
      %v813 = vld [vmem:[%s812] sm:$0xff]
      %v815 = vsel %vm381, %v811, 0
      %817 = vmatpush.msra.mxu0 0.0
      %818 = vmatpush.msra.mxu0 0.0
      %819 = vmatpush.msra.mxu0 0.0
      %820 = vmatpush.msra.mxu0 0.0
      %821 = vmatpush.msra.mxu0 0.0
      %822 = vmatpush.msra.mxu0 0.0
      %823 = vmatpush.msra.mxu0 0.0
      %824 = vmatpush.msra.mxu0 0.0
      %825 = vmatpush.msra.mxu0 0.0
      %826 = vmatpush.msra.mxu0 0.0
      %827 = vmatpush.msra.mxu0 0.0
      %828 = vmatpush.msra.mxu0 0.0
      %829 = vmatpush.msra.mxu0 0.0
      %830 = vmatpush.msra.mxu0 0.0
      %831 = vmatpush.msra.mxu0 0.0
      %832 = vmatpush.msra.mxu0 %v813
      %833 = vmatmul.f32.gmra.mxu0 %v815
      %v834 = vpop.f32.mrf.mxu0
      %v835 = vadd.f32 0.0, %v834
      %836 = vdwg.mxu0
      %v837 = vadd.f32 %v810, %v835
      %v838 = vld [vmem:[%s650] sm:$0xff]
      %s839 = scalar_lea.vmem %s2, 56
      %v840 = vld [vmem:[%s839] sm:$0xff]
      %v842 = vsel %vm381, %v838, 0
      %844 = vmatpush.msra.mxu0 0.0
      %845 = vmatpush.msra.mxu0 0.0
      %846 = vmatpush.msra.mxu0 0.0
      %847 = vmatpush.msra.mxu0 0.0
      %848 = vmatpush.msra.mxu0 0.0
      %849 = vmatpush.msra.mxu0 0.0
      %850 = vmatpush.msra.mxu0 0.0
      %851 = vmatpush.msra.mxu0 0.0
      %852 = vmatpush.msra.mxu0 0.0
      %853 = vmatpush.msra.mxu0 0.0
      %854 = vmatpush.msra.mxu0 0.0
      %855 = vmatpush.msra.mxu0 0.0
      %856 = vmatpush.msra.mxu0 0.0
      %857 = vmatpush.msra.mxu0 0.0
      %858 = vmatpush.msra.mxu0 0.0
      %859 = vmatpush.msra.mxu0 %v840
      %860 = vmatmul.f32.gmra.mxu0 %v842
      %v861 = vpop.f32.mrf.mxu0
      %v862 = vadd.f32 0.0, %v861
      %863 = vdwg.mxu0
      %v864 = vadd.f32 %v837, %v862
      %v865 = vld [vmem:[%s650 + $0x1] sm:$0xff]
      %s866 = scalar_lea.vmem %s2, 64
      %v867 = vld [vmem:[%s866] sm:$0xff]
      %v869 = vsel %vm381, %v865, 0
      %871 = vmatpush.msra.mxu0 0.0
      %872 = vmatpush.msra.mxu0 0.0
      %873 = vmatpush.msra.mxu0 0.0
      %874 = vmatpush.msra.mxu0 0.0
      %875 = vmatpush.msra.mxu0 0.0
      %876 = vmatpush.msra.mxu0 0.0
      %877 = vmatpush.msra.mxu0 0.0
      %878 = vmatpush.msra.mxu0 0.0
      %879 = vmatpush.msra.mxu0 0.0
      %880 = vmatpush.msra.mxu0 0.0
      %881 = vmatpush.msra.mxu0 0.0
      %882 = vmatpush.msra.mxu0 0.0
      %883 = vmatpush.msra.mxu0 0.0
      %884 = vmatpush.msra.mxu0 0.0
      %885 = vmatpush.msra.mxu0 0.0
      %886 = vmatpush.msra.mxu0 %v867
      %887 = vmatmul.f32.gmra.mxu0 %v869
      %v888 = vpop.f32.mrf.mxu0
      %v889 = vadd.f32 0.0, %v888
      %890 = vdwg.mxu0
      %v891 = vadd.f32 %v864, %v889
      %v892 = vld [vmem:[%s650 + $0x2] sm:$0xff]
      %s893 = scalar_lea.vmem %s2, 72
      %v894 = vld [vmem:[%s893] sm:$0xff]
      %v896 = vsel %vm381, %v892, 0
      %898 = vmatpush.msra.mxu0 0.0
      %899 = vmatpush.msra.mxu0 0.0
      %900 = vmatpush.msra.mxu0 0.0
      %901 = vmatpush.msra.mxu0 0.0
      %902 = vmatpush.msra.mxu0 0.0
      %903 = vmatpush.msra.mxu0 0.0
      %904 = vmatpush.msra.mxu0 0.0
      %905 = vmatpush.msra.mxu0 0.0
      %906 = vmatpush.msra.mxu0 0.0
      %907 = vmatpush.msra.mxu0 0.0
      %908 = vmatpush.msra.mxu0 0.0
      %909 = vmatpush.msra.mxu0 0.0
      %910 = vmatpush.msra.mxu0 0.0
      %911 = vmatpush.msra.mxu0 0.0
      %912 = vmatpush.msra.mxu0 0.0
      %913 = vmatpush.msra.mxu0 %v894
      %914 = vmatmul.f32.gmra.mxu0 %v896
      %v915 = vpop.f32.mrf.mxu0
      %v916 = vadd.f32 0.0, %v915
      %917 = vdwg.mxu0
      %v918 = vadd.f32 %v891, %v916
      %v919 = vld [vmem:[%s650 + $0x3] sm:$0xff]
      %s920 = scalar_lea.vmem %s2, 80
      %v921 = vld [vmem:[%s920] sm:$0xff]
      %v923 = vsel %vm381, %v919, 0
      %925 = vmatpush.msra.mxu0 0.0
      %926 = vmatpush.msra.mxu0 0.0
      %927 = vmatpush.msra.mxu0 0.0
      %928 = vmatpush.msra.mxu0 0.0
      %929 = vmatpush.msra.mxu0 0.0
      %930 = vmatpush.msra.mxu0 0.0
      %931 = vmatpush.msra.mxu0 0.0
      %932 = vmatpush.msra.mxu0 0.0
      %933 = vmatpush.msra.mxu0 0.0
      %934 = vmatpush.msra.mxu0 0.0
      %935 = vmatpush.msra.mxu0 0.0
      %936 = vmatpush.msra.mxu0 0.0
      %937 = vmatpush.msra.mxu0 0.0
      %938 = vmatpush.msra.mxu0 0.0
      %939 = vmatpush.msra.mxu0 0.0
      %940 = vmatpush.msra.mxu0 %v921
      %941 = vmatmul.f32.gmra.mxu0 %v923
      %v942 = vpop.f32.mrf.mxu0
      %v943 = vadd.f32 0.0, %v942
      %944 = vdwg.mxu0
      %v945 = vadd.f32 %v918, %v943
      %v946 = vld [vmem:[%s650 + $0x4] sm:$0xff]
      %s947 = scalar_lea.vmem %s2, 88
      %v948 = vld [vmem:[%s947] sm:$0xff]
      %v950 = vsel %vm381, %v946, 0
      %952 = vmatpush.msra.mxu0 0.0
      %953 = vmatpush.msra.mxu0 0.0
      %954 = vmatpush.msra.mxu0 0.0
      %955 = vmatpush.msra.mxu0 0.0
      %956 = vmatpush.msra.mxu0 0.0
      %957 = vmatpush.msra.mxu0 0.0
      %958 = vmatpush.msra.mxu0 0.0
      %959 = vmatpush.msra.mxu0 0.0
      %960 = vmatpush.msra.mxu0 0.0
      %961 = vmatpush.msra.mxu0 0.0
      %962 = vmatpush.msra.mxu0 0.0
      %963 = vmatpush.msra.mxu0 0.0
      %964 = vmatpush.msra.mxu0 0.0
      %965 = vmatpush.msra.mxu0 0.0
      %966 = vmatpush.msra.mxu0 0.0
      %967 = vmatpush.msra.mxu0 %v948
      %968 = vmatmul.f32.gmra.mxu0 %v950
      %v969 = vpop.f32.mrf.mxu0
      %v970 = vadd.f32 0.0, %v969
      %971 = vdwg.mxu0
      %v972 = vadd.f32 %v945, %v970
      %v973 = vld [vmem:[%s650 + $0x5] sm:$0xff]
      %s974 = scalar_lea.vmem %s2, 96
      %v975 = vld [vmem:[%s974] sm:$0xff]
      %v977 = vsel %vm381, %v973, 0
      %979 = vmatpush.msra.mxu0 0.0
      %980 = vmatpush.msra.mxu0 0.0
      %981 = vmatpush.msra.mxu0 0.0
      %982 = vmatpush.msra.mxu0 0.0
      %983 = vmatpush.msra.mxu0 0.0
      %984 = vmatpush.msra.mxu0 0.0
      %985 = vmatpush.msra.mxu0 0.0
      %986 = vmatpush.msra.mxu0 0.0
      %987 = vmatpush.msra.mxu0 0.0
      %988 = vmatpush.msra.mxu0 0.0
      %989 = vmatpush.msra.mxu0 0.0
      %990 = vmatpush.msra.mxu0 0.0
      %991 = vmatpush.msra.mxu0 0.0
      %992 = vmatpush.msra.mxu0 0.0
      %993 = vmatpush.msra.mxu0 0.0
      %994 = vmatpush.msra.mxu0 %v975
      %995 = vmatmul.f32.gmra.mxu0 %v977
      %v996 = vpop.f32.mrf.mxu0
      %v997 = vadd.f32 0.0, %v996
      %998 = vdwg.mxu0
      %v999 = vadd.f32 %v972, %v997
      %v1000 = vld [vmem:[%s650 + $0x6] sm:$0xff]
      %s1001 = scalar_lea.vmem %s2, 104
      %v1002 = vld [vmem:[%s1001] sm:$0xff]
      %v1004 = vsel %vm381, %v1000, 0
      %1006 = vmatpush.msra.mxu0 0.0
      %1007 = vmatpush.msra.mxu0 0.0
      %1008 = vmatpush.msra.mxu0 0.0
      %1009 = vmatpush.msra.mxu0 0.0
      %1010 = vmatpush.msra.mxu0 0.0
      %1011 = vmatpush.msra.mxu0 0.0
      %1012 = vmatpush.msra.mxu0 0.0
      %1013 = vmatpush.msra.mxu0 0.0
      %1014 = vmatpush.msra.mxu0 0.0
      %1015 = vmatpush.msra.mxu0 0.0
      %1016 = vmatpush.msra.mxu0 0.0
      %1017 = vmatpush.msra.mxu0 0.0
      %1018 = vmatpush.msra.mxu0 0.0
      %1019 = vmatpush.msra.mxu0 0.0
      %1020 = vmatpush.msra.mxu0 0.0
      %1021 = vmatpush.msra.mxu0 %v1002
      %1022 = vmatmul.f32.gmra.mxu0 %v1004
      %v1023 = vpop.f32.mrf.mxu0
      %v1024 = vadd.f32 0.0, %v1023
      %1025 = vdwg.mxu0
      %v1026 = vadd.f32 %v999, %v1024
      %v1027 = vxor.u32 %v1026, 2147483648
      %v1028 = vmul.f32 %v1027, 1.442695
      %v1029 = vpow.pop %v1028
      %v1030 = vadd.f32 %v1029, 1.0
      %v1031 = vrcp.pop %v1030
      %v1032 = vmul.f32 %v1030, %v1031
      %v1033 = vsub.f32 1.0, %v1032
      %v1034 = vmul.f32 %v1031, %v1033
      %v1035 = vadd.f32 %v1031, %v1034
      %vm1036 = vweird.f32 %v1030
      %vm1037 = vweird.f32 %v1031
      %vm1038 = vmor %vm1036, %vm1037
      %v1039 = vsel %vm1038, %v1031, %v1035
      %v1040 = vand.u32 2147483647, %v1030
      %vm1041 = vcmp.eq.f32.partialorder %v1040, 8.507059e+37
      %v1042 = vand.u32 %v1030, 2147483648
      %v1043 = vor.u32 1.1754944e-38, %v1042
      %v1044 = vsel %vm1041, %v1043, %v1039
      %v1045 = vmul.f32 1.0, %v1044
      %1046 = vst.msk [vmem:[%s188] sm:$0xff] %vm381, %v1045
      %p1047 = scmp.lt.s32.totalorder %s14, 1
      %s1048 = scalar_select %p1047, %s14, 1
      %s1049 = smul.addr %s1048, 8
      %s1050 = scalar_lea.vmem %s3, %s1049
      // Predicated region
      $region33: #{etfm_forward.8} parent=31 // pred_check
        %p1051 = pneg %p105
      $region34: #{etfm_forward.8} parent=31 // pred_check_branch
        %1053 = sbr.rel (%p1051) target = $region36
      $region35: #{etfm_forward.8} parent=31 // pred_region
        _
      $region36: #{etfm_forward.8} parent=31 // pred_fallthru
        _
    $region32: #{etfm_forward.8} parent=5 // pred_fallthru
      _
    %p1054 = scmp.le.s32.totalorder 2, %s9
    // Predicated region
    $region37: #{etfm_forward.8} parent=5 // pred_check
      %p1055 = pneg %p1054
    $region38: #{etfm_forward.8} parent=5 // pred_check_branch
      %1057 = sbr.rel (%p1055) target = $region40
    $region39: #{etfm_forward.8} parent=5 // pred_region
      %s1058 = ssub.s32 %s9, 2
      // Predicated region
      $region41: #{etfm_forward.8} parent=39 // pred_check
        %p1059 = pneg %p111
      $region42: #{etfm_forward.8} parent=39 // pred_check_branch
        %1061 = sbr.rel (%p1059) target = $region44
      $region43: #{etfm_forward.8} parent=39 // pred_region
        %p1062 = scmp.lt.s32.totalorder %s15, 1
        %s1063 = scalar_select %p1062, %s15, 1
        %s1064 = smul.addr %s1063, 8
        %s1065 = scalar_lea.vmem %s3, %s1064
      $region44: #{etfm_forward.8} parent=39 // pred_fallthru
        _
    $region40: #{etfm_forward.8} parent=5 // pred_fallthru
      _
  $region6: #{etfm_forward.8} parent=0 // loop_footer
    %s13 = sadd.s32 1, %s9
  $region7: #{etfm_forward.8} parent=0 // loop_footer_branch
    %8 = sbr.rel target = $region3
  $region8: #{etfm_forward.8} parent=0 // loop_exit
    _

// kernel: etfm_forward.10
$region0: #{etfm_forward.10}
  #allocation0 [shape = 'u32[]', space=smem, size = 0x4, offset = 0x4, fixed_abs, tag = 'smem constant byte address 0x4 - core index']
  #allocation1 [shape = 'u32[72,128]{1,0:T(1,128)}', space=vmem, size = 0x9000, scoped, tag = 'internal scratch']
  #allocation2 [shape = 'f32[2,14,8]{2,1,0:T(8,128)}', space=vmem, size = 0x4000, scoped, tag = 'scratch operand']
  %s0 = inlined_call_operand.vmem [shape: f32[2,64,8,8], index: 0, kind: input, shape index: {}]
  %s1 = inlined_call_operand.vmem [shape: f32[2,64,8,8], index: 1, kind: input, shape index: {}]
  %s2 = inlined_call_operand.vmem [shape: f32[2,8,8], index: 2, kind: input, shape index: {}]
  %s3 = inlined_call_operand.vmem [shape: f32[14,8,8], index: 3, kind: input, shape index: {}]
  %s4 = inlined_call_operand.vmem [shape: f32[2,8,8], index: 4, kind: output, shape index: {}]
  %s5 = sld [smem:[#allocation0]]
  $region49: #{etfm_forward.10} parent=0
    _
  %s7 = ssub.s32 1, %s5
  %s8 = scalar_select 0, %s7, %s5
  loop: start=0, step=1, limit=4
  $region2: #{etfm_forward.10} parent=0 // loop_pre_header
    _
  $region3: #{etfm_forward.10} parent=0 // loop_header
    %s10 = sphi 0, %s14
    %p11 = scmp.ge.s32.totalorder %s10, 4
    %s20 = sphi 0, %s22
    %s23 = sphi 0, %s20
    %s24 = sphi 0, %s23
    %s40 = sphi 0, %s24
    %s46 = sphi 0, %s48
    %s49 = sphi 0, %s46
    %s50 = sphi 0, %s49
    %s66 = sphi 0, %s50
    %s72 = sphi 0, %s74
    %s75 = sphi 0, %s72
    %s76 = sphi 0, %s75
    %s92 = sphi 0, %s76
    %s96 = sphi 0, %s96
    %s98 = sphi 0, %s96
    %s99 = sphi 0, %s98
    %s113 = sphi 0, %s99
    %s119 = sphi 0, %s121
    %s122 = sphi 0, %s119
    %s123 = sphi 0, %s122
    %s139 = sphi 0, %s123
  $region4: #{etfm_forward.10} parent=0 // loop_header_branch
    %13 = sbr.rel (%p11) target = $region8
  $region5: #{etfm_forward.10} parent=0 // loop_body
    %s15 = ssub.s32 %s10, 1
    %s16 = ssub.s32 %s10, 2
    %s17 = sadd.s32 %s10, 1
    %s18 = ssub.s32 %s10, %s17
    %p19 = scmp.eq.s32.totalorder %s18, 0
    %s21 = sadd.s32 %s20, 1
    %s22 = scalar_select %p19, %s20, %s21
    %p25 = pneg %p19
    %p26 = scmp.eq.s32.totalorder %s10, 1
    %p27 = por %p25, %p26
    %p28 = scmp.ne.s32.totalorder %s20, %s23
    %p29 = scmp.eq.s32.totalorder %s10, 0
    %p30 = por %p28, %p29
    %p31 = scmp.ne.s32.totalorder %s20, %s23
    %p32 = scmp.eq.s32.totalorder %s15, 1
    %p33 = por %p31, %p32
    %p34 = scmp.ne.s32.totalorder %s23, %s24
    %p35 = scmp.eq.s32.totalorder %s15, 0
    %p36 = por %p34, %p35
    %p37 = scmp.ne.s32.totalorder %s23, %s24
    %p38 = scmp.eq.s32.totalorder %s16, 1
    %p39 = por %p37, %p38
    %p41 = scmp.ne.s32.totalorder %s24, %s40
    %p42 = scmp.eq.s32.totalorder %s16, 0
    %p43 = por %p41, %p42
    %s44 = ssub.s32 %s10, %s17
    %p45 = scmp.eq.s32.totalorder %s44, 0
    %s47 = sadd.s32 %s46, 1
    %s48 = scalar_select %p45, %s46, %s47
    %p51 = pneg %p45
    %p52 = scmp.eq.s32.totalorder %s10, 1
    %p53 = por %p51, %p52
    %p54 = scmp.ne.s32.totalorder %s46, %s49
    %p55 = scmp.eq.s32.totalorder %s10, 0
    %p56 = por %p54, %p55
    %p57 = scmp.ne.s32.totalorder %s46, %s49
    %p58 = scmp.eq.s32.totalorder %s15, 1
    %p59 = por %p57, %p58
    %p60 = scmp.ne.s32.totalorder %s49, %s50
    %p61 = scmp.eq.s32.totalorder %s15, 0
    %p62 = por %p60, %p61
    %p63 = scmp.ne.s32.totalorder %s49, %s50
    %p64 = scmp.eq.s32.totalorder %s16, 1
    %p65 = por %p63, %p64
    %p67 = scmp.ne.s32.totalorder %s50, %s66
    %p68 = scmp.eq.s32.totalorder %s16, 0
    %p69 = por %p67, %p68
    %s70 = ssub.s32 %s10, %s17
    %p71 = scmp.eq.s32.totalorder %s70, 0
    %s73 = sadd.s32 %s72, 1
    %s74 = scalar_select %p71, %s72, %s73
    %p77 = pneg %p71
    %p78 = scmp.eq.s32.totalorder %s10, 1
    %p79 = por %p77, %p78
    %p80 = scmp.ne.s32.totalorder %s72, %s75
    %p81 = scmp.eq.s32.totalorder %s10, 0
    %p82 = por %p80, %p81
    %p83 = scmp.ne.s32.totalorder %s72, %s75
    %p84 = scmp.eq.s32.totalorder %s15, 1
    %p85 = por %p83, %p84
    %p86 = scmp.ne.s32.totalorder %s75, %s76
    %p87 = scmp.eq.s32.totalorder %s15, 0
    %p88 = por %p86, %p87
    %p89 = scmp.ne.s32.totalorder %s75, %s76
    %p90 = scmp.eq.s32.totalorder %s16, 1
    %p91 = por %p89, %p90
    %p93 = scmp.ne.s32.totalorder %s76, %s92
    %p94 = scmp.eq.s32.totalorder %s16, 0
    %p95 = por %p93, %p94
    %s97 = sadd.s32 %s96, 1
    %p100 = scmp.eq.s32.totalorder %s10, 1
    %p101 = scmp.ne.s32.totalorder %s96, %s98
    %p102 = scmp.eq.s32.totalorder %s10, 0
    %p103 = por %p101, %p102
    %p104 = scmp.ne.s32.totalorder %s96, %s98
    %p105 = scmp.eq.s32.totalorder %s15, 1
    %p106 = por %p104, %p105
    %p107 = scmp.ne.s32.totalorder %s98, %s99
    %p108 = scmp.eq.s32.totalorder %s15, 0
    %p109 = por %p107, %p108
    %p110 = scmp.ne.s32.totalorder %s98, %s99
    %p111 = scmp.eq.s32.totalorder %s16, 1
    %p112 = por %p110, %p111
    %p114 = scmp.ne.s32.totalorder %s99, %s113
    %p115 = scmp.eq.s32.totalorder %s16, 0
    %p116 = por %p114, %p115
    %s117 = ssub.s32 %s10, %s17
    %p118 = scmp.eq.s32.totalorder %s117, 0
    %s120 = sadd.s32 %s119, 1
    %s121 = scalar_select %p118, %s119, %s120
    %p124 = pneg %p118
    %p125 = scmp.eq.s32.totalorder %s10, 1
    %p126 = por %p124, %p125
    %p127 = scmp.ne.s32.totalorder %s119, %s122
    %p128 = scmp.eq.s32.totalorder %s10, 0
    %p129 = por %p127, %p128
    %p130 = scmp.ne.s32.totalorder %s119, %s122
    %p131 = scmp.eq.s32.totalorder %s15, 1
    %p132 = por %p130, %p131
    %p133 = scmp.ne.s32.totalorder %s122, %s123
    %p134 = scmp.eq.s32.totalorder %s15, 0
    %p135 = por %p133, %p134
    %p136 = scmp.ne.s32.totalorder %s122, %s123
    %p137 = scmp.eq.s32.totalorder %s16, 1
    %p138 = por %p136, %p137
    %p140 = scmp.ne.s32.totalorder %s123, %s139
    %p141 = scmp.eq.s32.totalorder %s16, 0
    %p142 = por %p140, %p141
    %p143 = scmp.le.s32.totalorder 1, %s10
    %p144 = scmp.lt.s32.totalorder %s10, 3
    %p145 = pnand %p143, %p144
    %p146 = pneg %p145
    // Predicated region
    $region9: #{etfm_forward.10} parent=5 // pred_check
      _
    $region10: #{etfm_forward.10} parent=5 // pred_check_branch
      %148 = sbr.rel (%p145) target = $region12
    $region11: #{etfm_forward.10} parent=5 // pred_region
      %s149 = ssub.s32 %s10, 1
      // Predicated region
      $region13: #{etfm_forward.10} parent=11 // pred_check
        %p150 = pneg %p109
      $region14: #{etfm_forward.10} parent=11 // pred_check_branch
        %152 = sbr.rel (%p150) target = $region16
      $region15: #{etfm_forward.10} parent=11 // pred_region
        _
      $region16: #{etfm_forward.10} parent=11 // pred_fallthru
        _
    $region12: #{etfm_forward.10} parent=5 // pred_fallthru
      _
    %p153 = scmp.lt.s32.totalorder %s10, 2
    // Predicated region
    $region17: #{etfm_forward.10} parent=5 // pred_check
      %p154 = pneg %p153
    $region18: #{etfm_forward.10} parent=5 // pred_check_branch
      %156 = sbr.rel (%p154) target = $region20
    $region19: #{etfm_forward.10} parent=5 // pred_region
      // Predicated region
      $region21: #{etfm_forward.10} parent=19 // pred_check
        %p157 = pneg %p30
      $region22: #{etfm_forward.10} parent=19 // pred_check_branch
        %159 = sbr.rel (%p157) target = $region24
      $region23: #{etfm_forward.10} parent=19 // pred_region
        %p160 = scmp.lt.s32.totalorder %s10, 1
        %s161 = scalar_select %p160, %s10, 1
        %s162 = smul.addr %s161, 64
        %s163 = smul.addr %s162, 8
        %s164 = scalar_lea.vmem %s0, %s163
      $region24: #{etfm_forward.10} parent=19 // pred_fallthru
        _
      // Predicated region
      $region25: #{etfm_forward.10} parent=19 // pred_check
        %p165 = pneg %p56
      $region26: #{etfm_forward.10} parent=19 // pred_check_branch
        %167 = sbr.rel (%p165) target = $region28
      $region27: #{etfm_forward.10} parent=19 // pred_region
        %p168 = scmp.lt.s32.totalorder %s10, 1
        %s169 = scalar_select %p168, %s10, 1
        %s170 = smul.addr %s169, 64
        %s171 = smul.addr %s170, 8
        %s172 = scalar_lea.vmem %s1, %s171
      $region28: #{etfm_forward.10} parent=19 // pred_fallthru
        _
      // Predicated region
      $region29: #{etfm_forward.10} parent=19 // pred_check
        %p173 = pneg %p82
      $region30: #{etfm_forward.10} parent=19 // pred_check_branch
        %175 = sbr.rel (%p173) target = $region32
      $region31: #{etfm_forward.10} parent=19 // pred_region
        %p176 = scmp.lt.s32.totalorder %s10, 1
        %s177 = scalar_select %p176, %s10, 1
        %s178 = smul.addr %s177, 8
        %s179 = scalar_lea.vmem %s2, %s178
      $region32: #{etfm_forward.10} parent=19 // pred_fallthru
        _
    $region20: #{etfm_forward.10} parent=5 // pred_fallthru
      _
    %p180 = scmp.le.s32.totalorder 1, %s10
    %p181 = scmp.lt.s32.totalorder %s10, 3
    %p182 = pnand %p180, %p181
    %p183 = pneg %p182
    // Predicated region
    $region33: #{etfm_forward.10} parent=5 // pred_check
      _
    $region34: #{etfm_forward.10} parent=5 // pred_check_branch
      %185 = sbr.rel (%p182) target = $region36
    $region35: #{etfm_forward.10} parent=5 // pred_region
      %s186 = ssub.s32 %s10, 1
      %p187 = scmp.lt.s32.totalorder %s15, 1
      %s188 = scalar_select %p187, %s15, 1
      %s189 = smul.addr %s188, 64
      %s190 = smul.addr %s189, 8
      %s191 = scalar_lea.vmem %s0, %s190
      %p192 = pneg %p36
      %p193 = pneg %p33
      %p194 = scmp.lt.s32.totalorder %s15, 1
      %s195 = scalar_select %p194, %s15, 1
      %s196 = smul.addr %s195, 64
      %s197 = smul.addr %s196, 8
      %s198 = scalar_lea.vmem %s1, %s197
      %p199 = pneg %p62
      %p200 = pneg %p59
      %p201 = scmp.lt.s32.totalorder %s15, 1
      %s202 = scalar_select %p201, %s15, 1
      %s203 = smul.addr %s202, 8
      %s204 = scalar_lea.vmem %s2, %s203
      %p205 = pneg %p88
      %p206 = pneg %p85
      %p207 = pneg %p109
      %p208 = pneg %p106
      %p209 = pneg %p135
      %p210 = pneg %p132
      %p211 = scmp.lt.s32.totalorder %s15, 1
      %s212 = scalar_select %p211, %s15, 1
      %s213 = smul.addr %s212, 8
      %s214 = scalar_lea.vmem %s4, %s213
      %p215 = scmp.lt.s32.totalorder %s15, 1
      %s216 = scalar_select %p215, %s15, 1
      %s217 = smul.addr %s216, 64
      %s218 = smul.addr %s217, 8
      %s219 = scalar_lea.vmem %s0, %s218
      %p220 = scmp.lt.s32.totalorder %s15, 1
      %s221 = scalar_select %p220, %s15, 1
      %s222 = smul.addr %s221, 64
      %s223 = smul.addr %s222, 8
      %s224 = scalar_lea.vmem %s1, %s223
      %p225 = scmp.lt.s32.totalorder %s15, 1
      %s226 = scalar_select %p225, %s15, 1
      %s227 = smul.addr %s226, 8
      %s228 = scalar_lea.vmem %s2, %s227
      %p229 = scmp.lt.s32.totalorder %s15, 1
      %s230 = scalar_select %p229, %s15, 1
      %s231 = smul.addr %s230, 8
      %s232 = scalar_lea.vmem %s4, %s231
      %v233 = vld [vmem:[%s228] sm:$0xff]
      %v234 = vld [vmem:[%s219] sm:$0xff]
      %v235 = vld [vmem:[%s219 + $0x8] sm:$0xff]
      %v236 = vld [vmem:[%s219 + $0x10] sm:$0xff]
      %v237 = vld [vmem:[%s219 + $0x18] sm:$0xff]
      %v238 = vld [vmem:[%s219 + $0x20] sm:$0xff]
      %v239 = vld [vmem:[%s219 + $0x28] sm:$0xff]
      %v240 = vld [vmem:[%s219 + $0x30] sm:$0xff]
      %v241 = vld [vmem:[%s219 + $0x38] sm:$0xff]
      %v242 = vld [vmem:[%s219 + $0x40] sm:$0xff]
      %v243 = vld [vmem:[%s219 + $0x48] sm:$0xff]
      %v244 = vld [vmem:[%s219 + $0x50] sm:$0xff]
      %v245 = vld [vmem:[%s219 + $0x58] sm:$0xff]
      %v246 = vld [vmem:[%s219 + $0x60] sm:$0xff]
      %v247 = vld [vmem:[%s219 + $0x68] sm:$0xff]
      %v248 = vld [vmem:[%s219 + $0x70] sm:$0xff]
      %v249 = vld [vmem:[%s219 + $0x78] sm:$0xff]
      %v250 = vld [vmem:[%s219 + $0x80] sm:$0xff]
      %v251 = vld [vmem:[%s219 + $0x88] sm:$0xff]
      %v252 = vld [vmem:[%s219 + $0x90] sm:$0xff]
      %v253 = vld [vmem:[%s219 + $0x98] sm:$0xff]
      %v254 = vld [vmem:[%s219 + $0xa0] sm:$0xff]
      %v255 = vld [vmem:[%s219 + $0xa8] sm:$0xff]
      %v256 = vld [vmem:[%s219 + $0xb0] sm:$0xff]
      %v257 = vld [vmem:[%s219 + $0xb8] sm:$0xff]
      %v258 = vld [vmem:[%s219 + $0xc0] sm:$0xff]
      %v259 = vld [vmem:[%s219 + $0xc8] sm:$0xff]
      %v260 = vld [vmem:[%s219 + $0xd0] sm:$0xff]
      %v261 = vld [vmem:[%s219 + $0xd8] sm:$0xff]
      %v262 = vld [vmem:[%s219 + $0xe0] sm:$0xff]
      %v263 = vld [vmem:[%s219 + $0xe8] sm:$0xff]
      %v264 = vld [vmem:[%s219 + $0xf0] sm:$0xff]
      %v265 = vld [vmem:[%s219 + $0xf8] sm:$0xff]
      %v266 = vld [vmem:[%s224] sm:$0xff]
      %v267 = vld [vmem:[%s224 + $0x8] sm:$0xff]
      %v268 = vld [vmem:[%s224 + $0x10] sm:$0xff]
      %v269 = vld [vmem:[%s224 + $0x18] sm:$0xff]
      %v270 = vld [vmem:[%s224 + $0x20] sm:$0xff]
      %v271 = vld [vmem:[%s224 + $0x28] sm:$0xff]
      %v272 = vld [vmem:[%s224 + $0x30] sm:$0xff]
      %v273 = vld [vmem:[%s224 + $0x38] sm:$0xff]
      %v274 = vld [vmem:[%s224 + $0x40] sm:$0xff]
      %v275 = vld [vmem:[%s224 + $0x48] sm:$0xff]
      %v276 = vld [vmem:[%s224 + $0x50] sm:$0xff]
      %v277 = vld [vmem:[%s224 + $0x58] sm:$0xff]
      %v278 = vld [vmem:[%s224 + $0x60] sm:$0xff]
      %v279 = vld [vmem:[%s224 + $0x68] sm:$0xff]
      %v280 = vld [vmem:[%s224 + $0x70] sm:$0xff]
      %v281 = vld [vmem:[%s224 + $0x78] sm:$0xff]
      %v282 = vld [vmem:[%s224 + $0x80] sm:$0xff]
      %v283 = vld [vmem:[%s224 + $0x88] sm:$0xff]
      %v284 = vld [vmem:[%s224 + $0x90] sm:$0xff]
      %v285 = vld [vmem:[%s224 + $0x98] sm:$0xff]
      %v286 = vld [vmem:[%s224 + $0xa0] sm:$0xff]
      %v287 = vld [vmem:[%s224 + $0xa8] sm:$0xff]
      %v288 = vld [vmem:[%s224 + $0xb0] sm:$0xff]
      %v289 = vld [vmem:[%s224 + $0xb8] sm:$0xff]
      %v290 = vld [vmem:[%s224 + $0xc0] sm:$0xff]
      %v291 = vld [vmem:[%s224 + $0xc8] sm:$0xff]
      %v292 = vld [vmem:[%s224 + $0xd0] sm:$0xff]
      %v293 = vld [vmem:[%s224 + $0xd8] sm:$0xff]
      %v294 = vld [vmem:[%s224 + $0xe0] sm:$0xff]
      %v295 = vld [vmem:[%s224 + $0xe8] sm:$0xff]
      %v296 = vld [vmem:[%s224 + $0xf0] sm:$0xff]
      %v297 = vld [vmem:[%s224 + $0xf8] sm:$0xff]
      %v298 = vmul.f32 %v234, %v266
      %v299 = vmul.f32 %v235, %v267
      %v300 = vmul.f32 %v236, %v268
      %v301 = vmul.f32 %v237, %v269
      %v302 = vmul.f32 %v238, %v270
      %v303 = vmul.f32 %v239, %v271
      %v304 = vmul.f32 %v240, %v272
      %v305 = vmul.f32 %v241, %v273
      %v306 = vmul.f32 %v242, %v274
      %v307 = vmul.f32 %v243, %v275
      %v308 = vmul.f32 %v244, %v276
      %v309 = vmul.f32 %v245, %v277
      %v310 = vmul.f32 %v246, %v278
      %v311 = vmul.f32 %v247, %v279
      %v312 = vmul.f32 %v248, %v280
      %v313 = vmul.f32 %v249, %v281
      %v314 = vmul.f32 %v250, %v282
      %v315 = vmul.f32 %v251, %v283
      %v316 = vmul.f32 %v252, %v284
      %v317 = vmul.f32 %v253, %v285
      %v318 = vmul.f32 %v254, %v286
      %v319 = vmul.f32 %v255, %v287
      %v320 = vmul.f32 %v256, %v288
      %v321 = vmul.f32 %v257, %v289
      %v322 = vmul.f32 %v258, %v290
      %v323 = vmul.f32 %v259, %v291
      %v324 = vmul.f32 %v260, %v292
      %v325 = vmul.f32 %v261, %v293
      %v326 = vmul.f32 %v262, %v294
      %v327 = vmul.f32 %v263, %v295
      %v328 = vmul.f32 %v264, %v296
      %v329 = vmul.f32 %v265, %v297
      %v330 = vmul.f32 %v298, %v233
      %v331 = vmul.f32 %v299, %v233
      %v332 = vmul.f32 %v300, %v233
      %v333 = vmul.f32 %v301, %v233
      %v334 = vmul.f32 %v302, %v233
      %v335 = vmul.f32 %v303, %v233
      %v336 = vmul.f32 %v304, %v233
      %v337 = vmul.f32 %v305, %v233
      %v338 = vmul.f32 %v306, %v233
      %v339 = vmul.f32 %v307, %v233
      %v340 = vmul.f32 %v308, %v233
      %v341 = vmul.f32 %v309, %v233
      %v342 = vmul.f32 %v310, %v233
      %v343 = vmul.f32 %v311, %v233
      %v344 = vmul.f32 %v312, %v233
      %v345 = vmul.f32 %v313, %v233
      %v346 = vmul.f32 %v314, %v233
      %v347 = vmul.f32 %v315, %v233
      %v348 = vmul.f32 %v316, %v233
      %v349 = vmul.f32 %v317, %v233
      %v350 = vmul.f32 %v318, %v233
      %v351 = vmul.f32 %v319, %v233
      %v352 = vmul.f32 %v320, %v233
      %v353 = vmul.f32 %v321, %v233
      %v354 = vmul.f32 %v322, %v233
      %v355 = vmul.f32 %v323, %v233
      %v356 = vmul.f32 %v324, %v233
      %v357 = vmul.f32 %v325, %v233
      %v358 = vmul.f32 %v326, %v233
      %v359 = vmul.f32 %v327, %v233
      %v360 = vmul.f32 %v328, %v233
      %v361 = vmul.f32 %v329, %v233
      %v362 = vadd.f32 %v330, %v266
      %v363 = vadd.f32 %v331, %v267
      %v364 = vadd.f32 %v332, %v268
      %v365 = vadd.f32 %v333, %v269
      %v366 = vadd.f32 %v334, %v270
      %v367 = vadd.f32 %v335, %v271
      %v368 = vadd.f32 %v336, %v272
      %v369 = vadd.f32 %v337, %v273
      %v370 = vadd.f32 %v338, %v274
      %v371 = vadd.f32 %v339, %v275
      %v372 = vadd.f32 %v340, %v276
      %v373 = vadd.f32 %v341, %v277
      %v374 = vadd.f32 %v342, %v278
      %v375 = vadd.f32 %v343, %v279
      %v376 = vadd.f32 %v344, %v280
      %v377 = vadd.f32 %v345, %v281
      %v378 = vadd.f32 %v346, %v282
      %v379 = vadd.f32 %v347, %v283
      %v380 = vadd.f32 %v348, %v284
      %v381 = vadd.f32 %v349, %v285
      %v382 = vadd.f32 %v350, %v286
      %v383 = vadd.f32 %v351, %v287
      %v384 = vadd.f32 %v352, %v288
      %v385 = vadd.f32 %v353, %v289
      %v386 = vadd.f32 %v354, %v290
      %v387 = vadd.f32 %v355, %v291
      %v388 = vadd.f32 %v356, %v292
      %v389 = vadd.f32 %v357, %v293
      %v390 = vadd.f32 %v358, %v294
      %v391 = vadd.f32 %v359, %v295
      %v392 = vadd.f32 %v360, %v296
      %v393 = vadd.f32 %v361, %v297
      %vm394 = vcmask 64512
      %v395 = vsel %vm394, %v362, 0.0
      %v396 = vsel %vm394, %v363, 0.0
      %v397 = vadd.f32 %v395, %v396
      %v398 = vsel %vm394, %v364, 0.0
      %v399 = vadd.f32 %v397, %v398
      %v400 = vsel %vm394, %v365, 0.0
      %v401 = vadd.f32 %v399, %v400
      %v402 = vsel %vm394, %v366, 0.0
      %v403 = vadd.f32 %v401, %v402
      %v404 = vsel %vm394, %v367, 0.0
      %v405 = vadd.f32 %v403, %v404
      %v406 = vsel %vm394, %v368, 0.0
      %v407 = vadd.f32 %v405, %v406
      %v408 = vsel %vm394, %v369, 0.0
      %v409 = vadd.f32 %v407, %v408
      %v410 = vsel %vm394, %v370, 0.0
      %v411 = vadd.f32 %v409, %v410
      %v412 = vsel %vm394, %v371, 0.0
      %v413 = vadd.f32 %v411, %v412
      %v414 = vsel %vm394, %v372, 0.0
      %v415 = vadd.f32 %v413, %v414
      %v416 = vsel %vm394, %v373, 0.0
      %v417 = vadd.f32 %v415, %v416
      %v418 = vsel %vm394, %v374, 0.0
      %v419 = vadd.f32 %v417, %v418
      %v420 = vsel %vm394, %v375, 0.0
      %v421 = vadd.f32 %v419, %v420
      %v422 = vsel %vm394, %v376, 0.0
      %v423 = vadd.f32 %v421, %v422
      %v424 = vsel %vm394, %v377, 0.0
      %v425 = vadd.f32 %v423, %v424
      %v426 = vsel %vm394, %v378, 0.0
      %v427 = vadd.f32 %v425, %v426
      %v428 = vsel %vm394, %v379, 0.0
      %v429 = vadd.f32 %v427, %v428
      %v430 = vsel %vm394, %v380, 0.0
      %v431 = vadd.f32 %v429, %v430
      %v432 = vsel %vm394, %v381, 0.0
      %v433 = vadd.f32 %v431, %v432
      %v434 = vsel %vm394, %v382, 0.0
      %v435 = vadd.f32 %v433, %v434
      %v436 = vsel %vm394, %v383, 0.0
      %v437 = vadd.f32 %v435, %v436
      %v438 = vsel %vm394, %v384, 0.0
      %v439 = vadd.f32 %v437, %v438
      %v440 = vsel %vm394, %v385, 0.0
      %v441 = vadd.f32 %v439, %v440
      %v442 = vsel %vm394, %v386, 0.0
      %v443 = vadd.f32 %v441, %v442
      %v444 = vsel %vm394, %v387, 0.0
      %v445 = vadd.f32 %v443, %v444
      %v446 = vsel %vm394, %v388, 0.0
      %v447 = vadd.f32 %v445, %v446
      %v448 = vsel %vm394, %v389, 0.0
      %v449 = vadd.f32 %v447, %v448
      %v450 = vsel %vm394, %v390, 0.0
      %v451 = vadd.f32 %v449, %v450
      %v452 = vsel %vm394, %v391, 0.0
      %v453 = vadd.f32 %v451, %v452
      %v454 = vsel %vm394, %v392, 0.0
      %v455 = vadd.f32 %v453, %v454
      %v456 = vsel %vm394, %v393, 0.0
      %v457 = vadd.f32 %v455, %v456
      %v458 = vrcp.pop 32.0
      %v459 = vmul.f32 32.0, %v458
      %v460 = vsub.f32 1.0, %v459
      %v461 = vmul.f32 %v458, %v460
      %v462 = vadd.f32 %v458, %v461
      %vm463 = vweird.f32 %v458
      %v464 = vsel %vm463, %v458, %v462
      %v465 = vmul.f32 %v457, %v464
      %v466 = vsel %vm394, %v362, -inf
      %v467 = vsel %vm394, %v363, -inf
      %v468 = vsel %vm394, %v364, -inf
      %v469 = vsel %vm394, %v365, -inf
      %v470 = vsel %vm394, %v366, -inf
      %v471 = vmax.f32 %v466, %v470
      %v472 = vsel %vm394, %v367, -inf
      %v473 = vmax.f32 %v467, %v472
      %v474 = vsel %vm394, %v368, -inf
      %v475 = vmax.f32 %v468, %v474
      %v476 = vsel %vm394, %v369, -inf
      %v477 = vmax.f32 %v469, %v476
      %v478 = vsel %vm394, %v370, -inf
      %v479 = vmax.f32 %v471, %v478
      %v480 = vsel %vm394, %v371, -inf
      %v481 = vmax.f32 %v473, %v480
      %v482 = vsel %vm394, %v372, -inf
      %v483 = vmax.f32 %v475, %v482
      %v484 = vsel %vm394, %v373, -inf
      %v485 = vmax.f32 %v477, %v484
      %v486 = vsel %vm394, %v374, -inf
      %v487 = vmax.f32 %v479, %v486
      %v488 = vsel %vm394, %v375, -inf
      %v489 = vmax.f32 %v481, %v488
      %v490 = vsel %vm394, %v376, -inf
      %v491 = vmax.f32 %v483, %v490
      %v492 = vsel %vm394, %v377, -inf
      %v493 = vmax.f32 %v485, %v492
      %v494 = vsel %vm394, %v378, -inf
      %v495 = vmax.f32 %v487, %v494
      %v496 = vsel %vm394, %v379, -inf
      %v497 = vmax.f32 %v489, %v496
      %v498 = vsel %vm394, %v380, -inf
      %v499 = vmax.f32 %v491, %v498
      %v500 = vsel %vm394, %v381, -inf
      %v501 = vmax.f32 %v493, %v500
      %v502 = vsel %vm394, %v382, -inf
      %v503 = vmax.f32 %v495, %v502
      %v504 = vsel %vm394, %v383, -inf
      %v505 = vmax.f32 %v497, %v504
      %v506 = vsel %vm394, %v384, -inf
      %v507 = vmax.f32 %v499, %v506
      %v508 = vsel %vm394, %v385, -inf
      %v509 = vmax.f32 %v501, %v508
      %v510 = vsel %vm394, %v386, -inf
      %v511 = vmax.f32 %v503, %v510
      %v512 = vsel %vm394, %v387, -inf
      %v513 = vmax.f32 %v505, %v512
      %v514 = vsel %vm394, %v388, -inf
      %v515 = vmax.f32 %v507, %v514
      %v516 = vsel %vm394, %v389, -inf
      %v517 = vmax.f32 %v509, %v516
      %v518 = vsel %vm394, %v390, -inf
      %v519 = vmax.f32 %v511, %v518
      %v520 = vsel %vm394, %v391, -inf
      %v521 = vmax.f32 %v513, %v520
      %v522 = vsel %vm394, %v392, -inf
      %v523 = vmax.f32 %v515, %v522
      %v524 = vsel %vm394, %v393, -inf
      %v525 = vmax.f32 %v517, %v524
      %v526 = vmax.f32 %v519, %v521
      %v527 = vmax.f32 %v523, %v525
      %v528 = vmax.f32 %v526, %v527
      %529 = vst.msk [vmem:[#allocation2] sm:$0xff] %vm394, 0.0
      %vm530 = vcmask 62464
      %531 = vst.msk [vmem:[#allocation2 + $0x8] sm:$0x3f] %vm530, 0.0
      %532 = vst.msk [vmem:[#allocation2 + $0x10] sm:$0xff] %vm394, 0.0
      %533 = vst.msk [vmem:[#allocation2 + $0x18] sm:$0x3f] %vm530, 0.0
      %534 = vst.msk [vmem:[#allocation2 + $0x3] sm:$0xff] %vm394, %v465
      %s535 = scalar_lea.vmem [#allocation2], 16
      %536 = vst.msk [vmem:[%s535 + $0x3] sm:$0xff] %vm394, %v528
      %v537 = vld [vmem:[#allocation2] sm:$0xff]
      %v538 = vld [vmem:[%s3] sm:$0xff]
      %v539 = vld [vmem:[#allocation2 + $0x1] sm:$0xff]
      %s540 = scalar_lea.vmem %s3, 8
      %v541 = vld [vmem:[%s540] sm:$0xff]
      %v543 = vsel %vm394, %v539, 0
      %545 = vmatpush.msra.mxu0 0.0
      %546 = vmatpush.msra.mxu0 0.0
      %547 = vmatpush.msra.mxu0 0.0
      %548 = vmatpush.msra.mxu0 0.0
      %549 = vmatpush.msra.mxu0 0.0
      %550 = vmatpush.msra.mxu0 0.0
      %551 = vmatpush.msra.mxu0 0.0
      %552 = vmatpush.msra.mxu0 0.0
      %553 = vmatpush.msra.mxu0 0.0
      %554 = vmatpush.msra.mxu0 0.0
      %555 = vmatpush.msra.mxu0 0.0
      %556 = vmatpush.msra.mxu0 0.0
      %557 = vmatpush.msra.mxu0 0.0
      %558 = vmatpush.msra.mxu0 0.0
      %559 = vmatpush.msra.mxu0 0.0
      %560 = vmatpush.msra.mxu0 %v541
      %561 = vmatmul.f32.gmra.mxu0 %v543
      %v562 = vpop.f32.mrf.mxu0
      %v563 = vadd.f32 0.0, %v562
      %564 = vdwg.mxu0
      %v566 = vsel %vm394, %v537, 0
      %568 = vmatpush.msra.mxu0 0.0
      %569 = vmatpush.msra.mxu0 0.0
      %570 = vmatpush.msra.mxu0 0.0
      %571 = vmatpush.msra.mxu0 0.0
      %572 = vmatpush.msra.mxu0 0.0
      %573 = vmatpush.msra.mxu0 0.0
      %574 = vmatpush.msra.mxu0 0.0
      %575 = vmatpush.msra.mxu0 0.0
      %576 = vmatpush.msra.mxu0 0.0
      %577 = vmatpush.msra.mxu0 0.0
      %578 = vmatpush.msra.mxu0 0.0
      %579 = vmatpush.msra.mxu0 0.0
      %580 = vmatpush.msra.mxu0 0.0
      %581 = vmatpush.msra.mxu0 0.0
      %582 = vmatpush.msra.mxu0 0.0
      %583 = vmatpush.msra.mxu0 %v538
      %584 = vmatmul.f32.gmra.mxu0 %v566
      %v585 = vpop.f32.mrf.mxu0
      %v586 = vadd.f32 %v563, %v585
      %587 = vdwg.mxu0
      %v588 = vld [vmem:[#allocation2 + $0x2] sm:$0xff]
      %s589 = scalar_lea.vmem %s3, 16
      %v590 = vld [vmem:[%s589] sm:$0xff]
      %v592 = vsel %vm394, %v588, 0
      %594 = vmatpush.msra.mxu0 0.0
      %595 = vmatpush.msra.mxu0 0.0
      %596 = vmatpush.msra.mxu0 0.0
      %597 = vmatpush.msra.mxu0 0.0
      %598 = vmatpush.msra.mxu0 0.0
      %599 = vmatpush.msra.mxu0 0.0
      %600 = vmatpush.msra.mxu0 0.0
      %601 = vmatpush.msra.mxu0 0.0
      %602 = vmatpush.msra.mxu0 0.0
      %603 = vmatpush.msra.mxu0 0.0
      %604 = vmatpush.msra.mxu0 0.0
      %605 = vmatpush.msra.mxu0 0.0
      %606 = vmatpush.msra.mxu0 0.0
      %607 = vmatpush.msra.mxu0 0.0
      %608 = vmatpush.msra.mxu0 0.0
      %609 = vmatpush.msra.mxu0 %v590
      %610 = vmatmul.f32.gmra.mxu0 %v592
      %v611 = vpop.f32.mrf.mxu0
      %v612 = vadd.f32 0.0, %v611
      %613 = vdwg.mxu0
      %v614 = vadd.f32 %v586, %v612
      %v615 = vld [vmem:[#allocation2 + $0x3] sm:$0xff]
      %s616 = scalar_lea.vmem %s3, 24
      %v617 = vld [vmem:[%s616] sm:$0xff]
      %v619 = vsel %vm394, %v615, 0
      %621 = vmatpush.msra.mxu0 0.0
      %622 = vmatpush.msra.mxu0 0.0
      %623 = vmatpush.msra.mxu0 0.0
      %624 = vmatpush.msra.mxu0 0.0
      %625 = vmatpush.msra.mxu0 0.0
      %626 = vmatpush.msra.mxu0 0.0
      %627 = vmatpush.msra.mxu0 0.0
      %628 = vmatpush.msra.mxu0 0.0
      %629 = vmatpush.msra.mxu0 0.0
      %630 = vmatpush.msra.mxu0 0.0
      %631 = vmatpush.msra.mxu0 0.0
      %632 = vmatpush.msra.mxu0 0.0
      %633 = vmatpush.msra.mxu0 0.0
      %634 = vmatpush.msra.mxu0 0.0
      %635 = vmatpush.msra.mxu0 0.0
      %636 = vmatpush.msra.mxu0 %v617
      %637 = vmatmul.f32.gmra.mxu0 %v619
      %v638 = vpop.f32.mrf.mxu0
      %v639 = vadd.f32 0.0, %v638
      %640 = vdwg.mxu0
      %v641 = vadd.f32 %v614, %v639
      %v642 = vld [vmem:[#allocation2 + $0x4] sm:$0xff]
      %s643 = scalar_lea.vmem %s3, 32
      %v644 = vld [vmem:[%s643] sm:$0xff]
      %v646 = vsel %vm394, %v642, 0
      %648 = vmatpush.msra.mxu0 0.0
      %649 = vmatpush.msra.mxu0 0.0
      %650 = vmatpush.msra.mxu0 0.0
      %651 = vmatpush.msra.mxu0 0.0
      %652 = vmatpush.msra.mxu0 0.0
      %653 = vmatpush.msra.mxu0 0.0
      %654 = vmatpush.msra.mxu0 0.0
      %655 = vmatpush.msra.mxu0 0.0
      %656 = vmatpush.msra.mxu0 0.0
      %657 = vmatpush.msra.mxu0 0.0
      %658 = vmatpush.msra.mxu0 0.0
      %659 = vmatpush.msra.mxu0 0.0
      %660 = vmatpush.msra.mxu0 0.0
      %661 = vmatpush.msra.mxu0 0.0
      %662 = vmatpush.msra.mxu0 0.0
      %663 = vmatpush.msra.mxu0 %v644
      %664 = vmatmul.f32.gmra.mxu0 %v646
      %v665 = vpop.f32.mrf.mxu0
      %v666 = vadd.f32 0.0, %v665
      %667 = vdwg.mxu0
      %v668 = vadd.f32 %v641, %v666
      %v669 = vld [vmem:[#allocation2 + $0x5] sm:$0xff]
      %s670 = scalar_lea.vmem %s3, 40
      %v671 = vld [vmem:[%s670] sm:$0xff]
      %v673 = vsel %vm394, %v669, 0
      %675 = vmatpush.msra.mxu0 0.0
      %676 = vmatpush.msra.mxu0 0.0
      %677 = vmatpush.msra.mxu0 0.0
      %678 = vmatpush.msra.mxu0 0.0
      %679 = vmatpush.msra.mxu0 0.0
      %680 = vmatpush.msra.mxu0 0.0
      %681 = vmatpush.msra.mxu0 0.0
      %682 = vmatpush.msra.mxu0 0.0
      %683 = vmatpush.msra.mxu0 0.0
      %684 = vmatpush.msra.mxu0 0.0
      %685 = vmatpush.msra.mxu0 0.0
      %686 = vmatpush.msra.mxu0 0.0
      %687 = vmatpush.msra.mxu0 0.0
      %688 = vmatpush.msra.mxu0 0.0
      %689 = vmatpush.msra.mxu0 0.0
      %690 = vmatpush.msra.mxu0 %v671
      %691 = vmatmul.f32.gmra.mxu0 %v673
      %v692 = vpop.f32.mrf.mxu0
      %v693 = vadd.f32 0.0, %v692
      %694 = vdwg.mxu0
      %v695 = vadd.f32 %v668, %v693
      %v696 = vld [vmem:[#allocation2 + $0x6] sm:$0xff]
      %s697 = scalar_lea.vmem %s3, 48
      %v698 = vld [vmem:[%s697] sm:$0xff]
      %v700 = vsel %vm394, %v696, 0
      %702 = vmatpush.msra.mxu0 0.0
      %703 = vmatpush.msra.mxu0 0.0
      %704 = vmatpush.msra.mxu0 0.0
      %705 = vmatpush.msra.mxu0 0.0
      %706 = vmatpush.msra.mxu0 0.0
      %707 = vmatpush.msra.mxu0 0.0
      %708 = vmatpush.msra.mxu0 0.0
      %709 = vmatpush.msra.mxu0 0.0
      %710 = vmatpush.msra.mxu0 0.0
      %711 = vmatpush.msra.mxu0 0.0
      %712 = vmatpush.msra.mxu0 0.0
      %713 = vmatpush.msra.mxu0 0.0
      %714 = vmatpush.msra.mxu0 0.0
      %715 = vmatpush.msra.mxu0 0.0
      %716 = vmatpush.msra.mxu0 0.0
      %717 = vmatpush.msra.mxu0 %v698
      %718 = vmatmul.f32.gmra.mxu0 %v700
      %v719 = vpop.f32.mrf.mxu0
      %v720 = vadd.f32 0.0, %v719
      %721 = vdwg.mxu0
      %v722 = vadd.f32 %v695, %v720
      %v723 = vld [vmem:[%s535] sm:$0xff]
      %s724 = scalar_lea.vmem %s3, 56
      %v725 = vld [vmem:[%s724] sm:$0xff]
      %v727 = vsel %vm394, %v723, 0
      %729 = vmatpush.msra.mxu0 0.0
      %730 = vmatpush.msra.mxu0 0.0
      %731 = vmatpush.msra.mxu0 0.0
      %732 = vmatpush.msra.mxu0 0.0
      %733 = vmatpush.msra.mxu0 0.0
      %734 = vmatpush.msra.mxu0 0.0
      %735 = vmatpush.msra.mxu0 0.0
      %736 = vmatpush.msra.mxu0 0.0
      %737 = vmatpush.msra.mxu0 0.0
      %738 = vmatpush.msra.mxu0 0.0
      %739 = vmatpush.msra.mxu0 0.0
      %740 = vmatpush.msra.mxu0 0.0
      %741 = vmatpush.msra.mxu0 0.0
      %742 = vmatpush.msra.mxu0 0.0
      %743 = vmatpush.msra.mxu0 0.0
      %744 = vmatpush.msra.mxu0 %v725
      %745 = vmatmul.f32.gmra.mxu0 %v727
      %v746 = vpop.f32.mrf.mxu0
      %v747 = vadd.f32 0.0, %v746
      %748 = vdwg.mxu0
      %v749 = vadd.f32 %v722, %v747
      %v750 = vld [vmem:[%s535 + $0x1] sm:$0xff]
      %s751 = scalar_lea.vmem %s3, 64
      %v752 = vld [vmem:[%s751] sm:$0xff]
      %v754 = vsel %vm394, %v750, 0
      %756 = vmatpush.msra.mxu0 0.0
      %757 = vmatpush.msra.mxu0 0.0
      %758 = vmatpush.msra.mxu0 0.0
      %759 = vmatpush.msra.mxu0 0.0
      %760 = vmatpush.msra.mxu0 0.0
      %761 = vmatpush.msra.mxu0 0.0
      %762 = vmatpush.msra.mxu0 0.0
      %763 = vmatpush.msra.mxu0 0.0
      %764 = vmatpush.msra.mxu0 0.0
      %765 = vmatpush.msra.mxu0 0.0
      %766 = vmatpush.msra.mxu0 0.0
      %767 = vmatpush.msra.mxu0 0.0
      %768 = vmatpush.msra.mxu0 0.0
      %769 = vmatpush.msra.mxu0 0.0
      %770 = vmatpush.msra.mxu0 0.0
      %771 = vmatpush.msra.mxu0 %v752
      %772 = vmatmul.f32.gmra.mxu0 %v754
      %v773 = vpop.f32.mrf.mxu0
      %v774 = vadd.f32 0.0, %v773
      %775 = vdwg.mxu0
      %v776 = vadd.f32 %v749, %v774
      %v777 = vld [vmem:[%s535 + $0x2] sm:$0xff]
      %s778 = scalar_lea.vmem %s3, 72
      %v779 = vld [vmem:[%s778] sm:$0xff]
      %v781 = vsel %vm394, %v777, 0
      %783 = vmatpush.msra.mxu0 0.0
      %784 = vmatpush.msra.mxu0 0.0
      %785 = vmatpush.msra.mxu0 0.0
      %786 = vmatpush.msra.mxu0 0.0
      %787 = vmatpush.msra.mxu0 0.0
      %788 = vmatpush.msra.mxu0 0.0
      %789 = vmatpush.msra.mxu0 0.0
      %790 = vmatpush.msra.mxu0 0.0
      %791 = vmatpush.msra.mxu0 0.0
      %792 = vmatpush.msra.mxu0 0.0
      %793 = vmatpush.msra.mxu0 0.0
      %794 = vmatpush.msra.mxu0 0.0
      %795 = vmatpush.msra.mxu0 0.0
      %796 = vmatpush.msra.mxu0 0.0
      %797 = vmatpush.msra.mxu0 0.0
      %798 = vmatpush.msra.mxu0 %v779
      %799 = vmatmul.f32.gmra.mxu0 %v781
      %v800 = vpop.f32.mrf.mxu0
      %v801 = vadd.f32 0.0, %v800
      %802 = vdwg.mxu0
      %v803 = vadd.f32 %v776, %v801
      %v804 = vld [vmem:[%s535 + $0x3] sm:$0xff]
      %s805 = scalar_lea.vmem %s3, 80
      %v806 = vld [vmem:[%s805] sm:$0xff]
      %v808 = vsel %vm394, %v804, 0
      %810 = vmatpush.msra.mxu0 0.0
      %811 = vmatpush.msra.mxu0 0.0
      %812 = vmatpush.msra.mxu0 0.0
      %813 = vmatpush.msra.mxu0 0.0
      %814 = vmatpush.msra.mxu0 0.0
      %815 = vmatpush.msra.mxu0 0.0
      %816 = vmatpush.msra.mxu0 0.0
      %817 = vmatpush.msra.mxu0 0.0
      %818 = vmatpush.msra.mxu0 0.0
      %819 = vmatpush.msra.mxu0 0.0
      %820 = vmatpush.msra.mxu0 0.0
      %821 = vmatpush.msra.mxu0 0.0
      %822 = vmatpush.msra.mxu0 0.0
      %823 = vmatpush.msra.mxu0 0.0
      %824 = vmatpush.msra.mxu0 0.0
      %825 = vmatpush.msra.mxu0 %v806
      %826 = vmatmul.f32.gmra.mxu0 %v808
      %v827 = vpop.f32.mrf.mxu0
      %v828 = vadd.f32 0.0, %v827
      %829 = vdwg.mxu0
      %v830 = vadd.f32 %v803, %v828
      %v831 = vld [vmem:[%s535 + $0x4] sm:$0xff]
      %s832 = scalar_lea.vmem %s3, 88
      %v833 = vld [vmem:[%s832] sm:$0xff]
      %v835 = vsel %vm394, %v831, 0
      %837 = vmatpush.msra.mxu0 0.0
      %838 = vmatpush.msra.mxu0 0.0
      %839 = vmatpush.msra.mxu0 0.0
      %840 = vmatpush.msra.mxu0 0.0
      %841 = vmatpush.msra.mxu0 0.0
      %842 = vmatpush.msra.mxu0 0.0
      %843 = vmatpush.msra.mxu0 0.0
      %844 = vmatpush.msra.mxu0 0.0
      %845 = vmatpush.msra.mxu0 0.0
      %846 = vmatpush.msra.mxu0 0.0
      %847 = vmatpush.msra.mxu0 0.0
      %848 = vmatpush.msra.mxu0 0.0
      %849 = vmatpush.msra.mxu0 0.0
      %850 = vmatpush.msra.mxu0 0.0
      %851 = vmatpush.msra.mxu0 0.0
      %852 = vmatpush.msra.mxu0 %v833
      %853 = vmatmul.f32.gmra.mxu0 %v835
      %v854 = vpop.f32.mrf.mxu0
      %v855 = vadd.f32 0.0, %v854
      %856 = vdwg.mxu0
      %v857 = vadd.f32 %v830, %v855
      %v858 = vld [vmem:[%s535 + $0x5] sm:$0xff]
      %s859 = scalar_lea.vmem %s3, 96
      %v860 = vld [vmem:[%s859] sm:$0xff]
      %v862 = vsel %vm394, %v858, 0
      %864 = vmatpush.msra.mxu0 0.0
      %865 = vmatpush.msra.mxu0 0.0
      %866 = vmatpush.msra.mxu0 0.0
      %867 = vmatpush.msra.mxu0 0.0
      %868 = vmatpush.msra.mxu0 0.0
      %869 = vmatpush.msra.mxu0 0.0
      %870 = vmatpush.msra.mxu0 0.0
      %871 = vmatpush.msra.mxu0 0.0
      %872 = vmatpush.msra.mxu0 0.0
      %873 = vmatpush.msra.mxu0 0.0
      %874 = vmatpush.msra.mxu0 0.0
      %875 = vmatpush.msra.mxu0 0.0
      %876 = vmatpush.msra.mxu0 0.0
      %877 = vmatpush.msra.mxu0 0.0
      %878 = vmatpush.msra.mxu0 0.0
      %879 = vmatpush.msra.mxu0 %v860
      %880 = vmatmul.f32.gmra.mxu0 %v862
      %v881 = vpop.f32.mrf.mxu0
      %v882 = vadd.f32 0.0, %v881
      %883 = vdwg.mxu0
      %v884 = vadd.f32 %v857, %v882
      %v885 = vld [vmem:[%s535 + $0x6] sm:$0xff]
      %s886 = scalar_lea.vmem %s3, 104
      %v887 = vld [vmem:[%s886] sm:$0xff]
      %v889 = vsel %vm394, %v885, 0
      %891 = vmatpush.msra.mxu0 0.0
      %892 = vmatpush.msra.mxu0 0.0
      %893 = vmatpush.msra.mxu0 0.0
      %894 = vmatpush.msra.mxu0 0.0
      %895 = vmatpush.msra.mxu0 0.0
      %896 = vmatpush.msra.mxu0 0.0
      %897 = vmatpush.msra.mxu0 0.0
      %898 = vmatpush.msra.mxu0 0.0
      %899 = vmatpush.msra.mxu0 0.0
      %900 = vmatpush.msra.mxu0 0.0
      %901 = vmatpush.msra.mxu0 0.0
      %902 = vmatpush.msra.mxu0 0.0
      %903 = vmatpush.msra.mxu0 0.0
      %904 = vmatpush.msra.mxu0 0.0
      %905 = vmatpush.msra.mxu0 0.0
      %906 = vmatpush.msra.mxu0 %v887
      %907 = vmatmul.f32.gmra.mxu0 %v889
      %v908 = vpop.f32.mrf.mxu0
      %v909 = vadd.f32 0.0, %v908
      %910 = vdwg.mxu0
      %v911 = vadd.f32 %v884, %v909
      %v912 = vxor.u32 %v911, 2147483648
      %v913 = vmul.f32 %v912, 1.442695
      %v914 = vpow.pop %v913
      %v915 = vadd.f32 %v914, 1.0
      %v916 = vrcp.pop %v915
      %v917 = vmul.f32 %v915, %v916
      %v918 = vsub.f32 1.0, %v917
      %v919 = vmul.f32 %v916, %v918
      %v920 = vadd.f32 %v916, %v919
      %vm921 = vweird.f32 %v915
      %vm922 = vweird.f32 %v916
      %vm923 = vmor %vm921, %vm922
      %v924 = vsel %vm923, %v916, %v920
      %v925 = vand.u32 2147483647, %v915
      %vm926 = vcmp.eq.f32.partialorder %v925, 8.507059e+37
      %v927 = vand.u32 %v915, 2147483648
      %v928 = vor.u32 1.1754944e-38, %v927
      %v929 = vsel %vm926, %v928, %v924
      %v930 = vmul.f32 1.0, %v929
      %931 = vst.msk [vmem:[%s232] sm:$0xff] %vm394, %v930
      %p932 = scmp.lt.s32.totalorder %s15, 1
      %s933 = scalar_select %p932, %s15, 1
      %s934 = smul.addr %s933, 8
      %s935 = scalar_lea.vmem %s4, %s934
      // Predicated region
      $region37: #{etfm_forward.10} parent=35 // pred_check
        %p936 = pneg %p132
      $region38: #{etfm_forward.10} parent=35 // pred_check_branch
        %938 = sbr.rel (%p936) target = $region40
      $region39: #{etfm_forward.10} parent=35 // pred_region
        _
      $region40: #{etfm_forward.10} parent=35 // pred_fallthru
        _
    $region36: #{etfm_forward.10} parent=5 // pred_fallthru
      _
    %p939 = scmp.le.s32.totalorder 2, %s10
    // Predicated region
    $region41: #{etfm_forward.10} parent=5 // pred_check
      %p940 = pneg %p939
    $region42: #{etfm_forward.10} parent=5 // pred_check_branch
      %942 = sbr.rel (%p940) target = $region44
    $region43: #{etfm_forward.10} parent=5 // pred_region
      %s943 = ssub.s32 %s10, 2
      // Predicated region
      $region45: #{etfm_forward.10} parent=43 // pred_check
        %p944 = pneg %p138
      $region46: #{etfm_forward.10} parent=43 // pred_check_branch
        %946 = sbr.rel (%p944) target = $region48
      $region47: #{etfm_forward.10} parent=43 // pred_region
        %p947 = scmp.lt.s32.totalorder %s16, 1
        %s948 = scalar_select %p947, %s16, 1
        %s949 = smul.addr %s948, 8
        %s950 = scalar_lea.vmem %s4, %s949
      $region48: #{etfm_forward.10} parent=43 // pred_fallthru
        _
    $region44: #{etfm_forward.10} parent=5 // pred_fallthru
      _
  $region6: #{etfm_forward.10} parent=0 // loop_footer
    %s14 = sadd.s32 1, %s10
  $region7: #{etfm_forward.10} parent=0 // loop_footer_branch
    %9 = sbr.rel target = $region3
  $region8: #{etfm_forward.10} parent=0 // loop_exit
    _

// kernel: etfm_forward.11
$region0: #{etfm_forward.11}
  #allocation0 [shape = 'u32[]', space=smem, size = 0x4, offset = 0x4, fixed_abs, tag = 'smem constant byte address 0x4 - core index']
  #allocation1 [shape = 'u32[72,128]{1,0:T(1,128)}', space=vmem, size = 0x9000, scoped, tag = 'internal scratch']
  #allocation2 [shape = 'f32[3,32]{1,0:T(4,128)}', space=vmem, size = 0x800, scoped, tag = 'scratch operand']
  #allocation3 [shape = 'f32[3,32]{1,0:T(4,128)}', space=vmem, size = 0x800, scoped, tag = 'scratch operand']
  %s0 = inlined_call_operand.vmem [shape: f32[2,64,64], index: 0, kind: input, shape index: {}]
  %s1 = inlined_call_operand.vmem [shape: f32[2,64,64], index: 1, kind: input, shape index: {}]
  %s2 = inlined_call_operand.vmem [shape: f32[2,64,64], index: 2, kind: input, shape index: {}]
  %s3 = inlined_call_operand.vmem [shape: f32[2,64,1], index: 3, kind: input, shape index: {}]
  %s4 = inlined_call_operand.vmem [shape: f32[2,64,1], index: 4, kind: input, shape index: {}]
  %s5 = inlined_call_operand.vmem [shape: f32[32,8], index: 5, kind: input, shape index: {}]
  %s6 = inlined_call_operand.vmem [shape: f32[8,32], index: 6, kind: input, shape index: {}]
  %s7 = inlined_call_operand.vmem [shape: f32[2,3,32], index: 7, kind: output, shape index: {}]
  %s8 = sld [smem:[#allocation0]]
  $region69: #{etfm_forward.11} parent=0
    _
  %s10 = ssub.s32 1, %s8
  %s11 = scalar_select 0, %s10, %s8
  loop: start=0, step=1, limit=4
  $region2: #{etfm_forward.11} parent=0 // loop_pre_header
    _
  $region3: #{etfm_forward.11} parent=0 // loop_header
    %s13 = sphi 0, %s17
    %p14 = scmp.ge.s32.totalorder %s13, 4
    %s20 = sphi 0, %s32
    %s21 = sphi 0, %s28
    %s22 = sphi 0, %s20
    %s23 = sphi 0, %s21
    %s24 = sphi 0, %s22
    %s25 = sphi 0, %s23
    %s37 = sphi 0, %s39
    %s40 = sphi 0, %s37
    %s41 = sphi 0, %s40
    %s57 = sphi 0, %s41
    %s65 = sphi 0, %s67
    %s68 = sphi 0, %s65
    %s69 = sphi 0, %s68
    %s85 = sphi 0, %s69
    %s93 = sphi 0, %s95
    %s96 = sphi 0, %s93
    %s97 = sphi 0, %s96
    %s113 = sphi 0, %s97
    %s121 = sphi 0, %s123
    %s124 = sphi 0, %s121
    %s125 = sphi 0, %s124
    %s141 = sphi 0, %s125
    %s149 = sphi 0, %s151
    %s152 = sphi 0, %s149
    %s153 = sphi 0, %s152
    %s169 = sphi 0, %s153
    %s173 = sphi 0, %s173
    %s175 = sphi 0, %s173
    %s176 = sphi 0, %s175
    %s190 = sphi 0, %s176
    %s194 = sphi 0, %s194
    %s196 = sphi 0, %s194
    %s197 = sphi 0, %s196
    %s211 = sphi 0, %s197
    %s217 = sphi 0, %s219
    %s220 = sphi 0, %s217
    %s221 = sphi 0, %s220
    %s237 = sphi 0, %s221
  $region4: #{etfm_forward.11} parent=0 // loop_header_branch
    %16 = sbr.rel (%p14) target = $region8
  $region5: #{etfm_forward.11} parent=0 // loop_body
    %s18 = ssub.s32 %s13, 1
    %s19 = ssub.s32 %s13, 2
    %s26 = sadd.s32 1, %s21
    %p27 = scmp.ge.s32.totalorder %s26, 1
    %s28 = scalar_select %p27, 0, %s26
    %s29 = sadd.s32 1, %s20
    %s30 = scalar_select %p27, %s29, %s20
    %p31 = scmp.ge.s32.totalorder %s30, 2
    %s32 = scalar_select %p31, 0, %s30
    %s33 = ssub.s32 %s20, %s32
    %s34 = ssub.s32 %s21, %s28
    %s35 = sor.u32 %s33, %s34
    %p36 = scmp.eq.s32.totalorder %s35, 0
    %s38 = sadd.s32 %s37, 1
    %s39 = scalar_select %p36, %s37, %s38
    %p42 = pneg %p36
    %p43 = scmp.eq.s32.totalorder %s13, 1
    %p44 = por %p42, %p43
    %p45 = scmp.ne.s32.totalorder %s37, %s40
    %p46 = scmp.eq.s32.totalorder %s13, 0
    %p47 = por %p45, %p46
    %p48 = scmp.ne.s32.totalorder %s37, %s40
    %p49 = scmp.eq.s32.totalorder %s18, 1
    %p50 = por %p48, %p49
    %p51 = scmp.ne.s32.totalorder %s40, %s41
    %p52 = scmp.eq.s32.totalorder %s18, 0
    %p53 = por %p51, %p52
    %p54 = scmp.ne.s32.totalorder %s40, %s41
    %p55 = scmp.eq.s32.totalorder %s19, 1
    %p56 = por %p54, %p55
    %p58 = scmp.ne.s32.totalorder %s41, %s57
    %p59 = scmp.eq.s32.totalorder %s19, 0
    %p60 = por %p58, %p59
    %s61 = ssub.s32 %s20, %s32
    %s62 = ssub.s32 %s21, %s28
    %s63 = sor.u32 %s61, %s62
    %p64 = scmp.eq.s32.totalorder %s63, 0
    %s66 = sadd.s32 %s65, 1
    %s67 = scalar_select %p64, %s65, %s66
    %p70 = pneg %p64
    %p71 = scmp.eq.s32.totalorder %s13, 1
    %p72 = por %p70, %p71
    %p73 = scmp.ne.s32.totalorder %s65, %s68
    %p74 = scmp.eq.s32.totalorder %s13, 0
    %p75 = por %p73, %p74
    %p76 = scmp.ne.s32.totalorder %s65, %s68
    %p77 = scmp.eq.s32.totalorder %s18, 1
    %p78 = por %p76, %p77
    %p79 = scmp.ne.s32.totalorder %s68, %s69
    %p80 = scmp.eq.s32.totalorder %s18, 0
    %p81 = por %p79, %p80
    %p82 = scmp.ne.s32.totalorder %s68, %s69
    %p83 = scmp.eq.s32.totalorder %s19, 1
    %p84 = por %p82, %p83
    %p86 = scmp.ne.s32.totalorder %s69, %s85
    %p87 = scmp.eq.s32.totalorder %s19, 0
    %p88 = por %p86, %p87
    %s89 = ssub.s32 %s20, %s32
    %s90 = ssub.s32 %s21, %s28
    %s91 = sor.u32 %s89, %s90
    %p92 = scmp.eq.s32.totalorder %s91, 0
    %s94 = sadd.s32 %s93, 1
    %s95 = scalar_select %p92, %s93, %s94
    %p98 = pneg %p92
    %p99 = scmp.eq.s32.totalorder %s13, 1
    %p100 = por %p98, %p99
    %p101 = scmp.ne.s32.totalorder %s93, %s96
    %p102 = scmp.eq.s32.totalorder %s13, 0
    %p103 = por %p101, %p102
    %p104 = scmp.ne.s32.totalorder %s93, %s96
    %p105 = scmp.eq.s32.totalorder %s18, 1
    %p106 = por %p104, %p105
    %p107 = scmp.ne.s32.totalorder %s96, %s97
    %p108 = scmp.eq.s32.totalorder %s18, 0
    %p109 = por %p107, %p108
    %p110 = scmp.ne.s32.totalorder %s96, %s97
    %p111 = scmp.eq.s32.totalorder %s19, 1
    %p112 = por %p110, %p111
    %p114 = scmp.ne.s32.totalorder %s97, %s113
    %p115 = scmp.eq.s32.totalorder %s19, 0
    %p116 = por %p114, %p115
    %s117 = ssub.s32 %s20, %s32
    %s118 = ssub.s32 %s21, %s28
    %s119 = sor.u32 %s117, %s118
    %p120 = scmp.eq.s32.totalorder %s119, 0
    %s122 = sadd.s32 %s121, 1
    %s123 = scalar_select %p120, %s121, %s122
    %p126 = pneg %p120
    %p127 = scmp.eq.s32.totalorder %s13, 1
    %p128 = por %p126, %p127
    %p129 = scmp.ne.s32.totalorder %s121, %s124
    %p130 = scmp.eq.s32.totalorder %s13, 0
    %p131 = por %p129, %p130
    %p132 = scmp.ne.s32.totalorder %s121, %s124
    %p133 = scmp.eq.s32.totalorder %s18, 1
    %p134 = por %p132, %p133
    %p135 = scmp.ne.s32.totalorder %s124, %s125
    %p136 = scmp.eq.s32.totalorder %s18, 0
    %p137 = por %p135, %p136
    %p138 = scmp.ne.s32.totalorder %s124, %s125
    %p139 = scmp.eq.s32.totalorder %s19, 1
    %p140 = por %p138, %p139
    %p142 = scmp.ne.s32.totalorder %s125, %s141
    %p143 = scmp.eq.s32.totalorder %s19, 0
    %p144 = por %p142, %p143
    %s145 = ssub.s32 %s20, %s32
    %s146 = ssub.s32 %s21, %s28
    %s147 = sor.u32 %s145, %s146
    %p148 = scmp.eq.s32.totalorder %s147, 0
    %s150 = sadd.s32 %s149, 1
    %s151 = scalar_select %p148, %s149, %s150
    %p154 = pneg %p148
    %p155 = scmp.eq.s32.totalorder %s13, 1
    %p156 = por %p154, %p155
    %p157 = scmp.ne.s32.totalorder %s149, %s152
    %p158 = scmp.eq.s32.totalorder %s13, 0
    %p159 = por %p157, %p158
    %p160 = scmp.ne.s32.totalorder %s149, %s152
    %p161 = scmp.eq.s32.totalorder %s18, 1
    %p162 = por %p160, %p161
    %p163 = scmp.ne.s32.totalorder %s152, %s153
    %p164 = scmp.eq.s32.totalorder %s18, 0
    %p165 = por %p163, %p164
    %p166 = scmp.ne.s32.totalorder %s152, %s153
    %p167 = scmp.eq.s32.totalorder %s19, 1
    %p168 = por %p166, %p167
    %p170 = scmp.ne.s32.totalorder %s153, %s169
    %p171 = scmp.eq.s32.totalorder %s19, 0
    %p172 = por %p170, %p171
    %s174 = sadd.s32 %s173, 1
    %p177 = scmp.eq.s32.totalorder %s13, 1
    %p178 = scmp.ne.s32.totalorder %s173, %s175
    %p179 = scmp.eq.s32.totalorder %s13, 0
    %p180 = por %p178, %p179
    %p181 = scmp.ne.s32.totalorder %s173, %s175
    %p182 = scmp.eq.s32.totalorder %s18, 1
    %p183 = por %p181, %p182
    %p184 = scmp.ne.s32.totalorder %s175, %s176
    %p185 = scmp.eq.s32.totalorder %s18, 0
    %p186 = por %p184, %p185
    %p187 = scmp.ne.s32.totalorder %s175, %s176
    %p188 = scmp.eq.s32.totalorder %s19, 1
    %p189 = por %p187, %p188
    %p191 = scmp.ne.s32.totalorder %s176, %s190
    %p192 = scmp.eq.s32.totalorder %s19, 0
    %p193 = por %p191, %p192
    %s195 = sadd.s32 %s194, 1
    %p198 = scmp.eq.s32.totalorder %s13, 1
    %p199 = scmp.ne.s32.totalorder %s194, %s196
    %p200 = scmp.eq.s32.totalorder %s13, 0
    %p201 = por %p199, %p200
    %p202 = scmp.ne.s32.totalorder %s194, %s196
    %p203 = scmp.eq.s32.totalorder %s18, 1
    %p204 = por %p202, %p203
    %p205 = scmp.ne.s32.totalorder %s196, %s197
    %p206 = scmp.eq.s32.totalorder %s18, 0
    %p207 = por %p205, %p206
    %p208 = scmp.ne.s32.totalorder %s196, %s197
    %p209 = scmp.eq.s32.totalorder %s19, 1
    %p210 = por %p208, %p209
    %p212 = scmp.ne.s32.totalorder %s197, %s211
    %p213 = scmp.eq.s32.totalorder %s19, 0
    %p214 = por %p212, %p213
    %s215 = ssub.s32 %s20, %s32
    %p216 = scmp.eq.s32.totalorder %s215, 0
    %s218 = sadd.s32 %s217, 1
    %s219 = scalar_select %p216, %s217, %s218
    %p222 = pneg %p216
    %p223 = scmp.eq.s32.totalorder %s13, 1
    %p224 = por %p222, %p223
    %p225 = scmp.ne.s32.totalorder %s217, %s220
    %p226 = scmp.eq.s32.totalorder %s13, 0
    %p227 = por %p225, %p226
    %p228 = scmp.ne.s32.totalorder %s217, %s220
    %p229 = scmp.eq.s32.totalorder %s18, 1
    %p230 = por %p228, %p229
    %p231 = scmp.ne.s32.totalorder %s220, %s221
    %p232 = scmp.eq.s32.totalorder %s18, 0
    %p233 = por %p231, %p232
    %p234 = scmp.ne.s32.totalorder %s220, %s221
    %p235 = scmp.eq.s32.totalorder %s19, 1
    %p236 = por %p234, %p235
    %p238 = scmp.ne.s32.totalorder %s221, %s237
    %p239 = scmp.eq.s32.totalorder %s19, 0
    %p240 = por %p238, %p239
    %p241 = scmp.le.s32.totalorder 1, %s13
    %p242 = scmp.lt.s32.totalorder %s13, 3
    %p243 = pnand %p241, %p242
    %p244 = pneg %p243
    // Predicated region
    $region9: #{etfm_forward.11} parent=5 // pred_check
      _
    $region10: #{etfm_forward.11} parent=5 // pred_check_branch
      %246 = sbr.rel (%p243) target = $region12
    $region11: #{etfm_forward.11} parent=5 // pred_region
      %s247 = ssub.s32 %s13, 1
      // Predicated region
      $region13: #{etfm_forward.11} parent=11 // pred_check
        %p248 = pneg %p186
      $region14: #{etfm_forward.11} parent=11 // pred_check_branch
        %250 = sbr.rel (%p248) target = $region16
      $region15: #{etfm_forward.11} parent=11 // pred_region
        _
      $region16: #{etfm_forward.11} parent=11 // pred_fallthru
        _
      // Predicated region
      $region17: #{etfm_forward.11} parent=11 // pred_check
        %p251 = pneg %p207
      $region18: #{etfm_forward.11} parent=11 // pred_check_branch
        %253 = sbr.rel (%p251) target = $region20
      $region19: #{etfm_forward.11} parent=11 // pred_region
        _
      $region20: #{etfm_forward.11} parent=11 // pred_fallthru
        _
    $region12: #{etfm_forward.11} parent=5 // pred_fallthru
      _
    %p254 = scmp.lt.s32.totalorder %s13, 2
    // Predicated region
    $region21: #{etfm_forward.11} parent=5 // pred_check
      %p255 = pneg %p254
    $region22: #{etfm_forward.11} parent=5 // pred_check_branch
      %257 = sbr.rel (%p255) target = $region24
    $region23: #{etfm_forward.11} parent=5 // pred_region
      // Predicated region
      $region25: #{etfm_forward.11} parent=23 // pred_check
        %p258 = pneg %p47
      $region26: #{etfm_forward.11} parent=23 // pred_check_branch
        %260 = sbr.rel (%p258) target = $region28
      $region27: #{etfm_forward.11} parent=23 // pred_region
        %s261 = smul.u32 8, %s21
        %p262 = scmp.lt.s32.totalorder %s20, 1
        %s263 = scalar_select %p262, %s20, 1
        %p264 = scmp.lt.s32.totalorder %s261, 7
        %s265 = scalar_select %p264, %s261, 7
        %s266 = smul.addr %s263, 8
        %s267 = sadd.s32 %s265, %s266
        %s268 = smul.addr %s267, 8
        %s269 = scalar_lea.vmem %s0, %s268
        %s270 = smul.u32 8, %s21
      $region28: #{etfm_forward.11} parent=23 // pred_fallthru
        _
      // Predicated region
      $region29: #{etfm_forward.11} parent=23 // pred_check
        %p271 = pneg %p75
      $region30: #{etfm_forward.11} parent=23 // pred_check_branch
        %273 = sbr.rel (%p271) target = $region32
      $region31: #{etfm_forward.11} parent=23 // pred_region
        %s274 = smul.u32 8, %s21
        %p275 = scmp.lt.s32.totalorder %s20, 1
        %s276 = scalar_select %p275, %s20, 1
        %p277 = scmp.lt.s32.totalorder %s274, 7
        %s278 = scalar_select %p277, %s274, 7
        %s279 = smul.addr %s276, 8
        %s280 = sadd.s32 %s278, %s279
        %s281 = smul.addr %s280, 8
        %s282 = scalar_lea.vmem %s1, %s281
        %s283 = smul.u32 8, %s21
      $region32: #{etfm_forward.11} parent=23 // pred_fallthru
        _
      // Predicated region
      $region33: #{etfm_forward.11} parent=23 // pred_check
        %p284 = pneg %p103
      $region34: #{etfm_forward.11} parent=23 // pred_check_branch
        %286 = sbr.rel (%p284) target = $region36
      $region35: #{etfm_forward.11} parent=23 // pred_region
        %s287 = smul.u32 8, %s21
        %p288 = scmp.lt.s32.totalorder %s20, 1
        %s289 = scalar_select %p288, %s20, 1
        %p290 = scmp.lt.s32.totalorder %s287, 7
        %s291 = scalar_select %p290, %s287, 7
        %s292 = smul.addr %s289, 8
        %s293 = sadd.s32 %s291, %s292
        %s294 = smul.addr %s293, 8
        %s295 = scalar_lea.vmem %s2, %s294
        %s296 = smul.u32 8, %s21
      $region36: #{etfm_forward.11} parent=23 // pred_fallthru
        _
      // Predicated region
      $region37: #{etfm_forward.11} parent=23 // pred_check
        %p297 = pneg %p131
      $region38: #{etfm_forward.11} parent=23 // pred_check_branch
        %299 = sbr.rel (%p297) target = $region40
      $region39: #{etfm_forward.11} parent=23 // pred_region
        %s300 = smul.u32 8, %s21
        %p301 = scmp.lt.s32.totalorder %s20, 1
        %s302 = scalar_select %p301, %s20, 1
        %p303 = scmp.lt.s32.totalorder %s300, 7
        %s304 = scalar_select %p303, %s300, 7
        %s305 = smul.addr %s302, 8
        %s306 = sadd.s32 %s304, %s305
        %s307 = smul.addr %s306, 8
        %s308 = scalar_lea.vmem %s3, %s307
        %s309 = smul.u32 8, %s21
      $region40: #{etfm_forward.11} parent=23 // pred_fallthru
        _
      // Predicated region
      $region41: #{etfm_forward.11} parent=23 // pred_check
        %p310 = pneg %p159
      $region42: #{etfm_forward.11} parent=23 // pred_check_branch
        %312 = sbr.rel (%p310) target = $region44
      $region43: #{etfm_forward.11} parent=23 // pred_region
        %s313 = smul.u32 8, %s21
        %p314 = scmp.lt.s32.totalorder %s20, 1
        %s315 = scalar_select %p314, %s20, 1
        %p316 = scmp.lt.s32.totalorder %s313, 7
        %s317 = scalar_select %p316, %s313, 7
        %s318 = smul.addr %s315, 8
        %s319 = sadd.s32 %s317, %s318
        %s320 = smul.addr %s319, 8
        %s321 = scalar_lea.vmem %s4, %s320
        %s322 = smul.u32 8, %s21
      $region44: #{etfm_forward.11} parent=23 // pred_fallthru
        _
    $region24: #{etfm_forward.11} parent=5 // pred_fallthru
      _
    %p323 = scmp.le.s32.totalorder 1, %s13
    %p324 = scmp.lt.s32.totalorder %s13, 3
    %p325 = pnand %p323, %p324
    %p326 = pneg %p325
    // Predicated region
    $region45: #{etfm_forward.11} parent=5 // pred_check
      _
    $region46: #{etfm_forward.11} parent=5 // pred_check_branch
      %328 = sbr.rel (%p325) target = $region48
    $region47: #{etfm_forward.11} parent=5 // pred_region
      %s329 = ssub.s32 %s13, 1
      %s330 = smul.u32 8, %s23
      %p331 = scmp.lt.s32.totalorder %s22, 1
      %s332 = scalar_select %p331, %s22, 1
      %p333 = scmp.lt.s32.totalorder %s330, 7
      %s334 = scalar_select %p333, %s330, 7
      %s335 = smul.addr %s332, 8
      %s336 = sadd.s32 %s334, %s335
      %s337 = smul.addr %s336, 8
      %s338 = scalar_lea.vmem %s0, %s337
      %p339 = pneg %p53
      %p340 = pneg %p50
      %s341 = smul.u32 8, %s23
      %p342 = scmp.lt.s32.totalorder %s22, 1
      %s343 = scalar_select %p342, %s22, 1
      %p344 = scmp.lt.s32.totalorder %s341, 7
      %s345 = scalar_select %p344, %s341, 7
      %s346 = smul.addr %s343, 8
      %s347 = sadd.s32 %s345, %s346
      %s348 = smul.addr %s347, 8
      %s349 = scalar_lea.vmem %s1, %s348
      %p350 = pneg %p81
      %p351 = pneg %p78
      %s352 = smul.u32 8, %s23
      %p353 = scmp.lt.s32.totalorder %s22, 1
      %s354 = scalar_select %p353, %s22, 1
      %p355 = scmp.lt.s32.totalorder %s352, 7
      %s356 = scalar_select %p355, %s352, 7
      %s357 = smul.addr %s354, 8
      %s358 = sadd.s32 %s356, %s357
      %s359 = smul.addr %s358, 8
      %s360 = scalar_lea.vmem %s2, %s359
      %p361 = pneg %p109
      %p362 = pneg %p106
      %s363 = smul.u32 8, %s23
      %p364 = scmp.lt.s32.totalorder %s22, 1
      %s365 = scalar_select %p364, %s22, 1
      %p366 = scmp.lt.s32.totalorder %s363, 7
      %s367 = scalar_select %p366, %s363, 7
      %s368 = smul.addr %s365, 8
      %s369 = sadd.s32 %s367, %s368
      %s370 = smul.addr %s369, 8
      %s371 = scalar_lea.vmem %s3, %s370
      %p372 = pneg %p137
      %p373 = pneg %p134
      %s374 = smul.u32 8, %s23
      %p375 = scmp.lt.s32.totalorder %s22, 1
      %s376 = scalar_select %p375, %s22, 1
      %p377 = scmp.lt.s32.totalorder %s374, 7
      %s378 = scalar_select %p377, %s374, 7
      %s379 = smul.addr %s376, 8
      %s380 = sadd.s32 %s378, %s379
      %s381 = smul.addr %s380, 8
      %s382 = scalar_lea.vmem %s4, %s381
      %p383 = pneg %p165
      %p384 = pneg %p162
      %p385 = pneg %p186
      %p386 = pneg %p183
      %p387 = pneg %p207
      %p388 = pneg %p204
      %p389 = pneg %p233
      %p390 = pneg %p230
      %p391 = scmp.lt.s32.totalorder %s22, 1
      %s392 = scalar_select %p391, %s22, 1
      %s393 = smul.addr %s392, 4
      %s394 = scalar_lea.vmem %s7, %s393
      %s395 = smul.u32 8, %s23
      %p396 = scmp.lt.s32.totalorder %s22, 1
      %s397 = scalar_select %p396, %s22, 1
      %p398 = scmp.lt.s32.totalorder %s395, 7
      %s399 = scalar_select %p398, %s395, 7
      %s400 = smul.addr %s397, 8
      %s401 = sadd.s32 %s399, %s400
      %s402 = smul.addr %s401, 8
      %s403 = scalar_lea.vmem %s0, %s402
      %s404 = smul.u32 8, %s23
      %s405 = smul.u32 8, %s23
      %p406 = scmp.lt.s32.totalorder %s22, 1
      %s407 = scalar_select %p406, %s22, 1
      %p408 = scmp.lt.s32.totalorder %s405, 7
      %s409 = scalar_select %p408, %s405, 7
      %s410 = smul.addr %s407, 8
      %s411 = sadd.s32 %s409, %s410
      %s412 = smul.addr %s411, 8
      %s413 = scalar_lea.vmem %s1, %s412
      %s414 = smul.u32 8, %s23
      %s415 = smul.u32 8, %s23
      %p416 = scmp.lt.s32.totalorder %s22, 1
      %s417 = scalar_select %p416, %s22, 1
      %p418 = scmp.lt.s32.totalorder %s415, 7
      %s419 = scalar_select %p418, %s415, 7
      %s420 = smul.addr %s417, 8
      %s421 = sadd.s32 %s419, %s420
      %s422 = smul.addr %s421, 8
      %s423 = scalar_lea.vmem %s2, %s422
      %s424 = smul.u32 8, %s23
      %s425 = smul.u32 8, %s23
      %p426 = scmp.lt.s32.totalorder %s22, 1
      %s427 = scalar_select %p426, %s22, 1
      %p428 = scmp.lt.s32.totalorder %s425, 7
      %s429 = scalar_select %p428, %s425, 7
      %s430 = smul.addr %s427, 8
      %s431 = sadd.s32 %s429, %s430
      %s432 = smul.addr %s431, 8
      %s433 = scalar_lea.vmem %s3, %s432
      %s434 = smul.u32 8, %s23
      %s435 = smul.u32 8, %s23
      %p436 = scmp.lt.s32.totalorder %s22, 1
      %s437 = scalar_select %p436, %s22, 1
      %p438 = scmp.lt.s32.totalorder %s435, 7
      %s439 = scalar_select %p438, %s435, 7
      %s440 = smul.addr %s437, 8
      %s441 = sadd.s32 %s439, %s440
      %s442 = smul.addr %s441, 8
      %s443 = scalar_lea.vmem %s4, %s442
      %s444 = smul.u32 8, %s23
      %p445 = scmp.lt.s32.totalorder %s22, 1
      %s446 = scalar_select %p445, %s22, 1
      %s447 = smul.addr %s446, 4
      %s448 = scalar_lea.vmem %s7, %s447
      %p449 = scmp.eq.s32.totalorder %s23, 0
      // Predicated region
      $region49: #{etfm_forward.11} parent=47 // pred_check
        %p450 = pneg %p449
      $region50: #{etfm_forward.11} parent=47 // pred_check_branch
        %452 = sbr.rel (%p450) target = $region52
      $region51: #{etfm_forward.11} parent=47 // pred_region
        %vm453 = vcmask 256000
        %454 = vst.msk [vmem:[#allocation2] sm:$0x7] %vm453, 0.0
        %455 = vst.msk [vmem:[#allocation3] sm:$0x7] %vm453, -inf
      $region52: #{etfm_forward.11} parent=47 // pred_fallthru
        _
      %v456 = vld [vmem:[%s433] sm:$0xff]
      %v457 = vld [vmem:[%s433 + $0x8] sm:$0xff]
      %v458 = vld [vmem:[%s433 + $0x10] sm:$0xff]
      %v459 = vld [vmem:[%s433 + $0x18] sm:$0xff]
      %v460 = vld [vmem:[%s433 + $0x20] sm:$0xff]
      %v461 = vld [vmem:[%s433 + $0x28] sm:$0xff]
      %v462 = vld [vmem:[%s433 + $0x30] sm:$0xff]
      %v463 = vld [vmem:[%s433 + $0x38] sm:$0xff]
      %v464 = vld [vmem:[%s443] sm:$0xff]
      %v465 = vld [vmem:[%s443 + $0x8] sm:$0xff]
      %v466 = vld [vmem:[%s443 + $0x10] sm:$0xff]
      %v467 = vld [vmem:[%s443 + $0x18] sm:$0xff]
      %v468 = vld [vmem:[%s443 + $0x20] sm:$0xff]
      %v469 = vld [vmem:[%s443 + $0x28] sm:$0xff]
      %v470 = vld [vmem:[%s443 + $0x30] sm:$0xff]
      %v471 = vld [vmem:[%s443 + $0x38] sm:$0xff]
      %v472 = vld [vmem:[%s423] sm:$0xff]
      %v473 = vld [vmem:[%s423 + $0x8] sm:$0xff]
      %v474 = vld [vmem:[%s423 + $0x10] sm:$0xff]
      %v475 = vld [vmem:[%s423 + $0x18] sm:$0xff]
      %v476 = vld [vmem:[%s423 + $0x20] sm:$0xff]
      %v477 = vld [vmem:[%s423 + $0x28] sm:$0xff]
      %v478 = vld [vmem:[%s423 + $0x30] sm:$0xff]
      %v479 = vld [vmem:[%s423 + $0x38] sm:$0xff]
      %v480 = vld [vmem:[%s403] sm:$0xff]
      %v481 = vld [vmem:[%s403 + $0x8] sm:$0xff]
      %v482 = vld [vmem:[%s403 + $0x10] sm:$0xff]
      %v483 = vld [vmem:[%s403 + $0x18] sm:$0xff]
      %v484 = vld [vmem:[%s403 + $0x20] sm:$0xff]
      %v485 = vld [vmem:[%s403 + $0x28] sm:$0xff]
      %v486 = vld [vmem:[%s403 + $0x30] sm:$0xff]
      %v487 = vld [vmem:[%s403 + $0x38] sm:$0xff]
      %v488 = vmul.f32 %v480, %v472
      %v489 = vmul.f32 %v481, %v473
      %v490 = vmul.f32 %v482, %v474
      %v491 = vmul.f32 %v483, %v475
      %v492 = vmul.f32 %v484, %v476
      %v493 = vmul.f32 %v485, %v477
      %v494 = vmul.f32 %v486, %v478
      %v495 = vmul.f32 %v487, %v479
      %497 = vset.pattern.permute.xlu0 0
      %498 = vperm.xlu0 %497, %v456
      %v499 = vpop.permute.xlu0 %498
      %502 = vset.pattern.permute.xlu0 0
      %503 = vperm.xlu0 %502, %v457
      %v504 = vpop.permute.xlu0 %503
      %507 = vset.pattern.permute.xlu0 0
      %508 = vperm.xlu0 %507, %v458
      %v509 = vpop.permute.xlu0 %508
      %512 = vset.pattern.permute.xlu0 0
      %513 = vperm.xlu0 %512, %v459
      %v514 = vpop.permute.xlu0 %513
      %517 = vset.pattern.permute.xlu0 0
      %518 = vperm.xlu0 %517, %v460
      %v519 = vpop.permute.xlu0 %518
      %522 = vset.pattern.permute.xlu0 0
      %523 = vperm.xlu0 %522, %v461
      %v524 = vpop.permute.xlu0 %523
      %527 = vset.pattern.permute.xlu0 0
      %528 = vperm.xlu0 %527, %v462
      %v529 = vpop.permute.xlu0 %528
      %532 = vset.pattern.permute.xlu0 0
      %533 = vperm.xlu0 %532, %v463
      %v534 = vpop.permute.xlu0 %533
      %v536 = vmul.f32 %v488, %v499
      %v537 = vmul.f32 %v489, %v504
      %v538 = vmul.f32 %v490, %v509
      %v539 = vmul.f32 %v491, %v514
      %v540 = vmul.f32 %v492, %v519
      %v541 = vmul.f32 %v493, %v524
      %v542 = vmul.f32 %v494, %v529
      %v543 = vmul.f32 %v495, %v534
      %v544 = vadd.f32 %v536, %v472
      %v545 = vadd.f32 %v537, %v473
      %v546 = vadd.f32 %v538, %v474
      %v547 = vadd.f32 %v539, %v475
      %v548 = vadd.f32 %v540, %v476
      %v549 = vadd.f32 %v541, %v477
      %v550 = vadd.f32 %v542, %v478
      %v551 = vadd.f32 %v543, %v479
      %v552 = vld [vmem:[%s413] sm:$0xff]
      %v553 = vld [vmem:[%s413 + $0x8] sm:$0xff]
      %v554 = vld [vmem:[%s413 + $0x10] sm:$0xff]
      %v555 = vld [vmem:[%s413 + $0x18] sm:$0xff]
      %v556 = vld [vmem:[%s413 + $0x20] sm:$0xff]
      %v557 = vld [vmem:[%s413 + $0x28] sm:$0xff]
      %v558 = vld [vmem:[%s413 + $0x30] sm:$0xff]
      %v559 = vld [vmem:[%s413 + $0x38] sm:$0xff]
      %v560 = vmul.f32 %v552, %v472
      %v561 = vmul.f32 %v553, %v473
      %v562 = vmul.f32 %v554, %v474
      %v563 = vmul.f32 %v555, %v475
      %v564 = vmul.f32 %v556, %v476
      %v565 = vmul.f32 %v557, %v477
      %v566 = vmul.f32 %v558, %v478
      %v567 = vmul.f32 %v559, %v479
      %569 = vset.pattern.permute.xlu0 0
      %570 = vperm.xlu0 %569, %v464
      %v571 = vpop.permute.xlu0 %570
      %574 = vset.pattern.permute.xlu0 0
      %575 = vperm.xlu0 %574, %v465
      %v576 = vpop.permute.xlu0 %575
      %579 = vset.pattern.permute.xlu0 0
      %580 = vperm.xlu0 %579, %v466
      %v581 = vpop.permute.xlu0 %580
      %584 = vset.pattern.permute.xlu0 0
      %585 = vperm.xlu0 %584, %v467
      %v586 = vpop.permute.xlu0 %585
      %589 = vset.pattern.permute.xlu0 0
      %590 = vperm.xlu0 %589, %v468
      %v591 = vpop.permute.xlu0 %590
      %594 = vset.pattern.permute.xlu0 0
      %595 = vperm.xlu0 %594, %v469
      %v596 = vpop.permute.xlu0 %595
      %599 = vset.pattern.permute.xlu0 0
      %600 = vperm.xlu0 %599, %v470
      %v601 = vpop.permute.xlu0 %600
      %604 = vset.pattern.permute.xlu0 0
      %605 = vperm.xlu0 %604, %v471
      %v606 = vpop.permute.xlu0 %605
      %v608 = vmul.f32 %v560, %v571
      %v609 = vmul.f32 %v561, %v576
      %v610 = vmul.f32 %v562, %v581
      %v611 = vmul.f32 %v563, %v586
      %v612 = vmul.f32 %v564, %v591
      %v613 = vmul.f32 %v565, %v596
      %v614 = vmul.f32 %v566, %v601
      %v615 = vmul.f32 %v567, %v606
      %v616 = vadd.f32 %v608, %v472
      %v617 = vadd.f32 %v609, %v473
      %v618 = vadd.f32 %v610, %v474
      %v619 = vadd.f32 %v611, %v475
      %v620 = vadd.f32 %v612, %v476
      %v621 = vadd.f32 %v613, %v477
      %v622 = vadd.f32 %v614, %v478
      %v623 = vadd.f32 %v615, %v479
      %v624 = vld [vmem:[#allocation2] sm:$0x1]
      %vm625 = vcmask 261120
      %v626 = vsel %vm625, %v544, 0.0
      %v627 = vsel %vm625, %v545, 0.0
      %v628 = vadd.f32 %v626, %v627
      %v629 = vsel %vm625, %v546, 0.0
      %v630 = vadd.f32 %v628, %v629
      %v631 = vsel %vm625, %v547, 0.0
      %v632 = vadd.f32 %v630, %v631
      %v633 = vsel %vm625, %v548, 0.0
      %v634 = vadd.f32 %v632, %v633
      %v635 = vsel %vm625, %v549, 0.0
      %v636 = vadd.f32 %v634, %v635
      %v637 = vsel %vm625, %v550, 0.0
      %v638 = vadd.f32 %v636, %v637
      %v639 = vsel %vm625, %v551, 0.0
      %v640 = vadd.f32 %v638, %v639
      %v641 = vrot.slane %v640, 4
      %v642 = vadd.f32 %v640, %v641
      %v643 = vrot.slane %v642, 2
      %v644 = vadd.f32 %v642, %v643
      %v645 = vrot.slane %v644, 1
      %v646 = vadd.f32 %v644, %v645
      %v647 = vadd.f32 %v624, %v646
      %vm648 = vcmask 253952
      %649 = vst.msk [vmem:[#allocation2] sm:$0x1] %vm648, %v647
      %v650 = vld [vmem:[#allocation2 + $0x1] sm:$0x1]
      %vm651 = vcmask 523520
      %v652 = vsel %vm651, %v544, 0.0
      %v653 = vsel %vm651, %v545, 0.0
      %v654 = vadd.f32 %v652, %v653
      %v655 = vsel %vm651, %v546, 0.0
      %v656 = vadd.f32 %v654, %v655
      %v657 = vsel %vm651, %v547, 0.0
      %v658 = vadd.f32 %v656, %v657
      %v659 = vsel %vm651, %v548, 0.0
      %v660 = vadd.f32 %v658, %v659
      %v661 = vsel %vm651, %v549, 0.0
      %v662 = vadd.f32 %v660, %v661
      %v663 = vsel %vm651, %v550, 0.0
      %v664 = vadd.f32 %v662, %v663
      %v665 = vsel %vm651, %v551, 0.0
      %v666 = vadd.f32 %v664, %v665
      %v667 = vrot.slane %v666, 4
      %v668 = vadd.f32 %v666, %v667
      %v669 = vrot.slane %v668, 2
      %v670 = vadd.f32 %v668, %v669
      %v671 = vrot.slane %v670, 1
      %v672 = vadd.f32 %v670, %v671
      %674 = vrot.lane.b32.xlu0 %v672, 96
      %v675 = vpop.permute.xlu0 %674
      %v677 = vadd.f32 %v650, %v675
      %678 = vst.msk [vmem:[#allocation2 + $0x1] sm:$0x1] %vm648, %v677
      %v679 = vld [vmem:[#allocation2 + $0x2] sm:$0x1]
      %v680 = vsel %vm651, %v616, 0.0
      %v681 = vsel %vm651, %v617, 0.0
      %v682 = vadd.f32 %v680, %v681
      %v683 = vsel %vm651, %v618, 0.0
      %v684 = vadd.f32 %v682, %v683
      %v685 = vsel %vm651, %v619, 0.0
      %v686 = vadd.f32 %v684, %v685
      %v687 = vsel %vm651, %v620, 0.0
      %v688 = vadd.f32 %v686, %v687
      %v689 = vsel %vm651, %v621, 0.0
      %v690 = vadd.f32 %v688, %v689
      %v691 = vsel %vm651, %v622, 0.0
      %v692 = vadd.f32 %v690, %v691
      %v693 = vsel %vm651, %v623, 0.0
      %v694 = vadd.f32 %v692, %v693
      %v695 = vrot.slane %v694, 4
      %v696 = vadd.f32 %v694, %v695
      %v697 = vrot.slane %v696, 2
      %v698 = vadd.f32 %v696, %v697
      %v699 = vrot.slane %v698, 1
      %v700 = vadd.f32 %v698, %v699
      %702 = vrot.lane.b32.xlu0 %v700, 96
      %v703 = vpop.permute.xlu0 %702
      %v705 = vadd.f32 %v679, %v703
      %706 = vst.msk [vmem:[#allocation2 + $0x2] sm:$0x1] %vm648, %v705
      %v707 = vld [vmem:[#allocation3] sm:$0x1]
      %v708 = vsel %vm625, %v544, -inf
      %v709 = vsel %vm625, %v545, -inf
      %v710 = vsel %vm625, %v546, -inf
      %v711 = vsel %vm625, %v547, -inf
      %v712 = vsel %vm625, %v548, -inf
      %v713 = vmax.f32 %v708, %v712
      %v714 = vsel %vm625, %v549, -inf
      %v715 = vmax.f32 %v709, %v714
      %v716 = vsel %vm625, %v550, -inf
      %v717 = vmax.f32 %v710, %v716
      %v718 = vsel %vm625, %v551, -inf
      %v719 = vmax.f32 %v711, %v718
      %v720 = vmax.f32 %v713, %v715
      %v721 = vmax.f32 %v717, %v719
      %v722 = vmax.f32 %v720, %v721
      %v723 = vrot.slane %v722, 4
      %v724 = vmax.f32 %v722, %v723
      %v725 = vrot.slane %v724, 2
      %v726 = vmax.f32 %v724, %v725
      %v727 = vrot.slane %v726, 1
      %v728 = vmax.f32 %v726, %v727
      %v729 = vmax.f32 %v707, %v728
      %730 = vst.msk [vmem:[#allocation3] sm:$0x1] %vm648, %v729
      %v731 = vld [vmem:[#allocation3 + $0x1] sm:$0x1]
      %v732 = vsel %vm651, %v544, -inf
      %v733 = vsel %vm651, %v545, -inf
      %v734 = vsel %vm651, %v546, -inf
      %v735 = vsel %vm651, %v547, -inf
      %v736 = vsel %vm651, %v548, -inf
      %v737 = vmax.f32 %v732, %v736
      %v738 = vsel %vm651, %v549, -inf
      %v739 = vmax.f32 %v733, %v738
      %v740 = vsel %vm651, %v550, -inf
      %v741 = vmax.f32 %v734, %v740
      %v742 = vsel %vm651, %v551, -inf
      %v743 = vmax.f32 %v735, %v742
      %v744 = vmax.f32 %v737, %v739
      %v745 = vmax.f32 %v741, %v743
      %v746 = vmax.f32 %v744, %v745
      %v747 = vrot.slane %v746, 4
      %v748 = vmax.f32 %v746, %v747
      %v749 = vrot.slane %v748, 2
      %v750 = vmax.f32 %v748, %v749
      %v751 = vrot.slane %v750, 1
      %v752 = vmax.f32 %v750, %v751
      %754 = vrot.lane.b32.xlu0 %v752, 96
      %v755 = vpop.permute.xlu0 %754
      %v757 = vmax.f32 %v731, %v755
      %758 = vst.msk [vmem:[#allocation3 + $0x1] sm:$0x1] %vm648, %v757
      %v759 = vld [vmem:[#allocation3 + $0x2] sm:$0x1]
      %v760 = vsel %vm651, %v616, -inf
      %v761 = vsel %vm651, %v617, -inf
      %v762 = vsel %vm651, %v618, -inf
      %v763 = vsel %vm651, %v619, -inf
      %v764 = vsel %vm651, %v620, -inf
      %v765 = vmax.f32 %v760, %v764
      %v766 = vsel %vm651, %v621, -inf
      %v767 = vmax.f32 %v761, %v766
      %v768 = vsel %vm651, %v622, -inf
      %v769 = vmax.f32 %v762, %v768
      %v770 = vsel %vm651, %v623, -inf
      %v771 = vmax.f32 %v763, %v770
      %v772 = vmax.f32 %v765, %v767
      %v773 = vmax.f32 %v769, %v771
      %v774 = vmax.f32 %v772, %v773
      %v775 = vrot.slane %v774, 4
      %v776 = vmax.f32 %v774, %v775
      %v777 = vrot.slane %v776, 2
      %v778 = vmax.f32 %v776, %v777
      %v779 = vrot.slane %v778, 1
      %v780 = vmax.f32 %v778, %v779
      %782 = vrot.lane.b32.xlu0 %v780, 96
      %v783 = vpop.permute.xlu0 %782
      %v785 = vmax.f32 %v759, %v783
      %786 = vst.msk [vmem:[#allocation3 + $0x2] sm:$0x1] %vm648, %v785
      // Predicated region
      $region53: #{etfm_forward.11} parent=47 // pred_check
        %p787 = pneg %p449
      $region54: #{etfm_forward.11} parent=47 // pred_check_branch
        %789 = sbr.rel (%p787) target = $region56
      $region55: #{etfm_forward.11} parent=47 // pred_region
        %v790 = vld [vmem:[#allocation2] sm:$0x7]
        %v791 = vmul.f32 %v790, 0.015625
        %v792 = vld [vmem:[%s5] sm:$0xff]
        %v793 = vld [vmem:[%s5 + $0x8] sm:$0xff]
        %v794 = vld [vmem:[%s5 + $0x10] sm:$0xff]
        %v795 = vld [vmem:[%s5 + $0x18] sm:$0xff]
        %v797 = vsel %vm625, %v791, 0
        %799 = vmatpush.msra.mxu0 0.0
        %800 = vmatpush.msra.mxu0 0.0
        %801 = vmatpush.msra.mxu0 0.0
        %802 = vmatpush.msra.mxu0 0.0
        %803 = vmatpush.msra.mxu0 0.0
        %804 = vmatpush.msra.mxu0 0.0
        %805 = vmatpush.msra.mxu0 0.0
        %806 = vmatpush.msra.mxu0 0.0
        %807 = vmatpush.msra.mxu0 0.0
        %808 = vmatpush.msra.mxu0 0.0
        %809 = vmatpush.msra.mxu0 0.0
        %810 = vmatpush.msra.mxu0 0.0
        %811 = vmatpush.msra.mxu0 %v795
        %812 = vmatpush.msra.mxu0 %v794
        %813 = vmatpush.msra.mxu0 %v793
        %814 = vmatpush.msra.mxu0 %v792
        %815 = vmatmul.f32.gmra.mxu0 %v797
        %v816 = vpop.f32.mrf.mxu0
        %v817 = vadd.f32 0.0, %v816
        %818 = vdwg.mxu0
        %v819 = vmax.f32 %v817, 0.0
        %v820 = vld [vmem:[%s6] sm:$0xff]
        %v821 = vld [vmem:[#allocation3] sm:$0x7]
        %v823 = vsel %vm625, %v821, 0
        %825 = vmatpush.msra.mxu0 0.0
        %826 = vmatpush.msra.mxu0 0.0
        %827 = vmatpush.msra.mxu0 0.0
        %828 = vmatpush.msra.mxu0 0.0
        %829 = vmatpush.msra.mxu0 0.0
        %830 = vmatpush.msra.mxu0 0.0
        %831 = vmatpush.msra.mxu0 0.0
        %832 = vmatpush.msra.mxu0 0.0
        %833 = vmatpush.msra.mxu0 0.0
        %834 = vmatpush.msra.mxu0 0.0
        %835 = vmatpush.msra.mxu0 0.0
        %836 = vmatpush.msra.mxu0 0.0
        %837 = vmatpush.msra.mxu0 %v795
        %838 = vmatpush.msra.mxu0 %v794
        %839 = vmatpush.msra.mxu0 %v793
        %840 = vmatpush.msra.mxu0 %v792
        %841 = vmatmul.f32.gmra.mxu0 %v823
        %v842 = vpop.f32.mrf.mxu0
        %v843 = vadd.f32 0.0, %v842
        %844 = vdwg.mxu0
        %v845 = vmax.f32 %v843, 0.0
        %vm846 = vcmask 64512
        %v848 = vsel %vm846, %v845, 0
        %850 = vmatpush.msra.mxu0 0.0
        %851 = vmatpush.msra.mxu0 0.0
        %852 = vmatpush.msra.mxu0 0.0
        %853 = vmatpush.msra.mxu0 0.0
        %854 = vmatpush.msra.mxu0 0.0
        %855 = vmatpush.msra.mxu0 0.0
        %856 = vmatpush.msra.mxu0 0.0
        %857 = vmatpush.msra.mxu0 0.0
        %858 = vmatpush.msra.mxu0 0.0
        %859 = vmatpush.msra.mxu0 0.0
        %860 = vmatpush.msra.mxu0 0.0
        %861 = vmatpush.msra.mxu0 0.0
        %862 = vmatpush.msra.mxu0 0.0
        %863 = vmatpush.msra.mxu0 0.0
        %864 = vmatpush.msra.mxu0 0.0
        %865 = vmatpush.msra.mxu0 %v820
        %866 = vmatmul.f32.gmra.mxu0 %v848
        %v867 = vpop.f32.mrf.mxu0
        %v868 = vadd.f32 0.0, %v867
        %869 = vdwg.mxu0
        %v871 = vsel %vm846, %v819, 0
        %873 = vmatpush.msra.mxu0 0.0
        %874 = vmatpush.msra.mxu0 0.0
        %875 = vmatpush.msra.mxu0 0.0
        %876 = vmatpush.msra.mxu0 0.0
        %877 = vmatpush.msra.mxu0 0.0
        %878 = vmatpush.msra.mxu0 0.0
        %879 = vmatpush.msra.mxu0 0.0
        %880 = vmatpush.msra.mxu0 0.0
        %881 = vmatpush.msra.mxu0 0.0
        %882 = vmatpush.msra.mxu0 0.0
        %883 = vmatpush.msra.mxu0 0.0
        %884 = vmatpush.msra.mxu0 0.0
        %885 = vmatpush.msra.mxu0 0.0
        %886 = vmatpush.msra.mxu0 0.0
        %887 = vmatpush.msra.mxu0 0.0
        %888 = vmatpush.msra.mxu0 %v820
        %889 = vmatmul.f32.gmra.mxu0 %v871
        %v890 = vpop.f32.mrf.mxu0
        %v891 = vadd.f32 %v868, %v890
        %892 = vdwg.mxu0
        %v893 = vxor.u32 %v891, 2147483648
        %v894 = vmul.f32 %v893, 1.442695
        %v895 = vpow.pop %v894
        %v896 = vadd.f32 %v895, 1.0
        %v897 = vrcp.pop %v896
        %v898 = vmul.f32 %v896, %v897
        %v899 = vsub.f32 1.0, %v898
        %v900 = vmul.f32 %v897, %v899
        %v901 = vadd.f32 %v897, %v900
        %vm902 = vweird.f32 %v896
        %vm903 = vweird.f32 %v897
        %vm904 = vmor %vm902, %vm903
        %v905 = vsel %vm904, %v897, %v901
        %v906 = vand.u32 2147483647, %v896
        %vm907 = vcmp.eq.f32.partialorder %v906, 8.507059e+37
        %v908 = vand.u32 %v896, 2147483648
        %v909 = vor.u32 1.1754944e-38, %v908
        %v910 = vsel %vm907, %v909, %v905
        %v911 = vmul.f32 1.0, %v910
        %vm912 = vcmask 256000
        %913 = vst.msk [vmem:[%s448] sm:$0x7] %vm912, %v911
      $region56: #{etfm_forward.11} parent=47 // pred_fallthru
        _
      %p914 = scmp.lt.s32.totalorder %s22, 1
      %s915 = scalar_select %p914, %s22, 1
      %s916 = smul.addr %s915, 4
      %s917 = scalar_lea.vmem %s7, %s916
      // Predicated region
      $region57: #{etfm_forward.11} parent=47 // pred_check
        %p918 = pneg %p230
      $region58: #{etfm_forward.11} parent=47 // pred_check_branch
        %920 = sbr.rel (%p918) target = $region60
      $region59: #{etfm_forward.11} parent=47 // pred_region
        _
      $region60: #{etfm_forward.11} parent=47 // pred_fallthru
        _
    $region48: #{etfm_forward.11} parent=5 // pred_fallthru
      _
    %p921 = scmp.le.s32.totalorder 2, %s13
    // Predicated region
    $region61: #{etfm_forward.11} parent=5 // pred_check
      %p922 = pneg %p921
    $region62: #{etfm_forward.11} parent=5 // pred_check_branch
      %924 = sbr.rel (%p922) target = $region64
    $region63: #{etfm_forward.11} parent=5 // pred_region
      %s925 = ssub.s32 %s13, 2
      // Predicated region
      $region65: #{etfm_forward.11} parent=63 // pred_check
        %p926 = pneg %p236
      $region66: #{etfm_forward.11} parent=63 // pred_check_branch
        %928 = sbr.rel (%p926) target = $region68
      $region67: #{etfm_forward.11} parent=63 // pred_region
        %p929 = scmp.lt.s32.totalorder %s24, 1
        %s930 = scalar_select %p929, %s24, 1
        %s931 = smul.addr %s930, 4
        %s932 = scalar_lea.vmem %s7, %s931
      $region68: #{etfm_forward.11} parent=63 // pred_fallthru
        _
    $region64: #{etfm_forward.11} parent=5 // pred_fallthru
      _
  $region6: #{etfm_forward.11} parent=0 // loop_footer
    %s17 = sadd.s32 1, %s13
  $region7: #{etfm_forward.11} parent=0 // loop_footer_branch
    %12 = sbr.rel target = $region3
  $region8: #{etfm_forward.11} parent=0 // loop_exit
    _

// kernel: etfm_forward.12
$region0: #{etfm_forward.12}
  #allocation0 [shape = 'u32[]', space=smem, size = 0x4, offset = 0x4, fixed_abs, tag = 'smem constant byte address 0x4 - core index']
  #allocation1 [shape = 'u32[72,128]{1,0:T(1,128)}', space=vmem, size = 0x9000, scoped, tag = 'internal scratch']
  #allocation2 [shape = 'f32[64,128]{1,0:T(8,128)}', space=vmem, size = 0x8000, scoped, tag = 'scratch operand']
  %s0 = inlined_call_operand.vmem [shape: f32[2,64,64], index: 0, kind: input, shape index: {}]
  %s1 = inlined_call_operand.vmem [shape: f32[2,64,64], index: 1, kind: input, shape index: {}]
  %s2 = inlined_call_operand.vmem [shape: f32[2,64,64], index: 2, kind: input, shape index: {}]
  %s3 = inlined_call_operand.vmem [shape: f32[2,64,1], index: 3, kind: input, shape index: {}]
  %s4 = inlined_call_operand.vmem [shape: f32[2,64,1], index: 4, kind: input, shape index: {}]
  %s5 = inlined_call_operand.vmem [shape: f32[2,64,1], index: 5, kind: input, shape index: {}]
  %s6 = inlined_call_operand.vmem [shape: f32[2,3,32], index: 6, kind: input, shape index: {}]
  %s7 = inlined_call_operand.vmem [shape: bf16[128,64], index: 7, kind: input, shape index: {}]
  %s8 = inlined_call_operand.vmem [shape: f32[1,64], index: 8, kind: input, shape index: {}]
  %s9 = inlined_call_operand.vmem [shape: f32[1,64], index: 9, kind: input, shape index: {}]
  %s10 = inlined_call_operand.vmem [shape: f32[2,64,64], index: 10, kind: output, shape index: {}]
  %s11 = sld [smem:[#allocation0]]
  $region73: #{etfm_forward.12} parent=0
    _
  %s13 = ssub.s32 1, %s11
  %s14 = scalar_select 0, %s13, %s11
  loop: start=0, step=1, limit=4
  $region2: #{etfm_forward.12} parent=0 // loop_pre_header
    _
  $region3: #{etfm_forward.12} parent=0 // loop_header
    %s16 = sphi 0, %s20
    %p17 = scmp.ge.s32.totalorder %s16, 4
    %s23 = sphi 0, %s35
    %s24 = sphi 0, %s31
    %s25 = sphi 0, %s23
    %s26 = sphi 0, %s24
    %s27 = sphi 0, %s25
    %s28 = sphi 0, %s26
    %s40 = sphi 0, %s42
    %s43 = sphi 0, %s40
    %s44 = sphi 0, %s43
    %s60 = sphi 0, %s44
    %s68 = sphi 0, %s70
    %s71 = sphi 0, %s68
    %s72 = sphi 0, %s71
    %s88 = sphi 0, %s72
    %s96 = sphi 0, %s98
    %s99 = sphi 0, %s96
    %s100 = sphi 0, %s99
    %s116 = sphi 0, %s100
    %s124 = sphi 0, %s126
    %s127 = sphi 0, %s124
    %s128 = sphi 0, %s127
    %s144 = sphi 0, %s128
    %s152 = sphi 0, %s154
    %s155 = sphi 0, %s152
    %s156 = sphi 0, %s155
    %s172 = sphi 0, %s156
    %s180 = sphi 0, %s182
    %s183 = sphi 0, %s180
    %s184 = sphi 0, %s183
    %s200 = sphi 0, %s184
    %s206 = sphi 0, %s208
    %s209 = sphi 0, %s206
    %s210 = sphi 0, %s209
    %s226 = sphi 0, %s210
    %s230 = sphi 0, %s230
    %s232 = sphi 0, %s230
    %s233 = sphi 0, %s232
    %s247 = sphi 0, %s233
    %s251 = sphi 0, %s251
    %s253 = sphi 0, %s251
    %s254 = sphi 0, %s253
    %s268 = sphi 0, %s254
    %s272 = sphi 0, %s272
    %s274 = sphi 0, %s272
    %s275 = sphi 0, %s274
    %s289 = sphi 0, %s275
    %s297 = sphi 0, %s299
    %s300 = sphi 0, %s297
    %s301 = sphi 0, %s300
    %s317 = sphi 0, %s301
  $region4: #{etfm_forward.12} parent=0 // loop_header_branch
    %19 = sbr.rel (%p17) target = $region8
  $region5: #{etfm_forward.12} parent=0 // loop_body
    %s21 = ssub.s32 %s16, 1
    %s22 = ssub.s32 %s16, 2
    %s29 = sadd.s32 1, %s24
    %p30 = scmp.ge.s32.totalorder %s29, 1
    %s31 = scalar_select %p30, 0, %s29
    %s32 = sadd.s32 1, %s23
    %s33 = scalar_select %p30, %s32, %s23
    %p34 = scmp.ge.s32.totalorder %s33, 2
    %s35 = scalar_select %p34, 0, %s33
    %s36 = ssub.s32 %s23, %s35
    %s37 = ssub.s32 %s24, %s31
    %s38 = sor.u32 %s36, %s37
    %p39 = scmp.eq.s32.totalorder %s38, 0
    %s41 = sadd.s32 %s40, 1
    %s42 = scalar_select %p39, %s40, %s41
    %p45 = pneg %p39
    %p46 = scmp.eq.s32.totalorder %s16, 1
    %p47 = por %p45, %p46
    %p48 = scmp.ne.s32.totalorder %s40, %s43
    %p49 = scmp.eq.s32.totalorder %s16, 0
    %p50 = por %p48, %p49
    %p51 = scmp.ne.s32.totalorder %s40, %s43
    %p52 = scmp.eq.s32.totalorder %s21, 1
    %p53 = por %p51, %p52
    %p54 = scmp.ne.s32.totalorder %s43, %s44
    %p55 = scmp.eq.s32.totalorder %s21, 0
    %p56 = por %p54, %p55
    %p57 = scmp.ne.s32.totalorder %s43, %s44
    %p58 = scmp.eq.s32.totalorder %s22, 1
    %p59 = por %p57, %p58
    %p61 = scmp.ne.s32.totalorder %s44, %s60
    %p62 = scmp.eq.s32.totalorder %s22, 0
    %p63 = por %p61, %p62
    %s64 = ssub.s32 %s23, %s35
    %s65 = ssub.s32 %s24, %s31
    %s66 = sor.u32 %s64, %s65
    %p67 = scmp.eq.s32.totalorder %s66, 0
    %s69 = sadd.s32 %s68, 1
    %s70 = scalar_select %p67, %s68, %s69
    %p73 = pneg %p67
    %p74 = scmp.eq.s32.totalorder %s16, 1
    %p75 = por %p73, %p74
    %p76 = scmp.ne.s32.totalorder %s68, %s71
    %p77 = scmp.eq.s32.totalorder %s16, 0
    %p78 = por %p76, %p77
    %p79 = scmp.ne.s32.totalorder %s68, %s71
    %p80 = scmp.eq.s32.totalorder %s21, 1
    %p81 = por %p79, %p80
    %p82 = scmp.ne.s32.totalorder %s71, %s72
    %p83 = scmp.eq.s32.totalorder %s21, 0
    %p84 = por %p82, %p83
    %p85 = scmp.ne.s32.totalorder %s71, %s72
    %p86 = scmp.eq.s32.totalorder %s22, 1
    %p87 = por %p85, %p86
    %p89 = scmp.ne.s32.totalorder %s72, %s88
    %p90 = scmp.eq.s32.totalorder %s22, 0
    %p91 = por %p89, %p90
    %s92 = ssub.s32 %s23, %s35
    %s93 = ssub.s32 %s24, %s31
    %s94 = sor.u32 %s92, %s93
    %p95 = scmp.eq.s32.totalorder %s94, 0
    %s97 = sadd.s32 %s96, 1
    %s98 = scalar_select %p95, %s96, %s97
    %p101 = pneg %p95
    %p102 = scmp.eq.s32.totalorder %s16, 1
    %p103 = por %p101, %p102
    %p104 = scmp.ne.s32.totalorder %s96, %s99
    %p105 = scmp.eq.s32.totalorder %s16, 0
    %p106 = por %p104, %p105
    %p107 = scmp.ne.s32.totalorder %s96, %s99
    %p108 = scmp.eq.s32.totalorder %s21, 1
    %p109 = por %p107, %p108
    %p110 = scmp.ne.s32.totalorder %s99, %s100
    %p111 = scmp.eq.s32.totalorder %s21, 0
    %p112 = por %p110, %p111
    %p113 = scmp.ne.s32.totalorder %s99, %s100
    %p114 = scmp.eq.s32.totalorder %s22, 1
    %p115 = por %p113, %p114
    %p117 = scmp.ne.s32.totalorder %s100, %s116
    %p118 = scmp.eq.s32.totalorder %s22, 0
    %p119 = por %p117, %p118
    %s120 = ssub.s32 %s23, %s35
    %s121 = ssub.s32 %s24, %s31
    %s122 = sor.u32 %s120, %s121
    %p123 = scmp.eq.s32.totalorder %s122, 0
    %s125 = sadd.s32 %s124, 1
    %s126 = scalar_select %p123, %s124, %s125
    %p129 = pneg %p123
    %p130 = scmp.eq.s32.totalorder %s16, 1
    %p131 = por %p129, %p130
    %p132 = scmp.ne.s32.totalorder %s124, %s127
    %p133 = scmp.eq.s32.totalorder %s16, 0
    %p134 = por %p132, %p133
    %p135 = scmp.ne.s32.totalorder %s124, %s127
    %p136 = scmp.eq.s32.totalorder %s21, 1
    %p137 = por %p135, %p136
    %p138 = scmp.ne.s32.totalorder %s127, %s128
    %p139 = scmp.eq.s32.totalorder %s21, 0
    %p140 = por %p138, %p139
    %p141 = scmp.ne.s32.totalorder %s127, %s128
    %p142 = scmp.eq.s32.totalorder %s22, 1
    %p143 = por %p141, %p142
    %p145 = scmp.ne.s32.totalorder %s128, %s144
    %p146 = scmp.eq.s32.totalorder %s22, 0
    %p147 = por %p145, %p146
    %s148 = ssub.s32 %s23, %s35
    %s149 = ssub.s32 %s24, %s31
    %s150 = sor.u32 %s148, %s149
    %p151 = scmp.eq.s32.totalorder %s150, 0
    %s153 = sadd.s32 %s152, 1
    %s154 = scalar_select %p151, %s152, %s153
    %p157 = pneg %p151
    %p158 = scmp.eq.s32.totalorder %s16, 1
    %p159 = por %p157, %p158
    %p160 = scmp.ne.s32.totalorder %s152, %s155
    %p161 = scmp.eq.s32.totalorder %s16, 0
    %p162 = por %p160, %p161
    %p163 = scmp.ne.s32.totalorder %s152, %s155
    %p164 = scmp.eq.s32.totalorder %s21, 1
    %p165 = por %p163, %p164
    %p166 = scmp.ne.s32.totalorder %s155, %s156
    %p167 = scmp.eq.s32.totalorder %s21, 0
    %p168 = por %p166, %p167
    %p169 = scmp.ne.s32.totalorder %s155, %s156
    %p170 = scmp.eq.s32.totalorder %s22, 1
    %p171 = por %p169, %p170
    %p173 = scmp.ne.s32.totalorder %s156, %s172
    %p174 = scmp.eq.s32.totalorder %s22, 0
    %p175 = por %p173, %p174
    %s176 = ssub.s32 %s23, %s35
    %s177 = ssub.s32 %s24, %s31
    %s178 = sor.u32 %s176, %s177
    %p179 = scmp.eq.s32.totalorder %s178, 0
    %s181 = sadd.s32 %s180, 1
    %s182 = scalar_select %p179, %s180, %s181
    %p185 = pneg %p179
    %p186 = scmp.eq.s32.totalorder %s16, 1
    %p187 = por %p185, %p186
    %p188 = scmp.ne.s32.totalorder %s180, %s183
    %p189 = scmp.eq.s32.totalorder %s16, 0
    %p190 = por %p188, %p189
    %p191 = scmp.ne.s32.totalorder %s180, %s183
    %p192 = scmp.eq.s32.totalorder %s21, 1
    %p193 = por %p191, %p192
    %p194 = scmp.ne.s32.totalorder %s183, %s184
    %p195 = scmp.eq.s32.totalorder %s21, 0
    %p196 = por %p194, %p195
    %p197 = scmp.ne.s32.totalorder %s183, %s184
    %p198 = scmp.eq.s32.totalorder %s22, 1
    %p199 = por %p197, %p198
    %p201 = scmp.ne.s32.totalorder %s184, %s200
    %p202 = scmp.eq.s32.totalorder %s22, 0
    %p203 = por %p201, %p202
    %s204 = ssub.s32 %s23, %s35
    %p205 = scmp.eq.s32.totalorder %s204, 0
    %s207 = sadd.s32 %s206, 1
    %s208 = scalar_select %p205, %s206, %s207
    %p211 = pneg %p205
    %p212 = scmp.eq.s32.totalorder %s16, 1
    %p213 = por %p211, %p212
    %p214 = scmp.ne.s32.totalorder %s206, %s209
    %p215 = scmp.eq.s32.totalorder %s16, 0
    %p216 = por %p214, %p215
    %p217 = scmp.ne.s32.totalorder %s206, %s209
    %p218 = scmp.eq.s32.totalorder %s21, 1
    %p219 = por %p217, %p218
    %p220 = scmp.ne.s32.totalorder %s209, %s210
    %p221 = scmp.eq.s32.totalorder %s21, 0
    %p222 = por %p220, %p221
    %p223 = scmp.ne.s32.totalorder %s209, %s210
    %p224 = scmp.eq.s32.totalorder %s22, 1
    %p225 = por %p223, %p224
    %p227 = scmp.ne.s32.totalorder %s210, %s226
    %p228 = scmp.eq.s32.totalorder %s22, 0
    %p229 = por %p227, %p228
    %s231 = sadd.s32 %s230, 1
    %p234 = scmp.eq.s32.totalorder %s16, 1
    %p235 = scmp.ne.s32.totalorder %s230, %s232
    %p236 = scmp.eq.s32.totalorder %s16, 0
    %p237 = por %p235, %p236
    %p238 = scmp.ne.s32.totalorder %s230, %s232
    %p239 = scmp.eq.s32.totalorder %s21, 1
    %p240 = por %p238, %p239
    %p241 = scmp.ne.s32.totalorder %s232, %s233
    %p242 = scmp.eq.s32.totalorder %s21, 0
    %p243 = por %p241, %p242
    %p244 = scmp.ne.s32.totalorder %s232, %s233
    %p245 = scmp.eq.s32.totalorder %s22, 1
    %p246 = por %p244, %p245
    %p248 = scmp.ne.s32.totalorder %s233, %s247
    %p249 = scmp.eq.s32.totalorder %s22, 0
    %p250 = por %p248, %p249
    %s252 = sadd.s32 %s251, 1
    %p255 = scmp.eq.s32.totalorder %s16, 1
    %p256 = scmp.ne.s32.totalorder %s251, %s253
    %p257 = scmp.eq.s32.totalorder %s16, 0
    %p258 = por %p256, %p257
    %p259 = scmp.ne.s32.totalorder %s251, %s253
    %p260 = scmp.eq.s32.totalorder %s21, 1
    %p261 = por %p259, %p260
    %p262 = scmp.ne.s32.totalorder %s253, %s254
    %p263 = scmp.eq.s32.totalorder %s21, 0
    %p264 = por %p262, %p263
    %p265 = scmp.ne.s32.totalorder %s253, %s254
    %p266 = scmp.eq.s32.totalorder %s22, 1
    %p267 = por %p265, %p266
    %p269 = scmp.ne.s32.totalorder %s254, %s268
    %p270 = scmp.eq.s32.totalorder %s22, 0
    %p271 = por %p269, %p270
    %s273 = sadd.s32 %s272, 1
    %p276 = scmp.eq.s32.totalorder %s16, 1
    %p277 = scmp.ne.s32.totalorder %s272, %s274
    %p278 = scmp.eq.s32.totalorder %s16, 0
    %p279 = por %p277, %p278
    %p280 = scmp.ne.s32.totalorder %s272, %s274
    %p281 = scmp.eq.s32.totalorder %s21, 1
    %p282 = por %p280, %p281
    %p283 = scmp.ne.s32.totalorder %s274, %s275
    %p284 = scmp.eq.s32.totalorder %s21, 0
    %p285 = por %p283, %p284
    %p286 = scmp.ne.s32.totalorder %s274, %s275
    %p287 = scmp.eq.s32.totalorder %s22, 1
    %p288 = por %p286, %p287
    %p290 = scmp.ne.s32.totalorder %s275, %s289
    %p291 = scmp.eq.s32.totalorder %s22, 0
    %p292 = por %p290, %p291
    %s293 = ssub.s32 %s23, %s35
    %s294 = ssub.s32 %s24, %s31
    %s295 = sor.u32 %s293, %s294
    %p296 = scmp.eq.s32.totalorder %s295, 0
    %s298 = sadd.s32 %s297, 1
    %s299 = scalar_select %p296, %s297, %s298
    %p302 = pneg %p296
    %p303 = scmp.eq.s32.totalorder %s16, 1
    %p304 = por %p302, %p303
    %p305 = scmp.ne.s32.totalorder %s297, %s300
    %p306 = scmp.eq.s32.totalorder %s16, 0
    %p307 = por %p305, %p306
    %p308 = scmp.ne.s32.totalorder %s297, %s300
    %p309 = scmp.eq.s32.totalorder %s21, 1
    %p310 = por %p308, %p309
    %p311 = scmp.ne.s32.totalorder %s300, %s301
    %p312 = scmp.eq.s32.totalorder %s21, 0
    %p313 = por %p311, %p312
    %p314 = scmp.ne.s32.totalorder %s300, %s301
    %p315 = scmp.eq.s32.totalorder %s22, 1
    %p316 = por %p314, %p315
    %p318 = scmp.ne.s32.totalorder %s301, %s317
    %p319 = scmp.eq.s32.totalorder %s22, 0
    %p320 = por %p318, %p319
    %p321 = scmp.le.s32.totalorder 1, %s16
    %p322 = scmp.lt.s32.totalorder %s16, 3
    %p323 = pnand %p321, %p322
    %p324 = pneg %p323
    // Predicated region
    $region9: #{etfm_forward.12} parent=5 // pred_check
      _
    $region10: #{etfm_forward.12} parent=5 // pred_check_branch
      %326 = sbr.rel (%p323) target = $region12
    $region11: #{etfm_forward.12} parent=5 // pred_region
      %s327 = ssub.s32 %s16, 1
      // Predicated region
      $region13: #{etfm_forward.12} parent=11 // pred_check
        %p328 = pneg %p243
      $region14: #{etfm_forward.12} parent=11 // pred_check_branch
        %330 = sbr.rel (%p328) target = $region16
      $region15: #{etfm_forward.12} parent=11 // pred_region
        _
      $region16: #{etfm_forward.12} parent=11 // pred_fallthru
        _
      // Predicated region
      $region17: #{etfm_forward.12} parent=11 // pred_check
        %p331 = pneg %p264
      $region18: #{etfm_forward.12} parent=11 // pred_check_branch
        %333 = sbr.rel (%p331) target = $region20
      $region19: #{etfm_forward.12} parent=11 // pred_region
        _
      $region20: #{etfm_forward.12} parent=11 // pred_fallthru
        _
      // Predicated region
      $region21: #{etfm_forward.12} parent=11 // pred_check
        %p334 = pneg %p285
      $region22: #{etfm_forward.12} parent=11 // pred_check_branch
        %336 = sbr.rel (%p334) target = $region24
      $region23: #{etfm_forward.12} parent=11 // pred_region
        _
      $region24: #{etfm_forward.12} parent=11 // pred_fallthru
        _
    $region12: #{etfm_forward.12} parent=5 // pred_fallthru
      _
    %p337 = scmp.lt.s32.totalorder %s16, 2
    // Predicated region
    $region25: #{etfm_forward.12} parent=5 // pred_check
      %p338 = pneg %p337
    $region26: #{etfm_forward.12} parent=5 // pred_check_branch
      %340 = sbr.rel (%p338) target = $region28
    $region27: #{etfm_forward.12} parent=5 // pred_region
      // Predicated region
      $region29: #{etfm_forward.12} parent=27 // pred_check
        %p341 = pneg %p50
      $region30: #{etfm_forward.12} parent=27 // pred_check_branch
        %343 = sbr.rel (%p341) target = $region32
      $region31: #{etfm_forward.12} parent=27 // pred_region
        %s344 = smul.u32 8, %s24
        %p345 = scmp.lt.s32.totalorder %s23, 1
        %s346 = scalar_select %p345, %s23, 1
        %p347 = scmp.lt.s32.totalorder %s344, 7
        %s348 = scalar_select %p347, %s344, 7
        %s349 = smul.addr %s346, 8
        %s350 = sadd.s32 %s348, %s349
        %s351 = smul.addr %s350, 8
        %s352 = scalar_lea.vmem %s0, %s351
        %s353 = smul.u32 8, %s24
      $region32: #{etfm_forward.12} parent=27 // pred_fallthru
        _
      // Predicated region
      $region33: #{etfm_forward.12} parent=27 // pred_check
        %p354 = pneg %p78
      $region34: #{etfm_forward.12} parent=27 // pred_check_branch
        %356 = sbr.rel (%p354) target = $region36
      $region35: #{etfm_forward.12} parent=27 // pred_region
        %s357 = smul.u32 8, %s24
        %p358 = scmp.lt.s32.totalorder %s23, 1
        %s359 = scalar_select %p358, %s23, 1
        %p360 = scmp.lt.s32.totalorder %s357, 7
        %s361 = scalar_select %p360, %s357, 7
        %s362 = smul.addr %s359, 8
        %s363 = sadd.s32 %s361, %s362
        %s364 = smul.addr %s363, 8
        %s365 = scalar_lea.vmem %s1, %s364
        %s366 = smul.u32 8, %s24
      $region36: #{etfm_forward.12} parent=27 // pred_fallthru
        _
      // Predicated region
      $region37: #{etfm_forward.12} parent=27 // pred_check
        %p367 = pneg %p106
      $region38: #{etfm_forward.12} parent=27 // pred_check_branch
        %369 = sbr.rel (%p367) target = $region40
      $region39: #{etfm_forward.12} parent=27 // pred_region
        %s370 = smul.u32 8, %s24
        %p371 = scmp.lt.s32.totalorder %s23, 1
        %s372 = scalar_select %p371, %s23, 1
        %p373 = scmp.lt.s32.totalorder %s370, 7
        %s374 = scalar_select %p373, %s370, 7
        %s375 = smul.addr %s372, 8
        %s376 = sadd.s32 %s374, %s375
        %s377 = smul.addr %s376, 8
        %s378 = scalar_lea.vmem %s2, %s377
        %s379 = smul.u32 8, %s24
      $region40: #{etfm_forward.12} parent=27 // pred_fallthru
        _
      // Predicated region
      $region41: #{etfm_forward.12} parent=27 // pred_check
        %p380 = pneg %p134
      $region42: #{etfm_forward.12} parent=27 // pred_check_branch
        %382 = sbr.rel (%p380) target = $region44
      $region43: #{etfm_forward.12} parent=27 // pred_region
        %s383 = smul.u32 8, %s24
        %p384 = scmp.lt.s32.totalorder %s23, 1
        %s385 = scalar_select %p384, %s23, 1
        %p386 = scmp.lt.s32.totalorder %s383, 7
        %s387 = scalar_select %p386, %s383, 7
        %s388 = smul.addr %s385, 8
        %s389 = sadd.s32 %s387, %s388
        %s390 = smul.addr %s389, 8
        %s391 = scalar_lea.vmem %s3, %s390
        %s392 = smul.u32 8, %s24
      $region44: #{etfm_forward.12} parent=27 // pred_fallthru
        _
      // Predicated region
      $region45: #{etfm_forward.12} parent=27 // pred_check
        %p393 = pneg %p162
      $region46: #{etfm_forward.12} parent=27 // pred_check_branch
        %395 = sbr.rel (%p393) target = $region48
      $region47: #{etfm_forward.12} parent=27 // pred_region
        %s396 = smul.u32 8, %s24
        %p397 = scmp.lt.s32.totalorder %s23, 1
        %s398 = scalar_select %p397, %s23, 1
        %p399 = scmp.lt.s32.totalorder %s396, 7
        %s400 = scalar_select %p399, %s396, 7
        %s401 = smul.addr %s398, 8
        %s402 = sadd.s32 %s400, %s401
        %s403 = smul.addr %s402, 8
        %s404 = scalar_lea.vmem %s4, %s403
        %s405 = smul.u32 8, %s24
      $region48: #{etfm_forward.12} parent=27 // pred_fallthru
        _
      // Predicated region
      $region49: #{etfm_forward.12} parent=27 // pred_check
        %p406 = pneg %p190
      $region50: #{etfm_forward.12} parent=27 // pred_check_branch
        %408 = sbr.rel (%p406) target = $region52
      $region51: #{etfm_forward.12} parent=27 // pred_region
        %s409 = smul.u32 8, %s24
        %p410 = scmp.lt.s32.totalorder %s23, 1
        %s411 = scalar_select %p410, %s23, 1
        %p412 = scmp.lt.s32.totalorder %s409, 7
        %s413 = scalar_select %p412, %s409, 7
        %s414 = smul.addr %s411, 8
        %s415 = sadd.s32 %s413, %s414
        %s416 = smul.addr %s415, 8
        %s417 = scalar_lea.vmem %s5, %s416
        %s418 = smul.u32 8, %s24
      $region52: #{etfm_forward.12} parent=27 // pred_fallthru
        _
      // Predicated region
      $region53: #{etfm_forward.12} parent=27 // pred_check
        %p419 = pneg %p216
      $region54: #{etfm_forward.12} parent=27 // pred_check_branch
        %421 = sbr.rel (%p419) target = $region56
      $region55: #{etfm_forward.12} parent=27 // pred_region
        %p422 = scmp.lt.s32.totalorder %s23, 1
        %s423 = scalar_select %p422, %s23, 1
        %s424 = smul.addr %s423, 4
        %s425 = scalar_lea.vmem %s6, %s424
      $region56: #{etfm_forward.12} parent=27 // pred_fallthru
        _
    $region28: #{etfm_forward.12} parent=5 // pred_fallthru
      _
    %p426 = scmp.le.s32.totalorder 1, %s16
    %p427 = scmp.lt.s32.totalorder %s16, 3
    %p428 = pnand %p426, %p427
    %p429 = pneg %p428
    // Predicated region
    $region57: #{etfm_forward.12} parent=5 // pred_check
      _
    $region58: #{etfm_forward.12} parent=5 // pred_check_branch
      %431 = sbr.rel (%p428) target = $region60
    $region59: #{etfm_forward.12} parent=5 // pred_region
      %s432 = ssub.s32 %s16, 1
      %s433 = smul.u32 8, %s26
      %p434 = scmp.lt.s32.totalorder %s25, 1
      %s435 = scalar_select %p434, %s25, 1
      %p436 = scmp.lt.s32.totalorder %s433, 7
      %s437 = scalar_select %p436, %s433, 7
      %s438 = smul.addr %s435, 8
      %s439 = sadd.s32 %s437, %s438
      %s440 = smul.addr %s439, 8
      %s441 = scalar_lea.vmem %s0, %s440
      %p442 = pneg %p56
      %p443 = pneg %p53
      %s444 = smul.u32 8, %s26
      %p445 = scmp.lt.s32.totalorder %s25, 1
      %s446 = scalar_select %p445, %s25, 1
      %p447 = scmp.lt.s32.totalorder %s444, 7
      %s448 = scalar_select %p447, %s444, 7
      %s449 = smul.addr %s446, 8
      %s450 = sadd.s32 %s448, %s449
      %s451 = smul.addr %s450, 8
      %s452 = scalar_lea.vmem %s1, %s451
      %p453 = pneg %p84
      %p454 = pneg %p81
      %s455 = smul.u32 8, %s26
      %p456 = scmp.lt.s32.totalorder %s25, 1
      %s457 = scalar_select %p456, %s25, 1
      %p458 = scmp.lt.s32.totalorder %s455, 7
      %s459 = scalar_select %p458, %s455, 7
      %s460 = smul.addr %s457, 8
      %s461 = sadd.s32 %s459, %s460
      %s462 = smul.addr %s461, 8
      %s463 = scalar_lea.vmem %s2, %s462
      %p464 = pneg %p112
      %p465 = pneg %p109
      %s466 = smul.u32 8, %s26
      %p467 = scmp.lt.s32.totalorder %s25, 1
      %s468 = scalar_select %p467, %s25, 1
      %p469 = scmp.lt.s32.totalorder %s466, 7
      %s470 = scalar_select %p469, %s466, 7
      %s471 = smul.addr %s468, 8
      %s472 = sadd.s32 %s470, %s471
      %s473 = smul.addr %s472, 8
      %s474 = scalar_lea.vmem %s3, %s473
      %p475 = pneg %p140
      %p476 = pneg %p137
      %s477 = smul.u32 8, %s26
      %p478 = scmp.lt.s32.totalorder %s25, 1
      %s479 = scalar_select %p478, %s25, 1
      %p480 = scmp.lt.s32.totalorder %s477, 7
      %s481 = scalar_select %p480, %s477, 7
      %s482 = smul.addr %s479, 8
      %s483 = sadd.s32 %s481, %s482
      %s484 = smul.addr %s483, 8
      %s485 = scalar_lea.vmem %s4, %s484
      %p486 = pneg %p168
      %p487 = pneg %p165
      %s488 = smul.u32 8, %s26
      %p489 = scmp.lt.s32.totalorder %s25, 1
      %s490 = scalar_select %p489, %s25, 1
      %p491 = scmp.lt.s32.totalorder %s488, 7
      %s492 = scalar_select %p491, %s488, 7
      %s493 = smul.addr %s490, 8
      %s494 = sadd.s32 %s492, %s493
      %s495 = smul.addr %s494, 8
      %s496 = scalar_lea.vmem %s5, %s495
      %p497 = pneg %p196
      %p498 = pneg %p193
      %p499 = scmp.lt.s32.totalorder %s25, 1
      %s500 = scalar_select %p499, %s25, 1
      %s501 = smul.addr %s500, 4
      %s502 = scalar_lea.vmem %s6, %s501
      %p503 = pneg %p222
      %p504 = pneg %p219
      %p505 = pneg %p243
      %p506 = pneg %p240
      %p507 = pneg %p264
      %p508 = pneg %p261
      %p509 = pneg %p285
      %p510 = pneg %p282
      %p511 = pneg %p313
      %p512 = pneg %p310
      %s513 = smul.u32 8, %s26
      %p514 = scmp.lt.s32.totalorder %s25, 1
      %s515 = scalar_select %p514, %s25, 1
      %p516 = scmp.lt.s32.totalorder %s513, 7
      %s517 = scalar_select %p516, %s513, 7
      %s518 = smul.addr %s515, 8
      %s519 = sadd.s32 %s517, %s518
      %s520 = smul.addr %s519, 8
      %s521 = scalar_lea.vmem %s10, %s520
      %s522 = smul.u32 8, %s26
      %p523 = scmp.lt.s32.totalorder %s25, 1
      %s524 = scalar_select %p523, %s25, 1
      %p525 = scmp.lt.s32.totalorder %s522, 7
      %s526 = scalar_select %p525, %s522, 7
      %s527 = smul.addr %s524, 8
      %s528 = sadd.s32 %s526, %s527
      %s529 = smul.addr %s528, 8
      %s530 = scalar_lea.vmem %s0, %s529
      %s531 = smul.u32 8, %s26
      %s532 = smul.u32 8, %s26
      %p533 = scmp.lt.s32.totalorder %s25, 1
      %s534 = scalar_select %p533, %s25, 1
      %p535 = scmp.lt.s32.totalorder %s532, 7
      %s536 = scalar_select %p535, %s532, 7
      %s537 = smul.addr %s534, 8
      %s538 = sadd.s32 %s536, %s537
      %s539 = smul.addr %s538, 8
      %s540 = scalar_lea.vmem %s1, %s539
      %s541 = smul.u32 8, %s26
      %s542 = smul.u32 8, %s26
      %p543 = scmp.lt.s32.totalorder %s25, 1
      %s544 = scalar_select %p543, %s25, 1
      %p545 = scmp.lt.s32.totalorder %s542, 7
      %s546 = scalar_select %p545, %s542, 7
      %s547 = smul.addr %s544, 8
      %s548 = sadd.s32 %s546, %s547
      %s549 = smul.addr %s548, 8
      %s550 = scalar_lea.vmem %s2, %s549
      %s551 = smul.u32 8, %s26
      %s552 = smul.u32 8, %s26
      %p553 = scmp.lt.s32.totalorder %s25, 1
      %s554 = scalar_select %p553, %s25, 1
      %p555 = scmp.lt.s32.totalorder %s552, 7
      %s556 = scalar_select %p555, %s552, 7
      %s557 = smul.addr %s554, 8
      %s558 = sadd.s32 %s556, %s557
      %s559 = smul.addr %s558, 8
      %s560 = scalar_lea.vmem %s3, %s559
      %s561 = smul.u32 8, %s26
      %s562 = smul.u32 8, %s26
      %p563 = scmp.lt.s32.totalorder %s25, 1
      %s564 = scalar_select %p563, %s25, 1
      %p565 = scmp.lt.s32.totalorder %s562, 7
      %s566 = scalar_select %p565, %s562, 7
      %s567 = smul.addr %s564, 8
      %s568 = sadd.s32 %s566, %s567
      %s569 = smul.addr %s568, 8
      %s570 = scalar_lea.vmem %s4, %s569
      %s571 = smul.u32 8, %s26
      %s572 = smul.u32 8, %s26
      %p573 = scmp.lt.s32.totalorder %s25, 1
      %s574 = scalar_select %p573, %s25, 1
      %p575 = scmp.lt.s32.totalorder %s572, 7
      %s576 = scalar_select %p575, %s572, 7
      %s577 = smul.addr %s574, 8
      %s578 = sadd.s32 %s576, %s577
      %s579 = smul.addr %s578, 8
      %s580 = scalar_lea.vmem %s5, %s579
      %s581 = smul.u32 8, %s26
      %p582 = scmp.lt.s32.totalorder %s25, 1
      %s583 = scalar_select %p582, %s25, 1
      %s584 = smul.addr %s583, 4
      %s585 = scalar_lea.vmem %s6, %s584
      %s586 = smul.u32 8, %s26
      %p587 = scmp.lt.s32.totalorder %s25, 1
      %s588 = scalar_select %p587, %s25, 1
      %p589 = scmp.lt.s32.totalorder %s586, 7
      %s590 = scalar_select %p589, %s586, 7
      %s591 = smul.addr %s588, 8
      %s592 = sadd.s32 %s590, %s591
      %s593 = smul.addr %s592, 8
      %s594 = scalar_lea.vmem %s10, %s593
      %s595 = smul.u32 8, %s26
      %v596 = vld [vmem:[%s560] sm:$0xff]
      %v597 = vld [vmem:[%s560 + $0x8] sm:$0xff]
      %v598 = vld [vmem:[%s560 + $0x10] sm:$0xff]
      %v599 = vld [vmem:[%s560 + $0x18] sm:$0xff]
      %v600 = vld [vmem:[%s560 + $0x20] sm:$0xff]
      %v601 = vld [vmem:[%s560 + $0x28] sm:$0xff]
      %v602 = vld [vmem:[%s560 + $0x30] sm:$0xff]
      %v603 = vld [vmem:[%s560 + $0x38] sm:$0xff]
      %v604 = vld [vmem:[%s570] sm:$0xff]
      %v605 = vld [vmem:[%s570 + $0x8] sm:$0xff]
      %v606 = vld [vmem:[%s570 + $0x10] sm:$0xff]
      %v607 = vld [vmem:[%s570 + $0x18] sm:$0xff]
      %v608 = vld [vmem:[%s570 + $0x20] sm:$0xff]
      %v609 = vld [vmem:[%s570 + $0x28] sm:$0xff]
      %v610 = vld [vmem:[%s570 + $0x30] sm:$0xff]
      %v611 = vld [vmem:[%s570 + $0x38] sm:$0xff]
      %v612 = vld [vmem:[%s550] sm:$0xff]
      %v613 = vld [vmem:[%s550 + $0x8] sm:$0xff]
      %v614 = vld [vmem:[%s550 + $0x10] sm:$0xff]
      %v615 = vld [vmem:[%s550 + $0x18] sm:$0xff]
      %v616 = vld [vmem:[%s550 + $0x20] sm:$0xff]
      %v617 = vld [vmem:[%s550 + $0x28] sm:$0xff]
      %v618 = vld [vmem:[%s550 + $0x30] sm:$0xff]
      %v619 = vld [vmem:[%s550 + $0x38] sm:$0xff]
      %v620 = vld [vmem:[%s585] sm:$0x1]
      %v621 = vld [vmem:[%s585 + $0x1] sm:$0x1]
      %v622 = vld [vmem:[%s585 + $0x2] sm:$0x1]
      %v623 = vld [vmem:[%s530] sm:$0xff]
      %v624 = vld [vmem:[%s530 + $0x8] sm:$0xff]
      %v625 = vld [vmem:[%s530 + $0x10] sm:$0xff]
      %v626 = vld [vmem:[%s530 + $0x18] sm:$0xff]
      %v627 = vld [vmem:[%s530 + $0x20] sm:$0xff]
      %v628 = vld [vmem:[%s530 + $0x28] sm:$0xff]
      %v629 = vld [vmem:[%s530 + $0x30] sm:$0xff]
      %v630 = vld [vmem:[%s530 + $0x38] sm:$0xff]
      %v631 = vmul.f32 %v623, %v612
      %v632 = vmul.f32 %v624, %v613
      %v633 = vmul.f32 %v625, %v614
      %v634 = vmul.f32 %v626, %v615
      %v635 = vmul.f32 %v627, %v616
      %v636 = vmul.f32 %v628, %v617
      %v637 = vmul.f32 %v629, %v618
      %v638 = vmul.f32 %v630, %v619
      %640 = vset.pattern.permute.xlu0 0
      %641 = vperm.xlu0 %640, %v596
      %v642 = vpop.permute.xlu0 %641
      %645 = vset.pattern.permute.xlu0 0
      %646 = vperm.xlu0 %645, %v597
      %v647 = vpop.permute.xlu0 %646
      %650 = vset.pattern.permute.xlu0 0
      %651 = vperm.xlu0 %650, %v598
      %v652 = vpop.permute.xlu0 %651
      %655 = vset.pattern.permute.xlu0 0
      %656 = vperm.xlu0 %655, %v599
      %v657 = vpop.permute.xlu0 %656
      %660 = vset.pattern.permute.xlu0 0
      %661 = vperm.xlu0 %660, %v600
      %v662 = vpop.permute.xlu0 %661
      %665 = vset.pattern.permute.xlu0 0
      %666 = vperm.xlu0 %665, %v601
      %v667 = vpop.permute.xlu0 %666
      %670 = vset.pattern.permute.xlu0 0
      %671 = vperm.xlu0 %670, %v602
      %v672 = vpop.permute.xlu0 %671
      %675 = vset.pattern.permute.xlu0 0
      %676 = vperm.xlu0 %675, %v603
      %v677 = vpop.permute.xlu0 %676
      %v679 = vmul.f32 %v631, %v642
      %v680 = vmul.f32 %v632, %v647
      %v681 = vmul.f32 %v633, %v652
      %v682 = vmul.f32 %v634, %v657
      %v683 = vmul.f32 %v635, %v662
      %v684 = vmul.f32 %v636, %v667
      %v685 = vmul.f32 %v637, %v672
      %v686 = vmul.f32 %v638, %v677
      %v687 = vadd.f32 %v679, %v612
      %v688 = vadd.f32 %v680, %v613
      %v689 = vadd.f32 %v681, %v614
      %v690 = vadd.f32 %v682, %v615
      %v691 = vadd.f32 %v683, %v616
      %v692 = vadd.f32 %v684, %v617
      %v693 = vadd.f32 %v685, %v618
      %v694 = vadd.f32 %v686, %v619
      %v695 = vperm.slane %v620, 0
      %v696 = vmul.f32 %v687, %v695
      %v697 = vmul.f32 %v688, %v695
      %v698 = vmul.f32 %v689, %v695
      %v699 = vmul.f32 %v690, %v695
      %v700 = vmul.f32 %v691, %v695
      %v701 = vmul.f32 %v692, %v695
      %v702 = vmul.f32 %v693, %v695
      %v703 = vmul.f32 %v694, %v695
      %v704 = vperm.slane %v621, 0
      %706 = vrot.lane.b32.xlu0 %v704, 32
      %v707 = vpop.permute.xlu0 %706
      %v709 = vmul.f32 %v687, %v707
      %v710 = vmul.f32 %v688, %v707
      %v711 = vmul.f32 %v689, %v707
      %v712 = vmul.f32 %v690, %v707
      %v713 = vmul.f32 %v691, %v707
      %v714 = vmul.f32 %v692, %v707
      %v715 = vmul.f32 %v693, %v707
      %v716 = vmul.f32 %v694, %v707
      %v717 = vld [vmem:[%s540] sm:$0xff]
      %v718 = vld [vmem:[%s540 + $0x8] sm:$0xff]
      %v719 = vld [vmem:[%s540 + $0x10] sm:$0xff]
      %v720 = vld [vmem:[%s540 + $0x18] sm:$0xff]
      %v721 = vld [vmem:[%s540 + $0x20] sm:$0xff]
      %v722 = vld [vmem:[%s540 + $0x28] sm:$0xff]
      %v723 = vld [vmem:[%s540 + $0x30] sm:$0xff]
      %v724 = vld [vmem:[%s540 + $0x38] sm:$0xff]
      %v725 = vmul.f32 %v717, %v612
      %v726 = vmul.f32 %v718, %v613
      %v727 = vmul.f32 %v719, %v614
      %v728 = vmul.f32 %v720, %v615
      %v729 = vmul.f32 %v721, %v616
      %v730 = vmul.f32 %v722, %v617
      %v731 = vmul.f32 %v723, %v618
      %v732 = vmul.f32 %v724, %v619
      %734 = vset.pattern.permute.xlu0 0
      %735 = vperm.xlu0 %734, %v604
      %v736 = vpop.permute.xlu0 %735
      %739 = vset.pattern.permute.xlu0 0
      %740 = vperm.xlu0 %739, %v605
      %v741 = vpop.permute.xlu0 %740
      %744 = vset.pattern.permute.xlu0 0
      %745 = vperm.xlu0 %744, %v606
      %v746 = vpop.permute.xlu0 %745
      %749 = vset.pattern.permute.xlu0 0
      %750 = vperm.xlu0 %749, %v607
      %v751 = vpop.permute.xlu0 %750
      %754 = vset.pattern.permute.xlu0 0
      %755 = vperm.xlu0 %754, %v608
      %v756 = vpop.permute.xlu0 %755
      %759 = vset.pattern.permute.xlu0 0
      %760 = vperm.xlu0 %759, %v609
      %v761 = vpop.permute.xlu0 %760
      %764 = vset.pattern.permute.xlu0 0
      %765 = vperm.xlu0 %764, %v610
      %v766 = vpop.permute.xlu0 %765
      %769 = vset.pattern.permute.xlu0 0
      %770 = vperm.xlu0 %769, %v611
      %v771 = vpop.permute.xlu0 %770
      %v773 = vmul.f32 %v725, %v736
      %v774 = vmul.f32 %v726, %v741
      %v775 = vmul.f32 %v727, %v746
      %v776 = vmul.f32 %v728, %v751
      %v777 = vmul.f32 %v729, %v756
      %v778 = vmul.f32 %v730, %v761
      %v779 = vmul.f32 %v731, %v766
      %v780 = vmul.f32 %v732, %v771
      %v781 = vadd.f32 %v773, %v612
      %v782 = vadd.f32 %v774, %v613
      %v783 = vadd.f32 %v775, %v614
      %v784 = vadd.f32 %v776, %v615
      %v785 = vadd.f32 %v777, %v616
      %v786 = vadd.f32 %v778, %v617
      %v787 = vadd.f32 %v779, %v618
      %v788 = vadd.f32 %v780, %v619
      %v789 = vld [vmem:[%s580] sm:$0xff]
      %v790 = vld [vmem:[%s580 + $0x8] sm:$0xff]
      %v791 = vld [vmem:[%s580 + $0x10] sm:$0xff]
      %v792 = vld [vmem:[%s580 + $0x18] sm:$0xff]
      %v793 = vld [vmem:[%s580 + $0x20] sm:$0xff]
      %v794 = vld [vmem:[%s580 + $0x28] sm:$0xff]
      %v795 = vld [vmem:[%s580 + $0x30] sm:$0xff]
      %v796 = vld [vmem:[%s580 + $0x38] sm:$0xff]
      %798 = vset.pattern.permute.xlu0 0
      %799 = vperm.xlu0 %798, %v789
      %v800 = vpop.permute.xlu0 %799
      %803 = vset.pattern.permute.xlu0 0
      %804 = vperm.xlu0 %803, %v790
      %v805 = vpop.permute.xlu0 %804
      %808 = vset.pattern.permute.xlu0 0
      %809 = vperm.xlu0 %808, %v791
      %v810 = vpop.permute.xlu0 %809
      %813 = vset.pattern.permute.xlu0 0
      %814 = vperm.xlu0 %813, %v792
      %v815 = vpop.permute.xlu0 %814
      %818 = vset.pattern.permute.xlu0 0
      %819 = vperm.xlu0 %818, %v793
      %v820 = vpop.permute.xlu0 %819
      %823 = vset.pattern.permute.xlu0 0
      %824 = vperm.xlu0 %823, %v794
      %v825 = vpop.permute.xlu0 %824
      %828 = vset.pattern.permute.xlu0 0
      %829 = vperm.xlu0 %828, %v795
      %v830 = vpop.permute.xlu0 %829
      %833 = vset.pattern.permute.xlu0 0
      %834 = vperm.xlu0 %833, %v796
      %v835 = vpop.permute.xlu0 %834
      %v837 = vmul.f32 %v781, %v800
      %v838 = vmul.f32 %v782, %v805
      %v839 = vmul.f32 %v783, %v810
      %v840 = vmul.f32 %v784, %v815
      %v841 = vmul.f32 %v785, %v820
      %v842 = vmul.f32 %v786, %v825
      %v843 = vmul.f32 %v787, %v830
      %v844 = vmul.f32 %v788, %v835
      %v845 = vperm.slane %v622, 0
      %847 = vrot.lane.b32.xlu0 %v845, 32
      %v848 = vpop.permute.xlu0 %847
      %v850 = vmul.f32 %v781, %v848
      %v851 = vmul.f32 %v782, %v848
      %v852 = vmul.f32 %v783, %v848
      %v853 = vmul.f32 %v784, %v848
      %v854 = vmul.f32 %v785, %v848
      %v855 = vmul.f32 %v786, %v848
      %v856 = vmul.f32 %v787, %v848
      %v857 = vmul.f32 %v788, %v848
      %866 = vrot.lane.b32.xlu0 %v709, 96
      %v867 = vpop.permute.xlu0 %866
      %868 = vrot.lane.b32.xlu0 %v710, 96
      %v869 = vpop.permute.xlu0 %868
      %870 = vrot.lane.b32.xlu0 %v711, 96
      %v871 = vpop.permute.xlu0 %870
      %872 = vrot.lane.b32.xlu0 %v712, 96
      %v873 = vpop.permute.xlu0 %872
      %874 = vrot.lane.b32.xlu0 %v713, 96
      %v875 = vpop.permute.xlu0 %874
      %876 = vrot.lane.b32.xlu0 %v714, 96
      %v877 = vpop.permute.xlu0 %876
      %878 = vrot.lane.b32.xlu0 %v715, 96
      %v879 = vpop.permute.xlu0 %878
      %880 = vrot.lane.b32.xlu0 %v716, 96
      %v881 = vpop.permute.xlu0 %880
      %v890 = vadd.f32 %v696, %v867
      %v891 = vadd.f32 %v697, %v869
      %v892 = vadd.f32 %v698, %v871
      %v893 = vadd.f32 %v699, %v873
      %v894 = vadd.f32 %v700, %v875
      %v895 = vadd.f32 %v701, %v877
      %v896 = vadd.f32 %v702, %v879
      %v897 = vadd.f32 %v703, %v881
      %v898 = vmul.f32 %v696, %v867
      %v899 = vmul.f32 %v697, %v869
      %v900 = vmul.f32 %v698, %v871
      %v901 = vmul.f32 %v699, %v873
      %v902 = vmul.f32 %v700, %v875
      %v903 = vmul.f32 %v701, %v877
      %v904 = vmul.f32 %v702, %v879
      %v905 = vmul.f32 %v703, %v881
      %914 = vrot.lane.b32.xlu0 %v850, 96
      %v915 = vpop.permute.xlu0 %914
      %916 = vrot.lane.b32.xlu0 %v851, 96
      %v917 = vpop.permute.xlu0 %916
      %918 = vrot.lane.b32.xlu0 %v852, 96
      %v919 = vpop.permute.xlu0 %918
      %920 = vrot.lane.b32.xlu0 %v853, 96
      %v921 = vpop.permute.xlu0 %920
      %922 = vrot.lane.b32.xlu0 %v854, 96
      %v923 = vpop.permute.xlu0 %922
      %924 = vrot.lane.b32.xlu0 %v855, 96
      %v925 = vpop.permute.xlu0 %924
      %926 = vrot.lane.b32.xlu0 %v856, 96
      %v927 = vpop.permute.xlu0 %926
      %928 = vrot.lane.b32.xlu0 %v857, 96
      %v929 = vpop.permute.xlu0 %928
      %v938 = vadd.f32 %v837, %v915
      %v939 = vadd.f32 %v838, %v917
      %v940 = vadd.f32 %v839, %v919
      %v941 = vadd.f32 %v840, %v921
      %v942 = vadd.f32 %v841, %v923
      %v943 = vadd.f32 %v842, %v925
      %v944 = vadd.f32 %v843, %v927
      %v945 = vadd.f32 %v844, %v929
      %v946 = vmul.f32 %v837, %v915
      %v947 = vmul.f32 %v838, %v917
      %v948 = vmul.f32 %v839, %v919
      %v949 = vmul.f32 %v840, %v921
      %v950 = vmul.f32 %v841, %v923
      %v951 = vmul.f32 %v842, %v925
      %v952 = vmul.f32 %v843, %v927
      %v953 = vmul.f32 %v844, %v929
      %v954 = vadd.f32 %v890, %v938
      %v955 = vadd.f32 %v891, %v939
      %v956 = vadd.f32 %v892, %v940
      %v957 = vadd.f32 %v893, %v941
      %v958 = vadd.f32 %v894, %v942
      %v959 = vadd.f32 %v895, %v943
      %v960 = vadd.f32 %v896, %v944
      %v961 = vadd.f32 %v897, %v945
      %vm962 = vcmask 261120
      %963 = vst.msk [vmem:[#allocation2] sm:$0xff] %vm962, %v954
      %964 = vst.msk [vmem:[#allocation2 + $0x8] sm:$0xff] %vm962, %v955
      %965 = vst.msk [vmem:[#allocation2 + $0x10] sm:$0xff] %vm962, %v956
      %966 = vst.msk [vmem:[#allocation2 + $0x18] sm:$0xff] %vm962, %v957
      %967 = vst.msk [vmem:[#allocation2 + $0x20] sm:$0xff] %vm962, %v958
      %968 = vst.msk [vmem:[#allocation2 + $0x28] sm:$0xff] %vm962, %v959
      %969 = vst.msk [vmem:[#allocation2 + $0x30] sm:$0xff] %vm962, %v960
      %970 = vst.msk [vmem:[#allocation2 + $0x38] sm:$0xff] %vm962, %v961
      %v971 = vadd.f32 %v898, %v946
      %v972 = vadd.f32 %v899, %v947
      %v973 = vadd.f32 %v900, %v948
      %v974 = vadd.f32 %v901, %v949
      %v975 = vadd.f32 %v902, %v950
      %v976 = vadd.f32 %v903, %v951
      %v977 = vadd.f32 %v904, %v952
      %v978 = vadd.f32 %v905, %v953
      %987 = vrot.lane.b32.xlu0 %v971, 32
      %v988 = vpop.permute.xlu0 %987
      %989 = vrot.lane.b32.xlu0 %v972, 32
      %v990 = vpop.permute.xlu0 %989
      %991 = vrot.lane.b32.xlu0 %v973, 32
      %v992 = vpop.permute.xlu0 %991
      %993 = vrot.lane.b32.xlu0 %v974, 32
      %v994 = vpop.permute.xlu0 %993
      %995 = vrot.lane.b32.xlu0 %v975, 32
      %v996 = vpop.permute.xlu0 %995
      %997 = vrot.lane.b32.xlu0 %v976, 32
      %v998 = vpop.permute.xlu0 %997
      %999 = vrot.lane.b32.xlu0 %v977, 32
      %v1000 = vpop.permute.xlu0 %999
      %1001 = vrot.lane.b32.xlu0 %v978, 32
      %v1002 = vpop.permute.xlu0 %1001
      %vm1011 = vcmask 523520
      %1012 = vst.msk [vmem:[#allocation2] sm:$0xff] %vm1011, %v988
      %1013 = vst.msk [vmem:[#allocation2 + $0x8] sm:$0xff] %vm1011, %v990
      %1014 = vst.msk [vmem:[#allocation2 + $0x10] sm:$0xff] %vm1011, %v992
      %1015 = vst.msk [vmem:[#allocation2 + $0x18] sm:$0xff] %vm1011, %v994
      %1016 = vst.msk [vmem:[#allocation2 + $0x20] sm:$0xff] %vm1011, %v996
      %1017 = vst.msk [vmem:[#allocation2 + $0x28] sm:$0xff] %vm1011, %v998
      %1018 = vst.msk [vmem:[#allocation2 + $0x30] sm:$0xff] %vm1011, %v1000
      %1019 = vst.msk [vmem:[#allocation2 + $0x38] sm:$0xff] %vm1011, %v1002
      %v1020 = vmul.f32 %v890, %v938
      %v1021 = vmul.f32 %v891, %v939
      %v1022 = vmul.f32 %v892, %v940
      %v1023 = vmul.f32 %v893, %v941
      %v1024 = vmul.f32 %v894, %v942
      %v1025 = vmul.f32 %v895, %v943
      %v1026 = vmul.f32 %v896, %v944
      %v1027 = vmul.f32 %v897, %v945
      %1036 = vrot.lane.b32.xlu0 %v1020, 64
      %v1037 = vpop.permute.xlu0 %1036
      %1038 = vrot.lane.b32.xlu0 %v1021, 64
      %v1039 = vpop.permute.xlu0 %1038
      %1040 = vrot.lane.b32.xlu0 %v1022, 64
      %v1041 = vpop.permute.xlu0 %1040
      %1042 = vrot.lane.b32.xlu0 %v1023, 64
      %v1043 = vpop.permute.xlu0 %1042
      %1044 = vrot.lane.b32.xlu0 %v1024, 64
      %v1045 = vpop.permute.xlu0 %1044
      %1046 = vrot.lane.b32.xlu0 %v1025, 64
      %v1047 = vpop.permute.xlu0 %1046
      %1048 = vrot.lane.b32.xlu0 %v1026, 64
      %v1049 = vpop.permute.xlu0 %1048
      %1050 = vrot.lane.b32.xlu0 %v1027, 64
      %v1051 = vpop.permute.xlu0 %1050
      %vm1060 = vcmask 785920
      %1061 = vst.msk [vmem:[#allocation2] sm:$0xff] %vm1060, %v1037
      %1062 = vst.msk [vmem:[#allocation2 + $0x8] sm:$0xff] %vm1060, %v1039
      %1063 = vst.msk [vmem:[#allocation2 + $0x10] sm:$0xff] %vm1060, %v1041
      %1064 = vst.msk [vmem:[#allocation2 + $0x18] sm:$0xff] %vm1060, %v1043
      %1065 = vst.msk [vmem:[#allocation2 + $0x20] sm:$0xff] %vm1060, %v1045
      %1066 = vst.msk [vmem:[#allocation2 + $0x28] sm:$0xff] %vm1060, %v1047
      %1067 = vst.msk [vmem:[#allocation2 + $0x30] sm:$0xff] %vm1060, %v1049
      %1068 = vst.msk [vmem:[#allocation2 + $0x38] sm:$0xff] %vm1060, %v1051
      %v1069 = vmul.f32 %v898, %v946
      %v1070 = vmul.f32 %v899, %v947
      %v1071 = vmul.f32 %v900, %v948
      %v1072 = vmul.f32 %v901, %v949
      %v1073 = vmul.f32 %v902, %v950
      %v1074 = vmul.f32 %v903, %v951
      %v1075 = vmul.f32 %v904, %v952
      %v1076 = vmul.f32 %v905, %v953
      %1085 = vrot.lane.b32.xlu0 %v1069, 96
      %v1086 = vpop.permute.xlu0 %1085
      %1087 = vrot.lane.b32.xlu0 %v1070, 96
      %v1088 = vpop.permute.xlu0 %1087
      %1089 = vrot.lane.b32.xlu0 %v1071, 96
      %v1090 = vpop.permute.xlu0 %1089
      %1091 = vrot.lane.b32.xlu0 %v1072, 96
      %v1092 = vpop.permute.xlu0 %1091
      %1093 = vrot.lane.b32.xlu0 %v1073, 96
      %v1094 = vpop.permute.xlu0 %1093
      %1095 = vrot.lane.b32.xlu0 %v1074, 96
      %v1096 = vpop.permute.xlu0 %1095
      %1097 = vrot.lane.b32.xlu0 %v1075, 96
      %v1098 = vpop.permute.xlu0 %1097
      %1099 = vrot.lane.b32.xlu0 %v1076, 96
      %v1100 = vpop.permute.xlu0 %1099
      %vm1109 = vcmask 1048320
      %1110 = vst.msk [vmem:[#allocation2] sm:$0xff] %vm1109, %v1086
      %1111 = vst.msk [vmem:[#allocation2 + $0x8] sm:$0xff] %vm1109, %v1088
      %1112 = vst.msk [vmem:[#allocation2 + $0x10] sm:$0xff] %vm1109, %v1090
      %1113 = vst.msk [vmem:[#allocation2 + $0x18] sm:$0xff] %vm1109, %v1092
      %1114 = vst.msk [vmem:[#allocation2 + $0x20] sm:$0xff] %vm1109, %v1094
      %1115 = vst.msk [vmem:[#allocation2 + $0x28] sm:$0xff] %vm1109, %v1096
      %1116 = vst.msk [vmem:[#allocation2 + $0x30] sm:$0xff] %vm1109, %v1098
      %1117 = vst.msk [vmem:[#allocation2 + $0x38] sm:$0xff] %vm1109, %v1100
      %v1118 = vld [vmem:[#allocation2] sm:$0xff]
      %v1119 = vld [vmem:[#allocation2 + $0x8] sm:$0xff]
      %v1120 = vld [vmem:[#allocation2 + $0x10] sm:$0xff]
      %v1121 = vld [vmem:[#allocation2 + $0x18] sm:$0xff]
      %v1122 = vld [vmem:[#allocation2 + $0x20] sm:$0xff]
      %v1123 = vld [vmem:[#allocation2 + $0x28] sm:$0xff]
      %v1124 = vld [vmem:[#allocation2 + $0x30] sm:$0xff]
      %v1125 = vld [vmem:[#allocation2 + $0x38] sm:$0xff]
      %v1126 = vpack.c.bf16 %v1119, %v1118
      %v1127 = vpack.c.bf16 %v1121, %v1120
      %v1128 = vpack.c.bf16 %v1123, %v1122
      %v1129 = vpack.c.bf16 %v1125, %v1124
      %v1130 = vld [vmem:[%s7] sm:$0xf]
      %v1131 = vld [vmem:[%s7 + $0x4] sm:$0xf]
      %v1132 = vld [vmem:[%s7 + $0x8] sm:$0xf]
      %v1133 = vld [vmem:[%s7 + $0xc] sm:$0xf]
      %v1134 = vld [vmem:[%s7 + $0x10] sm:$0xf]
      %v1135 = vld [vmem:[%s7 + $0x14] sm:$0xf]
      %v1136 = vld [vmem:[%s7 + $0x18] sm:$0xf]
      %v1137 = vld [vmem:[%s7 + $0x1c] sm:$0xf]
      %v1138 = vld [vmem:[%s7 + $0x20] sm:$0xf]
      %v1139 = vld [vmem:[%s7 + $0x24] sm:$0xf]
      %v1140 = vld [vmem:[%s7 + $0x28] sm:$0xf]
      %v1141 = vld [vmem:[%s7 + $0x2c] sm:$0xf]
      %v1142 = vld [vmem:[%s7 + $0x30] sm:$0xf]
      %v1143 = vld [vmem:[%s7 + $0x34] sm:$0xf]
      %v1144 = vld [vmem:[%s7 + $0x38] sm:$0xf]
      %v1145 = vld [vmem:[%s7 + $0x3c] sm:$0xf]
      %v1162 = vunpack.c.l.b16 %v1130
      %v1163 = vunpack.c.l.b16 %v1131
      %v1164 = vunpack.c.l.b16 %v1132
      %v1165 = vunpack.c.l.b16 %v1133
      %v1166 = vunpack.c.l.b16 %v1134
      %v1167 = vunpack.c.l.b16 %v1135
      %v1168 = vunpack.c.l.b16 %v1136
      %v1169 = vunpack.c.l.b16 %v1137
      %v1170 = vunpack.c.l.b16 %v1138
      %v1171 = vunpack.c.l.b16 %v1139
      %v1172 = vunpack.c.l.b16 %v1140
      %v1173 = vunpack.c.l.b16 %v1141
      %v1174 = vunpack.c.l.b16 %v1142
      %v1175 = vunpack.c.l.b16 %v1143
      %v1176 = vunpack.c.l.b16 %v1144
      %v1177 = vunpack.c.l.b16 %v1145
      %v1178 = vpack.c.b16 %v1163, %v1162
      %v1179 = vpack.c.b16 %v1165, %v1164
      %v1180 = vpack.c.b16 %v1167, %v1166
      %v1181 = vpack.c.b16 %v1169, %v1168
      %v1182 = vpack.c.b16 %v1171, %v1170
      %v1183 = vpack.c.b16 %v1173, %v1172
      %v1184 = vpack.c.b16 %v1175, %v1174
      %v1185 = vpack.c.b16 %v1177, %v1176
      %1194 = vmatpush.bf16.msra.mxu0 %v1185
      %1195 = vmatpush.bf16.msra.mxu0 %v1184
      %1196 = vmatpush.bf16.msra.mxu0 %v1183
      %1197 = vmatpush.bf16.msra.mxu0 %v1182
      %1198 = vmatpush.bf16.msra.mxu0 %v1181
      %1199 = vmatpush.bf16.msra.mxu0 %v1180
      %1200 = vmatpush.bf16.msra.mxu0 %v1179
      %1201 = vmatpush.bf16.msra.mxu0 %v1178
      %1202 = vmatmul.bf16.gmra.mxu0 %v1126
      %v1203 = vpop.f32.mrf.mxu0
      %v1204 = vadd.f32 0.0, %v1203
      %v1205 = vpop.f32.mrf.mxu0
      %v1206 = vadd.f32 0.0, %v1205
      %1207 = vmatmul.bf16.gmra.mxu0 %v1127
      %v1208 = vpop.f32.mrf.mxu0
      %v1209 = vadd.f32 0.0, %v1208
      %v1210 = vpop.f32.mrf.mxu0
      %v1211 = vadd.f32 0.0, %v1210
      %1212 = vmatmul.bf16.gmra.mxu0 %v1128
      %v1213 = vpop.f32.mrf.mxu0
      %v1214 = vadd.f32 0.0, %v1213
      %v1215 = vpop.f32.mrf.mxu0
      %v1216 = vadd.f32 0.0, %v1215
      %1217 = vmatmul.bf16.gmra.mxu0 %v1129
      %v1218 = vpop.f32.mrf.mxu0
      %v1219 = vadd.f32 0.0, %v1218
      %v1220 = vpop.f32.mrf.mxu0
      %v1221 = vadd.f32 0.0, %v1220
      %1222 = vdwg.mxu0
      %v1223 = vld [vmem:[%s8] sm:$0x1]
      %v1225 = vperm.slane %v1223, 0
      %v1227 = vmul.f32 %v1204, %v1225
      %v1228 = vmul.f32 %v1206, %v1225
      %v1229 = vmul.f32 %v1209, %v1225
      %v1230 = vmul.f32 %v1211, %v1225
      %v1231 = vmul.f32 %v1214, %v1225
      %v1232 = vmul.f32 %v1216, %v1225
      %v1233 = vmul.f32 %v1219, %v1225
      %v1234 = vmul.f32 %v1221, %v1225
      %v1235 = vld [vmem:[%s9] sm:$0x1]
      %v1237 = vperm.slane %v1235, 0
      %v1239 = vadd.f32 %v1227, %v1237
      %v1240 = vadd.f32 %v1228, %v1237
      %v1241 = vadd.f32 %v1229, %v1237
      %v1242 = vadd.f32 %v1230, %v1237
      %v1243 = vadd.f32 %v1231, %v1237
      %v1244 = vadd.f32 %v1232, %v1237
      %v1245 = vadd.f32 %v1233, %v1237
      %v1246 = vadd.f32 %v1234, %v1237
      %v1247 = vmax.f32 %v1239, 0.0
      %v1248 = vmax.f32 %v1240, 0.0
      %v1249 = vmax.f32 %v1241, 0.0
      %v1250 = vmax.f32 %v1242, 0.0
      %v1251 = vmax.f32 %v1243, 0.0
      %v1252 = vmax.f32 %v1244, 0.0
      %v1253 = vmax.f32 %v1245, 0.0
      %v1254 = vmax.f32 %v1246, 0.0
      %v1255 = vadd.f32 %v612, %v1247
      %v1256 = vadd.f32 %v613, %v1248
      %v1257 = vadd.f32 %v614, %v1249
      %v1258 = vadd.f32 %v615, %v1250
      %v1259 = vadd.f32 %v616, %v1251
      %v1260 = vadd.f32 %v617, %v1252
      %v1261 = vadd.f32 %v618, %v1253
      %v1262 = vadd.f32 %v619, %v1254
      %vm1263 = vcmask 523264
      %1264 = vst.msk [vmem:[%s594] sm:$0xff] %vm1263, %v1255
      %1265 = vst.msk [vmem:[%s594 + $0x8] sm:$0xff] %vm1263, %v1256
      %1266 = vst.msk [vmem:[%s594 + $0x10] sm:$0xff] %vm1263, %v1257
      %1267 = vst.msk [vmem:[%s594 + $0x18] sm:$0xff] %vm1263, %v1258
      %1268 = vst.msk [vmem:[%s594 + $0x20] sm:$0xff] %vm1263, %v1259
      %1269 = vst.msk [vmem:[%s594 + $0x28] sm:$0xff] %vm1263, %v1260
      %1270 = vst.msk [vmem:[%s594 + $0x30] sm:$0xff] %vm1263, %v1261
      %1271 = vst.msk [vmem:[%s594 + $0x38] sm:$0xff] %vm1263, %v1262
      %s1272 = smul.u32 8, %s26
      %p1273 = scmp.lt.s32.totalorder %s25, 1
      %s1274 = scalar_select %p1273, %s25, 1
      %p1275 = scmp.lt.s32.totalorder %s1272, 7
      %s1276 = scalar_select %p1275, %s1272, 7
      %s1277 = smul.addr %s1274, 8
      %s1278 = sadd.s32 %s1276, %s1277
      %s1279 = smul.addr %s1278, 8
      %s1280 = scalar_lea.vmem %s10, %s1279
      // Predicated region
      $region61: #{etfm_forward.12} parent=59 // pred_check
        %p1281 = pneg %p310
      $region62: #{etfm_forward.12} parent=59 // pred_check_branch
        %1283 = sbr.rel (%p1281) target = $region64
      $region63: #{etfm_forward.12} parent=59 // pred_region
        %s1284 = smul.u32 8, %s26
      $region64: #{etfm_forward.12} parent=59 // pred_fallthru
        _
    $region60: #{etfm_forward.12} parent=5 // pred_fallthru
      _
    %p1285 = scmp.le.s32.totalorder 2, %s16
    // Predicated region
    $region65: #{etfm_forward.12} parent=5 // pred_check
      %p1286 = pneg %p1285
    $region66: #{etfm_forward.12} parent=5 // pred_check_branch
      %1288 = sbr.rel (%p1286) target = $region68
    $region67: #{etfm_forward.12} parent=5 // pred_region
      %s1289 = ssub.s32 %s16, 2
      // Predicated region
      $region69: #{etfm_forward.12} parent=67 // pred_check
        %p1290 = pneg %p316
      $region70: #{etfm_forward.12} parent=67 // pred_check_branch
        %1292 = sbr.rel (%p1290) target = $region72
      $region71: #{etfm_forward.12} parent=67 // pred_region
        %s1293 = smul.u32 8, %s28
        %p1294 = scmp.lt.s32.totalorder %s27, 1
        %s1295 = scalar_select %p1294, %s27, 1
        %p1296 = scmp.lt.s32.totalorder %s1293, 7
        %s1297 = scalar_select %p1296, %s1293, 7
        %s1298 = smul.addr %s1295, 8
        %s1299 = sadd.s32 %s1297, %s1298
        %s1300 = smul.addr %s1299, 8
        %s1301 = scalar_lea.vmem %s10, %s1300
      $region72: #{etfm_forward.12} parent=67 // pred_fallthru
        _
    $region68: #{etfm_forward.12} parent=5 // pred_fallthru
      _
  $region6: #{etfm_forward.12} parent=0 // loop_footer
    %s20 = sadd.s32 1, %s16
  $region7: #{etfm_forward.12} parent=0 // loop_footer_branch
    %15 = sbr.rel target = $region3
  $region8: #{etfm_forward.12} parent=0 // loop_exit
    _

// kernel: etfm_forward.13
$region0: #{etfm_forward.13}
  #allocation0 [shape = 'u32[]', space=smem, size = 0x4, offset = 0x4, fixed_abs, tag = 'smem constant byte address 0x4 - core index']
  #allocation1 [shape = 'u32[72,128]{1,0:T(1,128)}', space=vmem, size = 0x9000, scoped, tag = 'internal scratch']
  #allocation2 [shape = 'f32[10,10,64]{2,1,0:T(8,128)}', space=vmem, size = 0x14000, scoped, tag = 'scratch operand']
  #allocation3 [shape = 'f32[64,576]{1,0:T(8,128)}', space=vmem, size = 0x28000, scoped, tag = 'scratch operand']
  %s0 = inlined_call_operand.vmem [shape: f32[2,8,8,64], index: 0, kind: input, shape index: {}]
  %s1 = inlined_call_operand.vmem [shape: bf16[576,64], index: 1, kind: input, shape index: {}]
  %s2 = inlined_call_operand.vmem [shape: f32[1,64], index: 2, kind: input, shape index: {}]
  %s3 = inlined_call_operand.vmem [shape: f32[1,64], index: 3, kind: input, shape index: {}]
  %s4 = inlined_call_operand.hbm [shape: f32[2,64,64], index: 4, kind: output, shape index: {}]
  %s5 = sld [smem:[#allocation0]]
  $region49: #{etfm_forward.13} parent=0
    _
  %s7 = ssub.s32 1, %s5
  %s8 = scalar_select 0, %s7, %s5
  $region1: #{etfm_forward.13} parent=0
    #allocation4 [shape = 'u8[65536]{0}', space=vmem, size = 0x10000, scoped, tag = 'output window, operand 0']
    #allocation5 [shape = 's32[2]{0}', space=sflag, size = 0x8, scoped, tag = 'scoped memory for etfm_forward.13']
    %9 = vsyncpa [#allocation5], 0
    %s10 = scalar_lea.sflag [#allocation5], 1
    %11 = vsyncpa %s10, 0
    loop: start=0, step=1, limit=4
    $region2: #{etfm_forward.13} parent=1 // loop_pre_header
      _
    $region3: #{etfm_forward.13} parent=1 // loop_header
      %s13 = sphi 0, %s17
      %p14 = scmp.ge.s32.totalorder %s13, 4
      %s23 = sphi 0, %s25
      %s26 = sphi 0, %s23
      %s27 = sphi 0, %s26
      %s43 = sphi 0, %s27
      %s47 = sphi 0, %s47
      %s49 = sphi 0, %s47
      %s50 = sphi 0, %s49
      %s64 = sphi 0, %s50
      %s68 = sphi 0, %s68
      %s70 = sphi 0, %s68
      %s71 = sphi 0, %s70
      %s85 = sphi 0, %s71
      %s89 = sphi 0, %s89
      %s91 = sphi 0, %s89
      %s92 = sphi 0, %s91
      %s106 = sphi 0, %s92
      %s112 = sphi 0, %s114
      %s115 = sphi 0, %s112
      %s116 = sphi 0, %s115
      %s132 = sphi 0, %s116
    $region4: #{etfm_forward.13} parent=1 // loop_header_branch
      %16 = sbr.rel (%p14) target = $region8
    $region5: #{etfm_forward.13} parent=1 // loop_body
      %s18 = ssub.s32 %s13, 1
      %s19 = ssub.s32 %s13, 2
      %s20 = sadd.s32 %s13, 1
      %s21 = ssub.s32 %s13, %s20
      %p22 = scmp.eq.s32.totalorder %s21, 0
      %s24 = sadd.s32 %s23, 1
      %s25 = scalar_select %p22, %s23, %s24
      %p28 = pneg %p22
      %p29 = scmp.eq.s32.totalorder %s13, 1
      %p30 = por %p28, %p29
      %p31 = scmp.ne.s32.totalorder %s23, %s26
      %p32 = scmp.eq.s32.totalorder %s13, 0
      %p33 = por %p31, %p32
      %p34 = scmp.ne.s32.totalorder %s23, %s26
      %p35 = scmp.eq.s32.totalorder %s18, 1
      %p36 = por %p34, %p35
      %p37 = scmp.ne.s32.totalorder %s26, %s27
      %p38 = scmp.eq.s32.totalorder %s18, 0
      %p39 = por %p37, %p38
      %p40 = scmp.ne.s32.totalorder %s26, %s27
      %p41 = scmp.eq.s32.totalorder %s19, 1
      %p42 = por %p40, %p41
      %p44 = scmp.ne.s32.totalorder %s27, %s43
      %p45 = scmp.eq.s32.totalorder %s19, 0
      %p46 = por %p44, %p45
      %s48 = sadd.s32 %s47, 1
      %p51 = scmp.eq.s32.totalorder %s13, 1
      %p52 = scmp.ne.s32.totalorder %s47, %s49
      %p53 = scmp.eq.s32.totalorder %s13, 0
      %p54 = por %p52, %p53
      %p55 = scmp.ne.s32.totalorder %s47, %s49
      %p56 = scmp.eq.s32.totalorder %s18, 1
      %p57 = por %p55, %p56
      %p58 = scmp.ne.s32.totalorder %s49, %s50
      %p59 = scmp.eq.s32.totalorder %s18, 0
      %p60 = por %p58, %p59
      %p61 = scmp.ne.s32.totalorder %s49, %s50
      %p62 = scmp.eq.s32.totalorder %s19, 1
      %p63 = por %p61, %p62
      %p65 = scmp.ne.s32.totalorder %s50, %s64
      %p66 = scmp.eq.s32.totalorder %s19, 0
      %p67 = por %p65, %p66
      %s69 = sadd.s32 %s68, 1
      %p72 = scmp.eq.s32.totalorder %s13, 1
      %p73 = scmp.ne.s32.totalorder %s68, %s70
      %p74 = scmp.eq.s32.totalorder %s13, 0
      %p75 = por %p73, %p74
      %p76 = scmp.ne.s32.totalorder %s68, %s70
      %p77 = scmp.eq.s32.totalorder %s18, 1
      %p78 = por %p76, %p77
      %p79 = scmp.ne.s32.totalorder %s70, %s71
      %p80 = scmp.eq.s32.totalorder %s18, 0
      %p81 = por %p79, %p80
      %p82 = scmp.ne.s32.totalorder %s70, %s71
      %p83 = scmp.eq.s32.totalorder %s19, 1
      %p84 = por %p82, %p83
      %p86 = scmp.ne.s32.totalorder %s71, %s85
      %p87 = scmp.eq.s32.totalorder %s19, 0
      %p88 = por %p86, %p87
      %s90 = sadd.s32 %s89, 1
      %p93 = scmp.eq.s32.totalorder %s13, 1
      %p94 = scmp.ne.s32.totalorder %s89, %s91
      %p95 = scmp.eq.s32.totalorder %s13, 0
      %p96 = por %p94, %p95
      %p97 = scmp.ne.s32.totalorder %s89, %s91
      %p98 = scmp.eq.s32.totalorder %s18, 1
      %p99 = por %p97, %p98
      %p100 = scmp.ne.s32.totalorder %s91, %s92
      %p101 = scmp.eq.s32.totalorder %s18, 0
      %p102 = por %p100, %p101
      %p103 = scmp.ne.s32.totalorder %s91, %s92
      %p104 = scmp.eq.s32.totalorder %s19, 1
      %p105 = por %p103, %p104
      %p107 = scmp.ne.s32.totalorder %s92, %s106
      %p108 = scmp.eq.s32.totalorder %s19, 0
      %p109 = por %p107, %p108
      %s110 = ssub.s32 %s13, %s20
      %p111 = scmp.eq.s32.totalorder %s110, 0
      %s113 = sadd.s32 %s112, 1
      %s114 = scalar_select %p111, %s112, %s113
      %p117 = pneg %p111
      %p118 = scmp.eq.s32.totalorder %s13, 1
      %p119 = por %p117, %p118
      %p120 = scmp.ne.s32.totalorder %s112, %s115
      %p121 = scmp.eq.s32.totalorder %s13, 0
      %p122 = por %p120, %p121
      %p123 = scmp.ne.s32.totalorder %s112, %s115
      %p124 = scmp.eq.s32.totalorder %s18, 1
      %p125 = por %p123, %p124
      %p126 = scmp.ne.s32.totalorder %s115, %s116
      %p127 = scmp.eq.s32.totalorder %s18, 0
      %p128 = por %p126, %p127
      %p129 = scmp.ne.s32.totalorder %s115, %s116
      %p130 = scmp.eq.s32.totalorder %s19, 1
      %p131 = por %p129, %p130
      %p133 = scmp.ne.s32.totalorder %s116, %s132
      %p134 = scmp.eq.s32.totalorder %s19, 0
      %p135 = por %p133, %p134
      %p136 = scmp.le.s32.totalorder 1, %s13
      %p137 = scmp.lt.s32.totalorder %s13, 3
      %p138 = pnand %p136, %p137
      %p139 = pneg %p138
      // Predicated region
      $region9: #{etfm_forward.13} parent=5 // pred_check
        _
      $region10: #{etfm_forward.13} parent=5 // pred_check_branch
        %141 = sbr.rel (%p138) target = $region12
      $region11: #{etfm_forward.13} parent=5 // pred_region
        %s142 = ssub.s32 %s13, 1
        // Predicated region
        $region13: #{etfm_forward.13} parent=11 // pred_check
          %p143 = pneg %p60
        $region14: #{etfm_forward.13} parent=11 // pred_check_branch
          %145 = sbr.rel (%p143) target = $region16
        $region15: #{etfm_forward.13} parent=11 // pred_region
          _
        $region16: #{etfm_forward.13} parent=11 // pred_fallthru
          _
        // Predicated region
        $region17: #{etfm_forward.13} parent=11 // pred_check
          %p146 = pneg %p81
        $region18: #{etfm_forward.13} parent=11 // pred_check_branch
          %148 = sbr.rel (%p146) target = $region20
        $region19: #{etfm_forward.13} parent=11 // pred_region
          _
        $region20: #{etfm_forward.13} parent=11 // pred_fallthru
          _
        // Predicated region
        $region21: #{etfm_forward.13} parent=11 // pred_check
          %p149 = pneg %p102
        $region22: #{etfm_forward.13} parent=11 // pred_check_branch
          %151 = sbr.rel (%p149) target = $region24
        $region23: #{etfm_forward.13} parent=11 // pred_region
          _
        $region24: #{etfm_forward.13} parent=11 // pred_fallthru
          _
      $region12: #{etfm_forward.13} parent=5 // pred_fallthru
        _
      %p152 = scmp.lt.s32.totalorder %s13, 2
      // Predicated region
      $region25: #{etfm_forward.13} parent=5 // pred_check
        %p153 = pneg %p152
      $region26: #{etfm_forward.13} parent=5 // pred_check_branch
        %155 = sbr.rel (%p153) target = $region28
      $region27: #{etfm_forward.13} parent=5 // pred_region
        // Predicated region
        $region29: #{etfm_forward.13} parent=27 // pred_check
          %p156 = pneg %p33
        $region30: #{etfm_forward.13} parent=27 // pred_check_branch
          %158 = sbr.rel (%p156) target = $region32
        $region31: #{etfm_forward.13} parent=27 // pred_region
          %p159 = scmp.lt.s32.totalorder %s13, 1
          %s160 = scalar_select %p159, %s13, 1
          %s161 = smul.addr %s160, 8
          %s162 = smul.addr %s161, 8
          %s163 = scalar_lea.vmem %s0, %s162
        $region32: #{etfm_forward.13} parent=27 // pred_fallthru
          _
      $region28: #{etfm_forward.13} parent=5 // pred_fallthru
        _
      %p164 = scmp.le.s32.totalorder 1, %s13
      %p165 = scmp.lt.s32.totalorder %s13, 3
      %p166 = pnand %p164, %p165
      %p167 = pneg %p166
      // Predicated region
      $region33: #{etfm_forward.13} parent=5 // pred_check
        _
      $region34: #{etfm_forward.13} parent=5 // pred_check_branch
        %169 = sbr.rel (%p166) target = $region36
      $region35: #{etfm_forward.13} parent=5 // pred_region
        %s170 = ssub.s32 %s13, 1
        %p171 = scmp.lt.s32.totalorder %s18, 1
        %s172 = scalar_select %p171, %s18, 1
        %s173 = smul.addr %s172, 8
        %s174 = smul.addr %s173, 8
        %s175 = scalar_lea.vmem %s0, %s174
        %p176 = pneg %p39
        %p177 = pneg %p36
        %p178 = pneg %p60
        %p179 = pneg %p57
        %p180 = pneg %p81
        %p181 = pneg %p78
        %p182 = pneg %p102
        %p183 = pneg %p99
        %p184 = pneg %p128
        %p185 = pneg %p125
        %s186 = sand.u32 %s115, 1
        %s187 = scalar_lea.sflag [#allocation5], %s186
        %s188 = sand.u32 %s115, 1
        %s189 = smul.addr %s188, 64
        %s190 = scalar_lea.vmem [#allocation4], %s189
        %p191 = scmp.lt.s32.totalorder %s18, 1
        %s192 = scalar_select %p191, %s18, 1
        %s193 = smul.addr %s192, 8
        %s194 = smul.addr %s193, 8
        %s195 = scalar_lea.vmem %s0, %s194
        %vm197 = vcmask 523264
        %198 = vst.msk [vmem:[#allocation2] sm:$0xff] %vm197, 0.0
        %vm199 = vcmask 517120
        %200 = vst.msk [vmem:[#allocation2 + $0x8] sm:$0x3] %vm199, 0.0
        %201 = vst.msk [vmem:[#allocation2 + $0x10] sm:$0xff] %vm197, 0.0
        %202 = vst.msk [vmem:[#allocation2 + $0x18] sm:$0x3] %vm199, 0.0
        %203 = vst.msk [vmem:[#allocation2 + $0x20] sm:$0xff] %vm197, 0.0
        %204 = vst.msk [vmem:[#allocation2 + $0x28] sm:$0x3] %vm199, 0.0
        %205 = vst.msk [vmem:[#allocation2 + $0x30] sm:$0xff] %vm197, 0.0
        %206 = vst.msk [vmem:[#allocation2 + $0x38] sm:$0x3] %vm199, 0.0
        %207 = vst.msk [vmem:[#allocation2 + $0x40] sm:$0xff] %vm197, 0.0
        %208 = vst.msk [vmem:[#allocation2 + $0x48] sm:$0x3] %vm199, 0.0
        %209 = vst.msk [vmem:[#allocation2 + $0x50] sm:$0xff] %vm197, 0.0
        %210 = vst.msk [vmem:[#allocation2 + $0x58] sm:$0x3] %vm199, 0.0
        %211 = vst.msk [vmem:[#allocation2 + $0x60] sm:$0xff] %vm197, 0.0
        %212 = vst.msk [vmem:[#allocation2 + $0x68] sm:$0x3] %vm199, 0.0
        %213 = vst.msk [vmem:[#allocation2 + $0x70] sm:$0xff] %vm197, 0.0
        %214 = vst.msk [vmem:[#allocation2 + $0x78] sm:$0x3] %vm199, 0.0
        %215 = vst.msk [vmem:[#allocation2 + $0x80] sm:$0xff] %vm197, 0.0
        %216 = vst.msk [vmem:[#allocation2 + $0x88] sm:$0x3] %vm199, 0.0
        %217 = vst.msk [vmem:[#allocation2 + $0x90] sm:$0xff] %vm197, 0.0
        %218 = vst.msk [vmem:[#allocation2 + $0x98] sm:$0x3] %vm199, 0.0
        %v219 = vld [vmem:[%s195] sm:$0xff]
        %v220 = vld [vmem:[%s195 + $0x8] sm:$0xff]
        %v221 = vld [vmem:[%s195 + $0x10] sm:$0xff]
        %v222 = vld [vmem:[%s195 + $0x18] sm:$0xff]
        %v223 = vld [vmem:[%s195 + $0x20] sm:$0xff]
        %v224 = vld [vmem:[%s195 + $0x28] sm:$0xff]
        %v225 = vld [vmem:[%s195 + $0x30] sm:$0xff]
        %v226 = vld [vmem:[%s195 + $0x38] sm:$0xff]
        %s227 = scalar_lea.vmem [#allocation2], 16
        %228 = vst.msk [vmem:[%s227 + $0x1] sm:$0xff] %vm197, %v219
        %229 = vst.msk [vmem:[%s227 + $0x11] sm:$0xff] %vm197, %v220
        %230 = vst.msk [vmem:[%s227 + $0x21] sm:$0xff] %vm197, %v221
        %231 = vst.msk [vmem:[%s227 + $0x31] sm:$0xff] %vm197, %v222
        %232 = vst.msk [vmem:[%s227 + $0x41] sm:$0xff] %vm197, %v223
        %233 = vst.msk [vmem:[%s227 + $0x51] sm:$0xff] %vm197, %v224
        %234 = vst.msk [vmem:[%s227 + $0x61] sm:$0xff] %vm197, %v225
        %235 = vst.msk [vmem:[%s227 + $0x71] sm:$0xff] %vm197, %v226
        %v236 = vld [vmem:[#allocation2] sm:$0xff]
        %v237 = vld [vmem:[#allocation2 + $0x10] sm:$0xff]
        %v238 = vld [vmem:[#allocation2 + $0x20] sm:$0xff]
        %v239 = vld [vmem:[#allocation2 + $0x30] sm:$0xff]
        %v240 = vld [vmem:[#allocation2 + $0x40] sm:$0xff]
        %v241 = vld [vmem:[#allocation2 + $0x50] sm:$0xff]
        %v242 = vld [vmem:[#allocation2 + $0x60] sm:$0xff]
        %v243 = vld [vmem:[#allocation2 + $0x70] sm:$0xff]
        %244 = vst.msk [vmem:[#allocation3] sm:$0xff] %vm197, %v236
        %245 = vst.msk [vmem:[#allocation3 + $0x28] sm:$0xff] %vm197, %v237
        %246 = vst.msk [vmem:[#allocation3 + $0x50] sm:$0xff] %vm197, %v238
        %247 = vst.msk [vmem:[#allocation3 + $0x78] sm:$0xff] %vm197, %v239
        %248 = vst.msk [vmem:[#allocation3 + $0xa0] sm:$0xff] %vm197, %v240
        %249 = vst.msk [vmem:[#allocation3 + $0xc8] sm:$0xff] %vm197, %v241
        %250 = vst.msk [vmem:[#allocation3 + $0xf0] sm:$0xff] %vm197, %v242
        %251 = vst.msk [vmem:[#allocation3 + $0x118] sm:$0xff] %vm197, %v243
        %v252 = vld [vmem:[#allocation2 + $0x1] sm:$0xff]
        %v253 = vld [vmem:[#allocation2 + $0x11] sm:$0xff]
        %v254 = vld [vmem:[#allocation2 + $0x21] sm:$0xff]
        %v255 = vld [vmem:[#allocation2 + $0x31] sm:$0xff]
        %v256 = vld [vmem:[#allocation2 + $0x41] sm:$0xff]
        %v257 = vld [vmem:[#allocation2 + $0x51] sm:$0xff]
        %v258 = vld [vmem:[#allocation2 + $0x61] sm:$0xff]
        %v259 = vld [vmem:[#allocation2 + $0x71] sm:$0xff]
        %268 = vrot.lane.b32.xlu0 %v252, 64
        %v269 = vpop.permute.xlu0 %268
        %270 = vrot.lane.b32.xlu0 %v253, 64
        %v271 = vpop.permute.xlu0 %270
        %272 = vrot.lane.b32.xlu0 %v254, 64
        %v273 = vpop.permute.xlu0 %272
        %274 = vrot.lane.b32.xlu0 %v255, 64
        %v275 = vpop.permute.xlu0 %274
        %276 = vrot.lane.b32.xlu0 %v256, 64
        %v277 = vpop.permute.xlu0 %276
        %278 = vrot.lane.b32.xlu0 %v257, 64
        %v279 = vpop.permute.xlu0 %278
        %280 = vrot.lane.b32.xlu0 %v258, 64
        %v281 = vpop.permute.xlu0 %280
        %282 = vrot.lane.b32.xlu0 %v259, 64
        %v283 = vpop.permute.xlu0 %282
        %vm292 = vcmask 1048064
        %293 = vst.msk [vmem:[#allocation3] sm:$0xff] %vm292, %v269
        %294 = vst.msk [vmem:[#allocation3 + $0x28] sm:$0xff] %vm292, %v271
        %295 = vst.msk [vmem:[#allocation3 + $0x50] sm:$0xff] %vm292, %v273
        %296 = vst.msk [vmem:[#allocation3 + $0x78] sm:$0xff] %vm292, %v275
        %297 = vst.msk [vmem:[#allocation3 + $0xa0] sm:$0xff] %vm292, %v277
        %298 = vst.msk [vmem:[#allocation3 + $0xc8] sm:$0xff] %vm292, %v279
        %299 = vst.msk [vmem:[#allocation3 + $0xf0] sm:$0xff] %vm292, %v281
        %300 = vst.msk [vmem:[#allocation3 + $0x118] sm:$0xff] %vm292, %v283
        %v301 = vld [vmem:[#allocation2 + $0x2] sm:$0xff]
        %v302 = vld [vmem:[#allocation2 + $0x12] sm:$0xff]
        %v303 = vld [vmem:[#allocation2 + $0x22] sm:$0xff]
        %v304 = vld [vmem:[#allocation2 + $0x32] sm:$0xff]
        %v305 = vld [vmem:[#allocation2 + $0x42] sm:$0xff]
        %v306 = vld [vmem:[#allocation2 + $0x52] sm:$0xff]
        %v307 = vld [vmem:[#allocation2 + $0x62] sm:$0xff]
        %v308 = vld [vmem:[#allocation2 + $0x72] sm:$0xff]
        %309 = vst.msk [vmem:[#allocation3 + $0x8] sm:$0xff] %vm197, %v301
        %310 = vst.msk [vmem:[#allocation3 + $0x30] sm:$0xff] %vm197, %v302
        %311 = vst.msk [vmem:[#allocation3 + $0x58] sm:$0xff] %vm197, %v303
        %312 = vst.msk [vmem:[#allocation3 + $0x80] sm:$0xff] %vm197, %v304
        %313 = vst.msk [vmem:[#allocation3 + $0xa8] sm:$0xff] %vm197, %v305
        %314 = vst.msk [vmem:[#allocation3 + $0xd0] sm:$0xff] %vm197, %v306
        %315 = vst.msk [vmem:[#allocation3 + $0xf8] sm:$0xff] %vm197, %v307
        %316 = vst.msk [vmem:[#allocation3 + $0x120] sm:$0xff] %vm197, %v308
        %v317 = vld [vmem:[%s227] sm:$0xff]
        %v318 = vld [vmem:[%s227 + $0x10] sm:$0xff]
        %v319 = vld [vmem:[%s227 + $0x20] sm:$0xff]
        %v320 = vld [vmem:[%s227 + $0x30] sm:$0xff]
        %v321 = vld [vmem:[%s227 + $0x40] sm:$0xff]
        %v322 = vld [vmem:[%s227 + $0x50] sm:$0xff]
        %v323 = vld [vmem:[%s227 + $0x60] sm:$0xff]
        %v324 = vld [vmem:[%s227 + $0x70] sm:$0xff]
        %333 = vrot.lane.b32.xlu0 %v317, 64
        %v334 = vpop.permute.xlu0 %333
        %335 = vrot.lane.b32.xlu0 %v318, 64
        %v336 = vpop.permute.xlu0 %335
        %337 = vrot.lane.b32.xlu0 %v319, 64
        %v338 = vpop.permute.xlu0 %337
        %339 = vrot.lane.b32.xlu0 %v320, 64
        %v340 = vpop.permute.xlu0 %339
        %341 = vrot.lane.b32.xlu0 %v321, 64
        %v342 = vpop.permute.xlu0 %341
        %343 = vrot.lane.b32.xlu0 %v322, 64
        %v344 = vpop.permute.xlu0 %343
        %345 = vrot.lane.b32.xlu0 %v323, 64
        %v346 = vpop.permute.xlu0 %345
        %347 = vrot.lane.b32.xlu0 %v324, 64
        %v348 = vpop.permute.xlu0 %347
        %357 = vst.msk [vmem:[#allocation3 + $0x8] sm:$0xff] %vm292, %v334
        %358 = vst.msk [vmem:[#allocation3 + $0x30] sm:$0xff] %vm292, %v336
        %359 = vst.msk [vmem:[#allocation3 + $0x58] sm:$0xff] %vm292, %v338
        %360 = vst.msk [vmem:[#allocation3 + $0x80] sm:$0xff] %vm292, %v340
        %361 = vst.msk [vmem:[#allocation3 + $0xa8] sm:$0xff] %vm292, %v342
        %362 = vst.msk [vmem:[#allocation3 + $0xd0] sm:$0xff] %vm292, %v344
        %363 = vst.msk [vmem:[#allocation3 + $0xf8] sm:$0xff] %vm292, %v346
        %364 = vst.msk [vmem:[#allocation3 + $0x120] sm:$0xff] %vm292, %v348
        %v365 = vld [vmem:[%s227 + $0x1] sm:$0xff]
        %v366 = vld [vmem:[%s227 + $0x11] sm:$0xff]
        %v367 = vld [vmem:[%s227 + $0x21] sm:$0xff]
        %v368 = vld [vmem:[%s227 + $0x31] sm:$0xff]
        %v369 = vld [vmem:[%s227 + $0x41] sm:$0xff]
        %v370 = vld [vmem:[%s227 + $0x51] sm:$0xff]
        %v371 = vld [vmem:[%s227 + $0x61] sm:$0xff]
        %v372 = vld [vmem:[%s227 + $0x71] sm:$0xff]
        %373 = vst.msk [vmem:[#allocation3 + $0x10] sm:$0xff] %vm197, %v365
        %374 = vst.msk [vmem:[#allocation3 + $0x38] sm:$0xff] %vm197, %v366
        %375 = vst.msk [vmem:[#allocation3 + $0x60] sm:$0xff] %vm197, %v367
        %376 = vst.msk [vmem:[#allocation3 + $0x88] sm:$0xff] %vm197, %v368
        %377 = vst.msk [vmem:[#allocation3 + $0xb0] sm:$0xff] %vm197, %v369
        %378 = vst.msk [vmem:[#allocation3 + $0xd8] sm:$0xff] %vm197, %v370
        %379 = vst.msk [vmem:[#allocation3 + $0x100] sm:$0xff] %vm197, %v371
        %380 = vst.msk [vmem:[#allocation3 + $0x128] sm:$0xff] %vm197, %v372
        %v381 = vld [vmem:[%s227 + $0x2] sm:$0xff]
        %v382 = vld [vmem:[%s227 + $0x12] sm:$0xff]
        %v383 = vld [vmem:[%s227 + $0x22] sm:$0xff]
        %v384 = vld [vmem:[%s227 + $0x32] sm:$0xff]
        %v385 = vld [vmem:[%s227 + $0x42] sm:$0xff]
        %v386 = vld [vmem:[%s227 + $0x52] sm:$0xff]
        %v387 = vld [vmem:[%s227 + $0x62] sm:$0xff]
        %v388 = vld [vmem:[%s227 + $0x72] sm:$0xff]
        %397 = vrot.lane.b32.xlu0 %v381, 64
        %v398 = vpop.permute.xlu0 %397
        %399 = vrot.lane.b32.xlu0 %v382, 64
        %v400 = vpop.permute.xlu0 %399
        %401 = vrot.lane.b32.xlu0 %v383, 64
        %v402 = vpop.permute.xlu0 %401
        %403 = vrot.lane.b32.xlu0 %v384, 64
        %v404 = vpop.permute.xlu0 %403
        %405 = vrot.lane.b32.xlu0 %v385, 64
        %v406 = vpop.permute.xlu0 %405
        %407 = vrot.lane.b32.xlu0 %v386, 64
        %v408 = vpop.permute.xlu0 %407
        %409 = vrot.lane.b32.xlu0 %v387, 64
        %v410 = vpop.permute.xlu0 %409
        %411 = vrot.lane.b32.xlu0 %v388, 64
        %v412 = vpop.permute.xlu0 %411
        %421 = vst.msk [vmem:[#allocation3 + $0x10] sm:$0xff] %vm292, %v398
        %422 = vst.msk [vmem:[#allocation3 + $0x38] sm:$0xff] %vm292, %v400
        %423 = vst.msk [vmem:[#allocation3 + $0x60] sm:$0xff] %vm292, %v402
        %424 = vst.msk [vmem:[#allocation3 + $0x88] sm:$0xff] %vm292, %v404
        %425 = vst.msk [vmem:[#allocation3 + $0xb0] sm:$0xff] %vm292, %v406
        %426 = vst.msk [vmem:[#allocation3 + $0xd8] sm:$0xff] %vm292, %v408
        %427 = vst.msk [vmem:[#allocation3 + $0x100] sm:$0xff] %vm292, %v410
        %428 = vst.msk [vmem:[#allocation3 + $0x128] sm:$0xff] %vm292, %v412
        %s429 = scalar_lea.vmem [#allocation2], 32
        %v430 = vld [vmem:[%s429] sm:$0xff]
        %v431 = vld [vmem:[%s429 + $0x10] sm:$0xff]
        %v432 = vld [vmem:[%s429 + $0x20] sm:$0xff]
        %v433 = vld [vmem:[%s429 + $0x30] sm:$0xff]
        %v434 = vld [vmem:[%s429 + $0x40] sm:$0xff]
        %v435 = vld [vmem:[%s429 + $0x50] sm:$0xff]
        %v436 = vld [vmem:[%s429 + $0x60] sm:$0xff]
        %v437 = vld [vmem:[%s429 + $0x70] sm:$0xff]
        %438 = vst.msk [vmem:[#allocation3 + $0x18] sm:$0xff] %vm197, %v430
        %439 = vst.msk [vmem:[#allocation3 + $0x40] sm:$0xff] %vm197, %v431
        %440 = vst.msk [vmem:[#allocation3 + $0x68] sm:$0xff] %vm197, %v432
        %441 = vst.msk [vmem:[#allocation3 + $0x90] sm:$0xff] %vm197, %v433
        %442 = vst.msk [vmem:[#allocation3 + $0xb8] sm:$0xff] %vm197, %v434
        %443 = vst.msk [vmem:[#allocation3 + $0xe0] sm:$0xff] %vm197, %v435
        %444 = vst.msk [vmem:[#allocation3 + $0x108] sm:$0xff] %vm197, %v436
        %445 = vst.msk [vmem:[#allocation3 + $0x130] sm:$0xff] %vm197, %v437
        %v446 = vld [vmem:[%s429 + $0x1] sm:$0xff]
        %v447 = vld [vmem:[%s429 + $0x11] sm:$0xff]
        %v448 = vld [vmem:[%s429 + $0x21] sm:$0xff]
        %v449 = vld [vmem:[%s429 + $0x31] sm:$0xff]
        %v450 = vld [vmem:[%s429 + $0x41] sm:$0xff]
        %v451 = vld [vmem:[%s429 + $0x51] sm:$0xff]
        %v452 = vld [vmem:[%s429 + $0x61] sm:$0xff]
        %v453 = vld [vmem:[%s429 + $0x71] sm:$0xff]
        %462 = vrot.lane.b32.xlu0 %v446, 64
        %v463 = vpop.permute.xlu0 %462
        %464 = vrot.lane.b32.xlu0 %v447, 64
        %v465 = vpop.permute.xlu0 %464
        %466 = vrot.lane.b32.xlu0 %v448, 64
        %v467 = vpop.permute.xlu0 %466
        %468 = vrot.lane.b32.xlu0 %v449, 64
        %v469 = vpop.permute.xlu0 %468
        %470 = vrot.lane.b32.xlu0 %v450, 64
        %v471 = vpop.permute.xlu0 %470
        %472 = vrot.lane.b32.xlu0 %v451, 64
        %v473 = vpop.permute.xlu0 %472
        %474 = vrot.lane.b32.xlu0 %v452, 64
        %v475 = vpop.permute.xlu0 %474
        %476 = vrot.lane.b32.xlu0 %v453, 64
        %v477 = vpop.permute.xlu0 %476
        %486 = vst.msk [vmem:[#allocation3 + $0x18] sm:$0xff] %vm292, %v463
        %487 = vst.msk [vmem:[#allocation3 + $0x40] sm:$0xff] %vm292, %v465
        %488 = vst.msk [vmem:[#allocation3 + $0x68] sm:$0xff] %vm292, %v467
        %489 = vst.msk [vmem:[#allocation3 + $0x90] sm:$0xff] %vm292, %v469
        %490 = vst.msk [vmem:[#allocation3 + $0xb8] sm:$0xff] %vm292, %v471
        %491 = vst.msk [vmem:[#allocation3 + $0xe0] sm:$0xff] %vm292, %v473
        %492 = vst.msk [vmem:[#allocation3 + $0x108] sm:$0xff] %vm292, %v475
        %493 = vst.msk [vmem:[#allocation3 + $0x130] sm:$0xff] %vm292, %v477
        %v494 = vld [vmem:[%s429 + $0x2] sm:$0xff]
        %v495 = vld [vmem:[%s429 + $0x12] sm:$0xff]
        %v496 = vld [vmem:[%s429 + $0x22] sm:$0xff]
        %v497 = vld [vmem:[%s429 + $0x32] sm:$0xff]
        %v498 = vld [vmem:[%s429 + $0x42] sm:$0xff]
        %v499 = vld [vmem:[%s429 + $0x52] sm:$0xff]
        %v500 = vld [vmem:[%s429 + $0x62] sm:$0xff]
        %v501 = vld [vmem:[%s429 + $0x72] sm:$0xff]
        %502 = vst.msk [vmem:[#allocation3 + $0x20] sm:$0xff] %vm197, %v494
        %503 = vst.msk [vmem:[#allocation3 + $0x48] sm:$0xff] %vm197, %v495
        %504 = vst.msk [vmem:[#allocation3 + $0x70] sm:$0xff] %vm197, %v496
        %505 = vst.msk [vmem:[#allocation3 + $0x98] sm:$0xff] %vm197, %v497
        %506 = vst.msk [vmem:[#allocation3 + $0xc0] sm:$0xff] %vm197, %v498
        %507 = vst.msk [vmem:[#allocation3 + $0xe8] sm:$0xff] %vm197, %v499
        %508 = vst.msk [vmem:[#allocation3 + $0x110] sm:$0xff] %vm197, %v500
        %509 = vst.msk [vmem:[#allocation3 + $0x138] sm:$0xff] %vm197, %v501
        %v510 = vld [vmem:[#allocation3] sm:$0xff]
        %v511 = vld [vmem:[#allocation3 + $0x8] sm:$0xff]
        %v512 = vld [vmem:[#allocation3 + $0x10] sm:$0xff]
        %v513 = vld [vmem:[#allocation3 + $0x18] sm:$0xff]
        %v514 = vld [vmem:[#allocation3 + $0x20] sm:$0xff]
        %v515 = vld [vmem:[#allocation3 + $0x28] sm:$0xff]
        %v516 = vld [vmem:[#allocation3 + $0x30] sm:$0xff]
        %v517 = vld [vmem:[#allocation3 + $0x38] sm:$0xff]
        %v518 = vld [vmem:[#allocation3 + $0x40] sm:$0xff]
        %v519 = vld [vmem:[#allocation3 + $0x48] sm:$0xff]
        %v520 = vld [vmem:[#allocation3 + $0x50] sm:$0xff]
        %v521 = vld [vmem:[#allocation3 + $0x58] sm:$0xff]
        %v522 = vld [vmem:[#allocation3 + $0x60] sm:$0xff]
        %v523 = vld [vmem:[#allocation3 + $0x68] sm:$0xff]
        %v524 = vld [vmem:[#allocation3 + $0x70] sm:$0xff]
        %v525 = vld [vmem:[#allocation3 + $0x78] sm:$0xff]
        %v526 = vld [vmem:[#allocation3 + $0x80] sm:$0xff]
        %v527 = vld [vmem:[#allocation3 + $0x88] sm:$0xff]
        %v528 = vld [vmem:[#allocation3 + $0x90] sm:$0xff]
        %v529 = vld [vmem:[#allocation3 + $0x98] sm:$0xff]
        %v530 = vld [vmem:[#allocation3 + $0xa0] sm:$0xff]
        %v531 = vld [vmem:[#allocation3 + $0xa8] sm:$0xff]
        %v532 = vld [vmem:[#allocation3 + $0xb0] sm:$0xff]
        %v533 = vld [vmem:[#allocation3 + $0xb8] sm:$0xff]
        %v534 = vld [vmem:[#allocation3 + $0xc0] sm:$0xff]
        %v535 = vld [vmem:[#allocation3 + $0xc8] sm:$0xff]
        %v536 = vld [vmem:[#allocation3 + $0xd0] sm:$0xff]
        %v537 = vld [vmem:[#allocation3 + $0xd8] sm:$0xff]
        %v538 = vld [vmem:[#allocation3 + $0xe0] sm:$0xff]
        %v539 = vld [vmem:[#allocation3 + $0xe8] sm:$0xff]
        %v540 = vld [vmem:[#allocation3 + $0xf0] sm:$0xff]
        %v541 = vld [vmem:[#allocation3 + $0xf8] sm:$0xff]
        %v542 = vld [vmem:[#allocation3 + $0x100] sm:$0xff]
        %v543 = vld [vmem:[#allocation3 + $0x108] sm:$0xff]
        %v544 = vld [vmem:[#allocation3 + $0x110] sm:$0xff]
        %v545 = vld [vmem:[#allocation3 + $0x118] sm:$0xff]
        %v546 = vld [vmem:[#allocation3 + $0x120] sm:$0xff]
        %v547 = vld [vmem:[#allocation3 + $0x128] sm:$0xff]
        %v548 = vld [vmem:[#allocation3 + $0x130] sm:$0xff]
        %v549 = vld [vmem:[#allocation3 + $0x138] sm:$0xff]
        %v550 = vpack.c.bf16 %v515, %v510
        %v551 = vpack.c.bf16 %v516, %v511
        %v552 = vpack.c.bf16 %v517, %v512
        %v553 = vpack.c.bf16 %v518, %v513
        %v554 = vpack.c.bf16 %v519, %v514
        %v555 = vpack.c.bf16 %v525, %v520
        %v556 = vpack.c.bf16 %v526, %v521
        %v557 = vpack.c.bf16 %v527, %v522
        %v558 = vpack.c.bf16 %v528, %v523
        %v559 = vpack.c.bf16 %v529, %v524
        %v560 = vpack.c.bf16 %v535, %v530
        %v561 = vpack.c.bf16 %v536, %v531
        %v562 = vpack.c.bf16 %v537, %v532
        %v563 = vpack.c.bf16 %v538, %v533
        %v564 = vpack.c.bf16 %v539, %v534
        %v565 = vpack.c.bf16 %v545, %v540
        %v566 = vpack.c.bf16 %v546, %v541
        %v567 = vpack.c.bf16 %v547, %v542
        %v568 = vpack.c.bf16 %v548, %v543
        %v569 = vpack.c.bf16 %v549, %v544
        %v570 = vld [vmem:[%s1] sm:$0xf]
        %v571 = vld [vmem:[%s1 + $0x4] sm:$0xf]
        %v572 = vld [vmem:[%s1 + $0x8] sm:$0xf]
        %v573 = vld [vmem:[%s1 + $0xc] sm:$0xf]
        %v574 = vld [vmem:[%s1 + $0x10] sm:$0xf]
        %v575 = vld [vmem:[%s1 + $0x14] sm:$0xf]
        %v576 = vld [vmem:[%s1 + $0x18] sm:$0xf]
        %v577 = vld [vmem:[%s1 + $0x1c] sm:$0xf]
        %v578 = vld [vmem:[%s1 + $0x20] sm:$0xf]
        %v579 = vld [vmem:[%s1 + $0x24] sm:$0xf]
        %v580 = vld [vmem:[%s1 + $0x28] sm:$0xf]
        %v581 = vld [vmem:[%s1 + $0x2c] sm:$0xf]
        %v582 = vld [vmem:[%s1 + $0x30] sm:$0xf]
        %v583 = vld [vmem:[%s1 + $0x34] sm:$0xf]
        %v584 = vld [vmem:[%s1 + $0x38] sm:$0xf]
        %v585 = vld [vmem:[%s1 + $0x3c] sm:$0xf]
        %v586 = vld [vmem:[%s1 + $0x40] sm:$0xf]
        %v587 = vld [vmem:[%s1 + $0x44] sm:$0xf]
        %v588 = vld [vmem:[%s1 + $0x48] sm:$0xf]
        %v589 = vld [vmem:[%s1 + $0x4c] sm:$0xf]
        %v590 = vld [vmem:[%s1 + $0x50] sm:$0xf]
        %v591 = vld [vmem:[%s1 + $0x54] sm:$0xf]
        %v592 = vld [vmem:[%s1 + $0x58] sm:$0xf]
        %v593 = vld [vmem:[%s1 + $0x5c] sm:$0xf]
        %v594 = vld [vmem:[%s1 + $0x60] sm:$0xf]
        %v595 = vld [vmem:[%s1 + $0x64] sm:$0xf]
        %v596 = vld [vmem:[%s1 + $0x68] sm:$0xf]
        %v597 = vld [vmem:[%s1 + $0x6c] sm:$0xf]
        %v598 = vld [vmem:[%s1 + $0x70] sm:$0xf]
        %v599 = vld [vmem:[%s1 + $0x74] sm:$0xf]
        %v600 = vld [vmem:[%s1 + $0x78] sm:$0xf]
        %v601 = vld [vmem:[%s1 + $0x7c] sm:$0xf]
        %v602 = vld [vmem:[%s1 + $0x80] sm:$0xf]
        %v603 = vld [vmem:[%s1 + $0x84] sm:$0xf]
        %v604 = vld [vmem:[%s1 + $0x88] sm:$0xf]
        %v605 = vld [vmem:[%s1 + $0x8c] sm:$0xf]
        %v606 = vld [vmem:[%s1 + $0x90] sm:$0xf]
        %v607 = vld [vmem:[%s1 + $0x94] sm:$0xf]
        %v608 = vld [vmem:[%s1 + $0x98] sm:$0xf]
        %v609 = vld [vmem:[%s1 + $0x9c] sm:$0xf]
        %v610 = vld [vmem:[%s1 + $0xa0] sm:$0xf]
        %v611 = vld [vmem:[%s1 + $0xa4] sm:$0xf]
        %v612 = vld [vmem:[%s1 + $0xa8] sm:$0xf]
        %v613 = vld [vmem:[%s1 + $0xac] sm:$0xf]
        %v614 = vld [vmem:[%s1 + $0xb0] sm:$0xf]
        %v615 = vld [vmem:[%s1 + $0xb4] sm:$0xf]
        %v616 = vld [vmem:[%s1 + $0xb8] sm:$0xf]
        %v617 = vld [vmem:[%s1 + $0xbc] sm:$0xf]
        %v618 = vld [vmem:[%s1 + $0xc0] sm:$0xf]
        %v619 = vld [vmem:[%s1 + $0xc4] sm:$0xf]
        %v620 = vld [vmem:[%s1 + $0xc8] sm:$0xf]
        %v621 = vld [vmem:[%s1 + $0xcc] sm:$0xf]
        %v622 = vld [vmem:[%s1 + $0xd0] sm:$0xf]
        %v623 = vld [vmem:[%s1 + $0xd4] sm:$0xf]
        %v624 = vld [vmem:[%s1 + $0xd8] sm:$0xf]
        %v625 = vld [vmem:[%s1 + $0xdc] sm:$0xf]
        %v626 = vld [vmem:[%s1 + $0xe0] sm:$0xf]
        %v627 = vld [vmem:[%s1 + $0xe4] sm:$0xf]
        %v628 = vld [vmem:[%s1 + $0xe8] sm:$0xf]
        %v629 = vld [vmem:[%s1 + $0xec] sm:$0xf]
        %v630 = vld [vmem:[%s1 + $0xf0] sm:$0xf]
        %v631 = vld [vmem:[%s1 + $0xf4] sm:$0xf]
        %v632 = vld [vmem:[%s1 + $0xf8] sm:$0xf]
        %v633 = vld [vmem:[%s1 + $0xfc] sm:$0xf]
        %v634 = vld [vmem:[%s1 + $0x100] sm:$0xf]
        %v635 = vld [vmem:[%s1 + $0x104] sm:$0xf]
        %v636 = vld [vmem:[%s1 + $0x108] sm:$0xf]
        %v637 = vld [vmem:[%s1 + $0x10c] sm:$0xf]
        %v638 = vld [vmem:[%s1 + $0x110] sm:$0xf]
        %v639 = vld [vmem:[%s1 + $0x114] sm:$0xf]
        %v640 = vld [vmem:[%s1 + $0x118] sm:$0xf]
        %v641 = vld [vmem:[%s1 + $0x11c] sm:$0xf]
        %v714 = vunpack.c.l.b16 %v570
        %v715 = vunpack.c.l.b16 %v571
        %v716 = vunpack.c.l.b16 %v572
        %v717 = vunpack.c.l.b16 %v573
        %v718 = vunpack.c.l.b16 %v574
        %v719 = vunpack.c.l.b16 %v575
        %v720 = vunpack.c.l.b16 %v576
        %v721 = vunpack.c.l.b16 %v577
        %v722 = vunpack.c.l.b16 %v578
        %v723 = vunpack.c.l.b16 %v579
        %v724 = vunpack.c.l.b16 %v580
        %v725 = vunpack.c.l.b16 %v581
        %v726 = vunpack.c.l.b16 %v582
        %v727 = vunpack.c.l.b16 %v583
        %v728 = vunpack.c.l.b16 %v584
        %v729 = vunpack.c.l.b16 %v585
        %v730 = vunpack.c.l.b16 %v586
        %v731 = vunpack.c.l.b16 %v587
        %v732 = vunpack.c.l.b16 %v588
        %v733 = vunpack.c.l.b16 %v589
        %v734 = vunpack.c.l.b16 %v590
        %v735 = vunpack.c.l.b16 %v591
        %v736 = vunpack.c.l.b16 %v592
        %v737 = vunpack.c.l.b16 %v593
        %v738 = vunpack.c.l.b16 %v594
        %v739 = vunpack.c.l.b16 %v595
        %v740 = vunpack.c.l.b16 %v596
        %v741 = vunpack.c.l.b16 %v597
        %v742 = vunpack.c.l.b16 %v598
        %v743 = vunpack.c.l.b16 %v599
        %v744 = vunpack.c.l.b16 %v600
        %v745 = vunpack.c.l.b16 %v601
        %v746 = vunpack.c.l.b16 %v602
        %v747 = vunpack.c.l.b16 %v603
        %v748 = vunpack.c.l.b16 %v604
        %v749 = vunpack.c.l.b16 %v605
        %v750 = vunpack.c.l.b16 %v606
        %v751 = vunpack.c.l.b16 %v607
        %v752 = vunpack.c.l.b16 %v608
        %v753 = vunpack.c.l.b16 %v609
        %v754 = vunpack.c.l.b16 %v610
        %v755 = vunpack.c.l.b16 %v611
        %v756 = vunpack.c.l.b16 %v612
        %v757 = vunpack.c.l.b16 %v613
        %v758 = vunpack.c.l.b16 %v614
        %v759 = vunpack.c.l.b16 %v615
        %v760 = vunpack.c.l.b16 %v616
        %v761 = vunpack.c.l.b16 %v617
        %v762 = vunpack.c.l.b16 %v618
        %v763 = vunpack.c.l.b16 %v619
        %v764 = vunpack.c.l.b16 %v620
        %v765 = vunpack.c.l.b16 %v621
        %v766 = vunpack.c.l.b16 %v622
        %v767 = vunpack.c.l.b16 %v623
        %v768 = vunpack.c.l.b16 %v624
        %v769 = vunpack.c.l.b16 %v625
        %v770 = vunpack.c.l.b16 %v626
        %v771 = vunpack.c.l.b16 %v627
        %v772 = vunpack.c.l.b16 %v628
        %v773 = vunpack.c.l.b16 %v629
        %v774 = vunpack.c.l.b16 %v630
        %v775 = vunpack.c.l.b16 %v631
        %v776 = vunpack.c.l.b16 %v632
        %v777 = vunpack.c.l.b16 %v633
        %v778 = vunpack.c.l.b16 %v634
        %v779 = vunpack.c.l.b16 %v635
        %v780 = vunpack.c.l.b16 %v636
        %v781 = vunpack.c.l.b16 %v637
        %v782 = vunpack.c.l.b16 %v638
        %v783 = vunpack.c.l.b16 %v639
        %v784 = vunpack.c.l.b16 %v640
        %v785 = vunpack.c.l.b16 %v641
        %v786 = vpack.c.b16 %v715, %v714
        %v787 = vpack.c.b16 %v717, %v716
        %v788 = vpack.c.b16 %v719, %v718
        %v789 = vpack.c.b16 %v721, %v720
        %v790 = vpack.c.b16 %v723, %v722
        %v791 = vpack.c.b16 %v725, %v724
        %v792 = vpack.c.b16 %v727, %v726
        %v793 = vpack.c.b16 %v729, %v728
        %v794 = vpack.c.b16 %v731, %v730
        %v795 = vpack.c.b16 %v733, %v732
        %v796 = vpack.c.b16 %v735, %v734
        %v797 = vpack.c.b16 %v737, %v736
        %v798 = vpack.c.b16 %v739, %v738
        %v799 = vpack.c.b16 %v741, %v740
        %v800 = vpack.c.b16 %v743, %v742
        %v801 = vpack.c.b16 %v745, %v744
        %v802 = vpack.c.b16 %v747, %v746
        %v803 = vpack.c.b16 %v749, %v748
        %v804 = vpack.c.b16 %v751, %v750
        %v805 = vpack.c.b16 %v753, %v752
        %v806 = vpack.c.b16 %v755, %v754
        %v807 = vpack.c.b16 %v757, %v756
        %v808 = vpack.c.b16 %v759, %v758
        %v809 = vpack.c.b16 %v761, %v760
        %v810 = vpack.c.b16 %v763, %v762
        %v811 = vpack.c.b16 %v765, %v764
        %v812 = vpack.c.b16 %v767, %v766
        %v813 = vpack.c.b16 %v769, %v768
        %v814 = vpack.c.b16 %v771, %v770
        %v815 = vpack.c.b16 %v773, %v772
        %v816 = vpack.c.b16 %v775, %v774
        %v817 = vpack.c.b16 %v777, %v776
        %v818 = vpack.c.b16 %v779, %v778
        %v819 = vpack.c.b16 %v781, %v780
        %v820 = vpack.c.b16 %v783, %v782
        %v821 = vpack.c.b16 %v785, %v784
        %v859 = vsel %vm197, %v554, 0
        %v862 = vsel %vm197, %v559, 0
        %v865 = vsel %vm197, %v564, 0
        %v868 = vsel %vm197, %v569, 0
        %870 = vmatpush.bf16.msra.mxu0 %v793
        %871 = vmatpush.bf16.msra.mxu0 %v792
        %872 = vmatpush.bf16.msra.mxu0 %v791
        %873 = vmatpush.bf16.msra.mxu0 %v790
        %874 = vmatpush.bf16.msra.mxu0 %v789
        %875 = vmatpush.bf16.msra.mxu0 %v788
        %876 = vmatpush.bf16.msra.mxu0 %v787
        %877 = vmatpush.bf16.msra.mxu0 %v786
        %878 = vmatmul.bf16.gmra.mxu0 %v550
        %v879 = vpop.f32.mrf.mxu0
        %v880 = vadd.f32 0.0, %v879
        %v881 = vpop.f32.mrf.mxu0
        %v882 = vadd.f32 0.0, %v881
        %883 = vmatmul.bf16.gmra.mxu0 %v555
        %v884 = vpop.f32.mrf.mxu0
        %v885 = vadd.f32 0.0, %v884
        %v886 = vpop.f32.mrf.mxu0
        %v887 = vadd.f32 0.0, %v886
        %888 = vmatmul.bf16.gmra.mxu0 %v560
        %v889 = vpop.f32.mrf.mxu0
        %v890 = vadd.f32 0.0, %v889
        %v891 = vpop.f32.mrf.mxu0
        %v892 = vadd.f32 0.0, %v891
        %893 = vmatmul.bf16.gmra.mxu0 %v565
        %v894 = vpop.f32.mrf.mxu0
        %v895 = vadd.f32 0.0, %v894
        %v896 = vpop.f32.mrf.mxu0
        %v897 = vadd.f32 0.0, %v896
        %898 = vdwg.mxu0
        %899 = vmatpush.bf16.msra.mxu0 %v801
        %900 = vmatpush.bf16.msra.mxu0 %v800
        %901 = vmatpush.bf16.msra.mxu0 %v799
        %902 = vmatpush.bf16.msra.mxu0 %v798
        %903 = vmatpush.bf16.msra.mxu0 %v797
        %904 = vmatpush.bf16.msra.mxu0 %v796
        %905 = vmatpush.bf16.msra.mxu0 %v795
        %906 = vmatpush.bf16.msra.mxu0 %v794
        %907 = vmatmul.bf16.gmra.mxu0 %v551
        %v908 = vpop.f32.mrf.mxu0
        %v909 = vadd.f32 %v880, %v908
        %v910 = vpop.f32.mrf.mxu0
        %v911 = vadd.f32 %v882, %v910
        %912 = vmatmul.bf16.gmra.mxu0 %v556
        %v913 = vpop.f32.mrf.mxu0
        %v914 = vadd.f32 %v885, %v913
        %v915 = vpop.f32.mrf.mxu0
        %v916 = vadd.f32 %v887, %v915
        %917 = vmatmul.bf16.gmra.mxu0 %v561
        %v918 = vpop.f32.mrf.mxu0
        %v919 = vadd.f32 %v890, %v918
        %v920 = vpop.f32.mrf.mxu0
        %v921 = vadd.f32 %v892, %v920
        %922 = vmatmul.bf16.gmra.mxu0 %v566
        %v923 = vpop.f32.mrf.mxu0
        %v924 = vadd.f32 %v895, %v923
        %v925 = vpop.f32.mrf.mxu0
        %v926 = vadd.f32 %v897, %v925
        %927 = vdwg.mxu0
        %928 = vmatpush.bf16.msra.mxu0 %v809
        %929 = vmatpush.bf16.msra.mxu0 %v808
        %930 = vmatpush.bf16.msra.mxu0 %v807
        %931 = vmatpush.bf16.msra.mxu0 %v806
        %932 = vmatpush.bf16.msra.mxu0 %v805
        %933 = vmatpush.bf16.msra.mxu0 %v804
        %934 = vmatpush.bf16.msra.mxu0 %v803
        %935 = vmatpush.bf16.msra.mxu0 %v802
        %936 = vmatmul.bf16.gmra.mxu0 %v552
        %v937 = vpop.f32.mrf.mxu0
        %v938 = vadd.f32 %v909, %v937
        %v939 = vpop.f32.mrf.mxu0
        %v940 = vadd.f32 %v911, %v939
        %941 = vmatmul.bf16.gmra.mxu0 %v557
        %v942 = vpop.f32.mrf.mxu0
        %v943 = vadd.f32 %v914, %v942
        %v944 = vpop.f32.mrf.mxu0
        %v945 = vadd.f32 %v916, %v944
        %946 = vmatmul.bf16.gmra.mxu0 %v562
        %v947 = vpop.f32.mrf.mxu0
        %v948 = vadd.f32 %v919, %v947
        %v949 = vpop.f32.mrf.mxu0
        %v950 = vadd.f32 %v921, %v949
        %951 = vmatmul.bf16.gmra.mxu0 %v567
        %v952 = vpop.f32.mrf.mxu0
        %v953 = vadd.f32 %v924, %v952
        %v954 = vpop.f32.mrf.mxu0
        %v955 = vadd.f32 %v926, %v954
        %956 = vdwg.mxu0
        %957 = vmatpush.bf16.msra.mxu0 %v817
        %958 = vmatpush.bf16.msra.mxu0 %v816
        %959 = vmatpush.bf16.msra.mxu0 %v815
        %960 = vmatpush.bf16.msra.mxu0 %v814
        %961 = vmatpush.bf16.msra.mxu0 %v813
        %962 = vmatpush.bf16.msra.mxu0 %v812
        %963 = vmatpush.bf16.msra.mxu0 %v811
        %964 = vmatpush.bf16.msra.mxu0 %v810
        %965 = vmatmul.bf16.gmra.mxu0 %v553
        %v966 = vpop.f32.mrf.mxu0
        %v967 = vadd.f32 %v938, %v966
        %v968 = vpop.f32.mrf.mxu0
        %v969 = vadd.f32 %v940, %v968
        %970 = vmatmul.bf16.gmra.mxu0 %v558
        %v971 = vpop.f32.mrf.mxu0
        %v972 = vadd.f32 %v943, %v971
        %v973 = vpop.f32.mrf.mxu0
        %v974 = vadd.f32 %v945, %v973
        %975 = vmatmul.bf16.gmra.mxu0 %v563
        %v976 = vpop.f32.mrf.mxu0
        %v977 = vadd.f32 %v948, %v976
        %v978 = vpop.f32.mrf.mxu0
        %v979 = vadd.f32 %v950, %v978
        %980 = vmatmul.bf16.gmra.mxu0 %v568
        %v981 = vpop.f32.mrf.mxu0
        %v982 = vadd.f32 %v953, %v981
        %v983 = vpop.f32.mrf.mxu0
        %v984 = vadd.f32 %v955, %v983
        %985 = vdwg.mxu0
        %986 = vmatpush.bf16.msra.mxu0 0
        %987 = vmatpush.bf16.msra.mxu0 0
        %988 = vmatpush.bf16.msra.mxu0 0
        %989 = vmatpush.bf16.msra.mxu0 0
        %990 = vmatpush.bf16.msra.mxu0 %v821
        %991 = vmatpush.bf16.msra.mxu0 %v820
        %992 = vmatpush.bf16.msra.mxu0 %v819
        %993 = vmatpush.bf16.msra.mxu0 %v818
        %994 = vmatmul.bf16.gmra.mxu0 %v859
        %v995 = vpop.f32.mrf.mxu0
        %v996 = vadd.f32 %v967, %v995
        %v997 = vpop.f32.mrf.mxu0
        %v998 = vadd.f32 %v969, %v997
        %999 = vmatmul.bf16.gmra.mxu0 %v862
        %v1000 = vpop.f32.mrf.mxu0
        %v1001 = vadd.f32 %v972, %v1000
        %v1002 = vpop.f32.mrf.mxu0
        %v1003 = vadd.f32 %v974, %v1002
        %1004 = vmatmul.bf16.gmra.mxu0 %v865
        %v1005 = vpop.f32.mrf.mxu0
        %v1006 = vadd.f32 %v977, %v1005
        %v1007 = vpop.f32.mrf.mxu0
        %v1008 = vadd.f32 %v979, %v1007
        %1009 = vmatmul.bf16.gmra.mxu0 %v868
        %v1010 = vpop.f32.mrf.mxu0
        %v1011 = vadd.f32 %v982, %v1010
        %v1012 = vpop.f32.mrf.mxu0
        %v1013 = vadd.f32 %v984, %v1012
        %1014 = vdwg.mxu0
        %v1015 = vld [vmem:[%s2] sm:$0x1]
        %v1017 = vperm.slane %v1015, 0
        %v1019 = vmul.f32 %v996, %v1017
        %v1020 = vmul.f32 %v998, %v1017
        %v1021 = vmul.f32 %v1001, %v1017
        %v1022 = vmul.f32 %v1003, %v1017
        %v1023 = vmul.f32 %v1006, %v1017
        %v1024 = vmul.f32 %v1008, %v1017
        %v1025 = vmul.f32 %v1011, %v1017
        %v1026 = vmul.f32 %v1013, %v1017
        %v1027 = vld [vmem:[%s3] sm:$0x1]
        %v1029 = vperm.slane %v1027, 0
        %v1031 = vadd.f32 %v1019, %v1029
        %v1032 = vadd.f32 %v1020, %v1029
        %v1033 = vadd.f32 %v1021, %v1029
        %v1034 = vadd.f32 %v1022, %v1029
        %v1035 = vadd.f32 %v1023, %v1029
        %v1036 = vadd.f32 %v1024, %v1029
        %v1037 = vadd.f32 %v1025, %v1029
        %v1038 = vadd.f32 %v1026, %v1029
        %1039 = vst.msk [vmem:[%s190] sm:$0xff] %vm197, %v1031
        %1040 = vst.msk [vmem:[%s190 + $0x8] sm:$0xff] %vm197, %v1032
        %1041 = vst.msk [vmem:[%s190 + $0x10] sm:$0xff] %vm197, %v1033
        %1042 = vst.msk [vmem:[%s190 + $0x18] sm:$0xff] %vm197, %v1034
        %1043 = vst.msk [vmem:[%s190 + $0x20] sm:$0xff] %vm197, %v1035
        %1044 = vst.msk [vmem:[%s190 + $0x28] sm:$0xff] %vm197, %v1036
        %1045 = vst.msk [vmem:[%s190 + $0x30] sm:$0xff] %vm197, %v1037
        %1046 = vst.msk [vmem:[%s190 + $0x38] sm:$0xff] %vm197, %v1038
        %s1047 = sand.u32 %s115, 1
        %s1048 = scalar_lea.sflag [#allocation5], %s1047
        %s1049 = sand.u32 %s115, 1
        %s1050 = smul.addr %s1049, 64
        %s1051 = scalar_lea.vmem [#allocation4], %s1050
        // Predicated region
        $region37: #{etfm_forward.13} parent=35 // pred_check
          %p1052 = pneg %p125
        $region38: #{etfm_forward.13} parent=35 // pred_check_branch
          %1054 = sbr.rel (%p1052) target = $region40
        $region39: #{etfm_forward.13} parent=35 // pred_region
          %1056 = vsyncadd %s1048, 0
          %s1057 = smul.addr %s18, 8
          %s1058 = smul.addr %s1057, 8
          %s1059 = scalar_lea.hbm %s4, %s1058
          %s1060 = sshll.u32 %s1051, 4
          %s1061 = int_to_ptr.vmem [resolvable:$true] %s1060
          %s1062 = sshll.u32 %s1059, 4
          %s1063 = int_to_ptr.hbm [resolvable:$true] %s1062
          %1068 = dma.vmem_to_hbm [thread:$0]  %s1061, 1024, %s1063, %s1048, 128, 128, 8
        $region40: #{etfm_forward.13} parent=35 // pred_fallthru
          _
      $region36: #{etfm_forward.13} parent=5 // pred_fallthru
        _
      %p1069 = scmp.le.s32.totalorder 2, %s13
      // Predicated region
      $region41: #{etfm_forward.13} parent=5 // pred_check
        %p1070 = pneg %p1069
      $region42: #{etfm_forward.13} parent=5 // pred_check_branch
        %1072 = sbr.rel (%p1070) target = $region44
      $region43: #{etfm_forward.13} parent=5 // pred_region
        %s1073 = ssub.s32 %s13, 2
        // Predicated region
        $region45: #{etfm_forward.13} parent=43 // pred_check
          %p1074 = pneg %p131
        $region46: #{etfm_forward.13} parent=43 // pred_check_branch
          %1076 = sbr.rel (%p1074) target = $region48
        $region47: #{etfm_forward.13} parent=43 // pred_region
          %s1077 = sand.u32 %s116, 1
          %s1078 = scalar_lea.sflag [#allocation5], %s1077
          %s1079 = sand.u32 %s116, 1
          %s1080 = smul.addr %s1079, 64
          %s1081 = scalar_lea.vmem [#allocation4], %s1080
          %1083 = dma.done %s1078, 1024
        $region48: #{etfm_forward.13} parent=43 // pred_fallthru
          _
      $region44: #{etfm_forward.13} parent=5 // pred_fallthru
        _
    $region6: #{etfm_forward.13} parent=1 // loop_footer
      %s17 = sadd.s32 1, %s13
    $region7: #{etfm_forward.13} parent=1 // loop_footer_branch
      %12 = sbr.rel target = $region3
    $region8: #{etfm_forward.13} parent=1 // loop_exit
      _
    %1084 = vsyncpa [#allocation5], 1
    %s1085 = scalar_lea.sflag [#allocation5], 1
    %1086 = vsyncpa %s1085, 1

</llo_original>
